<compile_context>
chip_gen: v5e
topology: v5e:2x2
jax: 0.10.0
libtpu: 0.0.40
codegen_flags: <defaults>
</compile_context>

<pallas_src>
import functools

import jax
import jax.numpy as jnp
from jax.experimental import pallas as pl
from jax.experimental.pallas import tpu as pltpu

BN_EPS = 1e-5
LRELU_SLOPE = 0.2          # standard DCGAN LeakyReLU slope
CN = 64

_VMEM_SPEC = pl.BlockSpec(memory_space=pltpu.MemorySpace.VMEM)
_COMPILER_PARAMS = pltpu.CompilerParams(vmem_limit_bytes=32 * 1024 * 1024)

# 4x4 / stride-2 / pad-1 conv decomposed over even/odd input phases:
# input index 2*o + k - 1 = 2*(o + m) + p  with per-tap parity p and offset m;
# with each phase map zero-padded by one ring, the window start is m + 1.
_TAP_PHASE = (1, 0, 1, 0)   # parity p for kernel tap k = 0..3
_TAP_START = (0, 1, 1, 2)   # m + 1   for kernel tap k = 0..3


# ---------------------------------------------------------------------------
# In-kernel helpers
# ---------------------------------------------------------------------------
def _bn_lrelu(y, gamma, beta):
    """Training-mode BatchNorm (biased batch stats) + LeakyReLU(0.2).

    Single-pass moments, reduced on the MXU with a ones matmul so the epilogue
    does not spend XLU/VPU slots on two sublane reductions."""
    r, oc = y.shape
    ones = jnp.ones((8, r), jnp.float32)          # 8 identical rows (MXU-friendly)
    moments = jnp.dot(ones, jnp.concatenate([y, y * y], axis=1),
                      preferred_element_type=jnp.float32)[:1] * (1.0 / r)
    mean = moments[:, :oc]
    var = moments[:, oc:] - mean * mean           # biased variance (PyTorch train)
    scale = gamma * jax.lax.rsqrt(var + BN_EPS)
    shift = beta - mean * scale
    yhat = y * scale + shift                      # single-FMA BN epilogue
    return jnp.maximum(yhat, LRELU_SLOPE * yhat)  # LeakyReLU, one VPU op


def _phase_pad(act, n, s):
    """Split a [n*s*s, C] activation (rows in (n, h, w) order) into 4 even/odd
    spatial phase maps, each zero-padded by one ring:
        phases[p][q][n, h', w', :] = act[n, 2h'+p, 2w'+q, :]
    Returned in bf16, ready for the MXU tap GEMMs."""
    sp = s // 2
    c = act.shape[-1]
    # de-interleave w parity (sublane axis), then h parity (leading axis)
    aw = act.reshape(n * s * sp, 2, c)
    cols = [aw[:, 0, :], aw[:, 1, :]]             # rows: (img, h, w')
    zr = jnp.zeros((n, 1, sp, c), jnp.bfloat16)
    zc = jnp.zeros((n, sp + 2, 1, c), jnp.bfloat16)
    phases = []
    for p in range(2):
        prow = []
        for q in range(2):
            ah = cols[q].reshape(n * sp, 2, sp, c)          # (img*h', p, w', c)
            ph = ah[:, p, :, :].reshape(n, sp, sp, c).astype(jnp.bfloat16)
            ph = jnp.concatenate([zr, ph, zr], axis=1)      # pad h'
            ph = jnp.concatenate([zc, ph, zc], axis=2)      # pad w'
            prow.append(ph)
        phases.append(prow)
    return phases


def _conv4x4_s2(phases, w_ref, n, so, oc):
    """4x4 / stride-2 / pad-1 conv as 16 accumulated sub-GEMMs over statically
    shifted contiguous windows of the padded phase maps.  Output rows are in
    (n, oh, ow) order; accumulation in f32."""
    c = phases[0][0].shape[-1]
    y = jnp.zeros((n * so * so, oc), jnp.float32)
    for ki in range(4):
        p, rs = _TAP_PHASE[ki], _TAP_START[ki]
        for kj in range(4):
            q, cs = _TAP_PHASE[kj], _TAP_START[kj]
            win = phases[p][q][:, rs:rs + so, cs:cs + so, :]
            y = y + jnp.dot(win.reshape(n * so * so, c), w_ref[ki * 4 + kj],
                            preferred_element_type=jnp.float32)
    return y


# ---------------------------------------------------------------------------
# The fused kernel
# ---------------------------------------------------------------------------
def _dcgan_disc_kernel(p1_ref, w1_ref, g1_ref, b1_ref,
                       w2_ref, g2_ref, b2_ref,
                       w3_ref, g3_ref, b3_ref,
                       w4_ref, o_ref, *, n, s1):
    s2, s3 = s1 // 2, s1 // 4
    c2, c3 = w2_ref.shape[2], w3_ref.shape[2]

    # layer 1: prebuilt lane-aligned patches [n*s1*s1, 128] @ [128, OC(pad 128)]
    y1 = jnp.dot(p1_ref[...], w1_ref[...], preferred_element_type=jnp.float32)
    a1 = _bn_lrelu(y1, g1_ref[...], b1_ref[...])          # padded lanes stay 0

    # layer 2: in-kernel im2col (phase windows), 64(+pad) -> 128 over s2 x s2
    a2 = _bn_lrelu(_conv4x4_s2(_phase_pad(a1, n, s1), w2_ref, n, s2, c2),
                   g2_ref[...], b2_ref[...])

    # layer 3: 128 -> 256 over s3 x s3
    a3 = _bn_lrelu(_conv4x4_s2(_phase_pad(a2, n, s2), w3_ref, n, s3, c3),
                   g3_ref[...], b3_ref[...])

    # head: 4x4 conv (bias=False per spec) + sigmoid, fused.  w4 rows are
    # matched to the (oh, ow) row order of a3, so the conv is a broadcasted
    # elementwise mul + per-image reduce.
    prod = a3.reshape(n, s3 * s3, c3) * w4_ref[...][None, :, :]
    per_ch = jnp.sum(prod, axis=1)                        # (n, C3)
    logits = jnp.sum(per_ch, axis=1, keepdims=True)       # (n, 1)
    o_ref[...] = jax.nn.sigmoid(logits)


# ---------------------------------------------------------------------------
# JAX glue: layer-1 im2col (lane-aligned) + weight reshapes
# ---------------------------------------------------------------------------
def _im2col_nhwc(x, kh, kw, stride, pad):
    # x: [N, H, W, C] -> [N*OH*OW, KH*KW*C] (tap-major, channel-minor columns)
    if pad > 0:
        x = jnp.pad(x, ((0, 0), (pad, pad), (pad, pad), (0, 0)))
    n, h, w, c = x.shape
    oh = (h - kh) // stride + 1
    ow = (w - kw) // stride + 1
    taps = []
    for i in range(kh):
        for j in range(kw):
            taps.append(x[:, i:i + stride * oh:stride, j:j + stride * ow:stride, :])
    p = jnp.stack(taps, axis=3)                           # [N, OH, OW, KH*KW, C]
    return p.reshape(n * oh * ow, kh * kw * c)


def _conv_w_taps(wt, c_pad=None, oc_pad=None):
    # PyTorch [OC, C, KH, KW] -> per-tap matrices [KH*KW, C(_pad), OC(_pad)]
    oc, c, kh, kw = wt.shape
    if c_pad is not None and c_pad > c:
        wt = jnp.pad(wt, ((0, 0), (0, c_pad - c), (0, 0), (0, 0)))
        c = c_pad
    m = wt.transpose(2, 3, 1, 0).reshape(kh * kw, c, oc)
    if oc_pad is not None and oc_pad > oc:
        m = jnp.pad(m, ((0, 0), (0, 0), (0, oc_pad - oc)))
    return m


def dcgan_discriminator(x, params):
    # 'gan' path: 3x (conv4x4 s2 p1, bias=False, BN, LeakyReLU) +
    #             conv4x4 s1 p0 (bias=False) + sigmoid.   x: [N, 3, H, W] NCHW.
    n, cin, h, w = x.shape
    assert h == w and h == 32, "4x4 head conv expects a 32x32 input (32->16->8->4->1)"
    s1 = h // 2

    # lane-dense NHWC, channel pad 3->8 (K = 4*4*8 = 128), bf16 once
    xh = jnp.transpose(x, (0, 2, 3, 1))
    xh = jnp.pad(xh, ((0, 0), (0, 0), (0, 0), (0, 8 - cin))).astype(jnp.bfloat16)
    p1 = _im2col_nhwc(xh, 4, 4, 2, 1)                                   # [n*s1*s1, 128]

    # layer-1 weight as a flat GEMM matrix (tap-major, channel-minor rows),
    # OC zero-padded 64 -> 128 so the layer-1 output block is full-lane.
    w1 = _conv_w_taps(params["w1"], c_pad=8, oc_pad=128)
    w1 = w1.reshape(16 * 8, 128).astype(jnp.bfloat16)                   # [128, 128]
    g1 = jnp.pad(params["g1"], ((0, 0), (0, 128 - CN)), constant_values=1.0)
    b1 = jnp.pad(params["b1"], ((0, 0), (0, 128 - CN)))

    w2 = _conv_w_taps(params["w2"], c_pad=128).astype(jnp.bfloat16)     # [16, 128, 128]
    w3 = _conv_w_taps(params["w3"]).astype(jnp.bfloat16)                # [16, 128, 256]
    # head weight row-matched to the (oh, ow) row order of the layer-3 output
    w4 = params["w4"][0].transpose(1, 2, 0).reshape(16, CN * 4).astype(jnp.float32)

    out = pl.pallas_call(
        functools.partial(_dcgan_disc_kernel, n=n, s1=s1),
        out_shape=jax.ShapeDtypeStruct((n, 1), jnp.float32),
        in_specs=[_VMEM_SPEC] * 11,
        out_specs=_VMEM_SPEC,
        compiler_params=_COMPILER_PARAMS,
    )(p1, w1, g1, b1,
      w2, params["g2"], params["b2"],
      w3, params["g3"], params["b3"],
      w4)
    return out.reshape(n, 1, 1, 1)


def init_params(key):
    k = jax.random.split(key, 4)

    def w_init(kk, oc, ic):
        return (0.02 * jax.random.normal(kk, (oc, ic, 4, 4))).astype(jnp.float32)

    return {
        "w1": w_init(k[0], CN, 3),
        "w2": w_init(k[1], CN * 2, CN),
        "w3": w_init(k[2], CN * 4, CN * 2),
        "w4": w_init(k[3], 1, CN * 4),
        # BatchNorm affine params at PyTorch defaults (weight=1, bias=0).
        "g1": jnp.ones((1, CN), jnp.float32), "b1": jnp.zeros((1, CN), jnp.float32),
        "g2": jnp.ones((1, CN * 2), jnp.float32), "b2": jnp.zeros((1, CN * 2), jnp.float32),
        "g3": jnp.ones((1, CN * 4), jnp.float32), "b3": jnp.zeros((1, CN * 4), jnp.float32),
    }


if __name__ == "__main__":
    key = jax.random.PRNGKey(0)
    kx, kp = jax.random.split(key)
    # 3-channel 32x32 input so the 4x4 head collapses spatial: 32->16->8->4->1.
    x = jax.random.normal(kx, (2, 3, 32, 32), dtype=jnp.float32)
    params = init_params(kp)

    out = jax.jit(dcgan_discriminator)(x, params)
    out = jax.block_until_ready(out)

    assert out.shape == (2, 1, 1, 1), out.shape
    assert bool(jnp.all(jnp.isfinite(out)))
    assert bool(jnp.all((out >= 0.0) & (out <= 1.0)))  # sigmoid head
    print("KERNEL_OK")
</pallas_src>

<mosaic_0001>
module attributes {stable_mosaic.version = 11 : i64} {
  func.func @_dcgan_disc_kernel(%arg0: memref<512x128xbf16, #tpu.memory_space<vmem>>, %arg1: memref<128x128xbf16, #tpu.memory_space<vmem>>, %arg2: memref<1x128xf32, #tpu.memory_space<vmem>>, %arg3: memref<1x128xf32, #tpu.memory_space<vmem>>, %arg4: memref<16x128x128xbf16, #tpu.memory_space<vmem>>, %arg5: memref<1x128xf32, #tpu.memory_space<vmem>>, %arg6: memref<1x128xf32, #tpu.memory_space<vmem>>, %arg7: memref<16x128x256xbf16, #tpu.memory_space<vmem>>, %arg8: memref<1x256xf32, #tpu.memory_space<vmem>>, %arg9: memref<1x256xf32, #tpu.memory_space<vmem>>, %arg10: memref<16x256xf32, #tpu.memory_space<vmem>>, %arg11: memref<2x1xf32, #tpu.memory_space<vmem>>) attributes {dimension_semantics = [], scalar_prefetch = 0 : i64, scratch_operands = 0 : i64, tpu.core_type = #tpu.core_type<tc>} {
    %c0 = arith.constant 0 : index
    %c0_0 = arith.constant 0 : index
    %0 = vector.load %arg0[%c0, %c0_0] : memref<512x128xbf16, #tpu.memory_space<vmem>>, vector<512x128xbf16>
    %c0_1 = arith.constant 0 : index
    %c0_2 = arith.constant 0 : index
    %1 = vector.load %arg1[%c0_1, %c0_2] : memref<128x128xbf16, #tpu.memory_space<vmem>>, vector<128x128xbf16>
    %cst = arith.constant dense<0.000000e+00> : vector<512x128xf32>
    %2 = tpu.matmul %0, %1, %cst {dimension_numbers = #tpu.dot_dimension_numbers<[1], [0], [0], [1], [0, 0, 1, 1], [], []>} : vector<512x128xbf16>, vector<128x128xbf16>, vector<512x128xf32> -> vector<512x128xf32>
    %c0_3 = arith.constant 0 : index
    %c0_4 = arith.constant 0 : index
    %3 = vector.load %arg2[%c0_3, %c0_4] : memref<1x128xf32, #tpu.memory_space<vmem>>, vector<1x128xf32>
    %c0_5 = arith.constant 0 : index
    %c0_6 = arith.constant 0 : index
    %4 = vector.load %arg3[%c0_5, %c0_6] : memref<1x128xf32, #tpu.memory_space<vmem>>, vector<1x128xf32>
    %cst_7 = arith.constant 1.000000e+00 : f32
    %5 = vector.broadcast %cst_7 : f32 to vector<8x512xf32>
    %6 = arith.mulf %2, %2 : vector<512x128xf32>
    %7 = tpu.concatenate %2, %6 in 1 : vector<512x128xf32>, vector<512x128xf32> -> vector<512x256xf32>
    %cst_8 = arith.constant dense<0.000000e+00> : vector<8x256xf32>
    %8 = tpu.matmul %5, %7, %cst_8 {dimension_numbers = #tpu.dot_dimension_numbers<[1], [0], [0], [1], [0, 0, 1, 1], [], []>} : vector<8x512xf32>, vector<512x256xf32>, vector<8x256xf32> -> vector<8x256xf32>
    %9 = vector.extract_strided_slice %8 {offsets = [0, 0], sizes = [1, 256], strides = [1, 1]} : vector<8x256xf32> to vector<1x256xf32>
    %cst_9 = arith.constant 0.001953125 : f32
    %10 = vector.broadcast %cst_9 : f32 to vector<1x256xf32>
    %11 = arith.mulf %9, %10 : vector<1x256xf32>
    %12 = vector.extract_strided_slice %11 {offsets = [0, 0], sizes = [1, 128], strides = [1, 1]} : vector<1x256xf32> to vector<1x128xf32>
    %13 = vector.extract_strided_slice %11 {offsets = [0, 128], sizes = [1, 128], strides = [1, 1]} : vector<1x256xf32> to vector<1x128xf32>
    %14 = arith.mulf %12, %12 : vector<1x128xf32>
    %15 = arith.subf %13, %14 : vector<1x128xf32>
    %cst_10 = arith.constant 9.99999974E-6 : f32
    %16 = vector.broadcast %cst_10 : f32 to vector<1x128xf32>
    %17 = arith.addf %15, %16 : vector<1x128xf32>
    %18 = math.rsqrt %17 : vector<1x128xf32>
    %19 = arith.mulf %3, %18 : vector<1x128xf32>
    %20 = arith.mulf %12, %19 : vector<1x128xf32>
    %21 = arith.subf %4, %20 : vector<1x128xf32>
    %22 = vector.broadcast %19 : vector<1x128xf32> to vector<512x128xf32>
    %23 = arith.mulf %2, %22 : vector<512x128xf32>
    %24 = vector.broadcast %21 : vector<1x128xf32> to vector<512x128xf32>
    %25 = arith.addf %23, %24 : vector<512x128xf32>
    %cst_11 = arith.constant 2.000000e-01 : f32
    %26 = vector.broadcast %cst_11 : f32 to vector<512x128xf32>
    %27 = arith.mulf %26, %25 : vector<512x128xf32>
    %28 = arith.maximumf %25, %27 : vector<512x128xf32>
    %29 = vector.shape_cast %28 : vector<512x128xf32> to vector<256x2x128xf32>
    %30 = vector.extract_strided_slice %29 {offsets = [0, 0, 0], sizes = [256, 1, 128], strides = [1, 1, 1]} : vector<256x2x128xf32> to vector<256x1x128xf32>
    %31 = vector.shape_cast %30 : vector<256x1x128xf32> to vector<256x128xf32>
    %32 = vector.extract_strided_slice %29 {offsets = [0, 1, 0], sizes = [256, 1, 128], strides = [1, 1, 1]} : vector<256x2x128xf32> to vector<256x1x128xf32>
    %33 = vector.shape_cast %32 : vector<256x1x128xf32> to vector<256x128xf32>
    %cst_12 = arith.constant 0.000000e+00 : bf16
    %34 = vector.broadcast %cst_12 : bf16 to vector<2x1x8x128xbf16>
    %cst_13 = arith.constant 0.000000e+00 : bf16
    %35 = vector.broadcast %cst_13 : bf16 to vector<2x10x1x128xbf16>
    %36 = vector.shape_cast %31 : vector<256x128xf32> to vector<16x2x8x128xf32>
    %37 = vector.extract_strided_slice %36 {offsets = [0, 0, 0, 0], sizes = [16, 1, 8, 128], strides = [1, 1, 1, 1]} : vector<16x2x8x128xf32> to vector<16x1x8x128xf32>
    %38 = vector.shape_cast %37 : vector<16x1x8x128xf32> to vector<16x8x128xf32>
    %39 = vector.shape_cast %38 : vector<16x8x128xf32> to vector<2x8x8x128xf32>
    %40 = arith.truncf %39 : vector<2x8x8x128xf32> to vector<2x8x8x128xbf16>
    %41 = tpu.concatenate %34, %40, %34 in 1 : vector<2x1x8x128xbf16>, vector<2x8x8x128xbf16>, vector<2x1x8x128xbf16> -> vector<2x10x8x128xbf16>
    %42 = tpu.concatenate %35, %41, %35 in 2 : vector<2x10x1x128xbf16>, vector<2x10x8x128xbf16>, vector<2x10x1x128xbf16> -> vector<2x10x10x128xbf16>
    %43 = vector.shape_cast %33 : vector<256x128xf32> to vector<16x2x8x128xf32>
    %44 = vector.extract_strided_slice %43 {offsets = [0, 0, 0, 0], sizes = [16, 1, 8, 128], strides = [1, 1, 1, 1]} : vector<16x2x8x128xf32> to vector<16x1x8x128xf32>
    %45 = vector.shape_cast %44 : vector<16x1x8x128xf32> to vector<16x8x128xf32>
    %46 = vector.shape_cast %45 : vector<16x8x128xf32> to vector<2x8x8x128xf32>
    %47 = arith.truncf %46 : vector<2x8x8x128xf32> to vector<2x8x8x128xbf16>
    %48 = tpu.concatenate %34, %47, %34 in 1 : vector<2x1x8x128xbf16>, vector<2x8x8x128xbf16>, vector<2x1x8x128xbf16> -> vector<2x10x8x128xbf16>
    %49 = tpu.concatenate %35, %48, %35 in 2 : vector<2x10x1x128xbf16>, vector<2x10x8x128xbf16>, vector<2x10x1x128xbf16> -> vector<2x10x10x128xbf16>
    %50 = vector.shape_cast %31 : vector<256x128xf32> to vector<16x2x8x128xf32>
    %51 = vector.extract_strided_slice %50 {offsets = [0, 1, 0, 0], sizes = [16, 1, 8, 128], strides = [1, 1, 1, 1]} : vector<16x2x8x128xf32> to vector<16x1x8x128xf32>
    %52 = vector.shape_cast %51 : vector<16x1x8x128xf32> to vector<16x8x128xf32>
    %53 = vector.shape_cast %52 : vector<16x8x128xf32> to vector<2x8x8x128xf32>
    %54 = arith.truncf %53 : vector<2x8x8x128xf32> to vector<2x8x8x128xbf16>
    %55 = tpu.concatenate %34, %54, %34 in 1 : vector<2x1x8x128xbf16>, vector<2x8x8x128xbf16>, vector<2x1x8x128xbf16> -> vector<2x10x8x128xbf16>
    %56 = tpu.concatenate %35, %55, %35 in 2 : vector<2x10x1x128xbf16>, vector<2x10x8x128xbf16>, vector<2x10x1x128xbf16> -> vector<2x10x10x128xbf16>
    %57 = vector.shape_cast %33 : vector<256x128xf32> to vector<16x2x8x128xf32>
    %58 = vector.extract_strided_slice %57 {offsets = [0, 1, 0, 0], sizes = [16, 1, 8, 128], strides = [1, 1, 1, 1]} : vector<16x2x8x128xf32> to vector<16x1x8x128xf32>
    %59 = vector.shape_cast %58 : vector<16x1x8x128xf32> to vector<16x8x128xf32>
    %60 = vector.shape_cast %59 : vector<16x8x128xf32> to vector<2x8x8x128xf32>
    %61 = arith.truncf %60 : vector<2x8x8x128xf32> to vector<2x8x8x128xbf16>
    %62 = tpu.concatenate %34, %61, %34 in 1 : vector<2x1x8x128xbf16>, vector<2x8x8x128xbf16>, vector<2x1x8x128xbf16> -> vector<2x10x8x128xbf16>
    %63 = tpu.concatenate %35, %62, %35 in 2 : vector<2x10x1x128xbf16>, vector<2x10x8x128xbf16>, vector<2x10x1x128xbf16> -> vector<2x10x10x128xbf16>
    %cst_14 = arith.constant 0.000000e+00 : f32
    %64 = vector.broadcast %cst_14 : f32 to vector<128x128xf32>
    %65 = vector.extract_strided_slice %63 {offsets = [0, 0, 0, 0], sizes = [2, 8, 8, 128], strides = [1, 1, 1, 1]} : vector<2x10x10x128xbf16> to vector<2x8x8x128xbf16>
    %66 = vector.shape_cast %65 : vector<2x8x8x128xbf16> to vector<128x128xbf16>
    %c0_15 = arith.constant 0 : index
    %c0_16 = arith.constant 0 : index
    %c0_17 = arith.constant 0 : index
    %67 = vector.load %arg4[%c0_15, %c0_16, %c0_17] : memref<16x128x128xbf16, #tpu.memory_space<vmem>>, vector<1x128x128xbf16>
    %68 = vector.shape_cast %67 : vector<1x128x128xbf16> to vector<128x128xbf16>
    %cst_18 = arith.constant dense<0.000000e+00> : vector<128x128xf32>
    %69 = tpu.matmul %66, %68, %cst_18 {dimension_numbers = #tpu.dot_dimension_numbers<[1], [0], [0], [1], [0, 0, 1, 1], [], []>} : vector<128x128xbf16>, vector<128x128xbf16>, vector<128x128xf32> -> vector<128x128xf32>
    %70 = arith.addf %64, %69 : vector<128x128xf32>
    %71 = vector.extract_strided_slice %56 {offsets = [0, 0, 1, 0], sizes = [2, 8, 8, 128], strides = [1, 1, 1, 1]} : vector<2x10x10x128xbf16> to vector<2x8x8x128xbf16>
    %72 = vector.shape_cast %71 : vector<2x8x8x128xbf16> to vector<128x128xbf16>
    %c1 = arith.constant 1 : index
    %c0_19 = arith.constant 0 : index
    %c0_20 = arith.constant 0 : index
    %73 = vector.load %arg4[%c1, %c0_19, %c0_20] : memref<16x128x128xbf16, #tpu.memory_space<vmem>>, vector<1x128x128xbf16>
    %74 = vector.shape_cast %73 : vector<1x128x128xbf16> to vector<128x128xbf16>
    %cst_21 = arith.constant dense<0.000000e+00> : vector<128x128xf32>
    %75 = tpu.matmul %72, %74, %cst_21 {dimension_numbers = #tpu.dot_dimension_numbers<[1], [0], [0], [1], [0, 0, 1, 1], [], []>} : vector<128x128xbf16>, vector<128x128xbf16>, vector<128x128xf32> -> vector<128x128xf32>
    %76 = arith.addf %70, %75 : vector<128x128xf32>
    %77 = vector.extract_strided_slice %63 {offsets = [0, 0, 1, 0], sizes = [2, 8, 8, 128], strides = [1, 1, 1, 1]} : vector<2x10x10x128xbf16> to vector<2x8x8x128xbf16>
    %78 = vector.shape_cast %77 : vector<2x8x8x128xbf16> to vector<128x128xbf16>
    %c2 = arith.constant 2 : index
    %c0_22 = arith.constant 0 : index
    %c0_23 = arith.constant 0 : index
    %79 = vector.load %arg4[%c2, %c0_22, %c0_23] : memref<16x128x128xbf16, #tpu.memory_space<vmem>>, vector<1x128x128xbf16>
    %80 = vector.shape_cast %79 : vector<1x128x128xbf16> to vector<128x128xbf16>
    %cst_24 = arith.constant dense<0.000000e+00> : vector<128x128xf32>
    %81 = tpu.matmul %78, %80, %cst_24 {dimension_numbers = #tpu.dot_dimension_numbers<[1], [0], [0], [1], [0, 0, 1, 1], [], []>} : vector<128x128xbf16>, vector<128x128xbf16>, vector<128x128xf32> -> vector<128x128xf32>
    %82 = arith.addf %76, %81 : vector<128x128xf32>
    %83 = vector.extract_strided_slice %56 {offsets = [0, 0, 2, 0], sizes = [2, 8, 8, 128], strides = [1, 1, 1, 1]} : vector<2x10x10x128xbf16> to vector<2x8x8x128xbf16>
    %84 = vector.shape_cast %83 : vector<2x8x8x128xbf16> to vector<128x128xbf16>
    %c3 = arith.constant 3 : index
    %c0_25 = arith.constant 0 : index
    %c0_26 = arith.constant 0 : index
    %85 = vector.load %arg4[%c3, %c0_25, %c0_26] : memref<16x128x128xbf16, #tpu.memory_space<vmem>>, vector<1x128x128xbf16>
    %86 = vector.shape_cast %85 : vector<1x128x128xbf16> to vector<128x128xbf16>
    %cst_27 = arith.constant dense<0.000000e+00> : vector<128x128xf32>
    %87 = tpu.matmul %84, %86, %cst_27 {dimension_numbers = #tpu.dot_dimension_numbers<[1], [0], [0], [1], [0, 0, 1, 1], [], []>} : vector<128x128xbf16>, vector<128x128xbf16>, vector<128x128xf32> -> vector<128x128xf32>
    %88 = arith.addf %82, %87 : vector<128x128xf32>
    %89 = vector.extract_strided_slice %49 {offsets = [0, 1, 0, 0], sizes = [2, 8, 8, 128], strides = [1, 1, 1, 1]} : vector<2x10x10x128xbf16> to vector<2x8x8x128xbf16>
    %90 = vector.shape_cast %89 : vector<2x8x8x128xbf16> to vector<128x128xbf16>
    %c4 = arith.constant 4 : index
    %c0_28 = arith.constant 0 : index
    %c0_29 = arith.constant 0 : index
    %91 = vector.load %arg4[%c4, %c0_28, %c0_29] : memref<16x128x128xbf16, #tpu.memory_space<vmem>>, vector<1x128x128xbf16>
    %92 = vector.shape_cast %91 : vector<1x128x128xbf16> to vector<128x128xbf16>
    %cst_30 = arith.constant dense<0.000000e+00> : vector<128x128xf32>
    %93 = tpu.matmul %90, %92, %cst_30 {dimension_numbers = #tpu.dot_dimension_numbers<[1], [0], [0], [1], [0, 0, 1, 1], [], []>} : vector<128x128xbf16>, vector<128x128xbf16>, vector<128x128xf32> -> vector<128x128xf32>
    %94 = arith.addf %88, %93 : vector<128x128xf32>
    %95 = vector.extract_strided_slice %42 {offsets = [0, 1, 1, 0], sizes = [2, 8, 8, 128], strides = [1, 1, 1, 1]} : vector<2x10x10x128xbf16> to vector<2x8x8x128xbf16>
    %96 = vector.shape_cast %95 : vector<2x8x8x128xbf16> to vector<128x128xbf16>
    %c5 = arith.constant 5 : index
    %c0_31 = arith.constant 0 : index
    %c0_32 = arith.constant 0 : index
    %97 = vector.load %arg4[%c5, %c0_31, %c0_32] : memref<16x128x128xbf16, #tpu.memory_space<vmem>>, vector<1x128x128xbf16>
    %98 = vector.shape_cast %97 : vector<1x128x128xbf16> to vector<128x128xbf16>
    %cst_33 = arith.constant dense<0.000000e+00> : vector<128x128xf32>
    %99 = tpu.matmul %96, %98, %cst_33 {dimension_numbers = #tpu.dot_dimension_numbers<[1], [0], [0], [1], [0, 0, 1, 1], [], []>} : vector<128x128xbf16>, vector<128x128xbf16>, vector<128x128xf32> -> vector<128x128xf32>
    %100 = arith.addf %94, %99 : vector<128x128xf32>
    %101 = vector.extract_strided_slice %49 {offsets = [0, 1, 1, 0], sizes = [2, 8, 8, 128], strides = [1, 1, 1, 1]} : vector<2x10x10x128xbf16> to vector<2x8x8x128xbf16>
    %102 = vector.shape_cast %101 : vector<2x8x8x128xbf16> to vector<128x128xbf16>
    %c6 = arith.constant 6 : index
    %c0_34 = arith.constant 0 : index
    %c0_35 = arith.constant 0 : index
    %103 = vector.load %arg4[%c6, %c0_34, %c0_35] : memref<16x128x128xbf16, #tpu.memory_space<vmem>>, vector<1x128x128xbf16>
    %104 = vector.shape_cast %103 : vector<1x128x128xbf16> to vector<128x128xbf16>
    %cst_36 = arith.constant dense<0.000000e+00> : vector<128x128xf32>
    %105 = tpu.matmul %102, %104, %cst_36 {dimension_numbers = #tpu.dot_dimension_numbers<[1], [0], [0], [1], [0, 0, 1, 1], [], []>} : vector<128x128xbf16>, vector<128x128xbf16>, vector<128x128xf32> -> vector<128x128xf32>
    %106 = arith.addf %100, %105 : vector<128x128xf32>
    %107 = vector.extract_strided_slice %42 {offsets = [0, 1, 2, 0], sizes = [2, 8, 8, 128], strides = [1, 1, 1, 1]} : vector<2x10x10x128xbf16> to vector<2x8x8x128xbf16>
    %108 = vector.shape_cast %107 : vector<2x8x8x128xbf16> to vector<128x128xbf16>
    %c7 = arith.constant 7 : index
    %c0_37 = arith.constant 0 : index
    %c0_38 = arith.constant 0 : index
    %109 = vector.load %arg4[%c7, %c0_37, %c0_38] : memref<16x128x128xbf16, #tpu.memory_space<vmem>>, vector<1x128x128xbf16>
    %110 = vector.shape_cast %109 : vector<1x128x128xbf16> to vector<128x128xbf16>
    %cst_39 = arith.constant dense<0.000000e+00> : vector<128x128xf32>
    %111 = tpu.matmul %108, %110, %cst_39 {dimension_numbers = #tpu.dot_dimension_numbers<[1], [0], [0], [1], [0, 0, 1, 1], [], []>} : vector<128x128xbf16>, vector<128x128xbf16>, vector<128x128xf32> -> vector<128x128xf32>
    %112 = arith.addf %106, %111 : vector<128x128xf32>
    %113 = vector.extract_strided_slice %63 {offsets = [0, 1, 0, 0], sizes = [2, 8, 8, 128], strides = [1, 1, 1, 1]} : vector<2x10x10x128xbf16> to vector<2x8x8x128xbf16>
    %114 = vector.shape_cast %113 : vector<2x8x8x128xbf16> to vector<128x128xbf16>
    %c8 = arith.constant 8 : index
    %c0_40 = arith.constant 0 : index
    %c0_41 = arith.constant 0 : index
    %115 = vector.load %arg4[%c8, %c0_40, %c0_41] : memref<16x128x128xbf16, #tpu.memory_space<vmem>>, vector<1x128x128xbf16>
    %116 = vector.shape_cast %115 : vector<1x128x128xbf16> to vector<128x128xbf16>
    %cst_42 = arith.constant dense<0.000000e+00> : vector<128x128xf32>
    %117 = tpu.matmul %114, %116, %cst_42 {dimension_numbers = #tpu.dot_dimension_numbers<[1], [0], [0], [1], [0, 0, 1, 1], [], []>} : vector<128x128xbf16>, vector<128x128xbf16>, vector<128x128xf32> -> vector<128x128xf32>
    %118 = arith.addf %112, %117 : vector<128x128xf32>
    %119 = vector.extract_strided_slice %56 {offsets = [0, 1, 1, 0], sizes = [2, 8, 8, 128], strides = [1, 1, 1, 1]} : vector<2x10x10x128xbf16> to vector<2x8x8x128xbf16>
    %120 = vector.shape_cast %119 : vector<2x8x8x128xbf16> to vector<128x128xbf16>
    %c9 = arith.constant 9 : index
    %c0_43 = arith.constant 0 : index
    %c0_44 = arith.constant 0 : index
    %121 = vector.load %arg4[%c9, %c0_43, %c0_44] : memref<16x128x128xbf16, #tpu.memory_space<vmem>>, vector<1x128x128xbf16>
    %122 = vector.shape_cast %121 : vector<1x128x128xbf16> to vector<128x128xbf16>
    %cst_45 = arith.constant dense<0.000000e+00> : vector<128x128xf32>
    %123 = tpu.matmul %120, %122, %cst_45 {dimension_numbers = #tpu.dot_dimension_numbers<[1], [0], [0], [1], [0, 0, 1, 1], [], []>} : vector<128x128xbf16>, vector<128x128xbf16>, vector<128x128xf32> -> vector<128x128xf32>
    %124 = arith.addf %118, %123 : vector<128x128xf32>
    %125 = vector.extract_strided_slice %63 {offsets = [0, 1, 1, 0], sizes = [2, 8, 8, 128], strides = [1, 1, 1, 1]} : vector<2x10x10x128xbf16> to vector<2x8x8x128xbf16>
    %126 = vector.shape_cast %125 : vector<2x8x8x128xbf16> to vector<128x128xbf16>
    %c10 = arith.constant 10 : index
    %c0_46 = arith.constant 0 : index
    %c0_47 = arith.constant 0 : index
    %127 = vector.load %arg4[%c10, %c0_46, %c0_47] : memref<16x128x128xbf16, #tpu.memory_space<vmem>>, vector<1x128x128xbf16>
    %128 = vector.shape_cast %127 : vector<1x128x128xbf16> to vector<128x128xbf16>
    %cst_48 = arith.constant dense<0.000000e+00> : vector<128x128xf32>
    %129 = tpu.matmul %126, %128, %cst_48 {dimension_numbers = #tpu.dot_dimension_numbers<[1], [0], [0], [1], [0, 0, 1, 1], [], []>} : vector<128x128xbf16>, vector<128x128xbf16>, vector<128x128xf32> -> vector<128x128xf32>
    %130 = arith.addf %124, %129 : vector<128x128xf32>
    %131 = vector.extract_strided_slice %56 {offsets = [0, 1, 2, 0], sizes = [2, 8, 8, 128], strides = [1, 1, 1, 1]} : vector<2x10x10x128xbf16> to vector<2x8x8x128xbf16>
    %132 = vector.shape_cast %131 : vector<2x8x8x128xbf16> to vector<128x128xbf16>
    %c11 = arith.constant 11 : index
    %c0_49 = arith.constant 0 : index
    %c0_50 = arith.constant 0 : index
    %133 = vector.load %arg4[%c11, %c0_49, %c0_50] : memref<16x128x128xbf16, #tpu.memory_space<vmem>>, vector<1x128x128xbf16>
    %134 = vector.shape_cast %133 : vector<1x128x128xbf16> to vector<128x128xbf16>
    %cst_51 = arith.constant dense<0.000000e+00> : vector<128x128xf32>
    %135 = tpu.matmul %132, %134, %cst_51 {dimension_numbers = #tpu.dot_dimension_numbers<[1], [0], [0], [1], [0, 0, 1, 1], [], []>} : vector<128x128xbf16>, vector<128x128xbf16>, vector<128x128xf32> -> vector<128x128xf32>
    %136 = arith.addf %130, %135 : vector<128x128xf32>
    %137 = vector.extract_strided_slice %49 {offsets = [0, 2, 0, 0], sizes = [2, 8, 8, 128], strides = [1, 1, 1, 1]} : vector<2x10x10x128xbf16> to vector<2x8x8x128xbf16>
    %138 = vector.shape_cast %137 : vector<2x8x8x128xbf16> to vector<128x128xbf16>
    %c12 = arith.constant 12 : index
    %c0_52 = arith.constant 0 : index
    %c0_53 = arith.constant 0 : index
    %139 = vector.load %arg4[%c12, %c0_52, %c0_53] : memref<16x128x128xbf16, #tpu.memory_space<vmem>>, vector<1x128x128xbf16>
    %140 = vector.shape_cast %139 : vector<1x128x128xbf16> to vector<128x128xbf16>
    %cst_54 = arith.constant dense<0.000000e+00> : vector<128x128xf32>
    %141 = tpu.matmul %138, %140, %cst_54 {dimension_numbers = #tpu.dot_dimension_numbers<[1], [0], [0], [1], [0, 0, 1, 1], [], []>} : vector<128x128xbf16>, vector<128x128xbf16>, vector<128x128xf32> -> vector<128x128xf32>
    %142 = arith.addf %136, %141 : vector<128x128xf32>
    %143 = vector.extract_strided_slice %42 {offsets = [0, 2, 1, 0], sizes = [2, 8, 8, 128], strides = [1, 1, 1, 1]} : vector<2x10x10x128xbf16> to vector<2x8x8x128xbf16>
    %144 = vector.shape_cast %143 : vector<2x8x8x128xbf16> to vector<128x128xbf16>
    %c13 = arith.constant 13 : index
    %c0_55 = arith.constant 0 : index
    %c0_56 = arith.constant 0 : index
    %145 = vector.load %arg4[%c13, %c0_55, %c0_56] : memref<16x128x128xbf16, #tpu.memory_space<vmem>>, vector<1x128x128xbf16>
    %146 = vector.shape_cast %145 : vector<1x128x128xbf16> to vector<128x128xbf16>
    %cst_57 = arith.constant dense<0.000000e+00> : vector<128x128xf32>
    %147 = tpu.matmul %144, %146, %cst_57 {dimension_numbers = #tpu.dot_dimension_numbers<[1], [0], [0], [1], [0, 0, 1, 1], [], []>} : vector<128x128xbf16>, vector<128x128xbf16>, vector<128x128xf32> -> vector<128x128xf32>
    %148 = arith.addf %142, %147 : vector<128x128xf32>
    %149 = vector.extract_strided_slice %49 {offsets = [0, 2, 1, 0], sizes = [2, 8, 8, 128], strides = [1, 1, 1, 1]} : vector<2x10x10x128xbf16> to vector<2x8x8x128xbf16>
    %150 = vector.shape_cast %149 : vector<2x8x8x128xbf16> to vector<128x128xbf16>
    %c14 = arith.constant 14 : index
    %c0_58 = arith.constant 0 : index
    %c0_59 = arith.constant 0 : index
    %151 = vector.load %arg4[%c14, %c0_58, %c0_59] : memref<16x128x128xbf16, #tpu.memory_space<vmem>>, vector<1x128x128xbf16>
    %152 = vector.shape_cast %151 : vector<1x128x128xbf16> to vector<128x128xbf16>
    %cst_60 = arith.constant dense<0.000000e+00> : vector<128x128xf32>
    %153 = tpu.matmul %150, %152, %cst_60 {dimension_numbers = #tpu.dot_dimension_numbers<[1], [0], [0], [1], [0, 0, 1, 1], [], []>} : vector<128x128xbf16>, vector<128x128xbf16>, vector<128x128xf32> -> vector<128x128xf32>
    %154 = arith.addf %148, %153 : vector<128x128xf32>
    %155 = vector.extract_strided_slice %42 {offsets = [0, 2, 2, 0], sizes = [2, 8, 8, 128], strides = [1, 1, 1, 1]} : vector<2x10x10x128xbf16> to vector<2x8x8x128xbf16>
    %156 = vector.shape_cast %155 : vector<2x8x8x128xbf16> to vector<128x128xbf16>
    %c15 = arith.constant 15 : index
    %c0_61 = arith.constant 0 : index
    %c0_62 = arith.constant 0 : index
    %157 = vector.load %arg4[%c15, %c0_61, %c0_62] : memref<16x128x128xbf16, #tpu.memory_space<vmem>>, vector<1x128x128xbf16>
    %158 = vector.shape_cast %157 : vector<1x128x128xbf16> to vector<128x128xbf16>
    %cst_63 = arith.constant dense<0.000000e+00> : vector<128x128xf32>
    %159 = tpu.matmul %156, %158, %cst_63 {dimension_numbers = #tpu.dot_dimension_numbers<[1], [0], [0], [1], [0, 0, 1, 1], [], []>} : vector<128x128xbf16>, vector<128x128xbf16>, vector<128x128xf32> -> vector<128x128xf32>
    %160 = arith.addf %154, %159 : vector<128x128xf32>
    %c0_64 = arith.constant 0 : index
    %c0_65 = arith.constant 0 : index
    %161 = vector.load %arg5[%c0_64, %c0_65] : memref<1x128xf32, #tpu.memory_space<vmem>>, vector<1x128xf32>
    %c0_66 = arith.constant 0 : index
    %c0_67 = arith.constant 0 : index
    %162 = vector.load %arg6[%c0_66, %c0_67] : memref<1x128xf32, #tpu.memory_space<vmem>>, vector<1x128xf32>
    %cst_68 = arith.constant 1.000000e+00 : f32
    %163 = vector.broadcast %cst_68 : f32 to vector<8x128xf32>
    %164 = arith.mulf %160, %160 : vector<128x128xf32>
    %165 = tpu.concatenate %160, %164 in 1 : vector<128x128xf32>, vector<128x128xf32> -> vector<128x256xf32>
    %cst_69 = arith.constant dense<0.000000e+00> : vector<8x256xf32>
    %166 = tpu.matmul %163, %165, %cst_69 {dimension_numbers = #tpu.dot_dimension_numbers<[1], [0], [0], [1], [0, 0, 1, 1], [], []>} : vector<8x128xf32>, vector<128x256xf32>, vector<8x256xf32> -> vector<8x256xf32>
    %167 = vector.extract_strided_slice %166 {offsets = [0, 0], sizes = [1, 256], strides = [1, 1]} : vector<8x256xf32> to vector<1x256xf32>
    %cst_70 = arith.constant 7.812500e-03 : f32
    %168 = vector.broadcast %cst_70 : f32 to vector<1x256xf32>
    %169 = arith.mulf %167, %168 : vector<1x256xf32>
    %170 = vector.extract_strided_slice %169 {offsets = [0, 0], sizes = [1, 128], strides = [1, 1]} : vector<1x256xf32> to vector<1x128xf32>
    %171 = vector.extract_strided_slice %169 {offsets = [0, 128], sizes = [1, 128], strides = [1, 1]} : vector<1x256xf32> to vector<1x128xf32>
    %172 = arith.mulf %170, %170 : vector<1x128xf32>
    %173 = arith.subf %171, %172 : vector<1x128xf32>
    %cst_71 = arith.constant 9.99999974E-6 : f32
    %174 = vector.broadcast %cst_71 : f32 to vector<1x128xf32>
    %175 = arith.addf %173, %174 : vector<1x128xf32>
    %176 = math.rsqrt %175 : vector<1x128xf32>
    %177 = arith.mulf %161, %176 : vector<1x128xf32>
    %178 = arith.mulf %170, %177 : vector<1x128xf32>
    %179 = arith.subf %162, %178 : vector<1x128xf32>
    %180 = vector.broadcast %177 : vector<1x128xf32> to vector<128x128xf32>
    %181 = arith.mulf %160, %180 : vector<128x128xf32>
    %182 = vector.broadcast %179 : vector<1x128xf32> to vector<128x128xf32>
    %183 = arith.addf %181, %182 : vector<128x128xf32>
    %cst_72 = arith.constant 2.000000e-01 : f32
    %184 = vector.broadcast %cst_72 : f32 to vector<128x128xf32>
    %185 = arith.mulf %184, %183 : vector<128x128xf32>
    %186 = arith.maximumf %183, %185 : vector<128x128xf32>
    %187 = vector.shape_cast %186 : vector<128x128xf32> to vector<64x2x128xf32>
    %188 = vector.extract_strided_slice %187 {offsets = [0, 0, 0], sizes = [64, 1, 128], strides = [1, 1, 1]} : vector<64x2x128xf32> to vector<64x1x128xf32>
    %189 = vector.shape_cast %188 : vector<64x1x128xf32> to vector<64x128xf32>
    %190 = vector.extract_strided_slice %187 {offsets = [0, 1, 0], sizes = [64, 1, 128], strides = [1, 1, 1]} : vector<64x2x128xf32> to vector<64x1x128xf32>
    %191 = vector.shape_cast %190 : vector<64x1x128xf32> to vector<64x128xf32>
    %cst_73 = arith.constant 0.000000e+00 : bf16
    %192 = vector.broadcast %cst_73 : bf16 to vector<2x1x4x128xbf16>
    %cst_74 = arith.constant 0.000000e+00 : bf16
    %193 = vector.broadcast %cst_74 : bf16 to vector<2x6x1x128xbf16>
    %194 = vector.shape_cast %189 : vector<64x128xf32> to vector<8x2x4x128xf32>
    %195 = vector.extract_strided_slice %194 {offsets = [0, 0, 0, 0], sizes = [8, 1, 4, 128], strides = [1, 1, 1, 1]} : vector<8x2x4x128xf32> to vector<8x1x4x128xf32>
    %196 = vector.shape_cast %195 : vector<8x1x4x128xf32> to vector<8x4x128xf32>
    %197 = vector.shape_cast %196 : vector<8x4x128xf32> to vector<2x4x4x128xf32>
    %198 = arith.truncf %197 : vector<2x4x4x128xf32> to vector<2x4x4x128xbf16>
    %199 = tpu.concatenate %192, %198, %192 in 1 : vector<2x1x4x128xbf16>, vector<2x4x4x128xbf16>, vector<2x1x4x128xbf16> -> vector<2x6x4x128xbf16>
    %200 = tpu.concatenate %193, %199, %193 in 2 : vector<2x6x1x128xbf16>, vector<2x6x4x128xbf16>, vector<2x6x1x128xbf16> -> vector<2x6x6x128xbf16>
    %201 = vector.shape_cast %191 : vector<64x128xf32> to vector<8x2x4x128xf32>
    %202 = vector.extract_strided_slice %201 {offsets = [0, 0, 0, 0], sizes = [8, 1, 4, 128], strides = [1, 1, 1, 1]} : vector<8x2x4x128xf32> to vector<8x1x4x128xf32>
    %203 = vector.shape_cast %202 : vector<8x1x4x128xf32> to vector<8x4x128xf32>
    %204 = vector.shape_cast %203 : vector<8x4x128xf32> to vector<2x4x4x128xf32>
    %205 = arith.truncf %204 : vector<2x4x4x128xf32> to vector<2x4x4x128xbf16>
    %206 = tpu.concatenate %192, %205, %192 in 1 : vector<2x1x4x128xbf16>, vector<2x4x4x128xbf16>, vector<2x1x4x128xbf16> -> vector<2x6x4x128xbf16>
    %207 = tpu.concatenate %193, %206, %193 in 2 : vector<2x6x1x128xbf16>, vector<2x6x4x128xbf16>, vector<2x6x1x128xbf16> -> vector<2x6x6x128xbf16>
    %208 = vector.shape_cast %189 : vector<64x128xf32> to vector<8x2x4x128xf32>
    %209 = vector.extract_strided_slice %208 {offsets = [0, 1, 0, 0], sizes = [8, 1, 4, 128], strides = [1, 1, 1, 1]} : vector<8x2x4x128xf32> to vector<8x1x4x128xf32>
    %210 = vector.shape_cast %209 : vector<8x1x4x128xf32> to vector<8x4x128xf32>
    %211 = vector.shape_cast %210 : vector<8x4x128xf32> to vector<2x4x4x128xf32>
    %212 = arith.truncf %211 : vector<2x4x4x128xf32> to vector<2x4x4x128xbf16>
    %213 = tpu.concatenate %192, %212, %192 in 1 : vector<2x1x4x128xbf16>, vector<2x4x4x128xbf16>, vector<2x1x4x128xbf16> -> vector<2x6x4x128xbf16>
    %214 = tpu.concatenate %193, %213, %193 in 2 : vector<2x6x1x128xbf16>, vector<2x6x4x128xbf16>, vector<2x6x1x128xbf16> -> vector<2x6x6x128xbf16>
    %215 = vector.shape_cast %191 : vector<64x128xf32> to vector<8x2x4x128xf32>
    %216 = vector.extract_strided_slice %215 {offsets = [0, 1, 0, 0], sizes = [8, 1, 4, 128], strides = [1, 1, 1, 1]} : vector<8x2x4x128xf32> to vector<8x1x4x128xf32>
    %217 = vector.shape_cast %216 : vector<8x1x4x128xf32> to vector<8x4x128xf32>
    %218 = vector.shape_cast %217 : vector<8x4x128xf32> to vector<2x4x4x128xf32>
    %219 = arith.truncf %218 : vector<2x4x4x128xf32> to vector<2x4x4x128xbf16>
    %220 = tpu.concatenate %192, %219, %192 in 1 : vector<2x1x4x128xbf16>, vector<2x4x4x128xbf16>, vector<2x1x4x128xbf16> -> vector<2x6x4x128xbf16>
    %221 = tpu.concatenate %193, %220, %193 in 2 : vector<2x6x1x128xbf16>, vector<2x6x4x128xbf16>, vector<2x6x1x128xbf16> -> vector<2x6x6x128xbf16>
    %cst_75 = arith.constant 0.000000e+00 : f32
    %222 = vector.broadcast %cst_75 : f32 to vector<32x256xf32>
    %223 = vector.extract_strided_slice %221 {offsets = [0, 0, 0, 0], sizes = [2, 4, 4, 128], strides = [1, 1, 1, 1]} : vector<2x6x6x128xbf16> to vector<2x4x4x128xbf16>
    %224 = vector.shape_cast %223 : vector<2x4x4x128xbf16> to vector<32x128xbf16>
    %c0_76 = arith.constant 0 : index
    %c0_77 = arith.constant 0 : index
    %c0_78 = arith.constant 0 : index
    %225 = vector.load %arg7[%c0_76, %c0_77, %c0_78] : memref<16x128x256xbf16, #tpu.memory_space<vmem>>, vector<1x128x256xbf16>
    %226 = vector.shape_cast %225 : vector<1x128x256xbf16> to vector<128x256xbf16>
    %cst_79 = arith.constant dense<0.000000e+00> : vector<32x256xf32>
    %227 = tpu.matmul %224, %226, %cst_79 {dimension_numbers = #tpu.dot_dimension_numbers<[1], [0], [0], [1], [0, 0, 1, 1], [], []>} : vector<32x128xbf16>, vector<128x256xbf16>, vector<32x256xf32> -> vector<32x256xf32>
    %228 = arith.addf %222, %227 : vector<32x256xf32>
    %229 = vector.extract_strided_slice %214 {offsets = [0, 0, 1, 0], sizes = [2, 4, 4, 128], strides = [1, 1, 1, 1]} : vector<2x6x6x128xbf16> to vector<2x4x4x128xbf16>
    %230 = vector.shape_cast %229 : vector<2x4x4x128xbf16> to vector<32x128xbf16>
    %c1_80 = arith.constant 1 : index
    %c0_81 = arith.constant 0 : index
    %c0_82 = arith.constant 0 : index
    %231 = vector.load %arg7[%c1_80, %c0_81, %c0_82] : memref<16x128x256xbf16, #tpu.memory_space<vmem>>, vector<1x128x256xbf16>
    %232 = vector.shape_cast %231 : vector<1x128x256xbf16> to vector<128x256xbf16>
    %cst_83 = arith.constant dense<0.000000e+00> : vector<32x256xf32>
    %233 = tpu.matmul %230, %232, %cst_83 {dimension_numbers = #tpu.dot_dimension_numbers<[1], [0], [0], [1], [0, 0, 1, 1], [], []>} : vector<32x128xbf16>, vector<128x256xbf16>, vector<32x256xf32> -> vector<32x256xf32>
    %234 = arith.addf %228, %233 : vector<32x256xf32>
    %235 = vector.extract_strided_slice %221 {offsets = [0, 0, 1, 0], sizes = [2, 4, 4, 128], strides = [1, 1, 1, 1]} : vector<2x6x6x128xbf16> to vector<2x4x4x128xbf16>
    %236 = vector.shape_cast %235 : vector<2x4x4x128xbf16> to vector<32x128xbf16>
    %c2_84 = arith.constant 2 : index
    %c0_85 = arith.constant 0 : index
    %c0_86 = arith.constant 0 : index
    %237 = vector.load %arg7[%c2_84, %c0_85, %c0_86] : memref<16x128x256xbf16, #tpu.memory_space<vmem>>, vector<1x128x256xbf16>
    %238 = vector.shape_cast %237 : vector<1x128x256xbf16> to vector<128x256xbf16>
    %cst_87 = arith.constant dense<0.000000e+00> : vector<32x256xf32>
    %239 = tpu.matmul %236, %238, %cst_87 {dimension_numbers = #tpu.dot_dimension_numbers<[1], [0], [0], [1], [0, 0, 1, 1], [], []>} : vector<32x128xbf16>, vector<128x256xbf16>, vector<32x256xf32> -> vector<32x256xf32>
    %240 = arith.addf %234, %239 : vector<32x256xf32>
    %241 = vector.extract_strided_slice %214 {offsets = [0, 0, 2, 0], sizes = [2, 4, 4, 128], strides = [1, 1, 1, 1]} : vector<2x6x6x128xbf16> to vector<2x4x4x128xbf16>
    %242 = vector.shape_cast %241 : vector<2x4x4x128xbf16> to vector<32x128xbf16>
    %c3_88 = arith.constant 3 : index
    %c0_89 = arith.constant 0 : index
    %c0_90 = arith.constant 0 : index
    %243 = vector.load %arg7[%c3_88, %c0_89, %c0_90] : memref<16x128x256xbf16, #tpu.memory_space<vmem>>, vector<1x128x256xbf16>
    %244 = vector.shape_cast %243 : vector<1x128x256xbf16> to vector<128x256xbf16>
    %cst_91 = arith.constant dense<0.000000e+00> : vector<32x256xf32>
    %245 = tpu.matmul %242, %244, %cst_91 {dimension_numbers = #tpu.dot_dimension_numbers<[1], [0], [0], [1], [0, 0, 1, 1], [], []>} : vector<32x128xbf16>, vector<128x256xbf16>, vector<32x256xf32> -> vector<32x256xf32>
    %246 = arith.addf %240, %245 : vector<32x256xf32>
    %247 = vector.extract_strided_slice %207 {offsets = [0, 1, 0, 0], sizes = [2, 4, 4, 128], strides = [1, 1, 1, 1]} : vector<2x6x6x128xbf16> to vector<2x4x4x128xbf16>
    %248 = vector.shape_cast %247 : vector<2x4x4x128xbf16> to vector<32x128xbf16>
    %c4_92 = arith.constant 4 : index
    %c0_93 = arith.constant 0 : index
    %c0_94 = arith.constant 0 : index
    %249 = vector.load %arg7[%c4_92, %c0_93, %c0_94] : memref<16x128x256xbf16, #tpu.memory_space<vmem>>, vector<1x128x256xbf16>
    %250 = vector.shape_cast %249 : vector<1x128x256xbf16> to vector<128x256xbf16>
    %cst_95 = arith.constant dense<0.000000e+00> : vector<32x256xf32>
    %251 = tpu.matmul %248, %250, %cst_95 {dimension_numbers = #tpu.dot_dimension_numbers<[1], [0], [0], [1], [0, 0, 1, 1], [], []>} : vector<32x128xbf16>, vector<128x256xbf16>, vector<32x256xf32> -> vector<32x256xf32>
    %252 = arith.addf %246, %251 : vector<32x256xf32>
    %253 = vector.extract_strided_slice %200 {offsets = [0, 1, 1, 0], sizes = [2, 4, 4, 128], strides = [1, 1, 1, 1]} : vector<2x6x6x128xbf16> to vector<2x4x4x128xbf16>
    %254 = vector.shape_cast %253 : vector<2x4x4x128xbf16> to vector<32x128xbf16>
    %c5_96 = arith.constant 5 : index
    %c0_97 = arith.constant 0 : index
    %c0_98 = arith.constant 0 : index
    %255 = vector.load %arg7[%c5_96, %c0_97, %c0_98] : memref<16x128x256xbf16, #tpu.memory_space<vmem>>, vector<1x128x256xbf16>
    %256 = vector.shape_cast %255 : vector<1x128x256xbf16> to vector<128x256xbf16>
    %cst_99 = arith.constant dense<0.000000e+00> : vector<32x256xf32>
    %257 = tpu.matmul %254, %256, %cst_99 {dimension_numbers = #tpu.dot_dimension_numbers<[1], [0], [0], [1], [0, 0, 1, 1], [], []>} : vector<32x128xbf16>, vector<128x256xbf16>, vector<32x256xf32> -> vector<32x256xf32>
    %258 = arith.addf %252, %257 : vector<32x256xf32>
    %259 = vector.extract_strided_slice %207 {offsets = [0, 1, 1, 0], sizes = [2, 4, 4, 128], strides = [1, 1, 1, 1]} : vector<2x6x6x128xbf16> to vector<2x4x4x128xbf16>
    %260 = vector.shape_cast %259 : vector<2x4x4x128xbf16> to vector<32x128xbf16>
    %c6_100 = arith.constant 6 : index
    %c0_101 = arith.constant 0 : index
    %c0_102 = arith.constant 0 : index
    %261 = vector.load %arg7[%c6_100, %c0_101, %c0_102] : memref<16x128x256xbf16, #tpu.memory_space<vmem>>, vector<1x128x256xbf16>
    %262 = vector.shape_cast %261 : vector<1x128x256xbf16> to vector<128x256xbf16>
    %cst_103 = arith.constant dense<0.000000e+00> : vector<32x256xf32>
    %263 = tpu.matmul %260, %262, %cst_103 {dimension_numbers = #tpu.dot_dimension_numbers<[1], [0], [0], [1], [0, 0, 1, 1], [], []>} : vector<32x128xbf16>, vector<128x256xbf16>, vector<32x256xf32> -> vector<32x256xf32>
    %264 = arith.addf %258, %263 : vector<32x256xf32>
    %265 = vector.extract_strided_slice %200 {offsets = [0, 1, 2, 0], sizes = [2, 4, 4, 128], strides = [1, 1, 1, 1]} : vector<2x6x6x128xbf16> to vector<2x4x4x128xbf16>
    %266 = vector.shape_cast %265 : vector<2x4x4x128xbf16> to vector<32x128xbf16>
    %c7_104 = arith.constant 7 : index
    %c0_105 = arith.constant 0 : index
    %c0_106 = arith.constant 0 : index
    %267 = vector.load %arg7[%c7_104, %c0_105, %c0_106] : memref<16x128x256xbf16, #tpu.memory_space<vmem>>, vector<1x128x256xbf16>
    %268 = vector.shape_cast %267 : vector<1x128x256xbf16> to vector<128x256xbf16>
    %cst_107 = arith.constant dense<0.000000e+00> : vector<32x256xf32>
    %269 = tpu.matmul %266, %268, %cst_107 {dimension_numbers = #tpu.dot_dimension_numbers<[1], [0], [0], [1], [0, 0, 1, 1], [], []>} : vector<32x128xbf16>, vector<128x256xbf16>, vector<32x256xf32> -> vector<32x256xf32>
    %270 = arith.addf %264, %269 : vector<32x256xf32>
    %271 = vector.extract_strided_slice %221 {offsets = [0, 1, 0, 0], sizes = [2, 4, 4, 128], strides = [1, 1, 1, 1]} : vector<2x6x6x128xbf16> to vector<2x4x4x128xbf16>
    %272 = vector.shape_cast %271 : vector<2x4x4x128xbf16> to vector<32x128xbf16>
    %c8_108 = arith.constant 8 : index
    %c0_109 = arith.constant 0 : index
    %c0_110 = arith.constant 0 : index
    %273 = vector.load %arg7[%c8_108, %c0_109, %c0_110] : memref<16x128x256xbf16, #tpu.memory_space<vmem>>, vector<1x128x256xbf16>
    %274 = vector.shape_cast %273 : vector<1x128x256xbf16> to vector<128x256xbf16>
    %cst_111 = arith.constant dense<0.000000e+00> : vector<32x256xf32>
    %275 = tpu.matmul %272, %274, %cst_111 {dimension_numbers = #tpu.dot_dimension_numbers<[1], [0], [0], [1], [0, 0, 1, 1], [], []>} : vector<32x128xbf16>, vector<128x256xbf16>, vector<32x256xf32> -> vector<32x256xf32>
    %276 = arith.addf %270, %275 : vector<32x256xf32>
    %277 = vector.extract_strided_slice %214 {offsets = [0, 1, 1, 0], sizes = [2, 4, 4, 128], strides = [1, 1, 1, 1]} : vector<2x6x6x128xbf16> to vector<2x4x4x128xbf16>
    %278 = vector.shape_cast %277 : vector<2x4x4x128xbf16> to vector<32x128xbf16>
    %c9_112 = arith.constant 9 : index
    %c0_113 = arith.constant 0 : index
    %c0_114 = arith.constant 0 : index
    %279 = vector.load %arg7[%c9_112, %c0_113, %c0_114] : memref<16x128x256xbf16, #tpu.memory_space<vmem>>, vector<1x128x256xbf16>
    %280 = vector.shape_cast %279 : vector<1x128x256xbf16> to vector<128x256xbf16>
    %cst_115 = arith.constant dense<0.000000e+00> : vector<32x256xf32>
    %281 = tpu.matmul %278, %280, %cst_115 {dimension_numbers = #tpu.dot_dimension_numbers<[1], [0], [0], [1], [0, 0, 1, 1], [], []>} : vector<32x128xbf16>, vector<128x256xbf16>, vector<32x256xf32> -> vector<32x256xf32>
    %282 = arith.addf %276, %281 : vector<32x256xf32>
    %283 = vector.extract_strided_slice %221 {offsets = [0, 1, 1, 0], sizes = [2, 4, 4, 128], strides = [1, 1, 1, 1]} : vector<2x6x6x128xbf16> to vector<2x4x4x128xbf16>
    %284 = vector.shape_cast %283 : vector<2x4x4x128xbf16> to vector<32x128xbf16>
    %c10_116 = arith.constant 10 : index
    %c0_117 = arith.constant 0 : index
    %c0_118 = arith.constant 0 : index
    %285 = vector.load %arg7[%c10_116, %c0_117, %c0_118] : memref<16x128x256xbf16, #tpu.memory_space<vmem>>, vector<1x128x256xbf16>
    %286 = vector.shape_cast %285 : vector<1x128x256xbf16> to vector<128x256xbf16>
    %cst_119 = arith.constant dense<0.000000e+00> : vector<32x256xf32>
    %287 = tpu.matmul %284, %286, %cst_119 {dimension_numbers = #tpu.dot_dimension_numbers<[1], [0], [0], [1], [0, 0, 1, 1], [], []>} : vector<32x128xbf16>, vector<128x256xbf16>, vector<32x256xf32> -> vector<32x256xf32>
    %288 = arith.addf %282, %287 : vector<32x256xf32>
    %289 = vector.extract_strided_slice %214 {offsets = [0, 1, 2, 0], sizes = [2, 4, 4, 128], strides = [1, 1, 1, 1]} : vector<2x6x6x128xbf16> to vector<2x4x4x128xbf16>
    %290 = vector.shape_cast %289 : vector<2x4x4x128xbf16> to vector<32x128xbf16>
    %c11_120 = arith.constant 11 : index
    %c0_121 = arith.constant 0 : index
    %c0_122 = arith.constant 0 : index
    %291 = vector.load %arg7[%c11_120, %c0_121, %c0_122] : memref<16x128x256xbf16, #tpu.memory_space<vmem>>, vector<1x128x256xbf16>
    %292 = vector.shape_cast %291 : vector<1x128x256xbf16> to vector<128x256xbf16>
    %cst_123 = arith.constant dense<0.000000e+00> : vector<32x256xf32>
    %293 = tpu.matmul %290, %292, %cst_123 {dimension_numbers = #tpu.dot_dimension_numbers<[1], [0], [0], [1], [0, 0, 1, 1], [], []>} : vector<32x128xbf16>, vector<128x256xbf16>, vector<32x256xf32> -> vector<32x256xf32>
    %294 = arith.addf %288, %293 : vector<32x256xf32>
    %295 = vector.extract_strided_slice %207 {offsets = [0, 2, 0, 0], sizes = [2, 4, 4, 128], strides = [1, 1, 1, 1]} : vector<2x6x6x128xbf16> to vector<2x4x4x128xbf16>
    %296 = vector.shape_cast %295 : vector<2x4x4x128xbf16> to vector<32x128xbf16>
    %c12_124 = arith.constant 12 : index
    %c0_125 = arith.constant 0 : index
    %c0_126 = arith.constant 0 : index
    %297 = vector.load %arg7[%c12_124, %c0_125, %c0_126] : memref<16x128x256xbf16, #tpu.memory_space<vmem>>, vector<1x128x256xbf16>
    %298 = vector.shape_cast %297 : vector<1x128x256xbf16> to vector<128x256xbf16>
    %cst_127 = arith.constant dense<0.000000e+00> : vector<32x256xf32>
    %299 = tpu.matmul %296, %298, %cst_127 {dimension_numbers = #tpu.dot_dimension_numbers<[1], [0], [0], [1], [0, 0, 1, 1], [], []>} : vector<32x128xbf16>, vector<128x256xbf16>, vector<32x256xf32> -> vector<32x256xf32>
    %300 = arith.addf %294, %299 : vector<32x256xf32>
    %301 = vector.extract_strided_slice %200 {offsets = [0, 2, 1, 0], sizes = [2, 4, 4, 128], strides = [1, 1, 1, 1]} : vector<2x6x6x128xbf16> to vector<2x4x4x128xbf16>
    %302 = vector.shape_cast %301 : vector<2x4x4x128xbf16> to vector<32x128xbf16>
    %c13_128 = arith.constant 13 : index
    %c0_129 = arith.constant 0 : index
    %c0_130 = arith.constant 0 : index
    %303 = vector.load %arg7[%c13_128, %c0_129, %c0_130] : memref<16x128x256xbf16, #tpu.memory_space<vmem>>, vector<1x128x256xbf16>
    %304 = vector.shape_cast %303 : vector<1x128x256xbf16> to vector<128x256xbf16>
    %cst_131 = arith.constant dense<0.000000e+00> : vector<32x256xf32>
    %305 = tpu.matmul %302, %304, %cst_131 {dimension_numbers = #tpu.dot_dimension_numbers<[1], [0], [0], [1], [0, 0, 1, 1], [], []>} : vector<32x128xbf16>, vector<128x256xbf16>, vector<32x256xf32> -> vector<32x256xf32>
    %306 = arith.addf %300, %305 : vector<32x256xf32>
    %307 = vector.extract_strided_slice %207 {offsets = [0, 2, 1, 0], sizes = [2, 4, 4, 128], strides = [1, 1, 1, 1]} : vector<2x6x6x128xbf16> to vector<2x4x4x128xbf16>
    %308 = vector.shape_cast %307 : vector<2x4x4x128xbf16> to vector<32x128xbf16>
    %c14_132 = arith.constant 14 : index
    %c0_133 = arith.constant 0 : index
    %c0_134 = arith.constant 0 : index
    %309 = vector.load %arg7[%c14_132, %c0_133, %c0_134] : memref<16x128x256xbf16, #tpu.memory_space<vmem>>, vector<1x128x256xbf16>
    %310 = vector.shape_cast %309 : vector<1x128x256xbf16> to vector<128x256xbf16>
    %cst_135 = arith.constant dense<0.000000e+00> : vector<32x256xf32>
    %311 = tpu.matmul %308, %310, %cst_135 {dimension_numbers = #tpu.dot_dimension_numbers<[1], [0], [0], [1], [0, 0, 1, 1], [], []>} : vector<32x128xbf16>, vector<128x256xbf16>, vector<32x256xf32> -> vector<32x256xf32>
    %312 = arith.addf %306, %311 : vector<32x256xf32>
    %313 = vector.extract_strided_slice %200 {offsets = [0, 2, 2, 0], sizes = [2, 4, 4, 128], strides = [1, 1, 1, 1]} : vector<2x6x6x128xbf16> to vector<2x4x4x128xbf16>
    %314 = vector.shape_cast %313 : vector<2x4x4x128xbf16> to vector<32x128xbf16>
    %c15_136 = arith.constant 15 : index
    %c0_137 = arith.constant 0 : index
    %c0_138 = arith.constant 0 : index
    %315 = vector.load %arg7[%c15_136, %c0_137, %c0_138] : memref<16x128x256xbf16, #tpu.memory_space<vmem>>, vector<1x128x256xbf16>
    %316 = vector.shape_cast %315 : vector<1x128x256xbf16> to vector<128x256xbf16>
    %cst_139 = arith.constant dense<0.000000e+00> : vector<32x256xf32>
    %317 = tpu.matmul %314, %316, %cst_139 {dimension_numbers = #tpu.dot_dimension_numbers<[1], [0], [0], [1], [0, 0, 1, 1], [], []>} : vector<32x128xbf16>, vector<128x256xbf16>, vector<32x256xf32> -> vector<32x256xf32>
    %318 = arith.addf %312, %317 : vector<32x256xf32>
    %c0_140 = arith.constant 0 : index
    %c0_141 = arith.constant 0 : index
    %319 = vector.load %arg8[%c0_140, %c0_141] : memref<1x256xf32, #tpu.memory_space<vmem>>, vector<1x256xf32>
    %c0_142 = arith.constant 0 : index
    %c0_143 = arith.constant 0 : index
    %320 = vector.load %arg9[%c0_142, %c0_143] : memref<1x256xf32, #tpu.memory_space<vmem>>, vector<1x256xf32>
    %cst_144 = arith.constant 1.000000e+00 : f32
    %321 = vector.broadcast %cst_144 : f32 to vector<8x32xf32>
    %322 = arith.mulf %318, %318 : vector<32x256xf32>
    %323 = tpu.concatenate %318, %322 in 1 : vector<32x256xf32>, vector<32x256xf32> -> vector<32x512xf32>
    %cst_145 = arith.constant dense<0.000000e+00> : vector<8x512xf32>
    %324 = tpu.matmul %321, %323, %cst_145 {dimension_numbers = #tpu.dot_dimension_numbers<[1], [0], [0], [1], [0, 0, 1, 1], [], []>} : vector<8x32xf32>, vector<32x512xf32>, vector<8x512xf32> -> vector<8x512xf32>
    %325 = vector.extract_strided_slice %324 {offsets = [0, 0], sizes = [1, 512], strides = [1, 1]} : vector<8x512xf32> to vector<1x512xf32>
    %cst_146 = arith.constant 3.125000e-02 : f32
    %326 = vector.broadcast %cst_146 : f32 to vector<1x512xf32>
    %327 = arith.mulf %325, %326 : vector<1x512xf32>
    %328 = vector.extract_strided_slice %327 {offsets = [0, 0], sizes = [1, 256], strides = [1, 1]} : vector<1x512xf32> to vector<1x256xf32>
    %329 = vector.extract_strided_slice %327 {offsets = [0, 256], sizes = [1, 256], strides = [1, 1]} : vector<1x512xf32> to vector<1x256xf32>
    %330 = arith.mulf %328, %328 : vector<1x256xf32>
    %331 = arith.subf %329, %330 : vector<1x256xf32>
    %cst_147 = arith.constant 9.99999974E-6 : f32
    %332 = vector.broadcast %cst_147 : f32 to vector<1x256xf32>
    %333 = arith.addf %331, %332 : vector<1x256xf32>
    %334 = math.rsqrt %333 : vector<1x256xf32>
    %335 = arith.mulf %319, %334 : vector<1x256xf32>
    %336 = arith.mulf %328, %335 : vector<1x256xf32>
    %337 = arith.subf %320, %336 : vector<1x256xf32>
    %338 = vector.broadcast %335 : vector<1x256xf32> to vector<32x256xf32>
    %339 = arith.mulf %318, %338 : vector<32x256xf32>
    %340 = vector.broadcast %337 : vector<1x256xf32> to vector<32x256xf32>
    %341 = arith.addf %339, %340 : vector<32x256xf32>
    %cst_148 = arith.constant 2.000000e-01 : f32
    %342 = vector.broadcast %cst_148 : f32 to vector<32x256xf32>
    %343 = arith.mulf %342, %341 : vector<32x256xf32>
    %344 = arith.maximumf %341, %343 : vector<32x256xf32>
    %345 = vector.shape_cast %344 : vector<32x256xf32> to vector<2x16x256xf32>
    %c0_149 = arith.constant 0 : index
    %c0_150 = arith.constant 0 : index
    %346 = vector.load %arg10[%c0_149, %c0_150] : memref<16x256xf32, #tpu.memory_space<vmem>>, vector<16x256xf32>
    %347 = vector.shape_cast %346 : vector<16x256xf32> to vector<1x16x256xf32>
    %348 = vector.broadcast %347 : vector<1x16x256xf32> to vector<2x16x256xf32>
    %349 = arith.mulf %345, %348 : vector<2x16x256xf32>
    %cst_151 = arith.constant dense<0.000000e+00> : vector<2x256xf32>
    %350 = vector.multi_reduction <add>, %349, %cst_151 [1] : vector<2x16x256xf32> to vector<2x256xf32>
    %cst_152 = arith.constant dense<0.000000e+00> : vector<2xf32>
    %351 = vector.multi_reduction <add>, %350, %cst_152 [1] : vector<2x256xf32> to vector<2xf32>
    %352 = vector.shape_cast %351 : vector<2xf32> to vector<2x1xf32>
    %353 = arith.negf %352 : vector<2x1xf32>
    %354 = math.exp %353 : vector<2x1xf32>
    %cst_153 = arith.constant 1.000000e+00 : f32
    %355 = vector.broadcast %cst_153 : f32 to vector<2x1xf32>
    %356 = arith.addf %355, %354 : vector<2x1xf32>
    %357 = arith.divf %355, %356 : vector<2x1xf32>
    %c0_154 = arith.constant 0 : index
    %c0_155 = arith.constant 0 : index
    %358 = vector.load %arg11[%c0_154, %c0_155] : memref<2x1xf32, #tpu.memory_space<vmem>>, vector<2x1xf32>
    tpu.vector_store %arg11[%c0_154, %c0_155], %357 {strides = array<i32>} : memref<2x1xf32, #tpu.memory_space<vmem>>, vector<2x1xf32>,
    return
  }
}

</mosaic_0001>

<llo_original>
// kernel: dcgan_discriminator.1
$region0: #{dcgan_discriminator.1}
  #allocation0 [shape = 'u32[]', space=smem, size = 0x4, offset = 0x4, fixed_abs, tag = 'smem constant byte address 0x4 - core index']
  #allocation1 [shape = 'u32[72,128]{1,0:T(1,128)}', space=vmem, size = 0x9000, scoped, tag = 'internal scratch']
  %s0 = inlined_call_operand.vmem [shape: bf16[512,128], index: 0, kind: input, shape index: {}]
  %s1 = inlined_call_operand.vmem [shape: bf16[128,128], index: 1, kind: input, shape index: {}]
  %s2 = inlined_call_operand.vmem [shape: f32[1,128], index: 2, kind: input, shape index: {}]
  %s3 = inlined_call_operand.vmem [shape: f32[1,128], index: 3, kind: input, shape index: {}]
  %s4 = inlined_call_operand.vmem [shape: bf16[16,128,128], index: 4, kind: input, shape index: {}]
  %s5 = inlined_call_operand.vmem [shape: f32[1,128], index: 5, kind: input, shape index: {}]
  %s6 = inlined_call_operand.vmem [shape: f32[1,128], index: 6, kind: input, shape index: {}]
  %s7 = inlined_call_operand.vmem [shape: bf16[16,128,256], index: 7, kind: input, shape index: {}]
  %s8 = inlined_call_operand.vmem [shape: f32[1,256], index: 8, kind: input, shape index: {}]
  %s9 = inlined_call_operand.vmem [shape: f32[1,256], index: 9, kind: input, shape index: {}]
  %s10 = inlined_call_operand.vmem [shape: f32[16,256], index: 10, kind: input, shape index: {}]
  %s11 = inlined_call_operand.vmem [shape: f32[2,1], index: 11, kind: output, shape index: {}]
  %s12 = sld [smem:[#allocation0]]
  $region54: #{dcgan_discriminator.1} parent=0
    _
  %s14 = ssub.s32 1, %s12
  %s15 = scalar_select 0, %s14, %s12
  // Predicated region
  $region2: #{dcgan_discriminator.1} parent=0 // pred_check
    _
  $region3: #{dcgan_discriminator.1} parent=0 // pred_check_branch
    %17 = sbr.rel (0) target = $region5
  $region4: #{dcgan_discriminator.1} parent=0 // pred_region
    _
  $region5: #{dcgan_discriminator.1} parent=0 // pred_fallthru
    _
  // Predicated region
  $region6: #{dcgan_discriminator.1} parent=0 // pred_check
    _
  $region7: #{dcgan_discriminator.1} parent=0 // pred_check_branch
    %19 = sbr.rel (0) target = $region9
  $region8: #{dcgan_discriminator.1} parent=0 // pred_region
    _
  $region9: #{dcgan_discriminator.1} parent=0 // pred_fallthru
    _
  // Predicated region
  $region10: #{dcgan_discriminator.1} parent=0 // pred_check
    _
  $region11: #{dcgan_discriminator.1} parent=0 // pred_check_branch
    %21 = sbr.rel (0) target = $region13
  $region12: #{dcgan_discriminator.1} parent=0 // pred_region
    _
  $region13: #{dcgan_discriminator.1} parent=0 // pred_fallthru
    _
  // Predicated region
  $region14: #{dcgan_discriminator.1} parent=0 // pred_check
    _
  $region15: #{dcgan_discriminator.1} parent=0 // pred_check_branch
    %23 = sbr.rel (0) target = $region17
  $region16: #{dcgan_discriminator.1} parent=0 // pred_region
    _
  $region17: #{dcgan_discriminator.1} parent=0 // pred_fallthru
    _
  // Predicated region
  $region18: #{dcgan_discriminator.1} parent=0 // pred_check
    _
  $region19: #{dcgan_discriminator.1} parent=0 // pred_check_branch
    %25 = sbr.rel (0) target = $region21
  $region20: #{dcgan_discriminator.1} parent=0 // pred_region
    _
  $region21: #{dcgan_discriminator.1} parent=0 // pred_fallthru
    _
  // Predicated region
  $region22: #{dcgan_discriminator.1} parent=0 // pred_check
    _
  $region23: #{dcgan_discriminator.1} parent=0 // pred_check_branch
    %27 = sbr.rel (0) target = $region25
  $region24: #{dcgan_discriminator.1} parent=0 // pred_region
    _
  $region25: #{dcgan_discriminator.1} parent=0 // pred_fallthru
    _
  // Predicated region
  $region26: #{dcgan_discriminator.1} parent=0 // pred_check
    _
  $region27: #{dcgan_discriminator.1} parent=0 // pred_check_branch
    %29 = sbr.rel (0) target = $region29
  $region28: #{dcgan_discriminator.1} parent=0 // pred_region
    _
  $region29: #{dcgan_discriminator.1} parent=0 // pred_fallthru
    _
  // Predicated region
  $region30: #{dcgan_discriminator.1} parent=0 // pred_check
    _
  $region31: #{dcgan_discriminator.1} parent=0 // pred_check_branch
    %31 = sbr.rel (0) target = $region33
  $region32: #{dcgan_discriminator.1} parent=0 // pred_region
    _
  $region33: #{dcgan_discriminator.1} parent=0 // pred_fallthru
    _
  // Predicated region
  $region34: #{dcgan_discriminator.1} parent=0 // pred_check
    _
  $region35: #{dcgan_discriminator.1} parent=0 // pred_check_branch
    %33 = sbr.rel (0) target = $region37
  $region36: #{dcgan_discriminator.1} parent=0 // pred_region
    _
  $region37: #{dcgan_discriminator.1} parent=0 // pred_fallthru
    _
  // Predicated region
  $region38: #{dcgan_discriminator.1} parent=0 // pred_check
    _
  $region39: #{dcgan_discriminator.1} parent=0 // pred_check_branch
    %35 = sbr.rel (0) target = $region41
  $region40: #{dcgan_discriminator.1} parent=0 // pred_region
    _
  $region41: #{dcgan_discriminator.1} parent=0 // pred_fallthru
    _
  // Predicated region
  $region42: #{dcgan_discriminator.1} parent=0 // pred_check
    _
  $region43: #{dcgan_discriminator.1} parent=0 // pred_check_branch
    %37 = sbr.rel (0) target = $region45
  $region44: #{dcgan_discriminator.1} parent=0 // pred_region
    _
  $region45: #{dcgan_discriminator.1} parent=0 // pred_fallthru
    _
  %v39 = vld [vmem:[%s0] sm:$0xf]
  %v40 = vld [vmem:[%s0 + $0x4] sm:$0xf]
  %v41 = vld [vmem:[%s0 + $0x8] sm:$0xf]
  %v42 = vld [vmem:[%s0 + $0xc] sm:$0xf]
  %v43 = vld [vmem:[%s0 + $0x10] sm:$0xf]
  %v44 = vld [vmem:[%s0 + $0x14] sm:$0xf]
  %v45 = vld [vmem:[%s0 + $0x18] sm:$0xf]
  %v46 = vld [vmem:[%s0 + $0x1c] sm:$0xf]
  %v47 = vld [vmem:[%s0 + $0x20] sm:$0xf]
  %v48 = vld [vmem:[%s0 + $0x24] sm:$0xf]
  %v49 = vld [vmem:[%s0 + $0x28] sm:$0xf]
  %v50 = vld [vmem:[%s0 + $0x2c] sm:$0xf]
  %v51 = vld [vmem:[%s0 + $0x30] sm:$0xf]
  %v52 = vld [vmem:[%s0 + $0x34] sm:$0xf]
  %v53 = vld [vmem:[%s0 + $0x38] sm:$0xf]
  %v54 = vld [vmem:[%s0 + $0x3c] sm:$0xf]
  %v55 = vld [vmem:[%s0 + $0x40] sm:$0xf]
  %v56 = vld [vmem:[%s0 + $0x44] sm:$0xf]
  %v57 = vld [vmem:[%s0 + $0x48] sm:$0xf]
  %v58 = vld [vmem:[%s0 + $0x4c] sm:$0xf]
  %v59 = vld [vmem:[%s0 + $0x50] sm:$0xf]
  %v60 = vld [vmem:[%s0 + $0x54] sm:$0xf]
  %v61 = vld [vmem:[%s0 + $0x58] sm:$0xf]
  %v62 = vld [vmem:[%s0 + $0x5c] sm:$0xf]
  %v63 = vld [vmem:[%s0 + $0x60] sm:$0xf]
  %v64 = vld [vmem:[%s0 + $0x64] sm:$0xf]
  %v65 = vld [vmem:[%s0 + $0x68] sm:$0xf]
  %v66 = vld [vmem:[%s0 + $0x6c] sm:$0xf]
  %v67 = vld [vmem:[%s0 + $0x70] sm:$0xf]
  %v68 = vld [vmem:[%s0 + $0x74] sm:$0xf]
  %v69 = vld [vmem:[%s0 + $0x78] sm:$0xf]
  %v70 = vld [vmem:[%s0 + $0x7c] sm:$0xf]
  %v71 = vld [vmem:[%s0 + $0x80] sm:$0xf]
  %v72 = vld [vmem:[%s0 + $0x84] sm:$0xf]
  %v73 = vld [vmem:[%s0 + $0x88] sm:$0xf]
  %v74 = vld [vmem:[%s0 + $0x8c] sm:$0xf]
  %v75 = vld [vmem:[%s0 + $0x90] sm:$0xf]
  %v76 = vld [vmem:[%s0 + $0x94] sm:$0xf]
  %v77 = vld [vmem:[%s0 + $0x98] sm:$0xf]
  %v78 = vld [vmem:[%s0 + $0x9c] sm:$0xf]
  %v79 = vld [vmem:[%s0 + $0xa0] sm:$0xf]
  %v80 = vld [vmem:[%s0 + $0xa4] sm:$0xf]
  %v81 = vld [vmem:[%s0 + $0xa8] sm:$0xf]
  %v82 = vld [vmem:[%s0 + $0xac] sm:$0xf]
  %v83 = vld [vmem:[%s0 + $0xb0] sm:$0xf]
  %v84 = vld [vmem:[%s0 + $0xb4] sm:$0xf]
  %v85 = vld [vmem:[%s0 + $0xb8] sm:$0xf]
  %v86 = vld [vmem:[%s0 + $0xbc] sm:$0xf]
  %v87 = vld [vmem:[%s0 + $0xc0] sm:$0xf]
  %v88 = vld [vmem:[%s0 + $0xc4] sm:$0xf]
  %v89 = vld [vmem:[%s0 + $0xc8] sm:$0xf]
  %v90 = vld [vmem:[%s0 + $0xcc] sm:$0xf]
  %v91 = vld [vmem:[%s0 + $0xd0] sm:$0xf]
  %v92 = vld [vmem:[%s0 + $0xd4] sm:$0xf]
  %v93 = vld [vmem:[%s0 + $0xd8] sm:$0xf]
  %v94 = vld [vmem:[%s0 + $0xdc] sm:$0xf]
  %v95 = vld [vmem:[%s0 + $0xe0] sm:$0xf]
  %v96 = vld [vmem:[%s0 + $0xe4] sm:$0xf]
  %v97 = vld [vmem:[%s0 + $0xe8] sm:$0xf]
  %v98 = vld [vmem:[%s0 + $0xec] sm:$0xf]
  %v99 = vld [vmem:[%s0 + $0xf0] sm:$0xf]
  %v100 = vld [vmem:[%s0 + $0xf4] sm:$0xf]
  %v101 = vld [vmem:[%s0 + $0xf8] sm:$0xf]
  %v102 = vld [vmem:[%s0 + $0xfc] sm:$0xf]
  %v103 = vld [vmem:[%s1] sm:$0xf]
  %v104 = vld [vmem:[%s1 + $0x4] sm:$0xf]
  %v105 = vld [vmem:[%s1 + $0x8] sm:$0xf]
  %v106 = vld [vmem:[%s1 + $0xc] sm:$0xf]
  %v107 = vld [vmem:[%s1 + $0x10] sm:$0xf]
  %v108 = vld [vmem:[%s1 + $0x14] sm:$0xf]
  %v109 = vld [vmem:[%s1 + $0x18] sm:$0xf]
  %v110 = vld [vmem:[%s1 + $0x1c] sm:$0xf]
  %v111 = vld [vmem:[%s1 + $0x20] sm:$0xf]
  %v112 = vld [vmem:[%s1 + $0x24] sm:$0xf]
  %v113 = vld [vmem:[%s1 + $0x28] sm:$0xf]
  %v114 = vld [vmem:[%s1 + $0x2c] sm:$0xf]
  %v115 = vld [vmem:[%s1 + $0x30] sm:$0xf]
  %v116 = vld [vmem:[%s1 + $0x34] sm:$0xf]
  %v117 = vld [vmem:[%s1 + $0x38] sm:$0xf]
  %v118 = vld [vmem:[%s1 + $0x3c] sm:$0xf]
  %v183 = vunpack.c.l.b16 %v39
  %v184 = vunpack.c.l.b16 %v40
  %v185 = vunpack.c.l.b16 %v41
  %v186 = vunpack.c.l.b16 %v42
  %v187 = vunpack.c.l.b16 %v43
  %v188 = vunpack.c.l.b16 %v44
  %v189 = vunpack.c.l.b16 %v45
  %v190 = vunpack.c.l.b16 %v46
  %v191 = vunpack.c.l.b16 %v47
  %v192 = vunpack.c.l.b16 %v48
  %v193 = vunpack.c.l.b16 %v49
  %v194 = vunpack.c.l.b16 %v50
  %v195 = vunpack.c.l.b16 %v51
  %v196 = vunpack.c.l.b16 %v52
  %v197 = vunpack.c.l.b16 %v53
  %v198 = vunpack.c.l.b16 %v54
  %v199 = vunpack.c.l.b16 %v55
  %v200 = vunpack.c.l.b16 %v56
  %v201 = vunpack.c.l.b16 %v57
  %v202 = vunpack.c.l.b16 %v58
  %v203 = vunpack.c.l.b16 %v59
  %v204 = vunpack.c.l.b16 %v60
  %v205 = vunpack.c.l.b16 %v61
  %v206 = vunpack.c.l.b16 %v62
  %v207 = vunpack.c.l.b16 %v63
  %v208 = vunpack.c.l.b16 %v64
  %v209 = vunpack.c.l.b16 %v65
  %v210 = vunpack.c.l.b16 %v66
  %v211 = vunpack.c.l.b16 %v67
  %v212 = vunpack.c.l.b16 %v68
  %v213 = vunpack.c.l.b16 %v69
  %v214 = vunpack.c.l.b16 %v70
  %v215 = vunpack.c.l.b16 %v71
  %v216 = vunpack.c.l.b16 %v72
  %v217 = vunpack.c.l.b16 %v73
  %v218 = vunpack.c.l.b16 %v74
  %v219 = vunpack.c.l.b16 %v75
  %v220 = vunpack.c.l.b16 %v76
  %v221 = vunpack.c.l.b16 %v77
  %v222 = vunpack.c.l.b16 %v78
  %v223 = vunpack.c.l.b16 %v79
  %v224 = vunpack.c.l.b16 %v80
  %v225 = vunpack.c.l.b16 %v81
  %v226 = vunpack.c.l.b16 %v82
  %v227 = vunpack.c.l.b16 %v83
  %v228 = vunpack.c.l.b16 %v84
  %v229 = vunpack.c.l.b16 %v85
  %v230 = vunpack.c.l.b16 %v86
  %v231 = vunpack.c.l.b16 %v87
  %v232 = vunpack.c.l.b16 %v88
  %v233 = vunpack.c.l.b16 %v89
  %v234 = vunpack.c.l.b16 %v90
  %v235 = vunpack.c.l.b16 %v91
  %v236 = vunpack.c.l.b16 %v92
  %v237 = vunpack.c.l.b16 %v93
  %v238 = vunpack.c.l.b16 %v94
  %v239 = vunpack.c.l.b16 %v95
  %v240 = vunpack.c.l.b16 %v96
  %v241 = vunpack.c.l.b16 %v97
  %v242 = vunpack.c.l.b16 %v98
  %v243 = vunpack.c.l.b16 %v99
  %v244 = vunpack.c.l.b16 %v100
  %v245 = vunpack.c.l.b16 %v101
  %v246 = vunpack.c.l.b16 %v102
  %v247 = vpack.c.b16 %v184, %v183
  %v248 = vpack.c.b16 %v186, %v185
  %v249 = vpack.c.b16 %v188, %v187
  %v250 = vpack.c.b16 %v190, %v189
  %v251 = vpack.c.b16 %v192, %v191
  %v252 = vpack.c.b16 %v194, %v193
  %v253 = vpack.c.b16 %v196, %v195
  %v254 = vpack.c.b16 %v198, %v197
  %v255 = vpack.c.b16 %v200, %v199
  %v256 = vpack.c.b16 %v202, %v201
  %v257 = vpack.c.b16 %v204, %v203
  %v258 = vpack.c.b16 %v206, %v205
  %v259 = vpack.c.b16 %v208, %v207
  %v260 = vpack.c.b16 %v210, %v209
  %v261 = vpack.c.b16 %v212, %v211
  %v262 = vpack.c.b16 %v214, %v213
  %v263 = vpack.c.b16 %v216, %v215
  %v264 = vpack.c.b16 %v218, %v217
  %v265 = vpack.c.b16 %v220, %v219
  %v266 = vpack.c.b16 %v222, %v221
  %v267 = vpack.c.b16 %v224, %v223
  %v268 = vpack.c.b16 %v226, %v225
  %v269 = vpack.c.b16 %v228, %v227
  %v270 = vpack.c.b16 %v230, %v229
  %v271 = vpack.c.b16 %v232, %v231
  %v272 = vpack.c.b16 %v234, %v233
  %v273 = vpack.c.b16 %v236, %v235
  %v274 = vpack.c.b16 %v238, %v237
  %v275 = vpack.c.b16 %v240, %v239
  %v276 = vpack.c.b16 %v242, %v241
  %v277 = vpack.c.b16 %v244, %v243
  %v278 = vpack.c.b16 %v246, %v245
  %v327 = vunpack.c.l.b16 %v103
  %v328 = vunpack.c.l.b16 %v104
  %v329 = vunpack.c.l.b16 %v105
  %v330 = vunpack.c.l.b16 %v106
  %v331 = vunpack.c.l.b16 %v107
  %v332 = vunpack.c.l.b16 %v108
  %v333 = vunpack.c.l.b16 %v109
  %v334 = vunpack.c.l.b16 %v110
  %v335 = vunpack.c.l.b16 %v111
  %v336 = vunpack.c.l.b16 %v112
  %v337 = vunpack.c.l.b16 %v113
  %v338 = vunpack.c.l.b16 %v114
  %v339 = vunpack.c.l.b16 %v115
  %v340 = vunpack.c.l.b16 %v116
  %v341 = vunpack.c.l.b16 %v117
  %v342 = vunpack.c.l.b16 %v118
  %v343 = vpack.c.b16 %v328, %v327
  %v344 = vpack.c.b16 %v330, %v329
  %v345 = vpack.c.b16 %v332, %v331
  %v346 = vpack.c.b16 %v334, %v333
  %v347 = vpack.c.b16 %v336, %v335
  %v348 = vpack.c.b16 %v338, %v337
  %v349 = vpack.c.b16 %v340, %v339
  %v350 = vpack.c.b16 %v342, %v341
  %359 = vmatpush.bf16.msra.mxu0 %v350
  %360 = vmatpush.bf16.msra.mxu0 %v349
  %361 = vmatpush.bf16.msra.mxu0 %v348
  %362 = vmatpush.bf16.msra.mxu0 %v347
  %363 = vmatpush.bf16.msra.mxu0 %v346
  %364 = vmatpush.bf16.msra.mxu0 %v345
  %365 = vmatpush.bf16.msra.mxu0 %v344
  %366 = vmatpush.bf16.msra.mxu0 %v343
  %367 = vmatmul.bf16.gmra.mxu0 %v247
  %v368 = vpop.f32.mrf.mxu0
  %v369 = vadd.f32 0.0, %v368
  %v370 = vpop.f32.mrf.mxu0
  %v371 = vadd.f32 0.0, %v370
  %372 = vmatmul.bf16.gmra.mxu0 %v248
  %v373 = vpop.f32.mrf.mxu0
  %v374 = vadd.f32 0.0, %v373
  %v375 = vpop.f32.mrf.mxu0
  %v376 = vadd.f32 0.0, %v375
  %377 = vmatmul.bf16.gmra.mxu0 %v249
  %v378 = vpop.f32.mrf.mxu0
  %v379 = vadd.f32 0.0, %v378
  %v380 = vpop.f32.mrf.mxu0
  %v381 = vadd.f32 0.0, %v380
  %382 = vmatmul.bf16.gmra.mxu0 %v250
  %v383 = vpop.f32.mrf.mxu0
  %v384 = vadd.f32 0.0, %v383
  %v385 = vpop.f32.mrf.mxu0
  %v386 = vadd.f32 0.0, %v385
  %387 = vmatmul.bf16.gmra.mxu0 %v251
  %v388 = vpop.f32.mrf.mxu0
  %v389 = vadd.f32 0.0, %v388
  %v390 = vpop.f32.mrf.mxu0
  %v391 = vadd.f32 0.0, %v390
  %392 = vmatmul.bf16.gmra.mxu0 %v252
  %v393 = vpop.f32.mrf.mxu0
  %v394 = vadd.f32 0.0, %v393
  %v395 = vpop.f32.mrf.mxu0
  %v396 = vadd.f32 0.0, %v395
  %397 = vmatmul.bf16.gmra.mxu0 %v253
  %v398 = vpop.f32.mrf.mxu0
  %v399 = vadd.f32 0.0, %v398
  %v400 = vpop.f32.mrf.mxu0
  %v401 = vadd.f32 0.0, %v400
  %402 = vmatmul.bf16.gmra.mxu0 %v254
  %v403 = vpop.f32.mrf.mxu0
  %v404 = vadd.f32 0.0, %v403
  %v405 = vpop.f32.mrf.mxu0
  %v406 = vadd.f32 0.0, %v405
  %407 = vmatmul.bf16.gmra.mxu0 %v255
  %v408 = vpop.f32.mrf.mxu0
  %v409 = vadd.f32 0.0, %v408
  %v410 = vpop.f32.mrf.mxu0
  %v411 = vadd.f32 0.0, %v410
  %412 = vmatmul.bf16.gmra.mxu0 %v256
  %v413 = vpop.f32.mrf.mxu0
  %v414 = vadd.f32 0.0, %v413
  %v415 = vpop.f32.mrf.mxu0
  %v416 = vadd.f32 0.0, %v415
  %417 = vmatmul.bf16.gmra.mxu0 %v257
  %v418 = vpop.f32.mrf.mxu0
  %v419 = vadd.f32 0.0, %v418
  %v420 = vpop.f32.mrf.mxu0
  %v421 = vadd.f32 0.0, %v420
  %422 = vmatmul.bf16.gmra.mxu0 %v258
  %v423 = vpop.f32.mrf.mxu0
  %v424 = vadd.f32 0.0, %v423
  %v425 = vpop.f32.mrf.mxu0
  %v426 = vadd.f32 0.0, %v425
  %427 = vmatmul.bf16.gmra.mxu0 %v259
  %v428 = vpop.f32.mrf.mxu0
  %v429 = vadd.f32 0.0, %v428
  %v430 = vpop.f32.mrf.mxu0
  %v431 = vadd.f32 0.0, %v430
  %432 = vmatmul.bf16.gmra.mxu0 %v260
  %v433 = vpop.f32.mrf.mxu0
  %v434 = vadd.f32 0.0, %v433
  %v435 = vpop.f32.mrf.mxu0
  %v436 = vadd.f32 0.0, %v435
  %437 = vmatmul.bf16.gmra.mxu0 %v261
  %v438 = vpop.f32.mrf.mxu0
  %v439 = vadd.f32 0.0, %v438
  %v440 = vpop.f32.mrf.mxu0
  %v441 = vadd.f32 0.0, %v440
  %442 = vmatmul.bf16.gmra.mxu0 %v262
  %v443 = vpop.f32.mrf.mxu0
  %v444 = vadd.f32 0.0, %v443
  %v445 = vpop.f32.mrf.mxu0
  %v446 = vadd.f32 0.0, %v445
  %447 = vmatmul.bf16.gmra.mxu0 %v263
  %v448 = vpop.f32.mrf.mxu0
  %v449 = vadd.f32 0.0, %v448
  %v450 = vpop.f32.mrf.mxu0
  %v451 = vadd.f32 0.0, %v450
  %452 = vmatmul.bf16.gmra.mxu0 %v264
  %v453 = vpop.f32.mrf.mxu0
  %v454 = vadd.f32 0.0, %v453
  %v455 = vpop.f32.mrf.mxu0
  %v456 = vadd.f32 0.0, %v455
  %457 = vmatmul.bf16.gmra.mxu0 %v265
  %v458 = vpop.f32.mrf.mxu0
  %v459 = vadd.f32 0.0, %v458
  %v460 = vpop.f32.mrf.mxu0
  %v461 = vadd.f32 0.0, %v460
  %462 = vmatmul.bf16.gmra.mxu0 %v266
  %v463 = vpop.f32.mrf.mxu0
  %v464 = vadd.f32 0.0, %v463
  %v465 = vpop.f32.mrf.mxu0
  %v466 = vadd.f32 0.0, %v465
  %467 = vmatmul.bf16.gmra.mxu0 %v267
  %v468 = vpop.f32.mrf.mxu0
  %v469 = vadd.f32 0.0, %v468
  %v470 = vpop.f32.mrf.mxu0
  %v471 = vadd.f32 0.0, %v470
  %472 = vmatmul.bf16.gmra.mxu0 %v268
  %v473 = vpop.f32.mrf.mxu0
  %v474 = vadd.f32 0.0, %v473
  %v475 = vpop.f32.mrf.mxu0
  %v476 = vadd.f32 0.0, %v475
  %477 = vmatmul.bf16.gmra.mxu0 %v269
  %v478 = vpop.f32.mrf.mxu0
  %v479 = vadd.f32 0.0, %v478
  %v480 = vpop.f32.mrf.mxu0
  %v481 = vadd.f32 0.0, %v480
  %482 = vmatmul.bf16.gmra.mxu0 %v270
  %v483 = vpop.f32.mrf.mxu0
  %v484 = vadd.f32 0.0, %v483
  %v485 = vpop.f32.mrf.mxu0
  %v486 = vadd.f32 0.0, %v485
  %487 = vmatmul.bf16.gmra.mxu0 %v271
  %v488 = vpop.f32.mrf.mxu0
  %v489 = vadd.f32 0.0, %v488
  %v490 = vpop.f32.mrf.mxu0
  %v491 = vadd.f32 0.0, %v490
  %492 = vmatmul.bf16.gmra.mxu0 %v272
  %v493 = vpop.f32.mrf.mxu0
  %v494 = vadd.f32 0.0, %v493
  %v495 = vpop.f32.mrf.mxu0
  %v496 = vadd.f32 0.0, %v495
  %497 = vmatmul.bf16.gmra.mxu0 %v273
  %v498 = vpop.f32.mrf.mxu0
  %v499 = vadd.f32 0.0, %v498
  %v500 = vpop.f32.mrf.mxu0
  %v501 = vadd.f32 0.0, %v500
  %502 = vmatmul.bf16.gmra.mxu0 %v274
  %v503 = vpop.f32.mrf.mxu0
  %v504 = vadd.f32 0.0, %v503
  %v505 = vpop.f32.mrf.mxu0
  %v506 = vadd.f32 0.0, %v505
  %507 = vmatmul.bf16.gmra.mxu0 %v275
  %v508 = vpop.f32.mrf.mxu0
  %v509 = vadd.f32 0.0, %v508
  %v510 = vpop.f32.mrf.mxu0
  %v511 = vadd.f32 0.0, %v510
  %512 = vmatmul.bf16.gmra.mxu0 %v276
  %v513 = vpop.f32.mrf.mxu0
  %v514 = vadd.f32 0.0, %v513
  %v515 = vpop.f32.mrf.mxu0
  %v516 = vadd.f32 0.0, %v515
  %517 = vmatmul.bf16.gmra.mxu0 %v277
  %v518 = vpop.f32.mrf.mxu0
  %v519 = vadd.f32 0.0, %v518
  %v520 = vpop.f32.mrf.mxu0
  %v521 = vadd.f32 0.0, %v520
  %522 = vmatmul.bf16.gmra.mxu0 %v278
  %v523 = vpop.f32.mrf.mxu0
  %v524 = vadd.f32 0.0, %v523
  %v525 = vpop.f32.mrf.mxu0
  %v526 = vadd.f32 0.0, %v525
  %527 = vdwg.mxu0
  %v528 = vld [vmem:[%s2] sm:$0x1]
  %v529 = vld [vmem:[%s3] sm:$0x1]
  %v530 = vmul.f32 %v369, %v369
  %v531 = vmul.f32 %v371, %v371
  %v532 = vmul.f32 %v374, %v374
  %v533 = vmul.f32 %v376, %v376
  %v534 = vmul.f32 %v379, %v379
  %v535 = vmul.f32 %v381, %v381
  %v536 = vmul.f32 %v384, %v384
  %v537 = vmul.f32 %v386, %v386
  %v538 = vmul.f32 %v389, %v389
  %v539 = vmul.f32 %v391, %v391
  %v540 = vmul.f32 %v394, %v394
  %v541 = vmul.f32 %v396, %v396
  %v542 = vmul.f32 %v399, %v399
  %v543 = vmul.f32 %v401, %v401
  %v544 = vmul.f32 %v404, %v404
  %v545 = vmul.f32 %v406, %v406
  %v546 = vmul.f32 %v409, %v409
  %v547 = vmul.f32 %v411, %v411
  %v548 = vmul.f32 %v414, %v414
  %v549 = vmul.f32 %v416, %v416
  %v550 = vmul.f32 %v419, %v419
  %v551 = vmul.f32 %v421, %v421
  %v552 = vmul.f32 %v424, %v424
  %v553 = vmul.f32 %v426, %v426
  %v554 = vmul.f32 %v429, %v429
  %v555 = vmul.f32 %v431, %v431
  %v556 = vmul.f32 %v434, %v434
  %v557 = vmul.f32 %v436, %v436
  %v558 = vmul.f32 %v439, %v439
  %v559 = vmul.f32 %v441, %v441
  %v560 = vmul.f32 %v444, %v444
  %v561 = vmul.f32 %v446, %v446
  %v562 = vmul.f32 %v449, %v449
  %v563 = vmul.f32 %v451, %v451
  %v564 = vmul.f32 %v454, %v454
  %v565 = vmul.f32 %v456, %v456
  %v566 = vmul.f32 %v459, %v459
  %v567 = vmul.f32 %v461, %v461
  %v568 = vmul.f32 %v464, %v464
  %v569 = vmul.f32 %v466, %v466
  %v570 = vmul.f32 %v469, %v469
  %v571 = vmul.f32 %v471, %v471
  %v572 = vmul.f32 %v474, %v474
  %v573 = vmul.f32 %v476, %v476
  %v574 = vmul.f32 %v479, %v479
  %v575 = vmul.f32 %v481, %v481
  %v576 = vmul.f32 %v484, %v484
  %v577 = vmul.f32 %v486, %v486
  %v578 = vmul.f32 %v489, %v489
  %v579 = vmul.f32 %v491, %v491
  %v580 = vmul.f32 %v494, %v494
  %v581 = vmul.f32 %v496, %v496
  %v582 = vmul.f32 %v499, %v499
  %v583 = vmul.f32 %v501, %v501
  %v584 = vmul.f32 %v504, %v504
  %v585 = vmul.f32 %v506, %v506
  %v586 = vmul.f32 %v509, %v509
  %v587 = vmul.f32 %v511, %v511
  %v588 = vmul.f32 %v514, %v514
  %v589 = vmul.f32 %v516, %v516
  %v590 = vmul.f32 %v519, %v519
  %v591 = vmul.f32 %v521, %v521
  %v592 = vmul.f32 %v524, %v524
  %v593 = vmul.f32 %v526, %v526
  %594 = vmatpush.msra.mxu0 %v406
  %595 = vmatpush.msra.mxu0 %v404
  %596 = vmatpush.msra.mxu0 %v401
  %597 = vmatpush.msra.mxu0 %v399
  %598 = vmatpush.msra.mxu0 %v396
  %599 = vmatpush.msra.mxu0 %v394
  %600 = vmatpush.msra.mxu0 %v391
  %601 = vmatpush.msra.mxu0 %v389
  %602 = vmatpush.msra.mxu0 %v386
  %603 = vmatpush.msra.mxu0 %v384
  %604 = vmatpush.msra.mxu0 %v381
  %605 = vmatpush.msra.mxu0 %v379
  %606 = vmatpush.msra.mxu0 %v376
  %607 = vmatpush.msra.mxu0 %v374
  %608 = vmatpush.msra.mxu0 %v371
  %609 = vmatpush.msra.mxu0 %v369
  %610 = vmatmul.f32.gmra.mxu0 1.0
  %v611 = vpop.f32.mrf.mxu0
  %v612 = vadd.f32 0.0, %v611
  %613 = vdwg.mxu0
  %614 = vmatpush.msra.mxu0 %v446
  %615 = vmatpush.msra.mxu0 %v444
  %616 = vmatpush.msra.mxu0 %v441
  %617 = vmatpush.msra.mxu0 %v439
  %618 = vmatpush.msra.mxu0 %v436
  %619 = vmatpush.msra.mxu0 %v434
  %620 = vmatpush.msra.mxu0 %v431
  %621 = vmatpush.msra.mxu0 %v429
  %622 = vmatpush.msra.mxu0 %v426
  %623 = vmatpush.msra.mxu0 %v424
  %624 = vmatpush.msra.mxu0 %v421
  %625 = vmatpush.msra.mxu0 %v419
  %626 = vmatpush.msra.mxu0 %v416
  %627 = vmatpush.msra.mxu0 %v414
  %628 = vmatpush.msra.mxu0 %v411
  %629 = vmatpush.msra.mxu0 %v409
  %630 = vmatmul.f32.gmra.mxu0 1.0
  %v631 = vpop.f32.mrf.mxu0
  %v632 = vadd.f32 %v612, %v631
  %633 = vdwg.mxu0
  %634 = vmatpush.msra.mxu0 %v486
  %635 = vmatpush.msra.mxu0 %v484
  %636 = vmatpush.msra.mxu0 %v481
  %637 = vmatpush.msra.mxu0 %v479
  %638 = vmatpush.msra.mxu0 %v476
  %639 = vmatpush.msra.mxu0 %v474
  %640 = vmatpush.msra.mxu0 %v471
  %641 = vmatpush.msra.mxu0 %v469
  %642 = vmatpush.msra.mxu0 %v466
  %643 = vmatpush.msra.mxu0 %v464
  %644 = vmatpush.msra.mxu0 %v461
  %645 = vmatpush.msra.mxu0 %v459
  %646 = vmatpush.msra.mxu0 %v456
  %647 = vmatpush.msra.mxu0 %v454
  %648 = vmatpush.msra.mxu0 %v451
  %649 = vmatpush.msra.mxu0 %v449
  %650 = vmatmul.f32.gmra.mxu0 1.0
  %v651 = vpop.f32.mrf.mxu0
  %v652 = vadd.f32 %v632, %v651
  %653 = vdwg.mxu0
  %654 = vmatpush.msra.mxu0 %v526
  %655 = vmatpush.msra.mxu0 %v524
  %656 = vmatpush.msra.mxu0 %v521
  %657 = vmatpush.msra.mxu0 %v519
  %658 = vmatpush.msra.mxu0 %v516
  %659 = vmatpush.msra.mxu0 %v514
  %660 = vmatpush.msra.mxu0 %v511
  %661 = vmatpush.msra.mxu0 %v509
  %662 = vmatpush.msra.mxu0 %v506
  %663 = vmatpush.msra.mxu0 %v504
  %664 = vmatpush.msra.mxu0 %v501
  %665 = vmatpush.msra.mxu0 %v499
  %666 = vmatpush.msra.mxu0 %v496
  %667 = vmatpush.msra.mxu0 %v494
  %668 = vmatpush.msra.mxu0 %v491
  %669 = vmatpush.msra.mxu0 %v489
  %670 = vmatmul.f32.gmra.mxu0 1.0
  %v671 = vpop.f32.mrf.mxu0
  %v672 = vadd.f32 %v652, %v671
  %673 = vdwg.mxu0
  %674 = vmatpush.msra.mxu0 %v545
  %675 = vmatpush.msra.mxu0 %v544
  %676 = vmatpush.msra.mxu0 %v543
  %677 = vmatpush.msra.mxu0 %v542
  %678 = vmatpush.msra.mxu0 %v541
  %679 = vmatpush.msra.mxu0 %v540
  %680 = vmatpush.msra.mxu0 %v539
  %681 = vmatpush.msra.mxu0 %v538
  %682 = vmatpush.msra.mxu0 %v537
  %683 = vmatpush.msra.mxu0 %v536
  %684 = vmatpush.msra.mxu0 %v535
  %685 = vmatpush.msra.mxu0 %v534
  %686 = vmatpush.msra.mxu0 %v533
  %687 = vmatpush.msra.mxu0 %v532
  %688 = vmatpush.msra.mxu0 %v531
  %689 = vmatpush.msra.mxu0 %v530
  %690 = vmatmul.f32.gmra.mxu0 1.0
  %v691 = vpop.f32.mrf.mxu0
  %v692 = vadd.f32 0.0, %v691
  %693 = vdwg.mxu0
  %694 = vmatpush.msra.mxu0 %v561
  %695 = vmatpush.msra.mxu0 %v560
  %696 = vmatpush.msra.mxu0 %v559
  %697 = vmatpush.msra.mxu0 %v558
  %698 = vmatpush.msra.mxu0 %v557
  %699 = vmatpush.msra.mxu0 %v556
  %700 = vmatpush.msra.mxu0 %v555
  %701 = vmatpush.msra.mxu0 %v554
  %702 = vmatpush.msra.mxu0 %v553
  %703 = vmatpush.msra.mxu0 %v552
  %704 = vmatpush.msra.mxu0 %v551
  %705 = vmatpush.msra.mxu0 %v550
  %706 = vmatpush.msra.mxu0 %v549
  %707 = vmatpush.msra.mxu0 %v548
  %708 = vmatpush.msra.mxu0 %v547
  %709 = vmatpush.msra.mxu0 %v546
  %710 = vmatmul.f32.gmra.mxu0 1.0
  %v711 = vpop.f32.mrf.mxu0
  %v712 = vadd.f32 %v692, %v711
  %713 = vdwg.mxu0
  %714 = vmatpush.msra.mxu0 %v577
  %715 = vmatpush.msra.mxu0 %v576
  %716 = vmatpush.msra.mxu0 %v575
  %717 = vmatpush.msra.mxu0 %v574
  %718 = vmatpush.msra.mxu0 %v573
  %719 = vmatpush.msra.mxu0 %v572
  %720 = vmatpush.msra.mxu0 %v571
  %721 = vmatpush.msra.mxu0 %v570
  %722 = vmatpush.msra.mxu0 %v569
  %723 = vmatpush.msra.mxu0 %v568
  %724 = vmatpush.msra.mxu0 %v567
  %725 = vmatpush.msra.mxu0 %v566
  %726 = vmatpush.msra.mxu0 %v565
  %727 = vmatpush.msra.mxu0 %v564
  %728 = vmatpush.msra.mxu0 %v563
  %729 = vmatpush.msra.mxu0 %v562
  %730 = vmatmul.f32.gmra.mxu0 1.0
  %v731 = vpop.f32.mrf.mxu0
  %v732 = vadd.f32 %v712, %v731
  %733 = vdwg.mxu0
  %734 = vmatpush.msra.mxu0 %v593
  %735 = vmatpush.msra.mxu0 %v592
  %736 = vmatpush.msra.mxu0 %v591
  %737 = vmatpush.msra.mxu0 %v590
  %738 = vmatpush.msra.mxu0 %v589
  %739 = vmatpush.msra.mxu0 %v588
  %740 = vmatpush.msra.mxu0 %v587
  %741 = vmatpush.msra.mxu0 %v586
  %742 = vmatpush.msra.mxu0 %v585
  %743 = vmatpush.msra.mxu0 %v584
  %744 = vmatpush.msra.mxu0 %v583
  %745 = vmatpush.msra.mxu0 %v582
  %746 = vmatpush.msra.mxu0 %v581
  %747 = vmatpush.msra.mxu0 %v580
  %748 = vmatpush.msra.mxu0 %v579
  %749 = vmatpush.msra.mxu0 %v578
  %750 = vmatmul.f32.gmra.mxu0 1.0
  %v751 = vpop.f32.mrf.mxu0
  %v752 = vadd.f32 %v732, %v751
  %753 = vdwg.mxu0
  %v754 = vmul.f32 %v672, 0.001953125
  %v755 = vmul.f32 %v752, 0.001953125
  %v756 = vmul.f32 %v754, %v754
  %v757 = vsub.f32 %v755, %v756
  %v758 = vadd.f32 %v757, 1e-05
  %v759 = vrsqrt.pop %v758
  %v760 = vmul.f32 %v759, %v758
  %v761 = vmul.f32 %v760, %v759
  %v762 = vmul.f32 0.5, %v761
  %v763 = vsub.f32 1.5, %v762
  %v764 = vmul.f32 %v759, %v763
  %vm765 = vweird.f32 %v758
  %vm766 = vweird.f32 %v759
  %vm767 = vmor %vm765, %vm766
  %v768 = vsel %vm767, %v759, %v764
  %v769 = vmul.f32 %v528, %v768
  %v770 = vmul.f32 %v754, %v769
  %v771 = vsub.f32 %v529, %v770
  %v773 = vperm.slane %v769, 0
  %v775 = vmul.f32 %v369, %v773
  %v776 = vmul.f32 %v371, %v773
  %v777 = vmul.f32 %v374, %v773
  %v778 = vmul.f32 %v376, %v773
  %v779 = vmul.f32 %v379, %v773
  %v780 = vmul.f32 %v381, %v773
  %v781 = vmul.f32 %v384, %v773
  %v782 = vmul.f32 %v386, %v773
  %v783 = vmul.f32 %v389, %v773
  %v784 = vmul.f32 %v391, %v773
  %v785 = vmul.f32 %v394, %v773
  %v786 = vmul.f32 %v396, %v773
  %v787 = vmul.f32 %v399, %v773
  %v788 = vmul.f32 %v401, %v773
  %v789 = vmul.f32 %v404, %v773
  %v790 = vmul.f32 %v406, %v773
  %v791 = vmul.f32 %v409, %v773
  %v792 = vmul.f32 %v411, %v773
  %v793 = vmul.f32 %v414, %v773
  %v794 = vmul.f32 %v416, %v773
  %v795 = vmul.f32 %v419, %v773
  %v796 = vmul.f32 %v421, %v773
  %v797 = vmul.f32 %v424, %v773
  %v798 = vmul.f32 %v426, %v773
  %v799 = vmul.f32 %v429, %v773
  %v800 = vmul.f32 %v431, %v773
  %v801 = vmul.f32 %v434, %v773
  %v802 = vmul.f32 %v436, %v773
  %v803 = vmul.f32 %v439, %v773
  %v804 = vmul.f32 %v441, %v773
  %v805 = vmul.f32 %v444, %v773
  %v806 = vmul.f32 %v446, %v773
  %v807 = vmul.f32 %v449, %v773
  %v808 = vmul.f32 %v451, %v773
  %v809 = vmul.f32 %v454, %v773
  %v810 = vmul.f32 %v456, %v773
  %v811 = vmul.f32 %v459, %v773
  %v812 = vmul.f32 %v461, %v773
  %v813 = vmul.f32 %v464, %v773
  %v814 = vmul.f32 %v466, %v773
  %v815 = vmul.f32 %v469, %v773
  %v816 = vmul.f32 %v471, %v773
  %v817 = vmul.f32 %v474, %v773
  %v818 = vmul.f32 %v476, %v773
  %v819 = vmul.f32 %v479, %v773
  %v820 = vmul.f32 %v481, %v773
  %v821 = vmul.f32 %v484, %v773
  %v822 = vmul.f32 %v486, %v773
  %v823 = vmul.f32 %v489, %v773
  %v824 = vmul.f32 %v491, %v773
  %v825 = vmul.f32 %v494, %v773
  %v826 = vmul.f32 %v496, %v773
  %v827 = vmul.f32 %v499, %v773
  %v828 = vmul.f32 %v501, %v773
  %v829 = vmul.f32 %v504, %v773
  %v830 = vmul.f32 %v506, %v773
  %v831 = vmul.f32 %v509, %v773
  %v832 = vmul.f32 %v511, %v773
  %v833 = vmul.f32 %v514, %v773
  %v834 = vmul.f32 %v516, %v773
  %v835 = vmul.f32 %v519, %v773
  %v836 = vmul.f32 %v521, %v773
  %v837 = vmul.f32 %v524, %v773
  %v838 = vmul.f32 %v526, %v773
  %v840 = vperm.slane %v771, 0
  %v842 = vadd.f32 %v775, %v840
  %v843 = vadd.f32 %v776, %v840
  %v844 = vadd.f32 %v777, %v840
  %v845 = vadd.f32 %v778, %v840
  %v846 = vadd.f32 %v779, %v840
  %v847 = vadd.f32 %v780, %v840
  %v848 = vadd.f32 %v781, %v840
  %v849 = vadd.f32 %v782, %v840
  %v850 = vadd.f32 %v783, %v840
  %v851 = vadd.f32 %v784, %v840
  %v852 = vadd.f32 %v785, %v840
  %v853 = vadd.f32 %v786, %v840
  %v854 = vadd.f32 %v787, %v840
  %v855 = vadd.f32 %v788, %v840
  %v856 = vadd.f32 %v789, %v840
  %v857 = vadd.f32 %v790, %v840
  %v858 = vadd.f32 %v791, %v840
  %v859 = vadd.f32 %v792, %v840
  %v860 = vadd.f32 %v793, %v840
  %v861 = vadd.f32 %v794, %v840
  %v862 = vadd.f32 %v795, %v840
  %v863 = vadd.f32 %v796, %v840
  %v864 = vadd.f32 %v797, %v840
  %v865 = vadd.f32 %v798, %v840
  %v866 = vadd.f32 %v799, %v840
  %v867 = vadd.f32 %v800, %v840
  %v868 = vadd.f32 %v801, %v840
  %v869 = vadd.f32 %v802, %v840
  %v870 = vadd.f32 %v803, %v840
  %v871 = vadd.f32 %v804, %v840
  %v872 = vadd.f32 %v805, %v840
  %v873 = vadd.f32 %v806, %v840
  %v874 = vadd.f32 %v807, %v840
  %v875 = vadd.f32 %v808, %v840
  %v876 = vadd.f32 %v809, %v840
  %v877 = vadd.f32 %v810, %v840
  %v878 = vadd.f32 %v811, %v840
  %v879 = vadd.f32 %v812, %v840
  %v880 = vadd.f32 %v813, %v840
  %v881 = vadd.f32 %v814, %v840
  %v882 = vadd.f32 %v815, %v840
  %v883 = vadd.f32 %v816, %v840
  %v884 = vadd.f32 %v817, %v840
  %v885 = vadd.f32 %v818, %v840
  %v886 = vadd.f32 %v819, %v840
  %v887 = vadd.f32 %v820, %v840
  %v888 = vadd.f32 %v821, %v840
  %v889 = vadd.f32 %v822, %v840
  %v890 = vadd.f32 %v823, %v840
  %v891 = vadd.f32 %v824, %v840
  %v892 = vadd.f32 %v825, %v840
  %v893 = vadd.f32 %v826, %v840
  %v894 = vadd.f32 %v827, %v840
  %v895 = vadd.f32 %v828, %v840
  %v896 = vadd.f32 %v829, %v840
  %v897 = vadd.f32 %v830, %v840
  %v898 = vadd.f32 %v831, %v840
  %v899 = vadd.f32 %v832, %v840
  %v900 = vadd.f32 %v833, %v840
  %v901 = vadd.f32 %v834, %v840
  %v902 = vadd.f32 %v835, %v840
  %v903 = vadd.f32 %v836, %v840
  %v904 = vadd.f32 %v837, %v840
  %v905 = vadd.f32 %v838, %v840
  %v906 = vmul.f32 %v842, 0.2
  %v907 = vmul.f32 %v843, 0.2
  %v908 = vmul.f32 %v844, 0.2
  %v909 = vmul.f32 %v845, 0.2
  %v910 = vmul.f32 %v846, 0.2
  %v911 = vmul.f32 %v847, 0.2
  %v912 = vmul.f32 %v848, 0.2
  %v913 = vmul.f32 %v849, 0.2
  %v914 = vmul.f32 %v850, 0.2
  %v915 = vmul.f32 %v851, 0.2
  %v916 = vmul.f32 %v852, 0.2
  %v917 = vmul.f32 %v853, 0.2
  %v918 = vmul.f32 %v854, 0.2
  %v919 = vmul.f32 %v855, 0.2
  %v920 = vmul.f32 %v856, 0.2
  %v921 = vmul.f32 %v857, 0.2
  %v922 = vmul.f32 %v858, 0.2
  %v923 = vmul.f32 %v859, 0.2
  %v924 = vmul.f32 %v860, 0.2
  %v925 = vmul.f32 %v861, 0.2
  %v926 = vmul.f32 %v862, 0.2
  %v927 = vmul.f32 %v863, 0.2
  %v928 = vmul.f32 %v864, 0.2
  %v929 = vmul.f32 %v865, 0.2
  %v930 = vmul.f32 %v866, 0.2
  %v931 = vmul.f32 %v867, 0.2
  %v932 = vmul.f32 %v868, 0.2
  %v933 = vmul.f32 %v869, 0.2
  %v934 = vmul.f32 %v870, 0.2
  %v935 = vmul.f32 %v871, 0.2
  %v936 = vmul.f32 %v872, 0.2
  %v937 = vmul.f32 %v873, 0.2
  %v938 = vmul.f32 %v874, 0.2
  %v939 = vmul.f32 %v875, 0.2
  %v940 = vmul.f32 %v876, 0.2
  %v941 = vmul.f32 %v877, 0.2
  %v942 = vmul.f32 %v878, 0.2
  %v943 = vmul.f32 %v879, 0.2
  %v944 = vmul.f32 %v880, 0.2
  %v945 = vmul.f32 %v881, 0.2
  %v946 = vmul.f32 %v882, 0.2
  %v947 = vmul.f32 %v883, 0.2
  %v948 = vmul.f32 %v884, 0.2
  %v949 = vmul.f32 %v885, 0.2
  %v950 = vmul.f32 %v886, 0.2
  %v951 = vmul.f32 %v887, 0.2
  %v952 = vmul.f32 %v888, 0.2
  %v953 = vmul.f32 %v889, 0.2
  %v954 = vmul.f32 %v890, 0.2
  %v955 = vmul.f32 %v891, 0.2
  %v956 = vmul.f32 %v892, 0.2
  %v957 = vmul.f32 %v893, 0.2
  %v958 = vmul.f32 %v894, 0.2
  %v959 = vmul.f32 %v895, 0.2
  %v960 = vmul.f32 %v896, 0.2
  %v961 = vmul.f32 %v897, 0.2
  %v962 = vmul.f32 %v898, 0.2
  %v963 = vmul.f32 %v899, 0.2
  %v964 = vmul.f32 %v900, 0.2
  %v965 = vmul.f32 %v901, 0.2
  %v966 = vmul.f32 %v902, 0.2
  %v967 = vmul.f32 %v903, 0.2
  %v968 = vmul.f32 %v904, 0.2
  %v969 = vmul.f32 %v905, 0.2
  %v970 = vmax.f32 %v842, %v906
  %v971 = vmax.f32 %v843, %v907
  %v972 = vmax.f32 %v844, %v908
  %v973 = vmax.f32 %v845, %v909
  %v974 = vmax.f32 %v846, %v910
  %v975 = vmax.f32 %v847, %v911
  %v976 = vmax.f32 %v848, %v912
  %v977 = vmax.f32 %v849, %v913
  %v978 = vmax.f32 %v850, %v914
  %v979 = vmax.f32 %v851, %v915
  %v980 = vmax.f32 %v852, %v916
  %v981 = vmax.f32 %v853, %v917
  %v982 = vmax.f32 %v854, %v918
  %v983 = vmax.f32 %v855, %v919
  %v984 = vmax.f32 %v856, %v920
  %v985 = vmax.f32 %v857, %v921
  %v986 = vmax.f32 %v858, %v922
  %v987 = vmax.f32 %v859, %v923
  %v988 = vmax.f32 %v860, %v924
  %v989 = vmax.f32 %v861, %v925
  %v990 = vmax.f32 %v862, %v926
  %v991 = vmax.f32 %v863, %v927
  %v992 = vmax.f32 %v864, %v928
  %v993 = vmax.f32 %v865, %v929
  %v994 = vmax.f32 %v866, %v930
  %v995 = vmax.f32 %v867, %v931
  %v996 = vmax.f32 %v868, %v932
  %v997 = vmax.f32 %v869, %v933
  %v998 = vmax.f32 %v870, %v934
  %v999 = vmax.f32 %v871, %v935
  %v1000 = vmax.f32 %v872, %v936
  %v1001 = vmax.f32 %v873, %v937
  %v1002 = vmax.f32 %v874, %v938
  %v1003 = vmax.f32 %v875, %v939
  %v1004 = vmax.f32 %v876, %v940
  %v1005 = vmax.f32 %v877, %v941
  %v1006 = vmax.f32 %v878, %v942
  %v1007 = vmax.f32 %v879, %v943
  %v1008 = vmax.f32 %v880, %v944
  %v1009 = vmax.f32 %v881, %v945
  %v1010 = vmax.f32 %v882, %v946
  %v1011 = vmax.f32 %v883, %v947
  %v1012 = vmax.f32 %v884, %v948
  %v1013 = vmax.f32 %v885, %v949
  %v1014 = vmax.f32 %v886, %v950
  %v1015 = vmax.f32 %v887, %v951
  %v1016 = vmax.f32 %v888, %v952
  %v1017 = vmax.f32 %v889, %v953
  %v1018 = vmax.f32 %v890, %v954
  %v1019 = vmax.f32 %v891, %v955
  %v1020 = vmax.f32 %v892, %v956
  %v1021 = vmax.f32 %v893, %v957
  %v1022 = vmax.f32 %v894, %v958
  %v1023 = vmax.f32 %v895, %v959
  %v1024 = vmax.f32 %v896, %v960
  %v1025 = vmax.f32 %v897, %v961
  %v1026 = vmax.f32 %v898, %v962
  %v1027 = vmax.f32 %v899, %v963
  %v1028 = vmax.f32 %v900, %v964
  %v1029 = vmax.f32 %v901, %v965
  %v1030 = vmax.f32 %v902, %v966
  %v1031 = vmax.f32 %v903, %v967
  %v1032 = vmax.f32 %v904, %v968
  %v1033 = vmax.f32 %v905, %v969
  %v1098 = vrot.slane %v970, 2
  %v1099 = vrot.slane %v970, 4
  %v1100 = vrot.slane %v970, 6
  %v1101 = vrot.slane %v971, 2
  %v1102 = vrot.slane %v971, 4
  %v1103 = vrot.slane %v971, 6
  %v1104 = vrot.slane %v972, 2
  %v1105 = vrot.slane %v972, 4
  %v1106 = vrot.slane %v972, 6
  %v1107 = vrot.slane %v973, 2
  %v1108 = vrot.slane %v973, 4
  %v1109 = vrot.slane %v973, 6
  %v1110 = vrot.slane %v974, 2
  %v1111 = vrot.slane %v974, 4
  %v1112 = vrot.slane %v974, 6
  %v1113 = vrot.slane %v975, 2
  %v1114 = vrot.slane %v975, 4
  %v1115 = vrot.slane %v975, 6
  %v1116 = vrot.slane %v976, 2
  %v1117 = vrot.slane %v976, 4
  %v1118 = vrot.slane %v976, 6
  %v1119 = vrot.slane %v977, 2
  %v1120 = vrot.slane %v977, 4
  %v1121 = vrot.slane %v977, 6
  %v1122 = vrot.slane %v978, 2
  %v1123 = vrot.slane %v978, 4
  %v1124 = vrot.slane %v978, 6
  %v1125 = vrot.slane %v979, 2
  %v1126 = vrot.slane %v979, 4
  %v1127 = vrot.slane %v979, 6
  %v1128 = vrot.slane %v980, 2
  %v1129 = vrot.slane %v980, 4
  %v1130 = vrot.slane %v980, 6
  %v1131 = vrot.slane %v981, 2
  %v1132 = vrot.slane %v981, 4
  %v1133 = vrot.slane %v981, 6
  %v1134 = vrot.slane %v982, 2
  %v1135 = vrot.slane %v982, 4
  %v1136 = vrot.slane %v982, 6
  %v1137 = vrot.slane %v983, 2
  %v1138 = vrot.slane %v983, 4
  %v1139 = vrot.slane %v983, 6
  %v1140 = vrot.slane %v984, 2
  %v1141 = vrot.slane %v984, 4
  %v1142 = vrot.slane %v984, 6
  %v1143 = vrot.slane %v985, 2
  %v1144 = vrot.slane %v985, 4
  %v1145 = vrot.slane %v985, 6
  %v1146 = vrot.slane %v986, 2
  %v1147 = vrot.slane %v986, 4
  %v1148 = vrot.slane %v986, 6
  %v1149 = vrot.slane %v987, 2
  %v1150 = vrot.slane %v987, 4
  %v1151 = vrot.slane %v987, 6
  %v1152 = vrot.slane %v988, 2
  %v1153 = vrot.slane %v988, 4
  %v1154 = vrot.slane %v988, 6
  %v1155 = vrot.slane %v989, 2
  %v1156 = vrot.slane %v989, 4
  %v1157 = vrot.slane %v989, 6
  %v1158 = vrot.slane %v990, 2
  %v1159 = vrot.slane %v990, 4
  %v1160 = vrot.slane %v990, 6
  %v1161 = vrot.slane %v991, 2
  %v1162 = vrot.slane %v991, 4
  %v1163 = vrot.slane %v991, 6
  %v1164 = vrot.slane %v992, 2
  %v1165 = vrot.slane %v992, 4
  %v1166 = vrot.slane %v992, 6
  %v1167 = vrot.slane %v993, 2
  %v1168 = vrot.slane %v993, 4
  %v1169 = vrot.slane %v993, 6
  %v1170 = vrot.slane %v994, 2
  %v1171 = vrot.slane %v994, 4
  %v1172 = vrot.slane %v994, 6
  %v1173 = vrot.slane %v995, 2
  %v1174 = vrot.slane %v995, 4
  %v1175 = vrot.slane %v995, 6
  %v1176 = vrot.slane %v996, 2
  %v1177 = vrot.slane %v996, 4
  %v1178 = vrot.slane %v996, 6
  %v1179 = vrot.slane %v997, 2
  %v1180 = vrot.slane %v997, 4
  %v1181 = vrot.slane %v997, 6
  %v1182 = vrot.slane %v998, 2
  %v1183 = vrot.slane %v998, 4
  %v1184 = vrot.slane %v998, 6
  %v1185 = vrot.slane %v999, 2
  %v1186 = vrot.slane %v999, 4
  %v1187 = vrot.slane %v999, 6
  %v1188 = vrot.slane %v1000, 2
  %v1189 = vrot.slane %v1000, 4
  %v1190 = vrot.slane %v1000, 6
  %v1191 = vrot.slane %v1001, 2
  %v1192 = vrot.slane %v1001, 4
  %v1193 = vrot.slane %v1001, 6
  %v1194 = vrot.slane %v1002, 2
  %v1195 = vrot.slane %v1002, 4
  %v1196 = vrot.slane %v1002, 6
  %v1197 = vrot.slane %v1003, 2
  %v1198 = vrot.slane %v1003, 4
  %v1199 = vrot.slane %v1003, 6
  %v1200 = vrot.slane %v1004, 2
  %v1201 = vrot.slane %v1004, 4
  %v1202 = vrot.slane %v1004, 6
  %v1203 = vrot.slane %v1005, 2
  %v1204 = vrot.slane %v1005, 4
  %v1205 = vrot.slane %v1005, 6
  %v1206 = vrot.slane %v1006, 2
  %v1207 = vrot.slane %v1006, 4
  %v1208 = vrot.slane %v1006, 6
  %v1209 = vrot.slane %v1007, 2
  %v1210 = vrot.slane %v1007, 4
  %v1211 = vrot.slane %v1007, 6
  %v1212 = vrot.slane %v1008, 2
  %v1213 = vrot.slane %v1008, 4
  %v1214 = vrot.slane %v1008, 6
  %v1215 = vrot.slane %v1009, 2
  %v1216 = vrot.slane %v1009, 4
  %v1217 = vrot.slane %v1009, 6
  %v1218 = vrot.slane %v1010, 2
  %v1219 = vrot.slane %v1010, 4
  %v1220 = vrot.slane %v1010, 6
  %v1221 = vrot.slane %v1011, 2
  %v1222 = vrot.slane %v1011, 4
  %v1223 = vrot.slane %v1011, 6
  %v1224 = vrot.slane %v1012, 2
  %v1225 = vrot.slane %v1012, 4
  %v1226 = vrot.slane %v1012, 6
  %v1227 = vrot.slane %v1013, 2
  %v1228 = vrot.slane %v1013, 4
  %v1229 = vrot.slane %v1013, 6
  %v1230 = vrot.slane %v1014, 2
  %v1231 = vrot.slane %v1014, 4
  %v1232 = vrot.slane %v1014, 6
  %v1233 = vrot.slane %v1015, 2
  %v1234 = vrot.slane %v1015, 4
  %v1235 = vrot.slane %v1015, 6
  %v1236 = vrot.slane %v1016, 2
  %v1237 = vrot.slane %v1016, 4
  %v1238 = vrot.slane %v1016, 6
  %v1239 = vrot.slane %v1017, 2
  %v1240 = vrot.slane %v1017, 4
  %v1241 = vrot.slane %v1017, 6
  %v1242 = vrot.slane %v1018, 2
  %v1243 = vrot.slane %v1018, 4
  %v1244 = vrot.slane %v1018, 6
  %v1245 = vrot.slane %v1019, 2
  %v1246 = vrot.slane %v1019, 4
  %v1247 = vrot.slane %v1019, 6
  %v1248 = vrot.slane %v1020, 2
  %v1249 = vrot.slane %v1020, 4
  %v1250 = vrot.slane %v1020, 6
  %v1251 = vrot.slane %v1021, 2
  %v1252 = vrot.slane %v1021, 4
  %v1253 = vrot.slane %v1021, 6
  %v1254 = vrot.slane %v1022, 2
  %v1255 = vrot.slane %v1022, 4
  %v1256 = vrot.slane %v1022, 6
  %v1257 = vrot.slane %v1023, 2
  %v1258 = vrot.slane %v1023, 4
  %v1259 = vrot.slane %v1023, 6
  %v1260 = vrot.slane %v1024, 2
  %v1261 = vrot.slane %v1024, 4
  %v1262 = vrot.slane %v1024, 6
  %v1263 = vrot.slane %v1025, 2
  %v1264 = vrot.slane %v1025, 4
  %v1265 = vrot.slane %v1025, 6
  %v1266 = vrot.slane %v1026, 2
  %v1267 = vrot.slane %v1026, 4
  %v1268 = vrot.slane %v1026, 6
  %v1269 = vrot.slane %v1027, 2
  %v1270 = vrot.slane %v1027, 4
  %v1271 = vrot.slane %v1027, 6
  %v1272 = vrot.slane %v1028, 2
  %v1273 = vrot.slane %v1028, 4
  %v1274 = vrot.slane %v1028, 6
  %v1275 = vrot.slane %v1029, 2
  %v1276 = vrot.slane %v1029, 4
  %v1277 = vrot.slane %v1029, 6
  %v1278 = vrot.slane %v1030, 2
  %v1279 = vrot.slane %v1030, 4
  %v1280 = vrot.slane %v1030, 6
  %v1281 = vrot.slane %v1031, 2
  %v1282 = vrot.slane %v1031, 4
  %v1283 = vrot.slane %v1031, 6
  %v1284 = vrot.slane %v1032, 2
  %v1285 = vrot.slane %v1032, 4
  %v1286 = vrot.slane %v1032, 6
  %v1287 = vrot.slane %v1033, 2
  %v1288 = vrot.slane %v1033, 4
  %v1289 = vrot.slane %v1033, 6
  %v1482 = vpack.c.bf16 %v970, %v970
  %v1483 = vpack.c.bf16 %v1098, %v1098
  %v1484 = vpack.c.bf16 %v1099, %v1099
  %v1485 = vpack.c.bf16 %v1100, %v1100
  %v1486 = vpack.c.bf16 %v971, %v971
  %v1487 = vpack.c.bf16 %v1101, %v1101
  %v1488 = vpack.c.bf16 %v1102, %v1102
  %v1489 = vpack.c.bf16 %v1103, %v1103
  %v1490 = vpack.c.bf16 %v974, %v974
  %v1491 = vpack.c.bf16 %v1110, %v1110
  %v1492 = vpack.c.bf16 %v1111, %v1111
  %v1493 = vpack.c.bf16 %v1112, %v1112
  %v1494 = vpack.c.bf16 %v975, %v975
  %v1495 = vpack.c.bf16 %v1113, %v1113
  %v1496 = vpack.c.bf16 %v1114, %v1114
  %v1497 = vpack.c.bf16 %v1115, %v1115
  %v1498 = vpack.c.bf16 %v978, %v978
  %v1499 = vpack.c.bf16 %v1122, %v1122
  %v1500 = vpack.c.bf16 %v1123, %v1123
  %v1501 = vpack.c.bf16 %v1124, %v1124
  %v1502 = vpack.c.bf16 %v979, %v979
  %v1503 = vpack.c.bf16 %v1125, %v1125
  %v1504 = vpack.c.bf16 %v1126, %v1126
  %v1505 = vpack.c.bf16 %v1127, %v1127
  %v1506 = vpack.c.bf16 %v982, %v982
  %v1507 = vpack.c.bf16 %v1134, %v1134
  %v1508 = vpack.c.bf16 %v1135, %v1135
  %v1509 = vpack.c.bf16 %v1136, %v1136
  %v1510 = vpack.c.bf16 %v983, %v983
  %v1511 = vpack.c.bf16 %v1137, %v1137
  %v1512 = vpack.c.bf16 %v1138, %v1138
  %v1513 = vpack.c.bf16 %v1139, %v1139
  %v1514 = vpack.c.bf16 %v986, %v986
  %v1515 = vpack.c.bf16 %v1146, %v1146
  %v1516 = vpack.c.bf16 %v1147, %v1147
  %v1517 = vpack.c.bf16 %v1148, %v1148
  %v1518 = vpack.c.bf16 %v987, %v987
  %v1519 = vpack.c.bf16 %v1149, %v1149
  %v1520 = vpack.c.bf16 %v1150, %v1150
  %v1521 = vpack.c.bf16 %v1151, %v1151
  %v1522 = vpack.c.bf16 %v990, %v990
  %v1523 = vpack.c.bf16 %v1158, %v1158
  %v1524 = vpack.c.bf16 %v1159, %v1159
  %v1525 = vpack.c.bf16 %v1160, %v1160
  %v1526 = vpack.c.bf16 %v991, %v991
  %v1527 = vpack.c.bf16 %v1161, %v1161
  %v1528 = vpack.c.bf16 %v1162, %v1162
  %v1529 = vpack.c.bf16 %v1163, %v1163
  %v1530 = vpack.c.bf16 %v994, %v994
  %v1531 = vpack.c.bf16 %v1170, %v1170
  %v1532 = vpack.c.bf16 %v1171, %v1171
  %v1533 = vpack.c.bf16 %v1172, %v1172
  %v1534 = vpack.c.bf16 %v995, %v995
  %v1535 = vpack.c.bf16 %v1173, %v1173
  %v1536 = vpack.c.bf16 %v1174, %v1174
  %v1537 = vpack.c.bf16 %v1175, %v1175
  %v1538 = vpack.c.bf16 %v998, %v998
  %v1539 = vpack.c.bf16 %v1182, %v1182
  %v1540 = vpack.c.bf16 %v1183, %v1183
  %v1541 = vpack.c.bf16 %v1184, %v1184
  %v1542 = vpack.c.bf16 %v999, %v999
  %v1543 = vpack.c.bf16 %v1185, %v1185
  %v1544 = vpack.c.bf16 %v1186, %v1186
  %v1545 = vpack.c.bf16 %v1187, %v1187
  %v1546 = vpack.c.bf16 %v1002, %v1002
  %v1547 = vpack.c.bf16 %v1194, %v1194
  %v1548 = vpack.c.bf16 %v1195, %v1195
  %v1549 = vpack.c.bf16 %v1196, %v1196
  %v1550 = vpack.c.bf16 %v1003, %v1003
  %v1551 = vpack.c.bf16 %v1197, %v1197
  %v1552 = vpack.c.bf16 %v1198, %v1198
  %v1553 = vpack.c.bf16 %v1199, %v1199
  %v1554 = vpack.c.bf16 %v1006, %v1006
  %v1555 = vpack.c.bf16 %v1206, %v1206
  %v1556 = vpack.c.bf16 %v1207, %v1207
  %v1557 = vpack.c.bf16 %v1208, %v1208
  %v1558 = vpack.c.bf16 %v1007, %v1007
  %v1559 = vpack.c.bf16 %v1209, %v1209
  %v1560 = vpack.c.bf16 %v1210, %v1210
  %v1561 = vpack.c.bf16 %v1211, %v1211
  %v1562 = vpack.c.bf16 %v1010, %v1010
  %v1563 = vpack.c.bf16 %v1218, %v1218
  %v1564 = vpack.c.bf16 %v1219, %v1219
  %v1565 = vpack.c.bf16 %v1220, %v1220
  %v1566 = vpack.c.bf16 %v1011, %v1011
  %v1567 = vpack.c.bf16 %v1221, %v1221
  %v1568 = vpack.c.bf16 %v1222, %v1222
  %v1569 = vpack.c.bf16 %v1223, %v1223
  %v1570 = vpack.c.bf16 %v1014, %v1014
  %v1571 = vpack.c.bf16 %v1230, %v1230
  %v1572 = vpack.c.bf16 %v1231, %v1231
  %v1573 = vpack.c.bf16 %v1232, %v1232
  %v1574 = vpack.c.bf16 %v1015, %v1015
  %v1575 = vpack.c.bf16 %v1233, %v1233
  %v1576 = vpack.c.bf16 %v1234, %v1234
  %v1577 = vpack.c.bf16 %v1235, %v1235
  %v1578 = vpack.c.bf16 %v1018, %v1018
  %v1579 = vpack.c.bf16 %v1242, %v1242
  %v1580 = vpack.c.bf16 %v1243, %v1243
  %v1581 = vpack.c.bf16 %v1244, %v1244
  %v1582 = vpack.c.bf16 %v1019, %v1019
  %v1583 = vpack.c.bf16 %v1245, %v1245
  %v1584 = vpack.c.bf16 %v1246, %v1246
  %v1585 = vpack.c.bf16 %v1247, %v1247
  %v1586 = vpack.c.bf16 %v1022, %v1022
  %v1587 = vpack.c.bf16 %v1254, %v1254
  %v1588 = vpack.c.bf16 %v1255, %v1255
  %v1589 = vpack.c.bf16 %v1256, %v1256
  %v1590 = vpack.c.bf16 %v1023, %v1023
  %v1591 = vpack.c.bf16 %v1257, %v1257
  %v1592 = vpack.c.bf16 %v1258, %v1258
  %v1593 = vpack.c.bf16 %v1259, %v1259
  %v1594 = vpack.c.bf16 %v1026, %v1026
  %v1595 = vpack.c.bf16 %v1266, %v1266
  %v1596 = vpack.c.bf16 %v1267, %v1267
  %v1597 = vpack.c.bf16 %v1268, %v1268
  %v1598 = vpack.c.bf16 %v1027, %v1027
  %v1599 = vpack.c.bf16 %v1269, %v1269
  %v1600 = vpack.c.bf16 %v1270, %v1270
  %v1601 = vpack.c.bf16 %v1271, %v1271
  %v1602 = vpack.c.bf16 %v1030, %v1030
  %v1603 = vpack.c.bf16 %v1278, %v1278
  %v1604 = vpack.c.bf16 %v1279, %v1279
  %v1605 = vpack.c.bf16 %v1280, %v1280
  %v1606 = vpack.c.bf16 %v1031, %v1031
  %v1607 = vpack.c.bf16 %v1281, %v1281
  %v1608 = vpack.c.bf16 %v1282, %v1282
  %v1609 = vpack.c.bf16 %v1283, %v1283
  %v1738 = vunpack.c.l.b16 %v1482
  %v1739 = vunpack.c.l.b16 %v1483
  %v1740 = vunpack.c.l.b16 %v1484
  %v1741 = vunpack.c.l.b16 %v1485
  %v1742 = vunpack.c.l.b16 %v1486
  %v1743 = vunpack.c.l.b16 %v1487
  %v1744 = vunpack.c.l.b16 %v1488
  %v1745 = vunpack.c.l.b16 %v1489
  %v1746 = vunpack.c.l.b16 %v1490
  %v1747 = vunpack.c.l.b16 %v1491
  %v1748 = vunpack.c.l.b16 %v1492
  %v1749 = vunpack.c.l.b16 %v1493
  %v1750 = vunpack.c.l.b16 %v1494
  %v1751 = vunpack.c.l.b16 %v1495
  %v1752 = vunpack.c.l.b16 %v1496
  %v1753 = vunpack.c.l.b16 %v1497
  %v1754 = vunpack.c.l.b16 %v1498
  %v1755 = vunpack.c.l.b16 %v1499
  %v1756 = vunpack.c.l.b16 %v1500
  %v1757 = vunpack.c.l.b16 %v1501
  %v1758 = vunpack.c.l.b16 %v1502
  %v1759 = vunpack.c.l.b16 %v1503
  %v1760 = vunpack.c.l.b16 %v1504
  %v1761 = vunpack.c.l.b16 %v1505
  %v1762 = vunpack.c.l.b16 %v1506
  %v1763 = vunpack.c.l.b16 %v1507
  %v1764 = vunpack.c.l.b16 %v1508
  %v1765 = vunpack.c.l.b16 %v1509
  %v1766 = vunpack.c.l.b16 %v1510
  %v1767 = vunpack.c.l.b16 %v1511
  %v1768 = vunpack.c.l.b16 %v1512
  %v1769 = vunpack.c.l.b16 %v1513
  %v1770 = vunpack.c.l.b16 %v1514
  %v1771 = vunpack.c.l.b16 %v1515
  %v1772 = vunpack.c.l.b16 %v1516
  %v1773 = vunpack.c.l.b16 %v1517
  %v1774 = vunpack.c.l.b16 %v1518
  %v1775 = vunpack.c.l.b16 %v1519
  %v1776 = vunpack.c.l.b16 %v1520
  %v1777 = vunpack.c.l.b16 %v1521
  %v1778 = vunpack.c.l.b16 %v1522
  %v1779 = vunpack.c.l.b16 %v1523
  %v1780 = vunpack.c.l.b16 %v1524
  %v1781 = vunpack.c.l.b16 %v1525
  %v1782 = vunpack.c.l.b16 %v1526
  %v1783 = vunpack.c.l.b16 %v1527
  %v1784 = vunpack.c.l.b16 %v1528
  %v1785 = vunpack.c.l.b16 %v1529
  %v1786 = vunpack.c.l.b16 %v1530
  %v1787 = vunpack.c.l.b16 %v1531
  %v1788 = vunpack.c.l.b16 %v1532
  %v1789 = vunpack.c.l.b16 %v1533
  %v1790 = vunpack.c.l.b16 %v1534
  %v1791 = vunpack.c.l.b16 %v1535
  %v1792 = vunpack.c.l.b16 %v1536
  %v1793 = vunpack.c.l.b16 %v1537
  %v1794 = vunpack.c.l.b16 %v1538
  %v1795 = vunpack.c.l.b16 %v1539
  %v1796 = vunpack.c.l.b16 %v1540
  %v1797 = vunpack.c.l.b16 %v1541
  %v1798 = vunpack.c.l.b16 %v1542
  %v1799 = vunpack.c.l.b16 %v1543
  %v1800 = vunpack.c.l.b16 %v1544
  %v1801 = vunpack.c.l.b16 %v1545
  %v1802 = vunpack.c.l.b16 %v1546
  %v1803 = vunpack.c.l.b16 %v1547
  %v1804 = vunpack.c.l.b16 %v1548
  %v1805 = vunpack.c.l.b16 %v1549
  %v1806 = vunpack.c.l.b16 %v1550
  %v1807 = vunpack.c.l.b16 %v1551
  %v1808 = vunpack.c.l.b16 %v1552
  %v1809 = vunpack.c.l.b16 %v1553
  %v1810 = vunpack.c.l.b16 %v1554
  %v1811 = vunpack.c.l.b16 %v1555
  %v1812 = vunpack.c.l.b16 %v1556
  %v1813 = vunpack.c.l.b16 %v1557
  %v1814 = vunpack.c.l.b16 %v1558
  %v1815 = vunpack.c.l.b16 %v1559
  %v1816 = vunpack.c.l.b16 %v1560
  %v1817 = vunpack.c.l.b16 %v1561
  %v1818 = vunpack.c.l.b16 %v1562
  %v1819 = vunpack.c.l.b16 %v1563
  %v1820 = vunpack.c.l.b16 %v1564
  %v1821 = vunpack.c.l.b16 %v1565
  %v1822 = vunpack.c.l.b16 %v1566
  %v1823 = vunpack.c.l.b16 %v1567
  %v1824 = vunpack.c.l.b16 %v1568
  %v1825 = vunpack.c.l.b16 %v1569
  %v1826 = vunpack.c.l.b16 %v1570
  %v1827 = vunpack.c.l.b16 %v1571
  %v1828 = vunpack.c.l.b16 %v1572
  %v1829 = vunpack.c.l.b16 %v1573
  %v1830 = vunpack.c.l.b16 %v1574
  %v1831 = vunpack.c.l.b16 %v1575
  %v1832 = vunpack.c.l.b16 %v1576
  %v1833 = vunpack.c.l.b16 %v1577
  %v1834 = vunpack.c.l.b16 %v1578
  %v1835 = vunpack.c.l.b16 %v1579
  %v1836 = vunpack.c.l.b16 %v1580
  %v1837 = vunpack.c.l.b16 %v1581
  %v1838 = vunpack.c.l.b16 %v1582
  %v1839 = vunpack.c.l.b16 %v1583
  %v1840 = vunpack.c.l.b16 %v1584
  %v1841 = vunpack.c.l.b16 %v1585
  %v1842 = vunpack.c.l.b16 %v1586
  %v1843 = vunpack.c.l.b16 %v1587
  %v1844 = vunpack.c.l.b16 %v1588
  %v1845 = vunpack.c.l.b16 %v1589
  %v1846 = vunpack.c.l.b16 %v1590
  %v1847 = vunpack.c.l.b16 %v1591
  %v1848 = vunpack.c.l.b16 %v1592
  %v1849 = vunpack.c.l.b16 %v1593
  %v1850 = vunpack.c.l.b16 %v1594
  %v1851 = vunpack.c.l.b16 %v1595
  %v1852 = vunpack.c.l.b16 %v1596
  %v1853 = vunpack.c.l.b16 %v1597
  %v1854 = vunpack.c.l.b16 %v1598
  %v1855 = vunpack.c.l.b16 %v1599
  %v1856 = vunpack.c.l.b16 %v1600
  %v1857 = vunpack.c.l.b16 %v1601
  %v1858 = vunpack.c.l.b16 %v1602
  %v1859 = vunpack.c.l.b16 %v1603
  %v1860 = vunpack.c.l.b16 %v1604
  %v1861 = vunpack.c.l.b16 %v1605
  %v1862 = vunpack.c.l.b16 %v1606
  %v1863 = vunpack.c.l.b16 %v1607
  %v1864 = vunpack.c.l.b16 %v1608
  %v1865 = vunpack.c.l.b16 %v1609
  %v1866 = vpack.c.b16 %v1738, %v1738
  %v1867 = vpack.c.b16 %v1739, %v1739
  %v1868 = vpack.c.b16 %v1740, %v1740
  %v1869 = vpack.c.b16 %v1741, %v1741
  %v1870 = vpack.c.b16 %v1742, %v1742
  %v1871 = vpack.c.b16 %v1743, %v1743
  %v1872 = vpack.c.b16 %v1744, %v1744
  %v1873 = vpack.c.b16 %v1745, %v1745
  %v1874 = vpack.c.b16 %v1746, %v1746
  %v1875 = vpack.c.b16 %v1747, %v1747
  %v1876 = vpack.c.b16 %v1748, %v1748
  %v1877 = vpack.c.b16 %v1749, %v1749
  %v1878 = vpack.c.b16 %v1750, %v1750
  %v1879 = vpack.c.b16 %v1751, %v1751
  %v1880 = vpack.c.b16 %v1752, %v1752
  %v1881 = vpack.c.b16 %v1753, %v1753
  %v1882 = vpack.c.b16 %v1754, %v1754
  %v1883 = vpack.c.b16 %v1755, %v1755
  %v1884 = vpack.c.b16 %v1756, %v1756
  %v1885 = vpack.c.b16 %v1757, %v1757
  %v1886 = vpack.c.b16 %v1758, %v1758
  %v1887 = vpack.c.b16 %v1759, %v1759
  %v1888 = vpack.c.b16 %v1760, %v1760
  %v1889 = vpack.c.b16 %v1761, %v1761
  %v1890 = vpack.c.b16 %v1762, %v1762
  %v1891 = vpack.c.b16 %v1763, %v1763
  %v1892 = vpack.c.b16 %v1764, %v1764
  %v1893 = vpack.c.b16 %v1765, %v1765
  %v1894 = vpack.c.b16 %v1766, %v1766
  %v1895 = vpack.c.b16 %v1767, %v1767
  %v1896 = vpack.c.b16 %v1768, %v1768
  %v1897 = vpack.c.b16 %v1769, %v1769
  %v1898 = vpack.c.b16 %v1770, %v1770
  %v1899 = vpack.c.b16 %v1771, %v1771
  %v1900 = vpack.c.b16 %v1772, %v1772
  %v1901 = vpack.c.b16 %v1773, %v1773
  %v1902 = vpack.c.b16 %v1774, %v1774
  %v1903 = vpack.c.b16 %v1775, %v1775
  %v1904 = vpack.c.b16 %v1776, %v1776
  %v1905 = vpack.c.b16 %v1777, %v1777
  %v1906 = vpack.c.b16 %v1778, %v1778
  %v1907 = vpack.c.b16 %v1779, %v1779
  %v1908 = vpack.c.b16 %v1780, %v1780
  %v1909 = vpack.c.b16 %v1781, %v1781
  %v1910 = vpack.c.b16 %v1782, %v1782
  %v1911 = vpack.c.b16 %v1783, %v1783
  %v1912 = vpack.c.b16 %v1784, %v1784
  %v1913 = vpack.c.b16 %v1785, %v1785
  %v1914 = vpack.c.b16 %v1786, %v1786
  %v1915 = vpack.c.b16 %v1787, %v1787
  %v1916 = vpack.c.b16 %v1788, %v1788
  %v1917 = vpack.c.b16 %v1789, %v1789
  %v1918 = vpack.c.b16 %v1790, %v1790
  %v1919 = vpack.c.b16 %v1791, %v1791
  %v1920 = vpack.c.b16 %v1792, %v1792
  %v1921 = vpack.c.b16 %v1793, %v1793
  %v1922 = vpack.c.b16 %v1794, %v1794
  %v1923 = vpack.c.b16 %v1795, %v1795
  %v1924 = vpack.c.b16 %v1796, %v1796
  %v1925 = vpack.c.b16 %v1797, %v1797
  %v1926 = vpack.c.b16 %v1798, %v1798
  %v1927 = vpack.c.b16 %v1799, %v1799
  %v1928 = vpack.c.b16 %v1800, %v1800
  %v1929 = vpack.c.b16 %v1801, %v1801
  %v1930 = vpack.c.b16 %v1802, %v1802
  %v1931 = vpack.c.b16 %v1803, %v1803
  %v1932 = vpack.c.b16 %v1804, %v1804
  %v1933 = vpack.c.b16 %v1805, %v1805
  %v1934 = vpack.c.b16 %v1806, %v1806
  %v1935 = vpack.c.b16 %v1807, %v1807
  %v1936 = vpack.c.b16 %v1808, %v1808
  %v1937 = vpack.c.b16 %v1809, %v1809
  %v1938 = vpack.c.b16 %v1810, %v1810
  %v1939 = vpack.c.b16 %v1811, %v1811
  %v1940 = vpack.c.b16 %v1812, %v1812
  %v1941 = vpack.c.b16 %v1813, %v1813
  %v1942 = vpack.c.b16 %v1814, %v1814
  %v1943 = vpack.c.b16 %v1815, %v1815
  %v1944 = vpack.c.b16 %v1816, %v1816
  %v1945 = vpack.c.b16 %v1817, %v1817
  %v1946 = vpack.c.b16 %v1818, %v1818
  %v1947 = vpack.c.b16 %v1819, %v1819
  %v1948 = vpack.c.b16 %v1820, %v1820
  %v1949 = vpack.c.b16 %v1821, %v1821
  %v1950 = vpack.c.b16 %v1822, %v1822
  %v1951 = vpack.c.b16 %v1823, %v1823
  %v1952 = vpack.c.b16 %v1824, %v1824
  %v1953 = vpack.c.b16 %v1825, %v1825
  %v1954 = vpack.c.b16 %v1826, %v1826
  %v1955 = vpack.c.b16 %v1827, %v1827
  %v1956 = vpack.c.b16 %v1828, %v1828
  %v1957 = vpack.c.b16 %v1829, %v1829
  %v1958 = vpack.c.b16 %v1830, %v1830
  %v1959 = vpack.c.b16 %v1831, %v1831
  %v1960 = vpack.c.b16 %v1832, %v1832
  %v1961 = vpack.c.b16 %v1833, %v1833
  %v1962 = vpack.c.b16 %v1834, %v1834
  %v1963 = vpack.c.b16 %v1835, %v1835
  %v1964 = vpack.c.b16 %v1836, %v1836
  %v1965 = vpack.c.b16 %v1837, %v1837
  %v1966 = vpack.c.b16 %v1838, %v1838
  %v1967 = vpack.c.b16 %v1839, %v1839
  %v1968 = vpack.c.b16 %v1840, %v1840
  %v1969 = vpack.c.b16 %v1841, %v1841
  %v1970 = vpack.c.b16 %v1842, %v1842
  %v1971 = vpack.c.b16 %v1843, %v1843
  %v1972 = vpack.c.b16 %v1844, %v1844
  %v1973 = vpack.c.b16 %v1845, %v1845
  %v1974 = vpack.c.b16 %v1846, %v1846
  %v1975 = vpack.c.b16 %v1847, %v1847
  %v1976 = vpack.c.b16 %v1848, %v1848
  %v1977 = vpack.c.b16 %v1849, %v1849
  %v1978 = vpack.c.b16 %v1850, %v1850
  %v1979 = vpack.c.b16 %v1851, %v1851
  %v1980 = vpack.c.b16 %v1852, %v1852
  %v1981 = vpack.c.b16 %v1853, %v1853
  %v1982 = vpack.c.b16 %v1854, %v1854
  %v1983 = vpack.c.b16 %v1855, %v1855
  %v1984 = vpack.c.b16 %v1856, %v1856
  %v1985 = vpack.c.b16 %v1857, %v1857
  %v1986 = vpack.c.b16 %v1858, %v1858
  %v1987 = vpack.c.b16 %v1859, %v1859
  %v1988 = vpack.c.b16 %v1860, %v1860
  %v1989 = vpack.c.b16 %v1861, %v1861
  %v1990 = vpack.c.b16 %v1862, %v1862
  %v1991 = vpack.c.b16 %v1863, %v1863
  %v1992 = vpack.c.b16 %v1864, %v1864
  %v1993 = vpack.c.b16 %v1865, %v1865
  %v1994 = vunpack.c.l.b16 %v1866
  %v1995 = vunpack.c.l.b16 %v1867
  %v1996 = vunpack.c.l.b16 %v1868
  %v1997 = vunpack.c.l.b16 %v1869
  %v1998 = vunpack.c.l.b16 %v1870
  %v1999 = vunpack.c.l.b16 %v1871
  %v2000 = vunpack.c.l.b16 %v1872
  %v2001 = vunpack.c.l.b16 %v1873
  %v2002 = vunpack.c.l.b16 %v1874
  %v2003 = vunpack.c.l.b16 %v1875
  %v2004 = vunpack.c.l.b16 %v1876
  %v2005 = vunpack.c.l.b16 %v1877
  %v2006 = vunpack.c.l.b16 %v1878
  %v2007 = vunpack.c.l.b16 %v1879
  %v2008 = vunpack.c.l.b16 %v1880
  %v2009 = vunpack.c.l.b16 %v1881
  %v2010 = vunpack.c.l.b16 %v1882
  %v2011 = vunpack.c.l.b16 %v1883
  %v2012 = vunpack.c.l.b16 %v1884
  %v2013 = vunpack.c.l.b16 %v1885
  %v2014 = vunpack.c.l.b16 %v1886
  %v2015 = vunpack.c.l.b16 %v1887
  %v2016 = vunpack.c.l.b16 %v1888
  %v2017 = vunpack.c.l.b16 %v1889
  %v2018 = vunpack.c.l.b16 %v1890
  %v2019 = vunpack.c.l.b16 %v1891
  %v2020 = vunpack.c.l.b16 %v1892
  %v2021 = vunpack.c.l.b16 %v1893
  %v2022 = vunpack.c.l.b16 %v1894
  %v2023 = vunpack.c.l.b16 %v1895
  %v2024 = vunpack.c.l.b16 %v1896
  %v2025 = vunpack.c.l.b16 %v1897
  %v2026 = vunpack.c.l.b16 %v1898
  %v2027 = vunpack.c.l.b16 %v1899
  %v2028 = vunpack.c.l.b16 %v1900
  %v2029 = vunpack.c.l.b16 %v1901
  %v2030 = vunpack.c.l.b16 %v1902
  %v2031 = vunpack.c.l.b16 %v1903
  %v2032 = vunpack.c.l.b16 %v1904
  %v2033 = vunpack.c.l.b16 %v1905
  %v2034 = vunpack.c.l.b16 %v1906
  %v2035 = vunpack.c.l.b16 %v1907
  %v2036 = vunpack.c.l.b16 %v1908
  %v2037 = vunpack.c.l.b16 %v1909
  %v2038 = vunpack.c.l.b16 %v1910
  %v2039 = vunpack.c.l.b16 %v1911
  %v2040 = vunpack.c.l.b16 %v1912
  %v2041 = vunpack.c.l.b16 %v1913
  %v2042 = vunpack.c.l.b16 %v1914
  %v2043 = vunpack.c.l.b16 %v1915
  %v2044 = vunpack.c.l.b16 %v1916
  %v2045 = vunpack.c.l.b16 %v1917
  %v2046 = vunpack.c.l.b16 %v1918
  %v2047 = vunpack.c.l.b16 %v1919
  %v2048 = vunpack.c.l.b16 %v1920
  %v2049 = vunpack.c.l.b16 %v1921
  %v2050 = vunpack.c.l.b16 %v1922
  %v2051 = vunpack.c.l.b16 %v1923
  %v2052 = vunpack.c.l.b16 %v1924
  %v2053 = vunpack.c.l.b16 %v1925
  %v2054 = vunpack.c.l.b16 %v1926
  %v2055 = vunpack.c.l.b16 %v1927
  %v2056 = vunpack.c.l.b16 %v1928
  %v2057 = vunpack.c.l.b16 %v1929
  %v2058 = vunpack.c.l.b16 %v1930
  %v2059 = vunpack.c.l.b16 %v1931
  %v2060 = vunpack.c.l.b16 %v1932
  %v2061 = vunpack.c.l.b16 %v1933
  %v2062 = vunpack.c.l.b16 %v1934
  %v2063 = vunpack.c.l.b16 %v1935
  %v2064 = vunpack.c.l.b16 %v1936
  %v2065 = vunpack.c.l.b16 %v1937
  %v2066 = vunpack.c.l.b16 %v1938
  %v2067 = vunpack.c.l.b16 %v1939
  %v2068 = vunpack.c.l.b16 %v1940
  %v2069 = vunpack.c.l.b16 %v1941
  %v2070 = vunpack.c.l.b16 %v1942
  %v2071 = vunpack.c.l.b16 %v1943
  %v2072 = vunpack.c.l.b16 %v1944
  %v2073 = vunpack.c.l.b16 %v1945
  %v2074 = vunpack.c.l.b16 %v1946
  %v2075 = vunpack.c.l.b16 %v1947
  %v2076 = vunpack.c.l.b16 %v1948
  %v2077 = vunpack.c.l.b16 %v1949
  %v2078 = vunpack.c.l.b16 %v1950
  %v2079 = vunpack.c.l.b16 %v1951
  %v2080 = vunpack.c.l.b16 %v1952
  %v2081 = vunpack.c.l.b16 %v1953
  %v2082 = vunpack.c.l.b16 %v1954
  %v2083 = vunpack.c.l.b16 %v1955
  %v2084 = vunpack.c.l.b16 %v1956
  %v2085 = vunpack.c.l.b16 %v1957
  %v2086 = vunpack.c.l.b16 %v1958
  %v2087 = vunpack.c.l.b16 %v1959
  %v2088 = vunpack.c.l.b16 %v1960
  %v2089 = vunpack.c.l.b16 %v1961
  %v2090 = vunpack.c.l.b16 %v1962
  %v2091 = vunpack.c.l.b16 %v1963
  %v2092 = vunpack.c.l.b16 %v1964
  %v2093 = vunpack.c.l.b16 %v1965
  %v2094 = vunpack.c.l.b16 %v1966
  %v2095 = vunpack.c.l.b16 %v1967
  %v2096 = vunpack.c.l.b16 %v1968
  %v2097 = vunpack.c.l.b16 %v1969
  %v2098 = vunpack.c.l.b16 %v1970
  %v2099 = vunpack.c.l.b16 %v1971
  %v2100 = vunpack.c.l.b16 %v1972
  %v2101 = vunpack.c.l.b16 %v1973
  %v2102 = vunpack.c.l.b16 %v1974
  %v2103 = vunpack.c.l.b16 %v1975
  %v2104 = vunpack.c.l.b16 %v1976
  %v2105 = vunpack.c.l.b16 %v1977
  %v2106 = vunpack.c.l.b16 %v1978
  %v2107 = vunpack.c.l.b16 %v1979
  %v2108 = vunpack.c.l.b16 %v1980
  %v2109 = vunpack.c.l.b16 %v1981
  %v2110 = vunpack.c.l.b16 %v1982
  %v2111 = vunpack.c.l.b16 %v1983
  %v2112 = vunpack.c.l.b16 %v1984
  %v2113 = vunpack.c.l.b16 %v1985
  %v2114 = vunpack.c.l.b16 %v1986
  %v2115 = vunpack.c.l.b16 %v1987
  %v2116 = vunpack.c.l.b16 %v1988
  %v2117 = vunpack.c.l.b16 %v1989
  %v2118 = vunpack.c.l.b16 %v1990
  %v2119 = vunpack.c.l.b16 %v1991
  %v2120 = vunpack.c.l.b16 %v1992
  %v2121 = vunpack.c.l.b16 %v1993
  %v2122 = vrot.slane %v1995, 7
  %vm2123 = vcmask 1041409
  %v2124 = vsel %vm2123, %v2122, %v1994
  %v2125 = vrot.slane %v1996, 6
  %vm2126 = vcmask 1042434
  %v2127 = vsel %vm2126, %v2125, %v2124
  %v2128 = vrot.slane %v1997, 5
  %vm2129 = vcmask 1043459
  %v2130 = vsel %vm2129, %v2128, %v2127
  %v2131 = vrot.slane %v1998, 4
  %vm2132 = vcmask 1044484
  %v2133 = vsel %vm2132, %v2131, %v2130
  %v2134 = vrot.slane %v1999, 3
  %vm2135 = vcmask 1045509
  %v2136 = vsel %vm2135, %v2134, %v2133
  %v2137 = vrot.slane %v2000, 2
  %vm2138 = vcmask 1046534
  %v2139 = vsel %vm2138, %v2137, %v2136
  %v2140 = vrot.slane %v2001, 1
  %vm2141 = vcmask 1047559
  %v2142 = vsel %vm2141, %v2140, %v2139
  %v2143 = vrot.slane %v2003, 7
  %v2144 = vsel %vm2123, %v2143, %v2002
  %v2145 = vrot.slane %v2004, 6
  %v2146 = vsel %vm2126, %v2145, %v2144
  %v2147 = vrot.slane %v2005, 5
  %v2148 = vsel %vm2129, %v2147, %v2146
  %v2149 = vrot.slane %v2006, 4
  %v2150 = vsel %vm2132, %v2149, %v2148
  %v2151 = vrot.slane %v2007, 3
  %v2152 = vsel %vm2135, %v2151, %v2150
  %v2153 = vrot.slane %v2008, 2
  %v2154 = vsel %vm2138, %v2153, %v2152
  %v2155 = vrot.slane %v2009, 1
  %v2156 = vsel %vm2141, %v2155, %v2154
  %v2157 = vrot.slane %v2011, 7
  %v2158 = vsel %vm2123, %v2157, %v2010
  %v2159 = vrot.slane %v2012, 6
  %v2160 = vsel %vm2126, %v2159, %v2158
  %v2161 = vrot.slane %v2013, 5
  %v2162 = vsel %vm2129, %v2161, %v2160
  %v2163 = vrot.slane %v2014, 4
  %v2164 = vsel %vm2132, %v2163, %v2162
  %v2165 = vrot.slane %v2015, 3
  %v2166 = vsel %vm2135, %v2165, %v2164
  %v2167 = vrot.slane %v2016, 2
  %v2168 = vsel %vm2138, %v2167, %v2166
  %v2169 = vrot.slane %v2017, 1
  %v2170 = vsel %vm2141, %v2169, %v2168
  %v2171 = vrot.slane %v2019, 7
  %v2172 = vsel %vm2123, %v2171, %v2018
  %v2173 = vrot.slane %v2020, 6
  %v2174 = vsel %vm2126, %v2173, %v2172
  %v2175 = vrot.slane %v2021, 5
  %v2176 = vsel %vm2129, %v2175, %v2174
  %v2177 = vrot.slane %v2022, 4
  %v2178 = vsel %vm2132, %v2177, %v2176
  %v2179 = vrot.slane %v2023, 3
  %v2180 = vsel %vm2135, %v2179, %v2178
  %v2181 = vrot.slane %v2024, 2
  %v2182 = vsel %vm2138, %v2181, %v2180
  %v2183 = vrot.slane %v2025, 1
  %v2184 = vsel %vm2141, %v2183, %v2182
  %v2185 = vrot.slane %v2027, 7
  %v2186 = vsel %vm2123, %v2185, %v2026
  %v2187 = vrot.slane %v2028, 6
  %v2188 = vsel %vm2126, %v2187, %v2186
  %v2189 = vrot.slane %v2029, 5
  %v2190 = vsel %vm2129, %v2189, %v2188
  %v2191 = vrot.slane %v2030, 4
  %v2192 = vsel %vm2132, %v2191, %v2190
  %v2193 = vrot.slane %v2031, 3
  %v2194 = vsel %vm2135, %v2193, %v2192
  %v2195 = vrot.slane %v2032, 2
  %v2196 = vsel %vm2138, %v2195, %v2194
  %v2197 = vrot.slane %v2033, 1
  %v2198 = vsel %vm2141, %v2197, %v2196
  %v2199 = vrot.slane %v2035, 7
  %v2200 = vsel %vm2123, %v2199, %v2034
  %v2201 = vrot.slane %v2036, 6
  %v2202 = vsel %vm2126, %v2201, %v2200
  %v2203 = vrot.slane %v2037, 5
  %v2204 = vsel %vm2129, %v2203, %v2202
  %v2205 = vrot.slane %v2038, 4
  %v2206 = vsel %vm2132, %v2205, %v2204
  %v2207 = vrot.slane %v2039, 3
  %v2208 = vsel %vm2135, %v2207, %v2206
  %v2209 = vrot.slane %v2040, 2
  %v2210 = vsel %vm2138, %v2209, %v2208
  %v2211 = vrot.slane %v2041, 1
  %v2212 = vsel %vm2141, %v2211, %v2210
  %v2213 = vrot.slane %v2043, 7
  %v2214 = vsel %vm2123, %v2213, %v2042
  %v2215 = vrot.slane %v2044, 6
  %v2216 = vsel %vm2126, %v2215, %v2214
  %v2217 = vrot.slane %v2045, 5
  %v2218 = vsel %vm2129, %v2217, %v2216
  %v2219 = vrot.slane %v2046, 4
  %v2220 = vsel %vm2132, %v2219, %v2218
  %v2221 = vrot.slane %v2047, 3
  %v2222 = vsel %vm2135, %v2221, %v2220
  %v2223 = vrot.slane %v2048, 2
  %v2224 = vsel %vm2138, %v2223, %v2222
  %v2225 = vrot.slane %v2049, 1
  %v2226 = vsel %vm2141, %v2225, %v2224
  %v2227 = vrot.slane %v2051, 7
  %v2228 = vsel %vm2123, %v2227, %v2050
  %v2229 = vrot.slane %v2052, 6
  %v2230 = vsel %vm2126, %v2229, %v2228
  %v2231 = vrot.slane %v2053, 5
  %v2232 = vsel %vm2129, %v2231, %v2230
  %v2233 = vrot.slane %v2054, 4
  %v2234 = vsel %vm2132, %v2233, %v2232
  %v2235 = vrot.slane %v2055, 3
  %v2236 = vsel %vm2135, %v2235, %v2234
  %v2237 = vrot.slane %v2056, 2
  %v2238 = vsel %vm2138, %v2237, %v2236
  %v2239 = vrot.slane %v2057, 1
  %v2240 = vsel %vm2141, %v2239, %v2238
  %v2241 = vrot.slane %v2059, 7
  %v2242 = vsel %vm2123, %v2241, %v2058
  %v2243 = vrot.slane %v2060, 6
  %v2244 = vsel %vm2126, %v2243, %v2242
  %v2245 = vrot.slane %v2061, 5
  %v2246 = vsel %vm2129, %v2245, %v2244
  %v2247 = vrot.slane %v2062, 4
  %v2248 = vsel %vm2132, %v2247, %v2246
  %v2249 = vrot.slane %v2063, 3
  %v2250 = vsel %vm2135, %v2249, %v2248
  %v2251 = vrot.slane %v2064, 2
  %v2252 = vsel %vm2138, %v2251, %v2250
  %v2253 = vrot.slane %v2065, 1
  %v2254 = vsel %vm2141, %v2253, %v2252
  %v2255 = vrot.slane %v2067, 7
  %v2256 = vsel %vm2123, %v2255, %v2066
  %v2257 = vrot.slane %v2068, 6
  %v2258 = vsel %vm2126, %v2257, %v2256
  %v2259 = vrot.slane %v2069, 5
  %v2260 = vsel %vm2129, %v2259, %v2258
  %v2261 = vrot.slane %v2070, 4
  %v2262 = vsel %vm2132, %v2261, %v2260
  %v2263 = vrot.slane %v2071, 3
  %v2264 = vsel %vm2135, %v2263, %v2262
  %v2265 = vrot.slane %v2072, 2
  %v2266 = vsel %vm2138, %v2265, %v2264
  %v2267 = vrot.slane %v2073, 1
  %v2268 = vsel %vm2141, %v2267, %v2266
  %v2269 = vrot.slane %v2075, 7
  %v2270 = vsel %vm2123, %v2269, %v2074
  %v2271 = vrot.slane %v2076, 6
  %v2272 = vsel %vm2126, %v2271, %v2270
  %v2273 = vrot.slane %v2077, 5
  %v2274 = vsel %vm2129, %v2273, %v2272
  %v2275 = vrot.slane %v2078, 4
  %v2276 = vsel %vm2132, %v2275, %v2274
  %v2277 = vrot.slane %v2079, 3
  %v2278 = vsel %vm2135, %v2277, %v2276
  %v2279 = vrot.slane %v2080, 2
  %v2280 = vsel %vm2138, %v2279, %v2278
  %v2281 = vrot.slane %v2081, 1
  %v2282 = vsel %vm2141, %v2281, %v2280
  %v2283 = vrot.slane %v2083, 7
  %v2284 = vsel %vm2123, %v2283, %v2082
  %v2285 = vrot.slane %v2084, 6
  %v2286 = vsel %vm2126, %v2285, %v2284
  %v2287 = vrot.slane %v2085, 5
  %v2288 = vsel %vm2129, %v2287, %v2286
  %v2289 = vrot.slane %v2086, 4
  %v2290 = vsel %vm2132, %v2289, %v2288
  %v2291 = vrot.slane %v2087, 3
  %v2292 = vsel %vm2135, %v2291, %v2290
  %v2293 = vrot.slane %v2088, 2
  %v2294 = vsel %vm2138, %v2293, %v2292
  %v2295 = vrot.slane %v2089, 1
  %v2296 = vsel %vm2141, %v2295, %v2294
  %v2297 = vrot.slane %v2091, 7
  %v2298 = vsel %vm2123, %v2297, %v2090
  %v2299 = vrot.slane %v2092, 6
  %v2300 = vsel %vm2126, %v2299, %v2298
  %v2301 = vrot.slane %v2093, 5
  %v2302 = vsel %vm2129, %v2301, %v2300
  %v2303 = vrot.slane %v2094, 4
  %v2304 = vsel %vm2132, %v2303, %v2302
  %v2305 = vrot.slane %v2095, 3
  %v2306 = vsel %vm2135, %v2305, %v2304
  %v2307 = vrot.slane %v2096, 2
  %v2308 = vsel %vm2138, %v2307, %v2306
  %v2309 = vrot.slane %v2097, 1
  %v2310 = vsel %vm2141, %v2309, %v2308
  %v2311 = vrot.slane %v2099, 7
  %v2312 = vsel %vm2123, %v2311, %v2098
  %v2313 = vrot.slane %v2100, 6
  %v2314 = vsel %vm2126, %v2313, %v2312
  %v2315 = vrot.slane %v2101, 5
  %v2316 = vsel %vm2129, %v2315, %v2314
  %v2317 = vrot.slane %v2102, 4
  %v2318 = vsel %vm2132, %v2317, %v2316
  %v2319 = vrot.slane %v2103, 3
  %v2320 = vsel %vm2135, %v2319, %v2318
  %v2321 = vrot.slane %v2104, 2
  %v2322 = vsel %vm2138, %v2321, %v2320
  %v2323 = vrot.slane %v2105, 1
  %v2324 = vsel %vm2141, %v2323, %v2322
  %v2325 = vrot.slane %v2107, 7
  %v2326 = vsel %vm2123, %v2325, %v2106
  %v2327 = vrot.slane %v2108, 6
  %v2328 = vsel %vm2126, %v2327, %v2326
  %v2329 = vrot.slane %v2109, 5
  %v2330 = vsel %vm2129, %v2329, %v2328
  %v2331 = vrot.slane %v2110, 4
  %v2332 = vsel %vm2132, %v2331, %v2330
  %v2333 = vrot.slane %v2111, 3
  %v2334 = vsel %vm2135, %v2333, %v2332
  %v2335 = vrot.slane %v2112, 2
  %v2336 = vsel %vm2138, %v2335, %v2334
  %v2337 = vrot.slane %v2113, 1
  %v2338 = vsel %vm2141, %v2337, %v2336
  %v2339 = vrot.slane %v2115, 7
  %v2340 = vsel %vm2123, %v2339, %v2114
  %v2341 = vrot.slane %v2116, 6
  %v2342 = vsel %vm2126, %v2341, %v2340
  %v2343 = vrot.slane %v2117, 5
  %v2344 = vsel %vm2129, %v2343, %v2342
  %v2345 = vrot.slane %v2118, 4
  %v2346 = vsel %vm2132, %v2345, %v2344
  %v2347 = vrot.slane %v2119, 3
  %v2348 = vsel %vm2135, %v2347, %v2346
  %v2349 = vrot.slane %v2120, 2
  %v2350 = vsel %vm2138, %v2349, %v2348
  %v2351 = vrot.slane %v2121, 1
  %v2352 = vsel %vm2141, %v2351, %v2350
  %v2353 = vpack.c.b16 %v2142, %v2142
  %v2354 = vpack.c.b16 %v2156, %v2156
  %v2355 = vpack.c.b16 %v2170, %v2170
  %v2356 = vpack.c.b16 %v2184, %v2184
  %v2357 = vpack.c.b16 %v2198, %v2198
  %v2358 = vpack.c.b16 %v2212, %v2212
  %v2359 = vpack.c.b16 %v2226, %v2226
  %v2360 = vpack.c.b16 %v2240, %v2240
  %v2361 = vpack.c.b16 %v2254, %v2254
  %v2362 = vpack.c.b16 %v2268, %v2268
  %v2363 = vpack.c.b16 %v2282, %v2282
  %v2364 = vpack.c.b16 %v2296, %v2296
  %v2365 = vpack.c.b16 %v2310, %v2310
  %v2366 = vpack.c.b16 %v2324, %v2324
  %v2367 = vpack.c.b16 %v2338, %v2338
  %v2368 = vpack.c.b16 %v2352, %v2352
  %v2370 = vshrl.u32 %v2353, 16
  %v2372 = vrot.slane %v2370, 7
  %v2373 = vshll.u32 %v2353, 16
  %v2375 = vor.u32 %v2372, %v2373
  %v2377 = vshrl.u32 %v2354, 16
  %v2379 = vrot.slane %v2377, 7
  %v2380 = vshll.u32 %v2354, 16
  %v2382 = vor.u32 %v2379, %v2380
  %v2384 = vshrl.u32 %v2355, 16
  %v2386 = vrot.slane %v2384, 7
  %v2387 = vshll.u32 %v2355, 16
  %v2389 = vor.u32 %v2386, %v2387
  %v2391 = vshrl.u32 %v2356, 16
  %v2393 = vrot.slane %v2391, 7
  %v2394 = vshll.u32 %v2356, 16
  %v2396 = vor.u32 %v2393, %v2394
  %v2398 = vshrl.u32 %v2357, 16
  %v2400 = vrot.slane %v2398, 7
  %v2401 = vshll.u32 %v2357, 16
  %v2403 = vor.u32 %v2400, %v2401
  %v2405 = vshrl.u32 %v2358, 16
  %v2407 = vrot.slane %v2405, 7
  %v2408 = vshll.u32 %v2358, 16
  %v2410 = vor.u32 %v2407, %v2408
  %v2412 = vshrl.u32 %v2359, 16
  %v2414 = vrot.slane %v2412, 7
  %v2415 = vshll.u32 %v2359, 16
  %v2417 = vor.u32 %v2414, %v2415
  %v2419 = vshrl.u32 %v2360, 16
  %v2421 = vrot.slane %v2419, 7
  %v2422 = vshll.u32 %v2360, 16
  %v2424 = vor.u32 %v2421, %v2422
  %v2426 = vshrl.u32 0, 16
  %v2428 = vrot.slane %v2426, 7
  %v2429 = vshll.u32 0, 16
  %v2431 = vor.u32 %v2428, %v2429
  %v2433 = vshrl.u32 %v2361, 16
  %v2435 = vrot.slane %v2433, 7
  %v2436 = vshll.u32 %v2361, 16
  %v2438 = vor.u32 %v2435, %v2436
  %v2440 = vshrl.u32 %v2362, 16
  %v2442 = vrot.slane %v2440, 7
  %v2443 = vshll.u32 %v2362, 16
  %v2445 = vor.u32 %v2442, %v2443
  %v2447 = vshrl.u32 %v2363, 16
  %v2449 = vrot.slane %v2447, 7
  %v2450 = vshll.u32 %v2363, 16
  %v2452 = vor.u32 %v2449, %v2450
  %v2454 = vshrl.u32 %v2364, 16
  %v2456 = vrot.slane %v2454, 7
  %v2457 = vshll.u32 %v2364, 16
  %v2459 = vor.u32 %v2456, %v2457
  %v2461 = vshrl.u32 %v2365, 16
  %v2463 = vrot.slane %v2461, 7
  %v2464 = vshll.u32 %v2365, 16
  %v2466 = vor.u32 %v2463, %v2464
  %v2468 = vshrl.u32 %v2366, 16
  %v2470 = vrot.slane %v2468, 7
  %v2471 = vshll.u32 %v2366, 16
  %v2473 = vor.u32 %v2470, %v2471
  %v2475 = vshrl.u32 %v2367, 16
  %v2477 = vrot.slane %v2475, 7
  %v2478 = vshll.u32 %v2367, 16
  %v2480 = vor.u32 %v2477, %v2478
  %v2482 = vshrl.u32 %v2368, 16
  %v2484 = vrot.slane %v2482, 7
  %v2485 = vshll.u32 %v2368, 16
  %v2487 = vor.u32 %v2484, %v2485
  %vm2505 = vcmask 1040384
  %vm2506 = vsmask.f32 256
  %vm2507 = vmand %vm2505, %vm2506
  %v2508 = vsel %vm2507, 0, %v2375
  %v2509 = vsel %vm2507, 0, %v2382
  %v2510 = vsel %vm2507, 0, %v2389
  %v2511 = vsel %vm2507, 0, %v2396
  %v2512 = vsel %vm2507, 0, %v2403
  %v2513 = vsel %vm2507, 0, %v2410
  %v2514 = vsel %vm2507, 0, %v2417
  %v2515 = vsel %vm2507, 0, %v2424
  %v2516 = vsel %vm2507, 0, %v2431
  %v2517 = vsel %vm2507, 0, %v2438
  %v2518 = vsel %vm2507, 0, %v2445
  %v2519 = vsel %vm2507, 0, %v2452
  %v2520 = vsel %vm2507, 0, %v2459
  %v2521 = vsel %vm2507, 0, %v2466
  %v2522 = vsel %vm2507, 0, %v2473
  %v2523 = vsel %vm2507, 0, %v2480
  %v2524 = vsel %vm2507, 0, %v2487
  %vm2525 = vcmask 1044480
  %vm2526 = vsmask.f32 4352
  %vm2527 = vmand %vm2525, %vm2526
  %v2528 = vsel %vm2527, %v2508, 0
  %v2529 = vsel %vm2527, %v2509, 0
  %v2530 = vsel %vm2527, %v2510, 0
  %v2531 = vsel %vm2527, %v2511, 0
  %v2532 = vsel %vm2527, %v2512, 0
  %v2533 = vsel %vm2527, %v2513, 0
  %v2534 = vsel %vm2527, %v2514, 0
  %v2535 = vsel %vm2527, %v2515, 0
  %v2536 = vsel %vm2527, %v2516, 0
  %v2537 = vsel %vm2527, %v2517, 0
  %v2538 = vsel %vm2527, %v2518, 0
  %v2539 = vsel %vm2527, %v2519, 0
  %v2540 = vsel %vm2527, %v2520, 0
  %v2541 = vsel %vm2527, %v2521, 0
  %v2542 = vsel %vm2527, %v2522, 0
  %v2543 = vsel %vm2527, %v2523, 0
  %v2544 = vsel %vm2527, %v2524, 0
  %v2545 = vrot.slane %v1994, 1
  %v2546 = vsel %vm2123, %v1995, %v2545
  %v2547 = vrot.slane %v1996, 7
  %v2548 = vsel %vm2126, %v2547, %v2546
  %v2549 = vrot.slane %v1997, 6
  %v2550 = vsel %vm2129, %v2549, %v2548
  %v2551 = vrot.slane %v1998, 5
  %v2552 = vsel %vm2132, %v2551, %v2550
  %v2553 = vrot.slane %v1999, 4
  %v2554 = vsel %vm2135, %v2553, %v2552
  %v2555 = vrot.slane %v2000, 3
  %v2556 = vsel %vm2138, %v2555, %v2554
  %v2557 = vrot.slane %v2001, 2
  %v2558 = vsel %vm2141, %v2557, %v2556
  %v2559 = vrot.slane %v2002, 1
  %v2560 = vsel %vm2123, %v2003, %v2559
  %v2561 = vrot.slane %v2004, 7
  %v2562 = vsel %vm2126, %v2561, %v2560
  %v2563 = vrot.slane %v2005, 6
  %v2564 = vsel %vm2129, %v2563, %v2562
  %v2565 = vrot.slane %v2006, 5
  %v2566 = vsel %vm2132, %v2565, %v2564
  %v2567 = vrot.slane %v2007, 4
  %v2568 = vsel %vm2135, %v2567, %v2566
  %v2569 = vrot.slane %v2008, 3
  %v2570 = vsel %vm2138, %v2569, %v2568
  %v2571 = vrot.slane %v2009, 2
  %v2572 = vsel %vm2141, %v2571, %v2570
  %v2573 = vrot.slane %v2010, 1
  %v2574 = vsel %vm2123, %v2011, %v2573
  %v2575 = vrot.slane %v2012, 7
  %v2576 = vsel %vm2126, %v2575, %v2574
  %v2577 = vrot.slane %v2013, 6
  %v2578 = vsel %vm2129, %v2577, %v2576
  %v2579 = vrot.slane %v2014, 5
  %v2580 = vsel %vm2132, %v2579, %v2578
  %v2581 = vrot.slane %v2015, 4
  %v2582 = vsel %vm2135, %v2581, %v2580
  %v2583 = vrot.slane %v2016, 3
  %v2584 = vsel %vm2138, %v2583, %v2582
  %v2585 = vrot.slane %v2017, 2
  %v2586 = vsel %vm2141, %v2585, %v2584
  %v2587 = vrot.slane %v2018, 1
  %v2588 = vsel %vm2123, %v2019, %v2587
  %v2589 = vrot.slane %v2020, 7
  %v2590 = vsel %vm2126, %v2589, %v2588
  %v2591 = vrot.slane %v2021, 6
  %v2592 = vsel %vm2129, %v2591, %v2590
  %v2593 = vrot.slane %v2022, 5
  %v2594 = vsel %vm2132, %v2593, %v2592
  %v2595 = vrot.slane %v2023, 4
  %v2596 = vsel %vm2135, %v2595, %v2594
  %v2597 = vrot.slane %v2024, 3
  %v2598 = vsel %vm2138, %v2597, %v2596
  %v2599 = vrot.slane %v2025, 2
  %v2600 = vsel %vm2141, %v2599, %v2598
  %v2601 = vrot.slane %v2026, 1
  %v2602 = vsel %vm2123, %v2027, %v2601
  %v2603 = vrot.slane %v2028, 7
  %v2604 = vsel %vm2126, %v2603, %v2602
  %v2605 = vrot.slane %v2029, 6
  %v2606 = vsel %vm2129, %v2605, %v2604
  %v2607 = vrot.slane %v2030, 5
  %v2608 = vsel %vm2132, %v2607, %v2606
  %v2609 = vrot.slane %v2031, 4
  %v2610 = vsel %vm2135, %v2609, %v2608
  %v2611 = vrot.slane %v2032, 3
  %v2612 = vsel %vm2138, %v2611, %v2610
  %v2613 = vrot.slane %v2033, 2
  %v2614 = vsel %vm2141, %v2613, %v2612
  %v2615 = vrot.slane %v2034, 1
  %v2616 = vsel %vm2123, %v2035, %v2615
  %v2617 = vrot.slane %v2036, 7
  %v2618 = vsel %vm2126, %v2617, %v2616
  %v2619 = vrot.slane %v2037, 6
  %v2620 = vsel %vm2129, %v2619, %v2618
  %v2621 = vrot.slane %v2038, 5
  %v2622 = vsel %vm2132, %v2621, %v2620
  %v2623 = vrot.slane %v2039, 4
  %v2624 = vsel %vm2135, %v2623, %v2622
  %v2625 = vrot.slane %v2040, 3
  %v2626 = vsel %vm2138, %v2625, %v2624
  %v2627 = vrot.slane %v2041, 2
  %v2628 = vsel %vm2141, %v2627, %v2626
  %v2629 = vrot.slane %v2042, 1
  %v2630 = vsel %vm2123, %v2043, %v2629
  %v2631 = vrot.slane %v2044, 7
  %v2632 = vsel %vm2126, %v2631, %v2630
  %v2633 = vrot.slane %v2045, 6
  %v2634 = vsel %vm2129, %v2633, %v2632
  %v2635 = vrot.slane %v2046, 5
  %v2636 = vsel %vm2132, %v2635, %v2634
  %v2637 = vrot.slane %v2047, 4
  %v2638 = vsel %vm2135, %v2637, %v2636
  %v2639 = vrot.slane %v2048, 3
  %v2640 = vsel %vm2138, %v2639, %v2638
  %v2641 = vrot.slane %v2049, 2
  %v2642 = vsel %vm2141, %v2641, %v2640
  %v2643 = vrot.slane %v2050, 1
  %v2644 = vsel %vm2123, %v2051, %v2643
  %v2645 = vrot.slane %v2052, 7
  %v2646 = vsel %vm2126, %v2645, %v2644
  %v2647 = vrot.slane %v2053, 6
  %v2648 = vsel %vm2129, %v2647, %v2646
  %v2649 = vrot.slane %v2054, 5
  %v2650 = vsel %vm2132, %v2649, %v2648
  %v2651 = vrot.slane %v2055, 4
  %v2652 = vsel %vm2135, %v2651, %v2650
  %v2653 = vrot.slane %v2056, 3
  %v2654 = vsel %vm2138, %v2653, %v2652
  %v2655 = vrot.slane %v2057, 2
  %v2656 = vsel %vm2141, %v2655, %v2654
  %v2657 = vrot.slane %v2058, 1
  %v2658 = vsel %vm2123, %v2059, %v2657
  %v2659 = vrot.slane %v2060, 7
  %v2660 = vsel %vm2126, %v2659, %v2658
  %v2661 = vrot.slane %v2061, 6
  %v2662 = vsel %vm2129, %v2661, %v2660
  %v2663 = vrot.slane %v2062, 5
  %v2664 = vsel %vm2132, %v2663, %v2662
  %v2665 = vrot.slane %v2063, 4
  %v2666 = vsel %vm2135, %v2665, %v2664
  %v2667 = vrot.slane %v2064, 3
  %v2668 = vsel %vm2138, %v2667, %v2666
  %v2669 = vrot.slane %v2065, 2
  %v2670 = vsel %vm2141, %v2669, %v2668
  %v2671 = vrot.slane %v2066, 1
  %v2672 = vsel %vm2123, %v2067, %v2671
  %v2673 = vrot.slane %v2068, 7
  %v2674 = vsel %vm2126, %v2673, %v2672
  %v2675 = vrot.slane %v2069, 6
  %v2676 = vsel %vm2129, %v2675, %v2674
  %v2677 = vrot.slane %v2070, 5
  %v2678 = vsel %vm2132, %v2677, %v2676
  %v2679 = vrot.slane %v2071, 4
  %v2680 = vsel %vm2135, %v2679, %v2678
  %v2681 = vrot.slane %v2072, 3
  %v2682 = vsel %vm2138, %v2681, %v2680
  %v2683 = vrot.slane %v2073, 2
  %v2684 = vsel %vm2141, %v2683, %v2682
  %v2685 = vrot.slane %v2074, 1
  %v2686 = vsel %vm2123, %v2075, %v2685
  %v2687 = vrot.slane %v2076, 7
  %v2688 = vsel %vm2126, %v2687, %v2686
  %v2689 = vrot.slane %v2077, 6
  %v2690 = vsel %vm2129, %v2689, %v2688
  %v2691 = vrot.slane %v2078, 5
  %v2692 = vsel %vm2132, %v2691, %v2690
  %v2693 = vrot.slane %v2079, 4
  %v2694 = vsel %vm2135, %v2693, %v2692
  %v2695 = vrot.slane %v2080, 3
  %v2696 = vsel %vm2138, %v2695, %v2694
  %v2697 = vrot.slane %v2081, 2
  %v2698 = vsel %vm2141, %v2697, %v2696
  %v2699 = vrot.slane %v2082, 1
  %v2700 = vsel %vm2123, %v2083, %v2699
  %v2701 = vrot.slane %v2084, 7
  %v2702 = vsel %vm2126, %v2701, %v2700
  %v2703 = vrot.slane %v2085, 6
  %v2704 = vsel %vm2129, %v2703, %v2702
  %v2705 = vrot.slane %v2086, 5
  %v2706 = vsel %vm2132, %v2705, %v2704
  %v2707 = vrot.slane %v2087, 4
  %v2708 = vsel %vm2135, %v2707, %v2706
  %v2709 = vrot.slane %v2088, 3
  %v2710 = vsel %vm2138, %v2709, %v2708
  %v2711 = vrot.slane %v2089, 2
  %v2712 = vsel %vm2141, %v2711, %v2710
  %v2713 = vrot.slane %v2090, 1
  %v2714 = vsel %vm2123, %v2091, %v2713
  %v2715 = vrot.slane %v2092, 7
  %v2716 = vsel %vm2126, %v2715, %v2714
  %v2717 = vrot.slane %v2093, 6
  %v2718 = vsel %vm2129, %v2717, %v2716
  %v2719 = vrot.slane %v2094, 5
  %v2720 = vsel %vm2132, %v2719, %v2718
  %v2721 = vrot.slane %v2095, 4
  %v2722 = vsel %vm2135, %v2721, %v2720
  %v2723 = vrot.slane %v2096, 3
  %v2724 = vsel %vm2138, %v2723, %v2722
  %v2725 = vrot.slane %v2097, 2
  %v2726 = vsel %vm2141, %v2725, %v2724
  %v2727 = vrot.slane %v2098, 1
  %v2728 = vsel %vm2123, %v2099, %v2727
  %v2729 = vrot.slane %v2100, 7
  %v2730 = vsel %vm2126, %v2729, %v2728
  %v2731 = vrot.slane %v2101, 6
  %v2732 = vsel %vm2129, %v2731, %v2730
  %v2733 = vrot.slane %v2102, 5
  %v2734 = vsel %vm2132, %v2733, %v2732
  %v2735 = vrot.slane %v2103, 4
  %v2736 = vsel %vm2135, %v2735, %v2734
  %v2737 = vrot.slane %v2104, 3
  %v2738 = vsel %vm2138, %v2737, %v2736
  %v2739 = vrot.slane %v2105, 2
  %v2740 = vsel %vm2141, %v2739, %v2738
  %v2741 = vrot.slane %v2106, 1
  %v2742 = vsel %vm2123, %v2107, %v2741
  %v2743 = vrot.slane %v2108, 7
  %v2744 = vsel %vm2126, %v2743, %v2742
  %v2745 = vrot.slane %v2109, 6
  %v2746 = vsel %vm2129, %v2745, %v2744
  %v2747 = vrot.slane %v2110, 5
  %v2748 = vsel %vm2132, %v2747, %v2746
  %v2749 = vrot.slane %v2111, 4
  %v2750 = vsel %vm2135, %v2749, %v2748
  %v2751 = vrot.slane %v2112, 3
  %v2752 = vsel %vm2138, %v2751, %v2750
  %v2753 = vrot.slane %v2113, 2
  %v2754 = vsel %vm2141, %v2753, %v2752
  %v2755 = vrot.slane %v2114, 1
  %v2756 = vsel %vm2123, %v2115, %v2755
  %v2757 = vrot.slane %v2116, 7
  %v2758 = vsel %vm2126, %v2757, %v2756
  %v2759 = vrot.slane %v2117, 6
  %v2760 = vsel %vm2129, %v2759, %v2758
  %v2761 = vrot.slane %v2118, 5
  %v2762 = vsel %vm2132, %v2761, %v2760
  %v2763 = vrot.slane %v2119, 4
  %v2764 = vsel %vm2135, %v2763, %v2762
  %v2765 = vrot.slane %v2120, 3
  %v2766 = vsel %vm2138, %v2765, %v2764
  %v2767 = vrot.slane %v2121, 2
  %v2768 = vsel %vm2141, %v2767, %v2766
  %v2769 = vpack.c.b16 %v2558, %v2558
  %v2770 = vpack.c.b16 %v2572, %v2572
  %v2771 = vpack.c.b16 %v2586, %v2586
  %v2772 = vpack.c.b16 %v2600, %v2600
  %v2773 = vpack.c.b16 %v2614, %v2614
  %v2774 = vpack.c.b16 %v2628, %v2628
  %v2775 = vpack.c.b16 %v2642, %v2642
  %v2776 = vpack.c.b16 %v2656, %v2656
  %v2777 = vpack.c.b16 %v2670, %v2670
  %v2778 = vpack.c.b16 %v2684, %v2684
  %v2779 = vpack.c.b16 %v2698, %v2698
  %v2780 = vpack.c.b16 %v2712, %v2712
  %v2781 = vpack.c.b16 %v2726, %v2726
  %v2782 = vpack.c.b16 %v2740, %v2740
  %v2783 = vpack.c.b16 %v2754, %v2754
  %v2784 = vpack.c.b16 %v2768, %v2768
  %v2786 = vshrl.u32 %v2769, 16
  %v2788 = vrot.slane %v2786, 7
  %v2789 = vshll.u32 %v2769, 16
  %v2791 = vor.u32 %v2788, %v2789
  %v2793 = vshrl.u32 %v2770, 16
  %v2795 = vrot.slane %v2793, 7
  %v2796 = vshll.u32 %v2770, 16
  %v2798 = vor.u32 %v2795, %v2796
  %v2800 = vshrl.u32 %v2771, 16
  %v2802 = vrot.slane %v2800, 7
  %v2803 = vshll.u32 %v2771, 16
  %v2805 = vor.u32 %v2802, %v2803
  %v2807 = vshrl.u32 %v2772, 16
  %v2809 = vrot.slane %v2807, 7
  %v2810 = vshll.u32 %v2772, 16
  %v2812 = vor.u32 %v2809, %v2810
  %v2814 = vshrl.u32 %v2773, 16
  %v2816 = vrot.slane %v2814, 7
  %v2817 = vshll.u32 %v2773, 16
  %v2819 = vor.u32 %v2816, %v2817
  %v2821 = vshrl.u32 %v2774, 16
  %v2823 = vrot.slane %v2821, 7
  %v2824 = vshll.u32 %v2774, 16
  %v2826 = vor.u32 %v2823, %v2824
  %v2828 = vshrl.u32 %v2775, 16
  %v2830 = vrot.slane %v2828, 7
  %v2831 = vshll.u32 %v2775, 16
  %v2833 = vor.u32 %v2830, %v2831
  %v2835 = vshrl.u32 %v2776, 16
  %v2837 = vrot.slane %v2835, 7
  %v2838 = vshll.u32 %v2776, 16
  %v2840 = vor.u32 %v2837, %v2838
  %v2842 = vshrl.u32 %v2777, 16
  %v2844 = vrot.slane %v2842, 7
  %v2845 = vshll.u32 %v2777, 16
  %v2847 = vor.u32 %v2844, %v2845
  %v2849 = vshrl.u32 %v2778, 16
  %v2851 = vrot.slane %v2849, 7
  %v2852 = vshll.u32 %v2778, 16
  %v2854 = vor.u32 %v2851, %v2852
  %v2856 = vshrl.u32 %v2779, 16
  %v2858 = vrot.slane %v2856, 7
  %v2859 = vshll.u32 %v2779, 16
  %v2861 = vor.u32 %v2858, %v2859
  %v2863 = vshrl.u32 %v2780, 16
  %v2865 = vrot.slane %v2863, 7
  %v2866 = vshll.u32 %v2780, 16
  %v2868 = vor.u32 %v2865, %v2866
  %v2870 = vshrl.u32 %v2781, 16
  %v2872 = vrot.slane %v2870, 7
  %v2873 = vshll.u32 %v2781, 16
  %v2875 = vor.u32 %v2872, %v2873
  %v2877 = vshrl.u32 %v2782, 16
  %v2879 = vrot.slane %v2877, 7
  %v2880 = vshll.u32 %v2782, 16
  %v2882 = vor.u32 %v2879, %v2880
  %v2884 = vshrl.u32 %v2783, 16
  %v2886 = vrot.slane %v2884, 7
  %v2887 = vshll.u32 %v2783, 16
  %v2889 = vor.u32 %v2886, %v2887
  %v2891 = vshrl.u32 %v2784, 16
  %v2893 = vrot.slane %v2891, 7
  %v2894 = vshll.u32 %v2784, 16
  %v2896 = vor.u32 %v2893, %v2894
  %v2913 = vsel %vm2507, 0, %v2791
  %v2914 = vsel %vm2507, 0, %v2798
  %v2915 = vsel %vm2507, 0, %v2805
  %v2916 = vsel %vm2507, 0, %v2812
  %v2917 = vsel %vm2507, 0, %v2819
  %v2918 = vsel %vm2507, 0, %v2826
  %v2919 = vsel %vm2507, 0, %v2833
  %v2920 = vsel %vm2507, 0, %v2840
  %v2921 = vsel %vm2507, 0, %v2847
  %v2922 = vsel %vm2507, 0, %v2854
  %v2923 = vsel %vm2507, 0, %v2861
  %v2924 = vsel %vm2507, 0, %v2868
  %v2925 = vsel %vm2507, 0, %v2875
  %v2926 = vsel %vm2507, 0, %v2882
  %v2927 = vsel %vm2507, 0, %v2889
  %v2928 = vsel %vm2507, 0, %v2896
  %v2929 = vsel %vm2527, %v2913, 0
  %v2930 = vsel %vm2527, %v2914, 0
  %v2931 = vsel %vm2527, %v2915, 0
  %v2932 = vsel %vm2527, %v2916, 0
  %v2933 = vsel %vm2527, %v2917, 0
  %v2934 = vsel %vm2527, %v2918, 0
  %v2935 = vsel %vm2527, %v2919, 0
  %v2936 = vsel %vm2527, %v2920, 0
  %v2937 = vsel %vm2527, %v2921, 0
  %v2938 = vsel %vm2527, %v2922, 0
  %v2939 = vsel %vm2527, %v2923, 0
  %v2940 = vsel %vm2527, %v2924, 0
  %v2941 = vsel %vm2527, %v2925, 0
  %v2942 = vsel %vm2527, %v2926, 0
  %v2943 = vsel %vm2527, %v2927, 0
  %v2944 = vsel %vm2527, %v2928, 0
  %v2945 = vpack.c.bf16 %v972, %v972
  %v2946 = vpack.c.bf16 %v1104, %v1104
  %v2947 = vpack.c.bf16 %v1105, %v1105
  %v2948 = vpack.c.bf16 %v1106, %v1106
  %v2949 = vpack.c.bf16 %v973, %v973
  %v2950 = vpack.c.bf16 %v1107, %v1107
  %v2951 = vpack.c.bf16 %v1108, %v1108
  %v2952 = vpack.c.bf16 %v1109, %v1109
  %v2953 = vpack.c.bf16 %v976, %v976
  %v2954 = vpack.c.bf16 %v1116, %v1116
  %v2955 = vpack.c.bf16 %v1117, %v1117
  %v2956 = vpack.c.bf16 %v1118, %v1118
  %v2957 = vpack.c.bf16 %v977, %v977
  %v2958 = vpack.c.bf16 %v1119, %v1119
  %v2959 = vpack.c.bf16 %v1120, %v1120
  %v2960 = vpack.c.bf16 %v1121, %v1121
  %v2961 = vpack.c.bf16 %v980, %v980
  %v2962 = vpack.c.bf16 %v1128, %v1128
  %v2963 = vpack.c.bf16 %v1129, %v1129
  %v2964 = vpack.c.bf16 %v1130, %v1130
  %v2965 = vpack.c.bf16 %v981, %v981
  %v2966 = vpack.c.bf16 %v1131, %v1131
  %v2967 = vpack.c.bf16 %v1132, %v1132
  %v2968 = vpack.c.bf16 %v1133, %v1133
  %v2969 = vpack.c.bf16 %v984, %v984
  %v2970 = vpack.c.bf16 %v1140, %v1140
  %v2971 = vpack.c.bf16 %v1141, %v1141
  %v2972 = vpack.c.bf16 %v1142, %v1142
  %v2973 = vpack.c.bf16 %v985, %v985
  %v2974 = vpack.c.bf16 %v1143, %v1143
  %v2975 = vpack.c.bf16 %v1144, %v1144
  %v2976 = vpack.c.bf16 %v1145, %v1145
  %v2977 = vpack.c.bf16 %v988, %v988
  %v2978 = vpack.c.bf16 %v1152, %v1152
  %v2979 = vpack.c.bf16 %v1153, %v1153
  %v2980 = vpack.c.bf16 %v1154, %v1154
  %v2981 = vpack.c.bf16 %v989, %v989
  %v2982 = vpack.c.bf16 %v1155, %v1155
  %v2983 = vpack.c.bf16 %v1156, %v1156
  %v2984 = vpack.c.bf16 %v1157, %v1157
  %v2985 = vpack.c.bf16 %v992, %v992
  %v2986 = vpack.c.bf16 %v1164, %v1164
  %v2987 = vpack.c.bf16 %v1165, %v1165
  %v2988 = vpack.c.bf16 %v1166, %v1166
  %v2989 = vpack.c.bf16 %v993, %v993
  %v2990 = vpack.c.bf16 %v1167, %v1167
  %v2991 = vpack.c.bf16 %v1168, %v1168
  %v2992 = vpack.c.bf16 %v1169, %v1169
  %v2993 = vpack.c.bf16 %v996, %v996
  %v2994 = vpack.c.bf16 %v1176, %v1176
  %v2995 = vpack.c.bf16 %v1177, %v1177
  %v2996 = vpack.c.bf16 %v1178, %v1178
  %v2997 = vpack.c.bf16 %v997, %v997
  %v2998 = vpack.c.bf16 %v1179, %v1179
  %v2999 = vpack.c.bf16 %v1180, %v1180
  %v3000 = vpack.c.bf16 %v1181, %v1181
  %v3001 = vpack.c.bf16 %v1000, %v1000
  %v3002 = vpack.c.bf16 %v1188, %v1188
  %v3003 = vpack.c.bf16 %v1189, %v1189
  %v3004 = vpack.c.bf16 %v1190, %v1190
  %v3005 = vpack.c.bf16 %v1001, %v1001
  %v3006 = vpack.c.bf16 %v1191, %v1191
  %v3007 = vpack.c.bf16 %v1192, %v1192
  %v3008 = vpack.c.bf16 %v1193, %v1193
  %v3009 = vpack.c.bf16 %v1004, %v1004
  %v3010 = vpack.c.bf16 %v1200, %v1200
  %v3011 = vpack.c.bf16 %v1201, %v1201
  %v3012 = vpack.c.bf16 %v1202, %v1202
  %v3013 = vpack.c.bf16 %v1005, %v1005
  %v3014 = vpack.c.bf16 %v1203, %v1203
  %v3015 = vpack.c.bf16 %v1204, %v1204
  %v3016 = vpack.c.bf16 %v1205, %v1205
  %v3017 = vpack.c.bf16 %v1008, %v1008
  %v3018 = vpack.c.bf16 %v1212, %v1212
  %v3019 = vpack.c.bf16 %v1213, %v1213
  %v3020 = vpack.c.bf16 %v1214, %v1214
  %v3021 = vpack.c.bf16 %v1009, %v1009
  %v3022 = vpack.c.bf16 %v1215, %v1215
  %v3023 = vpack.c.bf16 %v1216, %v1216
  %v3024 = vpack.c.bf16 %v1217, %v1217
  %v3025 = vpack.c.bf16 %v1012, %v1012
  %v3026 = vpack.c.bf16 %v1224, %v1224
  %v3027 = vpack.c.bf16 %v1225, %v1225
  %v3028 = vpack.c.bf16 %v1226, %v1226
  %v3029 = vpack.c.bf16 %v1013, %v1013
  %v3030 = vpack.c.bf16 %v1227, %v1227
  %v3031 = vpack.c.bf16 %v1228, %v1228
  %v3032 = vpack.c.bf16 %v1229, %v1229
  %v3033 = vpack.c.bf16 %v1016, %v1016
  %v3034 = vpack.c.bf16 %v1236, %v1236
  %v3035 = vpack.c.bf16 %v1237, %v1237
  %v3036 = vpack.c.bf16 %v1238, %v1238
  %v3037 = vpack.c.bf16 %v1017, %v1017
  %v3038 = vpack.c.bf16 %v1239, %v1239
  %v3039 = vpack.c.bf16 %v1240, %v1240
  %v3040 = vpack.c.bf16 %v1241, %v1241
  %v3041 = vpack.c.bf16 %v1020, %v1020
  %v3042 = vpack.c.bf16 %v1248, %v1248
  %v3043 = vpack.c.bf16 %v1249, %v1249
  %v3044 = vpack.c.bf16 %v1250, %v1250
  %v3045 = vpack.c.bf16 %v1021, %v1021
  %v3046 = vpack.c.bf16 %v1251, %v1251
  %v3047 = vpack.c.bf16 %v1252, %v1252
  %v3048 = vpack.c.bf16 %v1253, %v1253
  %v3049 = vpack.c.bf16 %v1024, %v1024
  %v3050 = vpack.c.bf16 %v1260, %v1260
  %v3051 = vpack.c.bf16 %v1261, %v1261
  %v3052 = vpack.c.bf16 %v1262, %v1262
  %v3053 = vpack.c.bf16 %v1025, %v1025
  %v3054 = vpack.c.bf16 %v1263, %v1263
  %v3055 = vpack.c.bf16 %v1264, %v1264
  %v3056 = vpack.c.bf16 %v1265, %v1265
  %v3057 = vpack.c.bf16 %v1028, %v1028
  %v3058 = vpack.c.bf16 %v1272, %v1272
  %v3059 = vpack.c.bf16 %v1273, %v1273
  %v3060 = vpack.c.bf16 %v1274, %v1274
  %v3061 = vpack.c.bf16 %v1029, %v1029
  %v3062 = vpack.c.bf16 %v1275, %v1275
  %v3063 = vpack.c.bf16 %v1276, %v1276
  %v3064 = vpack.c.bf16 %v1277, %v1277
  %v3065 = vpack.c.bf16 %v1032, %v1032
  %v3066 = vpack.c.bf16 %v1284, %v1284
  %v3067 = vpack.c.bf16 %v1285, %v1285
  %v3068 = vpack.c.bf16 %v1286, %v1286
  %v3069 = vpack.c.bf16 %v1033, %v1033
  %v3070 = vpack.c.bf16 %v1287, %v1287
  %v3071 = vpack.c.bf16 %v1288, %v1288
  %v3072 = vpack.c.bf16 %v1289, %v1289
  %v3201 = vunpack.c.l.b16 %v2945
  %v3202 = vunpack.c.l.b16 %v2946
  %v3203 = vunpack.c.l.b16 %v2947
  %v3204 = vunpack.c.l.b16 %v2948
  %v3205 = vunpack.c.l.b16 %v2949
  %v3206 = vunpack.c.l.b16 %v2950
  %v3207 = vunpack.c.l.b16 %v2951
  %v3208 = vunpack.c.l.b16 %v2952
  %v3209 = vunpack.c.l.b16 %v2953
  %v3210 = vunpack.c.l.b16 %v2954
  %v3211 = vunpack.c.l.b16 %v2955
  %v3212 = vunpack.c.l.b16 %v2956
  %v3213 = vunpack.c.l.b16 %v2957
  %v3214 = vunpack.c.l.b16 %v2958
  %v3215 = vunpack.c.l.b16 %v2959
  %v3216 = vunpack.c.l.b16 %v2960
  %v3217 = vunpack.c.l.b16 %v2961
  %v3218 = vunpack.c.l.b16 %v2962
  %v3219 = vunpack.c.l.b16 %v2963
  %v3220 = vunpack.c.l.b16 %v2964
  %v3221 = vunpack.c.l.b16 %v2965
  %v3222 = vunpack.c.l.b16 %v2966
  %v3223 = vunpack.c.l.b16 %v2967
  %v3224 = vunpack.c.l.b16 %v2968
  %v3225 = vunpack.c.l.b16 %v2969
  %v3226 = vunpack.c.l.b16 %v2970
  %v3227 = vunpack.c.l.b16 %v2971
  %v3228 = vunpack.c.l.b16 %v2972
  %v3229 = vunpack.c.l.b16 %v2973
  %v3230 = vunpack.c.l.b16 %v2974
  %v3231 = vunpack.c.l.b16 %v2975
  %v3232 = vunpack.c.l.b16 %v2976
  %v3233 = vunpack.c.l.b16 %v2977
  %v3234 = vunpack.c.l.b16 %v2978
  %v3235 = vunpack.c.l.b16 %v2979
  %v3236 = vunpack.c.l.b16 %v2980
  %v3237 = vunpack.c.l.b16 %v2981
  %v3238 = vunpack.c.l.b16 %v2982
  %v3239 = vunpack.c.l.b16 %v2983
  %v3240 = vunpack.c.l.b16 %v2984
  %v3241 = vunpack.c.l.b16 %v2985
  %v3242 = vunpack.c.l.b16 %v2986
  %v3243 = vunpack.c.l.b16 %v2987
  %v3244 = vunpack.c.l.b16 %v2988
  %v3245 = vunpack.c.l.b16 %v2989
  %v3246 = vunpack.c.l.b16 %v2990
  %v3247 = vunpack.c.l.b16 %v2991
  %v3248 = vunpack.c.l.b16 %v2992
  %v3249 = vunpack.c.l.b16 %v2993
  %v3250 = vunpack.c.l.b16 %v2994
  %v3251 = vunpack.c.l.b16 %v2995
  %v3252 = vunpack.c.l.b16 %v2996
  %v3253 = vunpack.c.l.b16 %v2997
  %v3254 = vunpack.c.l.b16 %v2998
  %v3255 = vunpack.c.l.b16 %v2999
  %v3256 = vunpack.c.l.b16 %v3000
  %v3257 = vunpack.c.l.b16 %v3001
  %v3258 = vunpack.c.l.b16 %v3002
  %v3259 = vunpack.c.l.b16 %v3003
  %v3260 = vunpack.c.l.b16 %v3004
  %v3261 = vunpack.c.l.b16 %v3005
  %v3262 = vunpack.c.l.b16 %v3006
  %v3263 = vunpack.c.l.b16 %v3007
  %v3264 = vunpack.c.l.b16 %v3008
  %v3265 = vunpack.c.l.b16 %v3009
  %v3266 = vunpack.c.l.b16 %v3010
  %v3267 = vunpack.c.l.b16 %v3011
  %v3268 = vunpack.c.l.b16 %v3012
  %v3269 = vunpack.c.l.b16 %v3013
  %v3270 = vunpack.c.l.b16 %v3014
  %v3271 = vunpack.c.l.b16 %v3015
  %v3272 = vunpack.c.l.b16 %v3016
  %v3273 = vunpack.c.l.b16 %v3017
  %v3274 = vunpack.c.l.b16 %v3018
  %v3275 = vunpack.c.l.b16 %v3019
  %v3276 = vunpack.c.l.b16 %v3020
  %v3277 = vunpack.c.l.b16 %v3021
  %v3278 = vunpack.c.l.b16 %v3022
  %v3279 = vunpack.c.l.b16 %v3023
  %v3280 = vunpack.c.l.b16 %v3024
  %v3281 = vunpack.c.l.b16 %v3025
  %v3282 = vunpack.c.l.b16 %v3026
  %v3283 = vunpack.c.l.b16 %v3027
  %v3284 = vunpack.c.l.b16 %v3028
  %v3285 = vunpack.c.l.b16 %v3029
  %v3286 = vunpack.c.l.b16 %v3030
  %v3287 = vunpack.c.l.b16 %v3031
  %v3288 = vunpack.c.l.b16 %v3032
  %v3289 = vunpack.c.l.b16 %v3033
  %v3290 = vunpack.c.l.b16 %v3034
  %v3291 = vunpack.c.l.b16 %v3035
  %v3292 = vunpack.c.l.b16 %v3036
  %v3293 = vunpack.c.l.b16 %v3037
  %v3294 = vunpack.c.l.b16 %v3038
  %v3295 = vunpack.c.l.b16 %v3039
  %v3296 = vunpack.c.l.b16 %v3040
  %v3297 = vunpack.c.l.b16 %v3041
  %v3298 = vunpack.c.l.b16 %v3042
  %v3299 = vunpack.c.l.b16 %v3043
  %v3300 = vunpack.c.l.b16 %v3044
  %v3301 = vunpack.c.l.b16 %v3045
  %v3302 = vunpack.c.l.b16 %v3046
  %v3303 = vunpack.c.l.b16 %v3047
  %v3304 = vunpack.c.l.b16 %v3048
  %v3305 = vunpack.c.l.b16 %v3049
  %v3306 = vunpack.c.l.b16 %v3050
  %v3307 = vunpack.c.l.b16 %v3051
  %v3308 = vunpack.c.l.b16 %v3052
  %v3309 = vunpack.c.l.b16 %v3053
  %v3310 = vunpack.c.l.b16 %v3054
  %v3311 = vunpack.c.l.b16 %v3055
  %v3312 = vunpack.c.l.b16 %v3056
  %v3313 = vunpack.c.l.b16 %v3057
  %v3314 = vunpack.c.l.b16 %v3058
  %v3315 = vunpack.c.l.b16 %v3059
  %v3316 = vunpack.c.l.b16 %v3060
  %v3317 = vunpack.c.l.b16 %v3061
  %v3318 = vunpack.c.l.b16 %v3062
  %v3319 = vunpack.c.l.b16 %v3063
  %v3320 = vunpack.c.l.b16 %v3064
  %v3321 = vunpack.c.l.b16 %v3065
  %v3322 = vunpack.c.l.b16 %v3066
  %v3323 = vunpack.c.l.b16 %v3067
  %v3324 = vunpack.c.l.b16 %v3068
  %v3325 = vunpack.c.l.b16 %v3069
  %v3326 = vunpack.c.l.b16 %v3070
  %v3327 = vunpack.c.l.b16 %v3071
  %v3328 = vunpack.c.l.b16 %v3072
  %v3329 = vpack.c.b16 %v3201, %v3201
  %v3330 = vpack.c.b16 %v3202, %v3202
  %v3331 = vpack.c.b16 %v3203, %v3203
  %v3332 = vpack.c.b16 %v3204, %v3204
  %v3333 = vpack.c.b16 %v3205, %v3205
  %v3334 = vpack.c.b16 %v3206, %v3206
  %v3335 = vpack.c.b16 %v3207, %v3207
  %v3336 = vpack.c.b16 %v3208, %v3208
  %v3337 = vpack.c.b16 %v3209, %v3209
  %v3338 = vpack.c.b16 %v3210, %v3210
  %v3339 = vpack.c.b16 %v3211, %v3211
  %v3340 = vpack.c.b16 %v3212, %v3212
  %v3341 = vpack.c.b16 %v3213, %v3213
  %v3342 = vpack.c.b16 %v3214, %v3214
  %v3343 = vpack.c.b16 %v3215, %v3215
  %v3344 = vpack.c.b16 %v3216, %v3216
  %v3345 = vpack.c.b16 %v3217, %v3217
  %v3346 = vpack.c.b16 %v3218, %v3218
  %v3347 = vpack.c.b16 %v3219, %v3219
  %v3348 = vpack.c.b16 %v3220, %v3220
  %v3349 = vpack.c.b16 %v3221, %v3221
  %v3350 = vpack.c.b16 %v3222, %v3222
  %v3351 = vpack.c.b16 %v3223, %v3223
  %v3352 = vpack.c.b16 %v3224, %v3224
  %v3353 = vpack.c.b16 %v3225, %v3225
  %v3354 = vpack.c.b16 %v3226, %v3226
  %v3355 = vpack.c.b16 %v3227, %v3227
  %v3356 = vpack.c.b16 %v3228, %v3228
  %v3357 = vpack.c.b16 %v3229, %v3229
  %v3358 = vpack.c.b16 %v3230, %v3230
  %v3359 = vpack.c.b16 %v3231, %v3231
  %v3360 = vpack.c.b16 %v3232, %v3232
  %v3361 = vpack.c.b16 %v3233, %v3233
  %v3362 = vpack.c.b16 %v3234, %v3234
  %v3363 = vpack.c.b16 %v3235, %v3235
  %v3364 = vpack.c.b16 %v3236, %v3236
  %v3365 = vpack.c.b16 %v3237, %v3237
  %v3366 = vpack.c.b16 %v3238, %v3238
  %v3367 = vpack.c.b16 %v3239, %v3239
  %v3368 = vpack.c.b16 %v3240, %v3240
  %v3369 = vpack.c.b16 %v3241, %v3241
  %v3370 = vpack.c.b16 %v3242, %v3242
  %v3371 = vpack.c.b16 %v3243, %v3243
  %v3372 = vpack.c.b16 %v3244, %v3244
  %v3373 = vpack.c.b16 %v3245, %v3245
  %v3374 = vpack.c.b16 %v3246, %v3246
  %v3375 = vpack.c.b16 %v3247, %v3247
  %v3376 = vpack.c.b16 %v3248, %v3248
  %v3377 = vpack.c.b16 %v3249, %v3249
  %v3378 = vpack.c.b16 %v3250, %v3250
  %v3379 = vpack.c.b16 %v3251, %v3251
  %v3380 = vpack.c.b16 %v3252, %v3252
  %v3381 = vpack.c.b16 %v3253, %v3253
  %v3382 = vpack.c.b16 %v3254, %v3254
  %v3383 = vpack.c.b16 %v3255, %v3255
  %v3384 = vpack.c.b16 %v3256, %v3256
  %v3385 = vpack.c.b16 %v3257, %v3257
  %v3386 = vpack.c.b16 %v3258, %v3258
  %v3387 = vpack.c.b16 %v3259, %v3259
  %v3388 = vpack.c.b16 %v3260, %v3260
  %v3389 = vpack.c.b16 %v3261, %v3261
  %v3390 = vpack.c.b16 %v3262, %v3262
  %v3391 = vpack.c.b16 %v3263, %v3263
  %v3392 = vpack.c.b16 %v3264, %v3264
  %v3393 = vpack.c.b16 %v3265, %v3265
  %v3394 = vpack.c.b16 %v3266, %v3266
  %v3395 = vpack.c.b16 %v3267, %v3267
  %v3396 = vpack.c.b16 %v3268, %v3268
  %v3397 = vpack.c.b16 %v3269, %v3269
  %v3398 = vpack.c.b16 %v3270, %v3270
  %v3399 = vpack.c.b16 %v3271, %v3271
  %v3400 = vpack.c.b16 %v3272, %v3272
  %v3401 = vpack.c.b16 %v3273, %v3273
  %v3402 = vpack.c.b16 %v3274, %v3274
  %v3403 = vpack.c.b16 %v3275, %v3275
  %v3404 = vpack.c.b16 %v3276, %v3276
  %v3405 = vpack.c.b16 %v3277, %v3277
  %v3406 = vpack.c.b16 %v3278, %v3278
  %v3407 = vpack.c.b16 %v3279, %v3279
  %v3408 = vpack.c.b16 %v3280, %v3280
  %v3409 = vpack.c.b16 %v3281, %v3281
  %v3410 = vpack.c.b16 %v3282, %v3282
  %v3411 = vpack.c.b16 %v3283, %v3283
  %v3412 = vpack.c.b16 %v3284, %v3284
  %v3413 = vpack.c.b16 %v3285, %v3285
  %v3414 = vpack.c.b16 %v3286, %v3286
  %v3415 = vpack.c.b16 %v3287, %v3287
  %v3416 = vpack.c.b16 %v3288, %v3288
  %v3417 = vpack.c.b16 %v3289, %v3289
  %v3418 = vpack.c.b16 %v3290, %v3290
  %v3419 = vpack.c.b16 %v3291, %v3291
  %v3420 = vpack.c.b16 %v3292, %v3292
  %v3421 = vpack.c.b16 %v3293, %v3293
  %v3422 = vpack.c.b16 %v3294, %v3294
  %v3423 = vpack.c.b16 %v3295, %v3295
  %v3424 = vpack.c.b16 %v3296, %v3296
  %v3425 = vpack.c.b16 %v3297, %v3297
  %v3426 = vpack.c.b16 %v3298, %v3298
  %v3427 = vpack.c.b16 %v3299, %v3299
  %v3428 = vpack.c.b16 %v3300, %v3300
  %v3429 = vpack.c.b16 %v3301, %v3301
  %v3430 = vpack.c.b16 %v3302, %v3302
  %v3431 = vpack.c.b16 %v3303, %v3303
  %v3432 = vpack.c.b16 %v3304, %v3304
  %v3433 = vpack.c.b16 %v3305, %v3305
  %v3434 = vpack.c.b16 %v3306, %v3306
  %v3435 = vpack.c.b16 %v3307, %v3307
  %v3436 = vpack.c.b16 %v3308, %v3308
  %v3437 = vpack.c.b16 %v3309, %v3309
  %v3438 = vpack.c.b16 %v3310, %v3310
  %v3439 = vpack.c.b16 %v3311, %v3311
  %v3440 = vpack.c.b16 %v3312, %v3312
  %v3441 = vpack.c.b16 %v3313, %v3313
  %v3442 = vpack.c.b16 %v3314, %v3314
  %v3443 = vpack.c.b16 %v3315, %v3315
  %v3444 = vpack.c.b16 %v3316, %v3316
  %v3445 = vpack.c.b16 %v3317, %v3317
  %v3446 = vpack.c.b16 %v3318, %v3318
  %v3447 = vpack.c.b16 %v3319, %v3319
  %v3448 = vpack.c.b16 %v3320, %v3320
  %v3449 = vpack.c.b16 %v3321, %v3321
  %v3450 = vpack.c.b16 %v3322, %v3322
  %v3451 = vpack.c.b16 %v3323, %v3323
  %v3452 = vpack.c.b16 %v3324, %v3324
  %v3453 = vpack.c.b16 %v3325, %v3325
  %v3454 = vpack.c.b16 %v3326, %v3326
  %v3455 = vpack.c.b16 %v3327, %v3327
  %v3456 = vpack.c.b16 %v3328, %v3328
  %v3457 = vunpack.c.l.b16 %v3329
  %v3458 = vunpack.c.l.b16 %v3330
  %v3459 = vunpack.c.l.b16 %v3331
  %v3460 = vunpack.c.l.b16 %v3332
  %v3461 = vunpack.c.l.b16 %v3333
  %v3462 = vunpack.c.l.b16 %v3334
  %v3463 = vunpack.c.l.b16 %v3335
  %v3464 = vunpack.c.l.b16 %v3336
  %v3465 = vunpack.c.l.b16 %v3337
  %v3466 = vunpack.c.l.b16 %v3338
  %v3467 = vunpack.c.l.b16 %v3339
  %v3468 = vunpack.c.l.b16 %v3340
  %v3469 = vunpack.c.l.b16 %v3341
  %v3470 = vunpack.c.l.b16 %v3342
  %v3471 = vunpack.c.l.b16 %v3343
  %v3472 = vunpack.c.l.b16 %v3344
  %v3473 = vunpack.c.l.b16 %v3345
  %v3474 = vunpack.c.l.b16 %v3346
  %v3475 = vunpack.c.l.b16 %v3347
  %v3476 = vunpack.c.l.b16 %v3348
  %v3477 = vunpack.c.l.b16 %v3349
  %v3478 = vunpack.c.l.b16 %v3350
  %v3479 = vunpack.c.l.b16 %v3351
  %v3480 = vunpack.c.l.b16 %v3352
  %v3481 = vunpack.c.l.b16 %v3353
  %v3482 = vunpack.c.l.b16 %v3354
  %v3483 = vunpack.c.l.b16 %v3355
  %v3484 = vunpack.c.l.b16 %v3356
  %v3485 = vunpack.c.l.b16 %v3357
  %v3486 = vunpack.c.l.b16 %v3358
  %v3487 = vunpack.c.l.b16 %v3359
  %v3488 = vunpack.c.l.b16 %v3360
  %v3489 = vunpack.c.l.b16 %v3361
  %v3490 = vunpack.c.l.b16 %v3362
  %v3491 = vunpack.c.l.b16 %v3363
  %v3492 = vunpack.c.l.b16 %v3364
  %v3493 = vunpack.c.l.b16 %v3365
  %v3494 = vunpack.c.l.b16 %v3366
  %v3495 = vunpack.c.l.b16 %v3367
  %v3496 = vunpack.c.l.b16 %v3368
  %v3497 = vunpack.c.l.b16 %v3369
  %v3498 = vunpack.c.l.b16 %v3370
  %v3499 = vunpack.c.l.b16 %v3371
  %v3500 = vunpack.c.l.b16 %v3372
  %v3501 = vunpack.c.l.b16 %v3373
  %v3502 = vunpack.c.l.b16 %v3374
  %v3503 = vunpack.c.l.b16 %v3375
  %v3504 = vunpack.c.l.b16 %v3376
  %v3505 = vunpack.c.l.b16 %v3377
  %v3506 = vunpack.c.l.b16 %v3378
  %v3507 = vunpack.c.l.b16 %v3379
  %v3508 = vunpack.c.l.b16 %v3380
  %v3509 = vunpack.c.l.b16 %v3381
  %v3510 = vunpack.c.l.b16 %v3382
  %v3511 = vunpack.c.l.b16 %v3383
  %v3512 = vunpack.c.l.b16 %v3384
  %v3513 = vunpack.c.l.b16 %v3385
  %v3514 = vunpack.c.l.b16 %v3386
  %v3515 = vunpack.c.l.b16 %v3387
  %v3516 = vunpack.c.l.b16 %v3388
  %v3517 = vunpack.c.l.b16 %v3389
  %v3518 = vunpack.c.l.b16 %v3390
  %v3519 = vunpack.c.l.b16 %v3391
  %v3520 = vunpack.c.l.b16 %v3392
  %v3521 = vunpack.c.l.b16 %v3393
  %v3522 = vunpack.c.l.b16 %v3394
  %v3523 = vunpack.c.l.b16 %v3395
  %v3524 = vunpack.c.l.b16 %v3396
  %v3525 = vunpack.c.l.b16 %v3397
  %v3526 = vunpack.c.l.b16 %v3398
  %v3527 = vunpack.c.l.b16 %v3399
  %v3528 = vunpack.c.l.b16 %v3400
  %v3529 = vunpack.c.l.b16 %v3401
  %v3530 = vunpack.c.l.b16 %v3402
  %v3531 = vunpack.c.l.b16 %v3403
  %v3532 = vunpack.c.l.b16 %v3404
  %v3533 = vunpack.c.l.b16 %v3405
  %v3534 = vunpack.c.l.b16 %v3406
  %v3535 = vunpack.c.l.b16 %v3407
  %v3536 = vunpack.c.l.b16 %v3408
  %v3537 = vunpack.c.l.b16 %v3409
  %v3538 = vunpack.c.l.b16 %v3410
  %v3539 = vunpack.c.l.b16 %v3411
  %v3540 = vunpack.c.l.b16 %v3412
  %v3541 = vunpack.c.l.b16 %v3413
  %v3542 = vunpack.c.l.b16 %v3414
  %v3543 = vunpack.c.l.b16 %v3415
  %v3544 = vunpack.c.l.b16 %v3416
  %v3545 = vunpack.c.l.b16 %v3417
  %v3546 = vunpack.c.l.b16 %v3418
  %v3547 = vunpack.c.l.b16 %v3419
  %v3548 = vunpack.c.l.b16 %v3420
  %v3549 = vunpack.c.l.b16 %v3421
  %v3550 = vunpack.c.l.b16 %v3422
  %v3551 = vunpack.c.l.b16 %v3423
  %v3552 = vunpack.c.l.b16 %v3424
  %v3553 = vunpack.c.l.b16 %v3425
  %v3554 = vunpack.c.l.b16 %v3426
  %v3555 = vunpack.c.l.b16 %v3427
  %v3556 = vunpack.c.l.b16 %v3428
  %v3557 = vunpack.c.l.b16 %v3429
  %v3558 = vunpack.c.l.b16 %v3430
  %v3559 = vunpack.c.l.b16 %v3431
  %v3560 = vunpack.c.l.b16 %v3432
  %v3561 = vunpack.c.l.b16 %v3433
  %v3562 = vunpack.c.l.b16 %v3434
  %v3563 = vunpack.c.l.b16 %v3435
  %v3564 = vunpack.c.l.b16 %v3436
  %v3565 = vunpack.c.l.b16 %v3437
  %v3566 = vunpack.c.l.b16 %v3438
  %v3567 = vunpack.c.l.b16 %v3439
  %v3568 = vunpack.c.l.b16 %v3440
  %v3569 = vunpack.c.l.b16 %v3441
  %v3570 = vunpack.c.l.b16 %v3442
  %v3571 = vunpack.c.l.b16 %v3443
  %v3572 = vunpack.c.l.b16 %v3444
  %v3573 = vunpack.c.l.b16 %v3445
  %v3574 = vunpack.c.l.b16 %v3446
  %v3575 = vunpack.c.l.b16 %v3447
  %v3576 = vunpack.c.l.b16 %v3448
  %v3577 = vunpack.c.l.b16 %v3449
  %v3578 = vunpack.c.l.b16 %v3450
  %v3579 = vunpack.c.l.b16 %v3451
  %v3580 = vunpack.c.l.b16 %v3452
  %v3581 = vunpack.c.l.b16 %v3453
  %v3582 = vunpack.c.l.b16 %v3454
  %v3583 = vunpack.c.l.b16 %v3455
  %v3584 = vunpack.c.l.b16 %v3456
  %v3585 = vrot.slane %v3458, 7
  %v3586 = vsel %vm2123, %v3585, %v3457
  %v3587 = vrot.slane %v3459, 6
  %v3588 = vsel %vm2126, %v3587, %v3586
  %v3589 = vrot.slane %v3460, 5
  %v3590 = vsel %vm2129, %v3589, %v3588
  %v3591 = vrot.slane %v3461, 4
  %v3592 = vsel %vm2132, %v3591, %v3590
  %v3593 = vrot.slane %v3462, 3
  %v3594 = vsel %vm2135, %v3593, %v3592
  %v3595 = vrot.slane %v3463, 2
  %v3596 = vsel %vm2138, %v3595, %v3594
  %v3597 = vrot.slane %v3464, 1
  %v3598 = vsel %vm2141, %v3597, %v3596
  %v3599 = vrot.slane %v3466, 7
  %v3600 = vsel %vm2123, %v3599, %v3465
  %v3601 = vrot.slane %v3467, 6
  %v3602 = vsel %vm2126, %v3601, %v3600
  %v3603 = vrot.slane %v3468, 5
  %v3604 = vsel %vm2129, %v3603, %v3602
  %v3605 = vrot.slane %v3469, 4
  %v3606 = vsel %vm2132, %v3605, %v3604
  %v3607 = vrot.slane %v3470, 3
  %v3608 = vsel %vm2135, %v3607, %v3606
  %v3609 = vrot.slane %v3471, 2
  %v3610 = vsel %vm2138, %v3609, %v3608
  %v3611 = vrot.slane %v3472, 1
  %v3612 = vsel %vm2141, %v3611, %v3610
  %v3613 = vrot.slane %v3474, 7
  %v3614 = vsel %vm2123, %v3613, %v3473
  %v3615 = vrot.slane %v3475, 6
  %v3616 = vsel %vm2126, %v3615, %v3614
  %v3617 = vrot.slane %v3476, 5
  %v3618 = vsel %vm2129, %v3617, %v3616
  %v3619 = vrot.slane %v3477, 4
  %v3620 = vsel %vm2132, %v3619, %v3618
  %v3621 = vrot.slane %v3478, 3
  %v3622 = vsel %vm2135, %v3621, %v3620
  %v3623 = vrot.slane %v3479, 2
  %v3624 = vsel %vm2138, %v3623, %v3622
  %v3625 = vrot.slane %v3480, 1
  %v3626 = vsel %vm2141, %v3625, %v3624
  %v3627 = vrot.slane %v3482, 7
  %v3628 = vsel %vm2123, %v3627, %v3481
  %v3629 = vrot.slane %v3483, 6
  %v3630 = vsel %vm2126, %v3629, %v3628
  %v3631 = vrot.slane %v3484, 5
  %v3632 = vsel %vm2129, %v3631, %v3630
  %v3633 = vrot.slane %v3485, 4
  %v3634 = vsel %vm2132, %v3633, %v3632
  %v3635 = vrot.slane %v3486, 3
  %v3636 = vsel %vm2135, %v3635, %v3634
  %v3637 = vrot.slane %v3487, 2
  %v3638 = vsel %vm2138, %v3637, %v3636
  %v3639 = vrot.slane %v3488, 1
  %v3640 = vsel %vm2141, %v3639, %v3638
  %v3641 = vrot.slane %v3490, 7
  %v3642 = vsel %vm2123, %v3641, %v3489
  %v3643 = vrot.slane %v3491, 6
  %v3644 = vsel %vm2126, %v3643, %v3642
  %v3645 = vrot.slane %v3492, 5
  %v3646 = vsel %vm2129, %v3645, %v3644
  %v3647 = vrot.slane %v3493, 4
  %v3648 = vsel %vm2132, %v3647, %v3646
  %v3649 = vrot.slane %v3494, 3
  %v3650 = vsel %vm2135, %v3649, %v3648
  %v3651 = vrot.slane %v3495, 2
  %v3652 = vsel %vm2138, %v3651, %v3650
  %v3653 = vrot.slane %v3496, 1
  %v3654 = vsel %vm2141, %v3653, %v3652
  %v3655 = vrot.slane %v3498, 7
  %v3656 = vsel %vm2123, %v3655, %v3497
  %v3657 = vrot.slane %v3499, 6
  %v3658 = vsel %vm2126, %v3657, %v3656
  %v3659 = vrot.slane %v3500, 5
  %v3660 = vsel %vm2129, %v3659, %v3658
  %v3661 = vrot.slane %v3501, 4
  %v3662 = vsel %vm2132, %v3661, %v3660
  %v3663 = vrot.slane %v3502, 3
  %v3664 = vsel %vm2135, %v3663, %v3662
  %v3665 = vrot.slane %v3503, 2
  %v3666 = vsel %vm2138, %v3665, %v3664
  %v3667 = vrot.slane %v3504, 1
  %v3668 = vsel %vm2141, %v3667, %v3666
  %v3669 = vrot.slane %v3506, 7
  %v3670 = vsel %vm2123, %v3669, %v3505
  %v3671 = vrot.slane %v3507, 6
  %v3672 = vsel %vm2126, %v3671, %v3670
  %v3673 = vrot.slane %v3508, 5
  %v3674 = vsel %vm2129, %v3673, %v3672
  %v3675 = vrot.slane %v3509, 4
  %v3676 = vsel %vm2132, %v3675, %v3674
  %v3677 = vrot.slane %v3510, 3
  %v3678 = vsel %vm2135, %v3677, %v3676
  %v3679 = vrot.slane %v3511, 2
  %v3680 = vsel %vm2138, %v3679, %v3678
  %v3681 = vrot.slane %v3512, 1
  %v3682 = vsel %vm2141, %v3681, %v3680
  %v3683 = vrot.slane %v3514, 7
  %v3684 = vsel %vm2123, %v3683, %v3513
  %v3685 = vrot.slane %v3515, 6
  %v3686 = vsel %vm2126, %v3685, %v3684
  %v3687 = vrot.slane %v3516, 5
  %v3688 = vsel %vm2129, %v3687, %v3686
  %v3689 = vrot.slane %v3517, 4
  %v3690 = vsel %vm2132, %v3689, %v3688
  %v3691 = vrot.slane %v3518, 3
  %v3692 = vsel %vm2135, %v3691, %v3690
  %v3693 = vrot.slane %v3519, 2
  %v3694 = vsel %vm2138, %v3693, %v3692
  %v3695 = vrot.slane %v3520, 1
  %v3696 = vsel %vm2141, %v3695, %v3694
  %v3697 = vrot.slane %v3522, 7
  %v3698 = vsel %vm2123, %v3697, %v3521
  %v3699 = vrot.slane %v3523, 6
  %v3700 = vsel %vm2126, %v3699, %v3698
  %v3701 = vrot.slane %v3524, 5
  %v3702 = vsel %vm2129, %v3701, %v3700
  %v3703 = vrot.slane %v3525, 4
  %v3704 = vsel %vm2132, %v3703, %v3702
  %v3705 = vrot.slane %v3526, 3
  %v3706 = vsel %vm2135, %v3705, %v3704
  %v3707 = vrot.slane %v3527, 2
  %v3708 = vsel %vm2138, %v3707, %v3706
  %v3709 = vrot.slane %v3528, 1
  %v3710 = vsel %vm2141, %v3709, %v3708
  %v3711 = vrot.slane %v3530, 7
  %v3712 = vsel %vm2123, %v3711, %v3529
  %v3713 = vrot.slane %v3531, 6
  %v3714 = vsel %vm2126, %v3713, %v3712
  %v3715 = vrot.slane %v3532, 5
  %v3716 = vsel %vm2129, %v3715, %v3714
  %v3717 = vrot.slane %v3533, 4
  %v3718 = vsel %vm2132, %v3717, %v3716
  %v3719 = vrot.slane %v3534, 3
  %v3720 = vsel %vm2135, %v3719, %v3718
  %v3721 = vrot.slane %v3535, 2
  %v3722 = vsel %vm2138, %v3721, %v3720
  %v3723 = vrot.slane %v3536, 1
  %v3724 = vsel %vm2141, %v3723, %v3722
  %v3725 = vrot.slane %v3538, 7
  %v3726 = vsel %vm2123, %v3725, %v3537
  %v3727 = vrot.slane %v3539, 6
  %v3728 = vsel %vm2126, %v3727, %v3726
  %v3729 = vrot.slane %v3540, 5
  %v3730 = vsel %vm2129, %v3729, %v3728
  %v3731 = vrot.slane %v3541, 4
  %v3732 = vsel %vm2132, %v3731, %v3730
  %v3733 = vrot.slane %v3542, 3
  %v3734 = vsel %vm2135, %v3733, %v3732
  %v3735 = vrot.slane %v3543, 2
  %v3736 = vsel %vm2138, %v3735, %v3734
  %v3737 = vrot.slane %v3544, 1
  %v3738 = vsel %vm2141, %v3737, %v3736
  %v3739 = vrot.slane %v3546, 7
  %v3740 = vsel %vm2123, %v3739, %v3545
  %v3741 = vrot.slane %v3547, 6
  %v3742 = vsel %vm2126, %v3741, %v3740
  %v3743 = vrot.slane %v3548, 5
  %v3744 = vsel %vm2129, %v3743, %v3742
  %v3745 = vrot.slane %v3549, 4
  %v3746 = vsel %vm2132, %v3745, %v3744
  %v3747 = vrot.slane %v3550, 3
  %v3748 = vsel %vm2135, %v3747, %v3746
  %v3749 = vrot.slane %v3551, 2
  %v3750 = vsel %vm2138, %v3749, %v3748
  %v3751 = vrot.slane %v3552, 1
  %v3752 = vsel %vm2141, %v3751, %v3750
  %v3753 = vrot.slane %v3554, 7
  %v3754 = vsel %vm2123, %v3753, %v3553
  %v3755 = vrot.slane %v3555, 6
  %v3756 = vsel %vm2126, %v3755, %v3754
  %v3757 = vrot.slane %v3556, 5
  %v3758 = vsel %vm2129, %v3757, %v3756
  %v3759 = vrot.slane %v3557, 4
  %v3760 = vsel %vm2132, %v3759, %v3758
  %v3761 = vrot.slane %v3558, 3
  %v3762 = vsel %vm2135, %v3761, %v3760
  %v3763 = vrot.slane %v3559, 2
  %v3764 = vsel %vm2138, %v3763, %v3762
  %v3765 = vrot.slane %v3560, 1
  %v3766 = vsel %vm2141, %v3765, %v3764
  %v3767 = vrot.slane %v3562, 7
  %v3768 = vsel %vm2123, %v3767, %v3561
  %v3769 = vrot.slane %v3563, 6
  %v3770 = vsel %vm2126, %v3769, %v3768
  %v3771 = vrot.slane %v3564, 5
  %v3772 = vsel %vm2129, %v3771, %v3770
  %v3773 = vrot.slane %v3565, 4
  %v3774 = vsel %vm2132, %v3773, %v3772
  %v3775 = vrot.slane %v3566, 3
  %v3776 = vsel %vm2135, %v3775, %v3774
  %v3777 = vrot.slane %v3567, 2
  %v3778 = vsel %vm2138, %v3777, %v3776
  %v3779 = vrot.slane %v3568, 1
  %v3780 = vsel %vm2141, %v3779, %v3778
  %v3781 = vrot.slane %v3570, 7
  %v3782 = vsel %vm2123, %v3781, %v3569
  %v3783 = vrot.slane %v3571, 6
  %v3784 = vsel %vm2126, %v3783, %v3782
  %v3785 = vrot.slane %v3572, 5
  %v3786 = vsel %vm2129, %v3785, %v3784
  %v3787 = vrot.slane %v3573, 4
  %v3788 = vsel %vm2132, %v3787, %v3786
  %v3789 = vrot.slane %v3574, 3
  %v3790 = vsel %vm2135, %v3789, %v3788
  %v3791 = vrot.slane %v3575, 2
  %v3792 = vsel %vm2138, %v3791, %v3790
  %v3793 = vrot.slane %v3576, 1
  %v3794 = vsel %vm2141, %v3793, %v3792
  %v3795 = vrot.slane %v3578, 7
  %v3796 = vsel %vm2123, %v3795, %v3577
  %v3797 = vrot.slane %v3579, 6
  %v3798 = vsel %vm2126, %v3797, %v3796
  %v3799 = vrot.slane %v3580, 5
  %v3800 = vsel %vm2129, %v3799, %v3798
  %v3801 = vrot.slane %v3581, 4
  %v3802 = vsel %vm2132, %v3801, %v3800
  %v3803 = vrot.slane %v3582, 3
  %v3804 = vsel %vm2135, %v3803, %v3802
  %v3805 = vrot.slane %v3583, 2
  %v3806 = vsel %vm2138, %v3805, %v3804
  %v3807 = vrot.slane %v3584, 1
  %v3808 = vsel %vm2141, %v3807, %v3806
  %v3809 = vpack.c.b16 %v3598, %v3598
  %v3810 = vpack.c.b16 %v3612, %v3612
  %v3811 = vpack.c.b16 %v3626, %v3626
  %v3812 = vpack.c.b16 %v3640, %v3640
  %v3813 = vpack.c.b16 %v3654, %v3654
  %v3814 = vpack.c.b16 %v3668, %v3668
  %v3815 = vpack.c.b16 %v3682, %v3682
  %v3816 = vpack.c.b16 %v3696, %v3696
  %v3817 = vpack.c.b16 %v3710, %v3710
  %v3818 = vpack.c.b16 %v3724, %v3724
  %v3819 = vpack.c.b16 %v3738, %v3738
  %v3820 = vpack.c.b16 %v3752, %v3752
  %v3821 = vpack.c.b16 %v3766, %v3766
  %v3822 = vpack.c.b16 %v3780, %v3780
  %v3823 = vpack.c.b16 %v3794, %v3794
  %v3824 = vpack.c.b16 %v3808, %v3808
  %v3826 = vshrl.u32 %v3809, 16
  %v3828 = vrot.slane %v3826, 7
  %v3829 = vshll.u32 %v3809, 16
  %v3831 = vor.u32 %v3828, %v3829
  %v3833 = vshrl.u32 %v3810, 16
  %v3835 = vrot.slane %v3833, 7
  %v3836 = vshll.u32 %v3810, 16
  %v3838 = vor.u32 %v3835, %v3836
  %v3840 = vshrl.u32 %v3811, 16
  %v3842 = vrot.slane %v3840, 7
  %v3843 = vshll.u32 %v3811, 16
  %v3845 = vor.u32 %v3842, %v3843
  %v3847 = vshrl.u32 %v3812, 16
  %v3849 = vrot.slane %v3847, 7
  %v3850 = vshll.u32 %v3812, 16
  %v3852 = vor.u32 %v3849, %v3850
  %v3854 = vshrl.u32 %v3813, 16
  %v3856 = vrot.slane %v3854, 7
  %v3857 = vshll.u32 %v3813, 16
  %v3859 = vor.u32 %v3856, %v3857
  %v3861 = vshrl.u32 %v3814, 16
  %v3863 = vrot.slane %v3861, 7
  %v3864 = vshll.u32 %v3814, 16
  %v3866 = vor.u32 %v3863, %v3864
  %v3868 = vshrl.u32 %v3815, 16
  %v3870 = vrot.slane %v3868, 7
  %v3871 = vshll.u32 %v3815, 16
  %v3873 = vor.u32 %v3870, %v3871
  %v3875 = vshrl.u32 %v3816, 16
  %v3877 = vrot.slane %v3875, 7
  %v3878 = vshll.u32 %v3816, 16
  %v3880 = vor.u32 %v3877, %v3878
  %v3882 = vshrl.u32 %v3817, 16
  %v3884 = vrot.slane %v3882, 7
  %v3885 = vshll.u32 %v3817, 16
  %v3887 = vor.u32 %v3884, %v3885
  %v3889 = vshrl.u32 %v3818, 16
  %v3891 = vrot.slane %v3889, 7
  %v3892 = vshll.u32 %v3818, 16
  %v3894 = vor.u32 %v3891, %v3892
  %v3896 = vshrl.u32 %v3819, 16
  %v3898 = vrot.slane %v3896, 7
  %v3899 = vshll.u32 %v3819, 16
  %v3901 = vor.u32 %v3898, %v3899
  %v3903 = vshrl.u32 %v3820, 16
  %v3905 = vrot.slane %v3903, 7
  %v3906 = vshll.u32 %v3820, 16
  %v3908 = vor.u32 %v3905, %v3906
  %v3910 = vshrl.u32 %v3821, 16
  %v3912 = vrot.slane %v3910, 7
  %v3913 = vshll.u32 %v3821, 16
  %v3915 = vor.u32 %v3912, %v3913
  %v3917 = vshrl.u32 %v3822, 16
  %v3919 = vrot.slane %v3917, 7
  %v3920 = vshll.u32 %v3822, 16
  %v3922 = vor.u32 %v3919, %v3920
  %v3924 = vshrl.u32 %v3823, 16
  %v3926 = vrot.slane %v3924, 7
  %v3927 = vshll.u32 %v3823, 16
  %v3929 = vor.u32 %v3926, %v3927
  %v3931 = vshrl.u32 %v3824, 16
  %v3933 = vrot.slane %v3931, 7
  %v3934 = vshll.u32 %v3824, 16
  %v3936 = vor.u32 %v3933, %v3934
  %v3953 = vsel %vm2507, 0, %v3831
  %v3954 = vsel %vm2507, 0, %v3838
  %v3955 = vsel %vm2507, 0, %v3845
  %v3956 = vsel %vm2507, 0, %v3852
  %v3957 = vsel %vm2507, 0, %v3859
  %v3958 = vsel %vm2507, 0, %v3866
  %v3959 = vsel %vm2507, 0, %v3873
  %v3960 = vsel %vm2507, 0, %v3880
  %v3961 = vsel %vm2507, 0, %v3887
  %v3962 = vsel %vm2507, 0, %v3894
  %v3963 = vsel %vm2507, 0, %v3901
  %v3964 = vsel %vm2507, 0, %v3908
  %v3965 = vsel %vm2507, 0, %v3915
  %v3966 = vsel %vm2507, 0, %v3922
  %v3967 = vsel %vm2507, 0, %v3929
  %v3968 = vsel %vm2507, 0, %v3936
  %v3969 = vsel %vm2527, %v3953, 0
  %v3970 = vsel %vm2527, %v3954, 0
  %v3971 = vsel %vm2527, %v3955, 0
  %v3972 = vsel %vm2527, %v3956, 0
  %v3973 = vsel %vm2527, %v3957, 0
  %v3974 = vsel %vm2527, %v3958, 0
  %v3975 = vsel %vm2527, %v3959, 0
  %v3976 = vsel %vm2527, %v3960, 0
  %v3977 = vsel %vm2527, %v3961, 0
  %v3978 = vsel %vm2527, %v3962, 0
  %v3979 = vsel %vm2527, %v3963, 0
  %v3980 = vsel %vm2527, %v3964, 0
  %v3981 = vsel %vm2527, %v3965, 0
  %v3982 = vsel %vm2527, %v3966, 0
  %v3983 = vsel %vm2527, %v3967, 0
  %v3984 = vsel %vm2527, %v3968, 0
  %v3985 = vrot.slane %v3457, 1
  %v3986 = vsel %vm2123, %v3458, %v3985
  %v3987 = vrot.slane %v3459, 7
  %v3988 = vsel %vm2126, %v3987, %v3986
  %v3989 = vrot.slane %v3460, 6
  %v3990 = vsel %vm2129, %v3989, %v3988
  %v3991 = vrot.slane %v3461, 5
  %v3992 = vsel %vm2132, %v3991, %v3990
  %v3993 = vrot.slane %v3462, 4
  %v3994 = vsel %vm2135, %v3993, %v3992
  %v3995 = vrot.slane %v3463, 3
  %v3996 = vsel %vm2138, %v3995, %v3994
  %v3997 = vrot.slane %v3464, 2
  %v3998 = vsel %vm2141, %v3997, %v3996
  %v3999 = vrot.slane %v3465, 1
  %v4000 = vsel %vm2123, %v3466, %v3999
  %v4001 = vrot.slane %v3467, 7
  %v4002 = vsel %vm2126, %v4001, %v4000
  %v4003 = vrot.slane %v3468, 6
  %v4004 = vsel %vm2129, %v4003, %v4002
  %v4005 = vrot.slane %v3469, 5
  %v4006 = vsel %vm2132, %v4005, %v4004
  %v4007 = vrot.slane %v3470, 4
  %v4008 = vsel %vm2135, %v4007, %v4006
  %v4009 = vrot.slane %v3471, 3
  %v4010 = vsel %vm2138, %v4009, %v4008
  %v4011 = vrot.slane %v3472, 2
  %v4012 = vsel %vm2141, %v4011, %v4010
  %v4013 = vrot.slane %v3473, 1
  %v4014 = vsel %vm2123, %v3474, %v4013
  %v4015 = vrot.slane %v3475, 7
  %v4016 = vsel %vm2126, %v4015, %v4014
  %v4017 = vrot.slane %v3476, 6
  %v4018 = vsel %vm2129, %v4017, %v4016
  %v4019 = vrot.slane %v3477, 5
  %v4020 = vsel %vm2132, %v4019, %v4018
  %v4021 = vrot.slane %v3478, 4
  %v4022 = vsel %vm2135, %v4021, %v4020
  %v4023 = vrot.slane %v3479, 3
  %v4024 = vsel %vm2138, %v4023, %v4022
  %v4025 = vrot.slane %v3480, 2
  %v4026 = vsel %vm2141, %v4025, %v4024
  %v4027 = vrot.slane %v3481, 1
  %v4028 = vsel %vm2123, %v3482, %v4027
  %v4029 = vrot.slane %v3483, 7
  %v4030 = vsel %vm2126, %v4029, %v4028
  %v4031 = vrot.slane %v3484, 6
  %v4032 = vsel %vm2129, %v4031, %v4030
  %v4033 = vrot.slane %v3485, 5
  %v4034 = vsel %vm2132, %v4033, %v4032
  %v4035 = vrot.slane %v3486, 4
  %v4036 = vsel %vm2135, %v4035, %v4034
  %v4037 = vrot.slane %v3487, 3
  %v4038 = vsel %vm2138, %v4037, %v4036
  %v4039 = vrot.slane %v3488, 2
  %v4040 = vsel %vm2141, %v4039, %v4038
  %v4041 = vrot.slane %v3489, 1
  %v4042 = vsel %vm2123, %v3490, %v4041
  %v4043 = vrot.slane %v3491, 7
  %v4044 = vsel %vm2126, %v4043, %v4042
  %v4045 = vrot.slane %v3492, 6
  %v4046 = vsel %vm2129, %v4045, %v4044
  %v4047 = vrot.slane %v3493, 5
  %v4048 = vsel %vm2132, %v4047, %v4046
  %v4049 = vrot.slane %v3494, 4
  %v4050 = vsel %vm2135, %v4049, %v4048
  %v4051 = vrot.slane %v3495, 3
  %v4052 = vsel %vm2138, %v4051, %v4050
  %v4053 = vrot.slane %v3496, 2
  %v4054 = vsel %vm2141, %v4053, %v4052
  %v4055 = vrot.slane %v3497, 1
  %v4056 = vsel %vm2123, %v3498, %v4055
  %v4057 = vrot.slane %v3499, 7
  %v4058 = vsel %vm2126, %v4057, %v4056
  %v4059 = vrot.slane %v3500, 6
  %v4060 = vsel %vm2129, %v4059, %v4058
  %v4061 = vrot.slane %v3501, 5
  %v4062 = vsel %vm2132, %v4061, %v4060
  %v4063 = vrot.slane %v3502, 4
  %v4064 = vsel %vm2135, %v4063, %v4062
  %v4065 = vrot.slane %v3503, 3
  %v4066 = vsel %vm2138, %v4065, %v4064
  %v4067 = vrot.slane %v3504, 2
  %v4068 = vsel %vm2141, %v4067, %v4066
  %v4069 = vrot.slane %v3505, 1
  %v4070 = vsel %vm2123, %v3506, %v4069
  %v4071 = vrot.slane %v3507, 7
  %v4072 = vsel %vm2126, %v4071, %v4070
  %v4073 = vrot.slane %v3508, 6
  %v4074 = vsel %vm2129, %v4073, %v4072
  %v4075 = vrot.slane %v3509, 5
  %v4076 = vsel %vm2132, %v4075, %v4074
  %v4077 = vrot.slane %v3510, 4
  %v4078 = vsel %vm2135, %v4077, %v4076
  %v4079 = vrot.slane %v3511, 3
  %v4080 = vsel %vm2138, %v4079, %v4078
  %v4081 = vrot.slane %v3512, 2
  %v4082 = vsel %vm2141, %v4081, %v4080
  %v4083 = vrot.slane %v3513, 1
  %v4084 = vsel %vm2123, %v3514, %v4083
  %v4085 = vrot.slane %v3515, 7
  %v4086 = vsel %vm2126, %v4085, %v4084
  %v4087 = vrot.slane %v3516, 6
  %v4088 = vsel %vm2129, %v4087, %v4086
  %v4089 = vrot.slane %v3517, 5
  %v4090 = vsel %vm2132, %v4089, %v4088
  %v4091 = vrot.slane %v3518, 4
  %v4092 = vsel %vm2135, %v4091, %v4090
  %v4093 = vrot.slane %v3519, 3
  %v4094 = vsel %vm2138, %v4093, %v4092
  %v4095 = vrot.slane %v3520, 2
  %v4096 = vsel %vm2141, %v4095, %v4094
  %v4097 = vrot.slane %v3521, 1
  %v4098 = vsel %vm2123, %v3522, %v4097
  %v4099 = vrot.slane %v3523, 7
  %v4100 = vsel %vm2126, %v4099, %v4098
  %v4101 = vrot.slane %v3524, 6
  %v4102 = vsel %vm2129, %v4101, %v4100
  %v4103 = vrot.slane %v3525, 5
  %v4104 = vsel %vm2132, %v4103, %v4102
  %v4105 = vrot.slane %v3526, 4
  %v4106 = vsel %vm2135, %v4105, %v4104
  %v4107 = vrot.slane %v3527, 3
  %v4108 = vsel %vm2138, %v4107, %v4106
  %v4109 = vrot.slane %v3528, 2
  %v4110 = vsel %vm2141, %v4109, %v4108
  %v4111 = vrot.slane %v3529, 1
  %v4112 = vsel %vm2123, %v3530, %v4111
  %v4113 = vrot.slane %v3531, 7
  %v4114 = vsel %vm2126, %v4113, %v4112
  %v4115 = vrot.slane %v3532, 6
  %v4116 = vsel %vm2129, %v4115, %v4114
  %v4117 = vrot.slane %v3533, 5
  %v4118 = vsel %vm2132, %v4117, %v4116
  %v4119 = vrot.slane %v3534, 4
  %v4120 = vsel %vm2135, %v4119, %v4118
  %v4121 = vrot.slane %v3535, 3
  %v4122 = vsel %vm2138, %v4121, %v4120
  %v4123 = vrot.slane %v3536, 2
  %v4124 = vsel %vm2141, %v4123, %v4122
  %v4125 = vrot.slane %v3537, 1
  %v4126 = vsel %vm2123, %v3538, %v4125
  %v4127 = vrot.slane %v3539, 7
  %v4128 = vsel %vm2126, %v4127, %v4126
  %v4129 = vrot.slane %v3540, 6
  %v4130 = vsel %vm2129, %v4129, %v4128
  %v4131 = vrot.slane %v3541, 5
  %v4132 = vsel %vm2132, %v4131, %v4130
  %v4133 = vrot.slane %v3542, 4
  %v4134 = vsel %vm2135, %v4133, %v4132
  %v4135 = vrot.slane %v3543, 3
  %v4136 = vsel %vm2138, %v4135, %v4134
  %v4137 = vrot.slane %v3544, 2
  %v4138 = vsel %vm2141, %v4137, %v4136
  %v4139 = vrot.slane %v3545, 1
  %v4140 = vsel %vm2123, %v3546, %v4139
  %v4141 = vrot.slane %v3547, 7
  %v4142 = vsel %vm2126, %v4141, %v4140
  %v4143 = vrot.slane %v3548, 6
  %v4144 = vsel %vm2129, %v4143, %v4142
  %v4145 = vrot.slane %v3549, 5
  %v4146 = vsel %vm2132, %v4145, %v4144
  %v4147 = vrot.slane %v3550, 4
  %v4148 = vsel %vm2135, %v4147, %v4146
  %v4149 = vrot.slane %v3551, 3
  %v4150 = vsel %vm2138, %v4149, %v4148
  %v4151 = vrot.slane %v3552, 2
  %v4152 = vsel %vm2141, %v4151, %v4150
  %v4153 = vrot.slane %v3553, 1
  %v4154 = vsel %vm2123, %v3554, %v4153
  %v4155 = vrot.slane %v3555, 7
  %v4156 = vsel %vm2126, %v4155, %v4154
  %v4157 = vrot.slane %v3556, 6
  %v4158 = vsel %vm2129, %v4157, %v4156
  %v4159 = vrot.slane %v3557, 5
  %v4160 = vsel %vm2132, %v4159, %v4158
  %v4161 = vrot.slane %v3558, 4
  %v4162 = vsel %vm2135, %v4161, %v4160
  %v4163 = vrot.slane %v3559, 3
  %v4164 = vsel %vm2138, %v4163, %v4162
  %v4165 = vrot.slane %v3560, 2
  %v4166 = vsel %vm2141, %v4165, %v4164
  %v4167 = vrot.slane %v3561, 1
  %v4168 = vsel %vm2123, %v3562, %v4167
  %v4169 = vrot.slane %v3563, 7
  %v4170 = vsel %vm2126, %v4169, %v4168
  %v4171 = vrot.slane %v3564, 6
  %v4172 = vsel %vm2129, %v4171, %v4170
  %v4173 = vrot.slane %v3565, 5
  %v4174 = vsel %vm2132, %v4173, %v4172
  %v4175 = vrot.slane %v3566, 4
  %v4176 = vsel %vm2135, %v4175, %v4174
  %v4177 = vrot.slane %v3567, 3
  %v4178 = vsel %vm2138, %v4177, %v4176
  %v4179 = vrot.slane %v3568, 2
  %v4180 = vsel %vm2141, %v4179, %v4178
  %v4181 = vrot.slane %v3569, 1
  %v4182 = vsel %vm2123, %v3570, %v4181
  %v4183 = vrot.slane %v3571, 7
  %v4184 = vsel %vm2126, %v4183, %v4182
  %v4185 = vrot.slane %v3572, 6
  %v4186 = vsel %vm2129, %v4185, %v4184
  %v4187 = vrot.slane %v3573, 5
  %v4188 = vsel %vm2132, %v4187, %v4186
  %v4189 = vrot.slane %v3574, 4
  %v4190 = vsel %vm2135, %v4189, %v4188
  %v4191 = vrot.slane %v3575, 3
  %v4192 = vsel %vm2138, %v4191, %v4190
  %v4193 = vrot.slane %v3576, 2
  %v4194 = vsel %vm2141, %v4193, %v4192
  %v4195 = vrot.slane %v3577, 1
  %v4196 = vsel %vm2123, %v3578, %v4195
  %v4197 = vrot.slane %v3579, 7
  %v4198 = vsel %vm2126, %v4197, %v4196
  %v4199 = vrot.slane %v3580, 6
  %v4200 = vsel %vm2129, %v4199, %v4198
  %v4201 = vrot.slane %v3581, 5
  %v4202 = vsel %vm2132, %v4201, %v4200
  %v4203 = vrot.slane %v3582, 4
  %v4204 = vsel %vm2135, %v4203, %v4202
  %v4205 = vrot.slane %v3583, 3
  %v4206 = vsel %vm2138, %v4205, %v4204
  %v4207 = vrot.slane %v3584, 2
  %v4208 = vsel %vm2141, %v4207, %v4206
  %v4209 = vpack.c.b16 %v3998, %v3998
  %v4210 = vpack.c.b16 %v4012, %v4012
  %v4211 = vpack.c.b16 %v4026, %v4026
  %v4212 = vpack.c.b16 %v4040, %v4040
  %v4213 = vpack.c.b16 %v4054, %v4054
  %v4214 = vpack.c.b16 %v4068, %v4068
  %v4215 = vpack.c.b16 %v4082, %v4082
  %v4216 = vpack.c.b16 %v4096, %v4096
  %v4217 = vpack.c.b16 %v4110, %v4110
  %v4218 = vpack.c.b16 %v4124, %v4124
  %v4219 = vpack.c.b16 %v4138, %v4138
  %v4220 = vpack.c.b16 %v4152, %v4152
  %v4221 = vpack.c.b16 %v4166, %v4166
  %v4222 = vpack.c.b16 %v4180, %v4180
  %v4223 = vpack.c.b16 %v4194, %v4194
  %v4224 = vpack.c.b16 %v4208, %v4208
  %v4226 = vshrl.u32 %v4209, 16
  %v4228 = vrot.slane %v4226, 7
  %v4229 = vshll.u32 %v4209, 16
  %v4231 = vor.u32 %v4228, %v4229
  %v4233 = vshrl.u32 %v4210, 16
  %v4235 = vrot.slane %v4233, 7
  %v4236 = vshll.u32 %v4210, 16
  %v4238 = vor.u32 %v4235, %v4236
  %v4240 = vshrl.u32 %v4211, 16
  %v4242 = vrot.slane %v4240, 7
  %v4243 = vshll.u32 %v4211, 16
  %v4245 = vor.u32 %v4242, %v4243
  %v4247 = vshrl.u32 %v4212, 16
  %v4249 = vrot.slane %v4247, 7
  %v4250 = vshll.u32 %v4212, 16
  %v4252 = vor.u32 %v4249, %v4250
  %v4254 = vshrl.u32 %v4213, 16
  %v4256 = vrot.slane %v4254, 7
  %v4257 = vshll.u32 %v4213, 16
  %v4259 = vor.u32 %v4256, %v4257
  %v4261 = vshrl.u32 %v4214, 16
  %v4263 = vrot.slane %v4261, 7
  %v4264 = vshll.u32 %v4214, 16
  %v4266 = vor.u32 %v4263, %v4264
  %v4268 = vshrl.u32 %v4215, 16
  %v4270 = vrot.slane %v4268, 7
  %v4271 = vshll.u32 %v4215, 16
  %v4273 = vor.u32 %v4270, %v4271
  %v4275 = vshrl.u32 %v4216, 16
  %v4277 = vrot.slane %v4275, 7
  %v4278 = vshll.u32 %v4216, 16
  %v4280 = vor.u32 %v4277, %v4278
  %v4282 = vshrl.u32 %v4217, 16
  %v4284 = vrot.slane %v4282, 7
  %v4285 = vshll.u32 %v4217, 16
  %v4287 = vor.u32 %v4284, %v4285
  %v4289 = vshrl.u32 %v4218, 16
  %v4291 = vrot.slane %v4289, 7
  %v4292 = vshll.u32 %v4218, 16
  %v4294 = vor.u32 %v4291, %v4292
  %v4296 = vshrl.u32 %v4219, 16
  %v4298 = vrot.slane %v4296, 7
  %v4299 = vshll.u32 %v4219, 16
  %v4301 = vor.u32 %v4298, %v4299
  %v4303 = vshrl.u32 %v4220, 16
  %v4305 = vrot.slane %v4303, 7
  %v4306 = vshll.u32 %v4220, 16
  %v4308 = vor.u32 %v4305, %v4306
  %v4310 = vshrl.u32 %v4221, 16
  %v4312 = vrot.slane %v4310, 7
  %v4313 = vshll.u32 %v4221, 16
  %v4315 = vor.u32 %v4312, %v4313
  %v4317 = vshrl.u32 %v4222, 16
  %v4319 = vrot.slane %v4317, 7
  %v4320 = vshll.u32 %v4222, 16
  %v4322 = vor.u32 %v4319, %v4320
  %v4324 = vshrl.u32 %v4223, 16
  %v4326 = vrot.slane %v4324, 7
  %v4327 = vshll.u32 %v4223, 16
  %v4329 = vor.u32 %v4326, %v4327
  %v4331 = vshrl.u32 %v4224, 16
  %v4333 = vrot.slane %v4331, 7
  %v4334 = vshll.u32 %v4224, 16
  %v4336 = vor.u32 %v4333, %v4334
  %v4353 = vsel %vm2507, 0, %v4231
  %v4354 = vsel %vm2507, 0, %v4238
  %v4355 = vsel %vm2507, 0, %v4245
  %v4356 = vsel %vm2507, 0, %v4252
  %v4357 = vsel %vm2507, 0, %v4259
  %v4358 = vsel %vm2507, 0, %v4266
  %v4359 = vsel %vm2507, 0, %v4273
  %v4360 = vsel %vm2507, 0, %v4280
  %v4361 = vsel %vm2507, 0, %v4287
  %v4362 = vsel %vm2507, 0, %v4294
  %v4363 = vsel %vm2507, 0, %v4301
  %v4364 = vsel %vm2507, 0, %v4308
  %v4365 = vsel %vm2507, 0, %v4315
  %v4366 = vsel %vm2507, 0, %v4322
  %v4367 = vsel %vm2507, 0, %v4329
  %v4368 = vsel %vm2507, 0, %v4336
  %v4369 = vsel %vm2527, %v4353, 0
  %v4370 = vsel %vm2527, %v4354, 0
  %v4371 = vsel %vm2527, %v4355, 0
  %v4372 = vsel %vm2527, %v4356, 0
  %v4373 = vsel %vm2527, %v4357, 0
  %v4374 = vsel %vm2527, %v4358, 0
  %v4375 = vsel %vm2527, %v4359, 0
  %v4376 = vsel %vm2527, %v4360, 0
  %v4377 = vsel %vm2527, %v4361, 0
  %v4378 = vsel %vm2527, %v4362, 0
  %v4379 = vsel %vm2527, %v4363, 0
  %v4380 = vsel %vm2527, %v4364, 0
  %v4381 = vsel %vm2527, %v4365, 0
  %v4382 = vsel %vm2527, %v4366, 0
  %v4383 = vsel %vm2527, %v4367, 0
  %v4384 = vsel %vm2527, %v4368, 0
  %v4385 = vld [vmem:[%s4] sm:$0xf]
  %v4386 = vld [vmem:[%s4 + $0x4] sm:$0xf]
  %v4387 = vld [vmem:[%s4 + $0x8] sm:$0xf]
  %v4388 = vld [vmem:[%s4 + $0xc] sm:$0xf]
  %v4389 = vld [vmem:[%s4 + $0x10] sm:$0xf]
  %v4390 = vld [vmem:[%s4 + $0x14] sm:$0xf]
  %v4391 = vld [vmem:[%s4 + $0x18] sm:$0xf]
  %v4392 = vld [vmem:[%s4 + $0x1c] sm:$0xf]
  %v4393 = vld [vmem:[%s4 + $0x20] sm:$0xf]
  %v4394 = vld [vmem:[%s4 + $0x24] sm:$0xf]
  %v4395 = vld [vmem:[%s4 + $0x28] sm:$0xf]
  %v4396 = vld [vmem:[%s4 + $0x2c] sm:$0xf]
  %v4397 = vld [vmem:[%s4 + $0x30] sm:$0xf]
  %v4398 = vld [vmem:[%s4 + $0x34] sm:$0xf]
  %v4399 = vld [vmem:[%s4 + $0x38] sm:$0xf]
  %v4400 = vld [vmem:[%s4 + $0x3c] sm:$0xf]
  %v4416 = vunpack.c.l.b16 %v2536
  %v4417 = vunpack.c.h.b16 %v2536
  %v4418 = vunpack.c.l.b16 %v3969
  %v4419 = vunpack.c.h.b16 %v3969
  %v4420 = vunpack.c.l.b16 %v3970
  %v4421 = vunpack.c.h.b16 %v3970
  %v4422 = vunpack.c.l.b16 %v3971
  %v4423 = vunpack.c.h.b16 %v3971
  %v4424 = vunpack.c.l.b16 %v3972
  %v4425 = vunpack.c.h.b16 %v3972
  %v4426 = vunpack.c.l.b16 %v3973
  %v4427 = vunpack.c.h.b16 %v3973
  %v4428 = vunpack.c.l.b16 %v3974
  %v4429 = vunpack.c.h.b16 %v3974
  %v4430 = vunpack.c.l.b16 %v3975
  %v4431 = vunpack.c.h.b16 %v3975
  %v4432 = vunpack.c.l.b16 %v3977
  %v4433 = vunpack.c.h.b16 %v3977
  %v4434 = vunpack.c.l.b16 %v3978
  %v4435 = vunpack.c.h.b16 %v3978
  %v4436 = vunpack.c.l.b16 %v3979
  %v4437 = vunpack.c.h.b16 %v3979
  %v4438 = vunpack.c.l.b16 %v3980
  %v4439 = vunpack.c.h.b16 %v3980
  %v4440 = vunpack.c.l.b16 %v3981
  %v4441 = vunpack.c.h.b16 %v3981
  %v4442 = vunpack.c.l.b16 %v3982
  %v4443 = vunpack.c.h.b16 %v3982
  %v4444 = vunpack.c.l.b16 %v3983
  %v4445 = vunpack.c.h.b16 %v3983
  %v4446 = vpack.c.b16 %v4416, %v4416
  %v4447 = vpack.c.b16 %v4417, %v4417
  %v4448 = vpack.c.b16 %v4418, %v4418
  %v4449 = vpack.c.b16 %v4419, %v4419
  %v4450 = vpack.c.b16 %v4420, %v4420
  %v4451 = vpack.c.b16 %v4421, %v4421
  %v4452 = vpack.c.b16 %v4422, %v4422
  %v4453 = vpack.c.b16 %v4423, %v4423
  %v4454 = vpack.c.b16 %v4424, %v4424
  %v4455 = vpack.c.b16 %v4425, %v4425
  %v4456 = vpack.c.b16 %v4426, %v4426
  %v4457 = vpack.c.b16 %v4427, %v4427
  %v4458 = vpack.c.b16 %v4428, %v4428
  %v4459 = vpack.c.b16 %v4429, %v4429
  %v4460 = vpack.c.b16 %v4430, %v4430
  %v4461 = vpack.c.b16 %v4431, %v4431
  %v4462 = vpack.c.b16 %v4432, %v4432
  %v4463 = vpack.c.b16 %v4433, %v4433
  %v4464 = vpack.c.b16 %v4434, %v4434
  %v4465 = vpack.c.b16 %v4435, %v4435
  %v4466 = vpack.c.b16 %v4436, %v4436
  %v4467 = vpack.c.b16 %v4437, %v4437
  %v4468 = vpack.c.b16 %v4438, %v4438
  %v4469 = vpack.c.b16 %v4439, %v4439
  %v4470 = vpack.c.b16 %v4440, %v4440
  %v4471 = vpack.c.b16 %v4441, %v4441
  %v4472 = vpack.c.b16 %v4442, %v4442
  %v4473 = vpack.c.b16 %v4443, %v4443
  %v4474 = vpack.c.b16 %v4444, %v4444
  %v4475 = vpack.c.b16 %v4445, %v4445
  %vm4476 = vsmask.f32 3328
  %vm4477 = vsmask.f32 7440
  %vm4478 = vmor %vm4476, %vm4477
  %v4480 = vshrl.u32 %v4446, 16
  %v4482 = vrot.slane %v4480, 4
  %v4483 = vshll.u32 %v4446, 16
  %v4485 = vrot.slane %v4483, 5
  %v4486 = vor.u32 %v4482, %v4485
  %v4487 = vrot.slane %v4486, 4
  %v4489 = vshll.u32 %v4447, 16
  %v4491 = vrot.slane %v4489, 5
  %v4492 = vsel %vm4478, %v4487, %v4491
  %v4494 = vshrl.u32 %v4448, 16
  %v4496 = vrot.slane %v4494, 4
  %v4497 = vshll.u32 %v4448, 16
  %v4499 = vrot.slane %v4497, 5
  %v4500 = vor.u32 %v4496, %v4499
  %v4501 = vrot.slane %v4500, 4
  %v4503 = vshll.u32 %v4449, 16
  %v4505 = vrot.slane %v4503, 5
  %v4506 = vsel %vm4478, %v4501, %v4505
  %v4508 = vshrl.u32 %v4450, 16
  %v4510 = vrot.slane %v4508, 4
  %v4511 = vshll.u32 %v4450, 16
  %v4513 = vrot.slane %v4511, 5
  %v4514 = vor.u32 %v4510, %v4513
  %v4515 = vrot.slane %v4514, 4
  %v4517 = vshll.u32 %v4451, 16
  %v4519 = vrot.slane %v4517, 5
  %v4520 = vsel %vm4478, %v4515, %v4519
  %v4522 = vshrl.u32 %v4452, 16
  %v4524 = vrot.slane %v4522, 4
  %v4525 = vshll.u32 %v4452, 16
  %v4527 = vrot.slane %v4525, 5
  %v4528 = vor.u32 %v4524, %v4527
  %v4529 = vrot.slane %v4528, 4
  %v4531 = vshll.u32 %v4453, 16
  %v4533 = vrot.slane %v4531, 5
  %v4534 = vsel %vm4478, %v4529, %v4533
  %v4536 = vshrl.u32 %v4454, 16
  %v4538 = vrot.slane %v4536, 4
  %v4539 = vshll.u32 %v4454, 16
  %v4541 = vrot.slane %v4539, 5
  %v4542 = vor.u32 %v4538, %v4541
  %v4543 = vrot.slane %v4542, 4
  %v4545 = vshll.u32 %v4455, 16
  %v4547 = vrot.slane %v4545, 5
  %v4548 = vsel %vm4478, %v4543, %v4547
  %v4550 = vshrl.u32 %v4456, 16
  %v4552 = vrot.slane %v4550, 4
  %v4553 = vshll.u32 %v4456, 16
  %v4555 = vrot.slane %v4553, 5
  %v4556 = vor.u32 %v4552, %v4555
  %v4557 = vrot.slane %v4556, 4
  %v4559 = vshll.u32 %v4457, 16
  %v4561 = vrot.slane %v4559, 5
  %v4562 = vsel %vm4478, %v4557, %v4561
  %v4564 = vshrl.u32 %v4458, 16
  %v4566 = vrot.slane %v4564, 4
  %v4567 = vshll.u32 %v4458, 16
  %v4569 = vrot.slane %v4567, 5
  %v4570 = vor.u32 %v4566, %v4569
  %v4571 = vrot.slane %v4570, 4
  %v4573 = vshll.u32 %v4459, 16
  %v4575 = vrot.slane %v4573, 5
  %v4576 = vsel %vm4478, %v4571, %v4575
  %v4578 = vshrl.u32 %v4460, 16
  %v4580 = vrot.slane %v4578, 4
  %v4581 = vshll.u32 %v4460, 16
  %v4583 = vrot.slane %v4581, 5
  %v4584 = vor.u32 %v4580, %v4583
  %v4585 = vrot.slane %v4584, 4
  %v4587 = vshll.u32 %v4461, 16
  %v4589 = vrot.slane %v4587, 5
  %v4590 = vsel %vm4478, %v4585, %v4589
  %v4592 = vshrl.u32 %v4462, 16
  %v4594 = vrot.slane %v4592, 4
  %v4595 = vshll.u32 %v4462, 16
  %v4597 = vrot.slane %v4595, 5
  %v4598 = vor.u32 %v4594, %v4597
  %v4599 = vrot.slane %v4598, 4
  %v4601 = vshll.u32 %v4463, 16
  %v4603 = vrot.slane %v4601, 5
  %v4604 = vsel %vm4478, %v4599, %v4603
  %v4606 = vshrl.u32 %v4464, 16
  %v4608 = vrot.slane %v4606, 4
  %v4609 = vshll.u32 %v4464, 16
  %v4611 = vrot.slane %v4609, 5
  %v4612 = vor.u32 %v4608, %v4611
  %v4613 = vrot.slane %v4612, 4
  %v4615 = vshll.u32 %v4465, 16
  %v4617 = vrot.slane %v4615, 5
  %v4618 = vsel %vm4478, %v4613, %v4617
  %v4620 = vshrl.u32 %v4466, 16
  %v4622 = vrot.slane %v4620, 4
  %v4623 = vshll.u32 %v4466, 16
  %v4625 = vrot.slane %v4623, 5
  %v4626 = vor.u32 %v4622, %v4625
  %v4627 = vrot.slane %v4626, 4
  %v4629 = vshll.u32 %v4467, 16
  %v4631 = vrot.slane %v4629, 5
  %v4632 = vsel %vm4478, %v4627, %v4631
  %v4634 = vshrl.u32 %v4468, 16
  %v4636 = vrot.slane %v4634, 4
  %v4637 = vshll.u32 %v4468, 16
  %v4639 = vrot.slane %v4637, 5
  %v4640 = vor.u32 %v4636, %v4639
  %v4641 = vrot.slane %v4640, 4
  %v4643 = vshll.u32 %v4469, 16
  %v4645 = vrot.slane %v4643, 5
  %v4646 = vsel %vm4478, %v4641, %v4645
  %v4648 = vshrl.u32 %v4470, 16
  %v4650 = vrot.slane %v4648, 4
  %v4651 = vshll.u32 %v4470, 16
  %v4653 = vrot.slane %v4651, 5
  %v4654 = vor.u32 %v4650, %v4653
  %v4655 = vrot.slane %v4654, 4
  %v4657 = vshll.u32 %v4471, 16
  %v4659 = vrot.slane %v4657, 5
  %v4660 = vsel %vm4478, %v4655, %v4659
  %v4662 = vshrl.u32 %v4472, 16
  %v4664 = vrot.slane %v4662, 4
  %v4665 = vshll.u32 %v4472, 16
  %v4667 = vrot.slane %v4665, 5
  %v4668 = vor.u32 %v4664, %v4667
  %v4669 = vrot.slane %v4668, 4
  %v4671 = vshll.u32 %v4473, 16
  %v4673 = vrot.slane %v4671, 5
  %v4674 = vsel %vm4478, %v4669, %v4673
  %v4676 = vshrl.u32 %v4474, 16
  %v4678 = vrot.slane %v4676, 4
  %v4679 = vshll.u32 %v4474, 16
  %v4681 = vrot.slane %v4679, 5
  %v4682 = vor.u32 %v4678, %v4681
  %v4683 = vrot.slane %v4682, 4
  %v4685 = vshll.u32 %v4475, 16
  %v4687 = vrot.slane %v4685, 5
  %v4688 = vsel %vm4478, %v4683, %v4687
  %s4689 = scalar_lea.vmem %s4, 64
  %v4690 = vld [vmem:[%s4689] sm:$0xf]
  %v4691 = vld [vmem:[%s4689 + $0x4] sm:$0xf]
  %v4692 = vld [vmem:[%s4689 + $0x8] sm:$0xf]
  %v4693 = vld [vmem:[%s4689 + $0xc] sm:$0xf]
  %v4694 = vld [vmem:[%s4689 + $0x10] sm:$0xf]
  %v4695 = vld [vmem:[%s4689 + $0x14] sm:$0xf]
  %v4696 = vld [vmem:[%s4689 + $0x18] sm:$0xf]
  %v4697 = vld [vmem:[%s4689 + $0x1c] sm:$0xf]
  %v4698 = vld [vmem:[%s4689 + $0x20] sm:$0xf]
  %v4699 = vld [vmem:[%s4689 + $0x24] sm:$0xf]
  %v4700 = vld [vmem:[%s4689 + $0x28] sm:$0xf]
  %v4701 = vld [vmem:[%s4689 + $0x2c] sm:$0xf]
  %v4702 = vld [vmem:[%s4689 + $0x30] sm:$0xf]
  %v4703 = vld [vmem:[%s4689 + $0x34] sm:$0xf]
  %v4704 = vld [vmem:[%s4689 + $0x38] sm:$0xf]
  %v4705 = vld [vmem:[%s4689 + $0x3c] sm:$0xf]
  %v4706 = vunpack.c.l.b16 %v4492
  %v4707 = vunpack.c.l.b16 %v4506
  %v4708 = vunpack.c.l.b16 %v4520
  %v4709 = vunpack.c.l.b16 %v4534
  %v4710 = vunpack.c.l.b16 %v4548
  %v4711 = vunpack.c.l.b16 %v4562
  %v4712 = vunpack.c.l.b16 %v4576
  %v4713 = vunpack.c.l.b16 %v4590
  %v4714 = vunpack.c.l.b16 %v4604
  %v4715 = vunpack.c.l.b16 %v4618
  %v4716 = vunpack.c.l.b16 %v4632
  %v4717 = vunpack.c.l.b16 %v4646
  %v4718 = vunpack.c.l.b16 %v4660
  %v4719 = vunpack.c.l.b16 %v4674
  %v4720 = vunpack.c.l.b16 %v4688
  %v4721 = vpack.c.b16 %v4707, %v4706
  %v4722 = vpack.c.b16 %v4709, %v4708
  %v4723 = vpack.c.b16 %v4711, %v4710
  %v4724 = vpack.c.b16 %v4713, %v4712
  %v4725 = vpack.c.b16 %v4714, %v4706
  %v4726 = vpack.c.b16 %v4716, %v4715
  %v4727 = vpack.c.b16 %v4718, %v4717
  %v4728 = vpack.c.b16 %v4720, %v4719
  %v4753 = vunpack.c.l.b16 %v4690
  %v4754 = vunpack.c.l.b16 %v4691
  %v4755 = vunpack.c.l.b16 %v4692
  %v4756 = vunpack.c.l.b16 %v4693
  %v4757 = vunpack.c.l.b16 %v4694
  %v4758 = vunpack.c.l.b16 %v4695
  %v4759 = vunpack.c.l.b16 %v4696
  %v4760 = vunpack.c.l.b16 %v4697
  %v4761 = vunpack.c.l.b16 %v4698
  %v4762 = vunpack.c.l.b16 %v4699
  %v4763 = vunpack.c.l.b16 %v4700
  %v4764 = vunpack.c.l.b16 %v4701
  %v4765 = vunpack.c.l.b16 %v4702
  %v4766 = vunpack.c.l.b16 %v4703
  %v4767 = vunpack.c.l.b16 %v4704
  %v4768 = vunpack.c.l.b16 %v4705
  %v4769 = vpack.c.b16 %v4754, %v4753
  %v4770 = vpack.c.b16 %v4756, %v4755
  %v4771 = vpack.c.b16 %v4758, %v4757
  %v4772 = vpack.c.b16 %v4760, %v4759
  %v4773 = vpack.c.b16 %v4762, %v4761
  %v4774 = vpack.c.b16 %v4764, %v4763
  %v4775 = vpack.c.b16 %v4766, %v4765
  %v4776 = vpack.c.b16 %v4768, %v4767
  %4785 = vmatpush.bf16.msra.mxu0 %v4776
  %4786 = vmatpush.bf16.msra.mxu0 %v4775
  %4787 = vmatpush.bf16.msra.mxu0 %v4774
  %4788 = vmatpush.bf16.msra.mxu0 %v4773
  %4789 = vmatpush.bf16.msra.mxu0 %v4772
  %4790 = vmatpush.bf16.msra.mxu0 %v4771
  %4791 = vmatpush.bf16.msra.mxu0 %v4770
  %4792 = vmatpush.bf16.msra.mxu0 %v4769
  %4793 = vmatmul.bf16.gmra.mxu0 %v4721
  %v4794 = vpop.f32.mrf.mxu0
  %v4795 = vadd.f32 0.0, %v4794
  %v4796 = vpop.f32.mrf.mxu0
  %v4797 = vadd.f32 0.0, %v4796
  %4798 = vmatmul.bf16.gmra.mxu0 %v4722
  %v4799 = vpop.f32.mrf.mxu0
  %v4800 = vadd.f32 0.0, %v4799
  %v4801 = vpop.f32.mrf.mxu0
  %v4802 = vadd.f32 0.0, %v4801
  %4803 = vmatmul.bf16.gmra.mxu0 %v4723
  %v4804 = vpop.f32.mrf.mxu0
  %v4805 = vadd.f32 0.0, %v4804
  %v4806 = vpop.f32.mrf.mxu0
  %v4807 = vadd.f32 0.0, %v4806
  %4808 = vmatmul.bf16.gmra.mxu0 %v4724
  %v4809 = vpop.f32.mrf.mxu0
  %v4810 = vadd.f32 0.0, %v4809
  %v4811 = vpop.f32.mrf.mxu0
  %v4812 = vadd.f32 0.0, %v4811
  %4813 = vmatmul.bf16.gmra.mxu0 %v4725
  %v4814 = vpop.f32.mrf.mxu0
  %v4815 = vadd.f32 0.0, %v4814
  %v4816 = vpop.f32.mrf.mxu0
  %v4817 = vadd.f32 0.0, %v4816
  %4818 = vmatmul.bf16.gmra.mxu0 %v4726
  %v4819 = vpop.f32.mrf.mxu0
  %v4820 = vadd.f32 0.0, %v4819
  %v4821 = vpop.f32.mrf.mxu0
  %v4822 = vadd.f32 0.0, %v4821
  %4823 = vmatmul.bf16.gmra.mxu0 %v4727
  %v4824 = vpop.f32.mrf.mxu0
  %v4825 = vadd.f32 0.0, %v4824
  %v4826 = vpop.f32.mrf.mxu0
  %v4827 = vadd.f32 0.0, %v4826
  %4828 = vmatmul.bf16.gmra.mxu0 %v4728
  %v4829 = vpop.f32.mrf.mxu0
  %v4830 = vadd.f32 0.0, %v4829
  %v4831 = vpop.f32.mrf.mxu0
  %v4832 = vadd.f32 0.0, %v4831
  %4833 = vdwg.mxu0
  %v4848 = vunpack.c.l.b16 %v4369
  %v4849 = vunpack.c.l.b16 %v4370
  %v4850 = vunpack.c.l.b16 %v4371
  %v4851 = vunpack.c.l.b16 %v4372
  %v4852 = vunpack.c.l.b16 %v4373
  %v4853 = vunpack.c.l.b16 %v4374
  %v4854 = vunpack.c.l.b16 %v4375
  %v4855 = vunpack.c.l.b16 %v4377
  %v4856 = vunpack.c.l.b16 %v4378
  %v4857 = vunpack.c.l.b16 %v4379
  %v4858 = vunpack.c.l.b16 %v4380
  %v4859 = vunpack.c.l.b16 %v4381
  %v4860 = vunpack.c.l.b16 %v4382
  %v4861 = vunpack.c.l.b16 %v4383
  %v4862 = vpack.c.b16 %v4848, %v4416
  %v4863 = vpack.c.b16 %v4850, %v4849
  %v4864 = vpack.c.b16 %v4852, %v4851
  %v4865 = vpack.c.b16 %v4854, %v4853
  %v4866 = vpack.c.b16 %v4855, %v4416
  %v4867 = vpack.c.b16 %v4857, %v4856
  %v4868 = vpack.c.b16 %v4859, %v4858
  %v4869 = vpack.c.b16 %v4861, %v4860
  %v4894 = vunpack.c.l.b16 %v4385
  %v4895 = vunpack.c.l.b16 %v4386
  %v4896 = vunpack.c.l.b16 %v4387
  %v4897 = vunpack.c.l.b16 %v4388
  %v4898 = vunpack.c.l.b16 %v4389
  %v4899 = vunpack.c.l.b16 %v4390
  %v4900 = vunpack.c.l.b16 %v4391
  %v4901 = vunpack.c.l.b16 %v4392
  %v4902 = vunpack.c.l.b16 %v4393
  %v4903 = vunpack.c.l.b16 %v4394
  %v4904 = vunpack.c.l.b16 %v4395
  %v4905 = vunpack.c.l.b16 %v4396
  %v4906 = vunpack.c.l.b16 %v4397
  %v4907 = vunpack.c.l.b16 %v4398
  %v4908 = vunpack.c.l.b16 %v4399
  %v4909 = vunpack.c.l.b16 %v4400
  %v4910 = vpack.c.b16 %v4895, %v4894
  %v4911 = vpack.c.b16 %v4897, %v4896
  %v4912 = vpack.c.b16 %v4899, %v4898
  %v4913 = vpack.c.b16 %v4901, %v4900
  %v4914 = vpack.c.b16 %v4903, %v4902
  %v4915 = vpack.c.b16 %v4905, %v4904
  %v4916 = vpack.c.b16 %v4907, %v4906
  %v4917 = vpack.c.b16 %v4909, %v4908
  %4926 = vmatpush.bf16.msra.mxu0 %v4917
  %4927 = vmatpush.bf16.msra.mxu0 %v4916
  %4928 = vmatpush.bf16.msra.mxu0 %v4915
  %4929 = vmatpush.bf16.msra.mxu0 %v4914
  %4930 = vmatpush.bf16.msra.mxu0 %v4913
  %4931 = vmatpush.bf16.msra.mxu0 %v4912
  %4932 = vmatpush.bf16.msra.mxu0 %v4911
  %4933 = vmatpush.bf16.msra.mxu0 %v4910
  %4934 = vmatmul.bf16.gmra.mxu0 %v4862
  %v4935 = vpop.f32.mrf.mxu0
  %v4936 = vadd.f32 %v4795, %v4935
  %v4937 = vpop.f32.mrf.mxu0
  %v4938 = vadd.f32 %v4797, %v4937
  %4939 = vmatmul.bf16.gmra.mxu0 %v4863
  %v4940 = vpop.f32.mrf.mxu0
  %v4941 = vadd.f32 %v4800, %v4940
  %v4942 = vpop.f32.mrf.mxu0
  %v4943 = vadd.f32 %v4802, %v4942
  %4944 = vmatmul.bf16.gmra.mxu0 %v4864
  %v4945 = vpop.f32.mrf.mxu0
  %v4946 = vadd.f32 %v4805, %v4945
  %v4947 = vpop.f32.mrf.mxu0
  %v4948 = vadd.f32 %v4807, %v4947
  %4949 = vmatmul.bf16.gmra.mxu0 %v4865
  %v4950 = vpop.f32.mrf.mxu0
  %v4951 = vadd.f32 %v4810, %v4950
  %v4952 = vpop.f32.mrf.mxu0
  %v4953 = vadd.f32 %v4812, %v4952
  %4954 = vmatmul.bf16.gmra.mxu0 %v4866
  %v4955 = vpop.f32.mrf.mxu0
  %v4956 = vadd.f32 %v4815, %v4955
  %v4957 = vpop.f32.mrf.mxu0
  %v4958 = vadd.f32 %v4817, %v4957
  %4959 = vmatmul.bf16.gmra.mxu0 %v4867
  %v4960 = vpop.f32.mrf.mxu0
  %v4961 = vadd.f32 %v4820, %v4960
  %v4962 = vpop.f32.mrf.mxu0
  %v4963 = vadd.f32 %v4822, %v4962
  %4964 = vmatmul.bf16.gmra.mxu0 %v4868
  %v4965 = vpop.f32.mrf.mxu0
  %v4966 = vadd.f32 %v4825, %v4965
  %v4967 = vpop.f32.mrf.mxu0
  %v4968 = vadd.f32 %v4827, %v4967
  %4969 = vmatmul.bf16.gmra.mxu0 %v4869
  %v4970 = vpop.f32.mrf.mxu0
  %v4971 = vadd.f32 %v4830, %v4970
  %v4972 = vpop.f32.mrf.mxu0
  %v4973 = vadd.f32 %v4832, %v4972
  %4974 = vdwg.mxu0
  %v4975 = vunpack.c.h.b16 %v4369
  %v4976 = vunpack.c.h.b16 %v4370
  %v4977 = vunpack.c.h.b16 %v4371
  %v4978 = vunpack.c.h.b16 %v4372
  %v4979 = vunpack.c.h.b16 %v4373
  %v4980 = vunpack.c.h.b16 %v4374
  %v4981 = vunpack.c.h.b16 %v4375
  %v4982 = vunpack.c.h.b16 %v4377
  %v4983 = vunpack.c.h.b16 %v4378
  %v4984 = vunpack.c.h.b16 %v4379
  %v4985 = vunpack.c.h.b16 %v4380
  %v4986 = vunpack.c.h.b16 %v4381
  %v4987 = vunpack.c.h.b16 %v4382
  %v4988 = vunpack.c.h.b16 %v4383
  %v4989 = vpack.c.b16 %v4848, %v4848
  %v4990 = vpack.c.b16 %v4975, %v4975
  %v4991 = vpack.c.b16 %v4849, %v4849
  %v4992 = vpack.c.b16 %v4976, %v4976
  %v4993 = vpack.c.b16 %v4850, %v4850
  %v4994 = vpack.c.b16 %v4977, %v4977
  %v4995 = vpack.c.b16 %v4851, %v4851
  %v4996 = vpack.c.b16 %v4978, %v4978
  %v4997 = vpack.c.b16 %v4852, %v4852
  %v4998 = vpack.c.b16 %v4979, %v4979
  %v4999 = vpack.c.b16 %v4853, %v4853
  %v5000 = vpack.c.b16 %v4980, %v4980
  %v5001 = vpack.c.b16 %v4854, %v4854
  %v5002 = vpack.c.b16 %v4981, %v4981
  %v5003 = vpack.c.b16 %v4855, %v4855
  %v5004 = vpack.c.b16 %v4982, %v4982
  %v5005 = vpack.c.b16 %v4856, %v4856
  %v5006 = vpack.c.b16 %v4983, %v4983
  %v5007 = vpack.c.b16 %v4857, %v4857
  %v5008 = vpack.c.b16 %v4984, %v4984
  %v5009 = vpack.c.b16 %v4858, %v4858
  %v5010 = vpack.c.b16 %v4985, %v4985
  %v5011 = vpack.c.b16 %v4859, %v4859
  %v5012 = vpack.c.b16 %v4986, %v4986
  %v5013 = vpack.c.b16 %v4860, %v4860
  %v5014 = vpack.c.b16 %v4987, %v4987
  %v5015 = vpack.c.b16 %v4861, %v4861
  %v5016 = vpack.c.b16 %v4988, %v4988
  %v5018 = vshrl.u32 %v4989, 16
  %v5020 = vrot.slane %v5018, 4
  %v5021 = vshll.u32 %v4989, 16
  %v5023 = vrot.slane %v5021, 5
  %v5024 = vor.u32 %v5020, %v5023
  %v5025 = vrot.slane %v5024, 4
  %v5027 = vshll.u32 %v4990, 16
  %v5029 = vrot.slane %v5027, 5
  %v5030 = vsel %vm4478, %v5025, %v5029
  %v5032 = vshrl.u32 %v4991, 16
  %v5034 = vrot.slane %v5032, 4
  %v5035 = vshll.u32 %v4991, 16
  %v5037 = vrot.slane %v5035, 5
  %v5038 = vor.u32 %v5034, %v5037
  %v5039 = vrot.slane %v5038, 4
  %v5041 = vshll.u32 %v4992, 16
  %v5043 = vrot.slane %v5041, 5
  %v5044 = vsel %vm4478, %v5039, %v5043
  %v5046 = vshrl.u32 %v4993, 16
  %v5048 = vrot.slane %v5046, 4
  %v5049 = vshll.u32 %v4993, 16
  %v5051 = vrot.slane %v5049, 5
  %v5052 = vor.u32 %v5048, %v5051
  %v5053 = vrot.slane %v5052, 4
  %v5055 = vshll.u32 %v4994, 16
  %v5057 = vrot.slane %v5055, 5
  %v5058 = vsel %vm4478, %v5053, %v5057
  %v5060 = vshrl.u32 %v4995, 16
  %v5062 = vrot.slane %v5060, 4
  %v5063 = vshll.u32 %v4995, 16
  %v5065 = vrot.slane %v5063, 5
  %v5066 = vor.u32 %v5062, %v5065
  %v5067 = vrot.slane %v5066, 4
  %v5069 = vshll.u32 %v4996, 16
  %v5071 = vrot.slane %v5069, 5
  %v5072 = vsel %vm4478, %v5067, %v5071
  %v5074 = vshrl.u32 %v4997, 16
  %v5076 = vrot.slane %v5074, 4
  %v5077 = vshll.u32 %v4997, 16
  %v5079 = vrot.slane %v5077, 5
  %v5080 = vor.u32 %v5076, %v5079
  %v5081 = vrot.slane %v5080, 4
  %v5083 = vshll.u32 %v4998, 16
  %v5085 = vrot.slane %v5083, 5
  %v5086 = vsel %vm4478, %v5081, %v5085
  %v5088 = vshrl.u32 %v4999, 16
  %v5090 = vrot.slane %v5088, 4
  %v5091 = vshll.u32 %v4999, 16
  %v5093 = vrot.slane %v5091, 5
  %v5094 = vor.u32 %v5090, %v5093
  %v5095 = vrot.slane %v5094, 4
  %v5097 = vshll.u32 %v5000, 16
  %v5099 = vrot.slane %v5097, 5
  %v5100 = vsel %vm4478, %v5095, %v5099
  %v5102 = vshrl.u32 %v5001, 16
  %v5104 = vrot.slane %v5102, 4
  %v5105 = vshll.u32 %v5001, 16
  %v5107 = vrot.slane %v5105, 5
  %v5108 = vor.u32 %v5104, %v5107
  %v5109 = vrot.slane %v5108, 4
  %v5111 = vshll.u32 %v5002, 16
  %v5113 = vrot.slane %v5111, 5
  %v5114 = vsel %vm4478, %v5109, %v5113
  %v5116 = vshrl.u32 %v5003, 16
  %v5118 = vrot.slane %v5116, 4
  %v5119 = vshll.u32 %v5003, 16
  %v5121 = vrot.slane %v5119, 5
  %v5122 = vor.u32 %v5118, %v5121
  %v5123 = vrot.slane %v5122, 4
  %v5125 = vshll.u32 %v5004, 16
  %v5127 = vrot.slane %v5125, 5
  %v5128 = vsel %vm4478, %v5123, %v5127
  %v5130 = vshrl.u32 %v5005, 16
  %v5132 = vrot.slane %v5130, 4
  %v5133 = vshll.u32 %v5005, 16
  %v5135 = vrot.slane %v5133, 5
  %v5136 = vor.u32 %v5132, %v5135
  %v5137 = vrot.slane %v5136, 4
  %v5139 = vshll.u32 %v5006, 16
  %v5141 = vrot.slane %v5139, 5
  %v5142 = vsel %vm4478, %v5137, %v5141
  %v5144 = vshrl.u32 %v5007, 16
  %v5146 = vrot.slane %v5144, 4
  %v5147 = vshll.u32 %v5007, 16
  %v5149 = vrot.slane %v5147, 5
  %v5150 = vor.u32 %v5146, %v5149
  %v5151 = vrot.slane %v5150, 4
  %v5153 = vshll.u32 %v5008, 16
  %v5155 = vrot.slane %v5153, 5
  %v5156 = vsel %vm4478, %v5151, %v5155
  %v5158 = vshrl.u32 %v5009, 16
  %v5160 = vrot.slane %v5158, 4
  %v5161 = vshll.u32 %v5009, 16
  %v5163 = vrot.slane %v5161, 5
  %v5164 = vor.u32 %v5160, %v5163
  %v5165 = vrot.slane %v5164, 4
  %v5167 = vshll.u32 %v5010, 16
  %v5169 = vrot.slane %v5167, 5
  %v5170 = vsel %vm4478, %v5165, %v5169
  %v5172 = vshrl.u32 %v5011, 16
  %v5174 = vrot.slane %v5172, 4
  %v5175 = vshll.u32 %v5011, 16
  %v5177 = vrot.slane %v5175, 5
  %v5178 = vor.u32 %v5174, %v5177
  %v5179 = vrot.slane %v5178, 4
  %v5181 = vshll.u32 %v5012, 16
  %v5183 = vrot.slane %v5181, 5
  %v5184 = vsel %vm4478, %v5179, %v5183
  %v5186 = vshrl.u32 %v5013, 16
  %v5188 = vrot.slane %v5186, 4
  %v5189 = vshll.u32 %v5013, 16
  %v5191 = vrot.slane %v5189, 5
  %v5192 = vor.u32 %v5188, %v5191
  %v5193 = vrot.slane %v5192, 4
  %v5195 = vshll.u32 %v5014, 16
  %v5197 = vrot.slane %v5195, 5
  %v5198 = vsel %vm4478, %v5193, %v5197
  %v5200 = vshrl.u32 %v5015, 16
  %v5202 = vrot.slane %v5200, 4
  %v5203 = vshll.u32 %v5015, 16
  %v5205 = vrot.slane %v5203, 5
  %v5206 = vor.u32 %v5202, %v5205
  %v5207 = vrot.slane %v5206, 4
  %v5209 = vshll.u32 %v5016, 16
  %v5211 = vrot.slane %v5209, 5
  %v5212 = vsel %vm4478, %v5207, %v5211
  %s5213 = scalar_lea.vmem %s4, 128
  %v5214 = vld [vmem:[%s5213] sm:$0xf]
  %v5215 = vld [vmem:[%s5213 + $0x4] sm:$0xf]
  %v5216 = vld [vmem:[%s5213 + $0x8] sm:$0xf]
  %v5217 = vld [vmem:[%s5213 + $0xc] sm:$0xf]
  %v5218 = vld [vmem:[%s5213 + $0x10] sm:$0xf]
  %v5219 = vld [vmem:[%s5213 + $0x14] sm:$0xf]
  %v5220 = vld [vmem:[%s5213 + $0x18] sm:$0xf]
  %v5221 = vld [vmem:[%s5213 + $0x1c] sm:$0xf]
  %v5222 = vld [vmem:[%s5213 + $0x20] sm:$0xf]
  %v5223 = vld [vmem:[%s5213 + $0x24] sm:$0xf]
  %v5224 = vld [vmem:[%s5213 + $0x28] sm:$0xf]
  %v5225 = vld [vmem:[%s5213 + $0x2c] sm:$0xf]
  %v5226 = vld [vmem:[%s5213 + $0x30] sm:$0xf]
  %v5227 = vld [vmem:[%s5213 + $0x34] sm:$0xf]
  %v5228 = vld [vmem:[%s5213 + $0x38] sm:$0xf]
  %v5229 = vld [vmem:[%s5213 + $0x3c] sm:$0xf]
  %v5230 = vunpack.c.l.b16 %v5030
  %v5231 = vunpack.c.l.b16 %v5044
  %v5232 = vunpack.c.l.b16 %v5058
  %v5233 = vunpack.c.l.b16 %v5072
  %v5234 = vunpack.c.l.b16 %v5086
  %v5235 = vunpack.c.l.b16 %v5100
  %v5236 = vunpack.c.l.b16 %v5114
  %v5237 = vunpack.c.l.b16 %v5128
  %v5238 = vunpack.c.l.b16 %v5142
  %v5239 = vunpack.c.l.b16 %v5156
  %v5240 = vunpack.c.l.b16 %v5170
  %v5241 = vunpack.c.l.b16 %v5184
  %v5242 = vunpack.c.l.b16 %v5198
  %v5243 = vunpack.c.l.b16 %v5212
  %v5244 = vpack.c.b16 %v5230, %v4706
  %v5245 = vpack.c.b16 %v5232, %v5231
  %v5246 = vpack.c.b16 %v5234, %v5233
  %v5247 = vpack.c.b16 %v5236, %v5235
  %v5248 = vpack.c.b16 %v5237, %v4706
  %v5249 = vpack.c.b16 %v5239, %v5238
  %v5250 = vpack.c.b16 %v5241, %v5240
  %v5251 = vpack.c.b16 %v5243, %v5242
  %v5276 = vunpack.c.l.b16 %v5214
  %v5277 = vunpack.c.l.b16 %v5215
  %v5278 = vunpack.c.l.b16 %v5216
  %v5279 = vunpack.c.l.b16 %v5217
  %v5280 = vunpack.c.l.b16 %v5218
  %v5281 = vunpack.c.l.b16 %v5219
  %v5282 = vunpack.c.l.b16 %v5220
  %v5283 = vunpack.c.l.b16 %v5221
  %v5284 = vunpack.c.l.b16 %v5222
  %v5285 = vunpack.c.l.b16 %v5223
  %v5286 = vunpack.c.l.b16 %v5224
  %v5287 = vunpack.c.l.b16 %v5225
  %v5288 = vunpack.c.l.b16 %v5226
  %v5289 = vunpack.c.l.b16 %v5227
  %v5290 = vunpack.c.l.b16 %v5228
  %v5291 = vunpack.c.l.b16 %v5229
  %v5292 = vpack.c.b16 %v5277, %v5276
  %v5293 = vpack.c.b16 %v5279, %v5278
  %v5294 = vpack.c.b16 %v5281, %v5280
  %v5295 = vpack.c.b16 %v5283, %v5282
  %v5296 = vpack.c.b16 %v5285, %v5284
  %v5297 = vpack.c.b16 %v5287, %v5286
  %v5298 = vpack.c.b16 %v5289, %v5288
  %v5299 = vpack.c.b16 %v5291, %v5290
  %5308 = vmatpush.bf16.msra.mxu0 %v5299
  %5309 = vmatpush.bf16.msra.mxu0 %v5298
  %5310 = vmatpush.bf16.msra.mxu0 %v5297
  %5311 = vmatpush.bf16.msra.mxu0 %v5296
  %5312 = vmatpush.bf16.msra.mxu0 %v5295
  %5313 = vmatpush.bf16.msra.mxu0 %v5294
  %5314 = vmatpush.bf16.msra.mxu0 %v5293
  %5315 = vmatpush.bf16.msra.mxu0 %v5292
  %5316 = vmatmul.bf16.gmra.mxu0 %v5244
  %v5317 = vpop.f32.mrf.mxu0
  %v5318 = vadd.f32 0.0, %v5317
  %v5319 = vpop.f32.mrf.mxu0
  %v5320 = vadd.f32 0.0, %v5319
  %5321 = vmatmul.bf16.gmra.mxu0 %v5245
  %v5322 = vpop.f32.mrf.mxu0
  %v5323 = vadd.f32 0.0, %v5322
  %v5324 = vpop.f32.mrf.mxu0
  %v5325 = vadd.f32 0.0, %v5324
  %5326 = vmatmul.bf16.gmra.mxu0 %v5246
  %v5327 = vpop.f32.mrf.mxu0
  %v5328 = vadd.f32 0.0, %v5327
  %v5329 = vpop.f32.mrf.mxu0
  %v5330 = vadd.f32 0.0, %v5329
  %5331 = vmatmul.bf16.gmra.mxu0 %v5247
  %v5332 = vpop.f32.mrf.mxu0
  %v5333 = vadd.f32 0.0, %v5332
  %v5334 = vpop.f32.mrf.mxu0
  %v5335 = vadd.f32 0.0, %v5334
  %5336 = vmatmul.bf16.gmra.mxu0 %v5248
  %v5337 = vpop.f32.mrf.mxu0
  %v5338 = vadd.f32 0.0, %v5337
  %v5339 = vpop.f32.mrf.mxu0
  %v5340 = vadd.f32 0.0, %v5339
  %5341 = vmatmul.bf16.gmra.mxu0 %v5249
  %v5342 = vpop.f32.mrf.mxu0
  %v5343 = vadd.f32 0.0, %v5342
  %v5344 = vpop.f32.mrf.mxu0
  %v5345 = vadd.f32 0.0, %v5344
  %5346 = vmatmul.bf16.gmra.mxu0 %v5250
  %v5347 = vpop.f32.mrf.mxu0
  %v5348 = vadd.f32 0.0, %v5347
  %v5349 = vpop.f32.mrf.mxu0
  %v5350 = vadd.f32 0.0, %v5349
  %5351 = vmatmul.bf16.gmra.mxu0 %v5251
  %v5352 = vpop.f32.mrf.mxu0
  %v5353 = vadd.f32 0.0, %v5352
  %v5354 = vpop.f32.mrf.mxu0
  %v5355 = vadd.f32 0.0, %v5354
  %5356 = vdwg.mxu0
  %v5357 = vadd.f32 %v4936, %v5318
  %v5358 = vadd.f32 %v4938, %v5320
  %v5359 = vadd.f32 %v4941, %v5323
  %v5360 = vadd.f32 %v4943, %v5325
  %v5361 = vadd.f32 %v4946, %v5328
  %v5362 = vadd.f32 %v4948, %v5330
  %v5363 = vadd.f32 %v4951, %v5333
  %v5364 = vadd.f32 %v4953, %v5335
  %v5365 = vadd.f32 %v4956, %v5338
  %v5366 = vadd.f32 %v4958, %v5340
  %v5367 = vadd.f32 %v4961, %v5343
  %v5368 = vadd.f32 %v4963, %v5345
  %v5369 = vadd.f32 %v4966, %v5348
  %v5370 = vadd.f32 %v4968, %v5350
  %v5371 = vadd.f32 %v4971, %v5353
  %v5372 = vadd.f32 %v4973, %v5355
  %vm5373 = vcmask 1042432
  %vm5374 = vcmask 1046532
  %vm5375 = vmor %vm5373, %vm5374
  %v5376 = vrot.slane %v4446, 5
  %v5377 = vrot.slane %v5376, 4
  %v5378 = vrot.slane %v4447, 5
  %v5379 = vsel %vm5375, %v5377, %v5378
  %v5380 = vrot.slane %v4448, 5
  %v5381 = vrot.slane %v5380, 4
  %v5382 = vrot.slane %v4449, 5
  %v5383 = vsel %vm5375, %v5381, %v5382
  %v5384 = vrot.slane %v4450, 5
  %v5385 = vrot.slane %v5384, 4
  %v5386 = vrot.slane %v4451, 5
  %v5387 = vsel %vm5375, %v5385, %v5386
  %v5388 = vrot.slane %v4452, 5
  %v5389 = vrot.slane %v5388, 4
  %v5390 = vrot.slane %v4453, 5
  %v5391 = vsel %vm5375, %v5389, %v5390
  %v5392 = vrot.slane %v4454, 5
  %v5393 = vrot.slane %v5392, 4
  %v5394 = vrot.slane %v4455, 5
  %v5395 = vsel %vm5375, %v5393, %v5394
  %v5396 = vrot.slane %v4456, 5
  %v5397 = vrot.slane %v5396, 4
  %v5398 = vrot.slane %v4457, 5
  %v5399 = vsel %vm5375, %v5397, %v5398
  %v5400 = vrot.slane %v4458, 5
  %v5401 = vrot.slane %v5400, 4
  %v5402 = vrot.slane %v4459, 5
  %v5403 = vsel %vm5375, %v5401, %v5402
  %v5404 = vrot.slane %v4460, 5
  %v5405 = vrot.slane %v5404, 4
  %v5406 = vrot.slane %v4461, 5
  %v5407 = vsel %vm5375, %v5405, %v5406
  %v5408 = vrot.slane %v4462, 5
  %v5409 = vrot.slane %v5408, 4
  %v5410 = vrot.slane %v4463, 5
  %v5411 = vsel %vm5375, %v5409, %v5410
  %v5412 = vrot.slane %v4464, 5
  %v5413 = vrot.slane %v5412, 4
  %v5414 = vrot.slane %v4465, 5
  %v5415 = vsel %vm5375, %v5413, %v5414
  %v5416 = vrot.slane %v4466, 5
  %v5417 = vrot.slane %v5416, 4
  %v5418 = vrot.slane %v4467, 5
  %v5419 = vsel %vm5375, %v5417, %v5418
  %v5420 = vrot.slane %v4468, 5
  %v5421 = vrot.slane %v5420, 4
  %v5422 = vrot.slane %v4469, 5
  %v5423 = vsel %vm5375, %v5421, %v5422
  %v5424 = vrot.slane %v4470, 5
  %v5425 = vrot.slane %v5424, 4
  %v5426 = vrot.slane %v4471, 5
  %v5427 = vsel %vm5375, %v5425, %v5426
  %v5428 = vrot.slane %v4472, 5
  %v5429 = vrot.slane %v5428, 4
  %v5430 = vrot.slane %v4473, 5
  %v5431 = vsel %vm5375, %v5429, %v5430
  %v5432 = vrot.slane %v4474, 5
  %v5433 = vrot.slane %v5432, 4
  %v5434 = vrot.slane %v4475, 5
  %v5435 = vsel %vm5375, %v5433, %v5434
  %s5436 = scalar_lea.vmem %s4, 192
  %v5437 = vld [vmem:[%s5436] sm:$0xf]
  %v5438 = vld [vmem:[%s5436 + $0x4] sm:$0xf]
  %v5439 = vld [vmem:[%s5436 + $0x8] sm:$0xf]
  %v5440 = vld [vmem:[%s5436 + $0xc] sm:$0xf]
  %v5441 = vld [vmem:[%s5436 + $0x10] sm:$0xf]
  %v5442 = vld [vmem:[%s5436 + $0x14] sm:$0xf]
  %v5443 = vld [vmem:[%s5436 + $0x18] sm:$0xf]
  %v5444 = vld [vmem:[%s5436 + $0x1c] sm:$0xf]
  %v5445 = vld [vmem:[%s5436 + $0x20] sm:$0xf]
  %v5446 = vld [vmem:[%s5436 + $0x24] sm:$0xf]
  %v5447 = vld [vmem:[%s5436 + $0x28] sm:$0xf]
  %v5448 = vld [vmem:[%s5436 + $0x2c] sm:$0xf]
  %v5449 = vld [vmem:[%s5436 + $0x30] sm:$0xf]
  %v5450 = vld [vmem:[%s5436 + $0x34] sm:$0xf]
  %v5451 = vld [vmem:[%s5436 + $0x38] sm:$0xf]
  %v5452 = vld [vmem:[%s5436 + $0x3c] sm:$0xf]
  %v5453 = vunpack.c.l.b16 %v5379
  %v5454 = vunpack.c.l.b16 %v5383
  %v5455 = vunpack.c.l.b16 %v5387
  %v5456 = vunpack.c.l.b16 %v5391
  %v5457 = vunpack.c.l.b16 %v5395
  %v5458 = vunpack.c.l.b16 %v5399
  %v5459 = vunpack.c.l.b16 %v5403
  %v5460 = vunpack.c.l.b16 %v5407
  %v5461 = vunpack.c.l.b16 %v5411
  %v5462 = vunpack.c.l.b16 %v5415
  %v5463 = vunpack.c.l.b16 %v5419
  %v5464 = vunpack.c.l.b16 %v5423
  %v5465 = vunpack.c.l.b16 %v5427
  %v5466 = vunpack.c.l.b16 %v5431
  %v5467 = vunpack.c.l.b16 %v5435
  %v5468 = vpack.c.b16 %v5454, %v5453
  %v5469 = vpack.c.b16 %v5456, %v5455
  %v5470 = vpack.c.b16 %v5458, %v5457
  %v5471 = vpack.c.b16 %v5460, %v5459
  %v5472 = vpack.c.b16 %v5461, %v5453
  %v5473 = vpack.c.b16 %v5463, %v5462
  %v5474 = vpack.c.b16 %v5465, %v5464
  %v5475 = vpack.c.b16 %v5467, %v5466
  %v5500 = vunpack.c.l.b16 %v5437
  %v5501 = vunpack.c.l.b16 %v5438
  %v5502 = vunpack.c.l.b16 %v5439
  %v5503 = vunpack.c.l.b16 %v5440
  %v5504 = vunpack.c.l.b16 %v5441
  %v5505 = vunpack.c.l.b16 %v5442
  %v5506 = vunpack.c.l.b16 %v5443
  %v5507 = vunpack.c.l.b16 %v5444
  %v5508 = vunpack.c.l.b16 %v5445
  %v5509 = vunpack.c.l.b16 %v5446
  %v5510 = vunpack.c.l.b16 %v5447
  %v5511 = vunpack.c.l.b16 %v5448
  %v5512 = vunpack.c.l.b16 %v5449
  %v5513 = vunpack.c.l.b16 %v5450
  %v5514 = vunpack.c.l.b16 %v5451
  %v5515 = vunpack.c.l.b16 %v5452
  %v5516 = vpack.c.b16 %v5501, %v5500
  %v5517 = vpack.c.b16 %v5503, %v5502
  %v5518 = vpack.c.b16 %v5505, %v5504
  %v5519 = vpack.c.b16 %v5507, %v5506
  %v5520 = vpack.c.b16 %v5509, %v5508
  %v5521 = vpack.c.b16 %v5511, %v5510
  %v5522 = vpack.c.b16 %v5513, %v5512
  %v5523 = vpack.c.b16 %v5515, %v5514
  %5532 = vmatpush.bf16.msra.mxu0 %v5523
  %5533 = vmatpush.bf16.msra.mxu0 %v5522
  %5534 = vmatpush.bf16.msra.mxu0 %v5521
  %5535 = vmatpush.bf16.msra.mxu0 %v5520
  %5536 = vmatpush.bf16.msra.mxu0 %v5519
  %5537 = vmatpush.bf16.msra.mxu0 %v5518
  %5538 = vmatpush.bf16.msra.mxu0 %v5517
  %5539 = vmatpush.bf16.msra.mxu0 %v5516
  %5540 = vmatmul.bf16.gmra.mxu0 %v5468
  %v5541 = vpop.f32.mrf.mxu0
  %v5542 = vadd.f32 0.0, %v5541
  %v5543 = vpop.f32.mrf.mxu0
  %v5544 = vadd.f32 0.0, %v5543
  %5545 = vmatmul.bf16.gmra.mxu0 %v5469
  %v5546 = vpop.f32.mrf.mxu0
  %v5547 = vadd.f32 0.0, %v5546
  %v5548 = vpop.f32.mrf.mxu0
  %v5549 = vadd.f32 0.0, %v5548
  %5550 = vmatmul.bf16.gmra.mxu0 %v5470
  %v5551 = vpop.f32.mrf.mxu0
  %v5552 = vadd.f32 0.0, %v5551
  %v5553 = vpop.f32.mrf.mxu0
  %v5554 = vadd.f32 0.0, %v5553
  %5555 = vmatmul.bf16.gmra.mxu0 %v5471
  %v5556 = vpop.f32.mrf.mxu0
  %v5557 = vadd.f32 0.0, %v5556
  %v5558 = vpop.f32.mrf.mxu0
  %v5559 = vadd.f32 0.0, %v5558
  %5560 = vmatmul.bf16.gmra.mxu0 %v5472
  %v5561 = vpop.f32.mrf.mxu0
  %v5562 = vadd.f32 0.0, %v5561
  %v5563 = vpop.f32.mrf.mxu0
  %v5564 = vadd.f32 0.0, %v5563
  %5565 = vmatmul.bf16.gmra.mxu0 %v5473
  %v5566 = vpop.f32.mrf.mxu0
  %v5567 = vadd.f32 0.0, %v5566
  %v5568 = vpop.f32.mrf.mxu0
  %v5569 = vadd.f32 0.0, %v5568
  %5570 = vmatmul.bf16.gmra.mxu0 %v5474
  %v5571 = vpop.f32.mrf.mxu0
  %v5572 = vadd.f32 0.0, %v5571
  %v5573 = vpop.f32.mrf.mxu0
  %v5574 = vadd.f32 0.0, %v5573
  %5575 = vmatmul.bf16.gmra.mxu0 %v5475
  %v5576 = vpop.f32.mrf.mxu0
  %v5577 = vadd.f32 0.0, %v5576
  %v5578 = vpop.f32.mrf.mxu0
  %v5579 = vadd.f32 0.0, %v5578
  %5580 = vdwg.mxu0
  %v5581 = vadd.f32 %v5357, %v5542
  %v5582 = vadd.f32 %v5358, %v5544
  %v5583 = vadd.f32 %v5359, %v5547
  %v5584 = vadd.f32 %v5360, %v5549
  %v5585 = vadd.f32 %v5361, %v5552
  %v5586 = vadd.f32 %v5362, %v5554
  %v5587 = vadd.f32 %v5363, %v5557
  %v5588 = vadd.f32 %v5364, %v5559
  %v5589 = vadd.f32 %v5365, %v5562
  %v5590 = vadd.f32 %v5366, %v5564
  %v5591 = vadd.f32 %v5367, %v5567
  %v5592 = vadd.f32 %v5368, %v5569
  %v5593 = vadd.f32 %v5369, %v5572
  %v5594 = vadd.f32 %v5370, %v5574
  %v5595 = vadd.f32 %v5371, %v5577
  %v5596 = vadd.f32 %v5372, %v5579
  %s5597 = scalar_lea.vmem %s4, 256
  %v5598 = vld [vmem:[%s5597] sm:$0xf]
  %v5599 = vld [vmem:[%s5597 + $0x4] sm:$0xf]
  %v5600 = vld [vmem:[%s5597 + $0x8] sm:$0xf]
  %v5601 = vld [vmem:[%s5597 + $0xc] sm:$0xf]
  %v5602 = vld [vmem:[%s5597 + $0x10] sm:$0xf]
  %v5603 = vld [vmem:[%s5597 + $0x14] sm:$0xf]
  %v5604 = vld [vmem:[%s5597 + $0x18] sm:$0xf]
  %v5605 = vld [vmem:[%s5597 + $0x1c] sm:$0xf]
  %v5606 = vld [vmem:[%s5597 + $0x20] sm:$0xf]
  %v5607 = vld [vmem:[%s5597 + $0x24] sm:$0xf]
  %v5608 = vld [vmem:[%s5597 + $0x28] sm:$0xf]
  %v5609 = vld [vmem:[%s5597 + $0x2c] sm:$0xf]
  %v5610 = vld [vmem:[%s5597 + $0x30] sm:$0xf]
  %v5611 = vld [vmem:[%s5597 + $0x34] sm:$0xf]
  %v5612 = vld [vmem:[%s5597 + $0x38] sm:$0xf]
  %v5613 = vld [vmem:[%s5597 + $0x3c] sm:$0xf]
  %v5630 = vunpack.c.l.b16 %v2929
  %v5631 = vunpack.c.l.b16 %v2930
  %v5632 = vunpack.c.l.b16 %v2931
  %v5633 = vunpack.c.l.b16 %v2932
  %v5634 = vunpack.c.l.b16 %v2933
  %v5635 = vunpack.c.l.b16 %v2934
  %v5636 = vunpack.c.l.b16 %v2935
  %v5637 = vunpack.c.l.b16 %v2936
  %v5638 = vunpack.c.l.b16 %v2937
  %v5639 = vunpack.c.l.b16 %v2938
  %v5640 = vunpack.c.l.b16 %v2939
  %v5641 = vunpack.c.l.b16 %v2940
  %v5642 = vunpack.c.l.b16 %v2941
  %v5643 = vunpack.c.l.b16 %v2942
  %v5644 = vunpack.c.l.b16 %v2943
  %v5645 = vunpack.c.l.b16 %v2944
  %v5646 = vpack.c.b16 %v5631, %v5630
  %v5647 = vpack.c.b16 %v5633, %v5632
  %v5648 = vpack.c.b16 %v5635, %v5634
  %v5649 = vpack.c.b16 %v5637, %v5636
  %v5650 = vpack.c.b16 %v5639, %v5638
  %v5651 = vpack.c.b16 %v5641, %v5640
  %v5652 = vpack.c.b16 %v5643, %v5642
  %v5653 = vpack.c.b16 %v5645, %v5644
  %v5678 = vunpack.c.l.b16 %v5598
  %v5679 = vunpack.c.l.b16 %v5599
  %v5680 = vunpack.c.l.b16 %v5600
  %v5681 = vunpack.c.l.b16 %v5601
  %v5682 = vunpack.c.l.b16 %v5602
  %v5683 = vunpack.c.l.b16 %v5603
  %v5684 = vunpack.c.l.b16 %v5604
  %v5685 = vunpack.c.l.b16 %v5605
  %v5686 = vunpack.c.l.b16 %v5606
  %v5687 = vunpack.c.l.b16 %v5607
  %v5688 = vunpack.c.l.b16 %v5608
  %v5689 = vunpack.c.l.b16 %v5609
  %v5690 = vunpack.c.l.b16 %v5610
  %v5691 = vunpack.c.l.b16 %v5611
  %v5692 = vunpack.c.l.b16 %v5612
  %v5693 = vunpack.c.l.b16 %v5613
  %v5694 = vpack.c.b16 %v5679, %v5678
  %v5695 = vpack.c.b16 %v5681, %v5680
  %v5696 = vpack.c.b16 %v5683, %v5682
  %v5697 = vpack.c.b16 %v5685, %v5684
  %v5698 = vpack.c.b16 %v5687, %v5686
  %v5699 = vpack.c.b16 %v5689, %v5688
  %v5700 = vpack.c.b16 %v5691, %v5690
  %v5701 = vpack.c.b16 %v5693, %v5692
  %5710 = vmatpush.bf16.msra.mxu0 %v5701
  %5711 = vmatpush.bf16.msra.mxu0 %v5700
  %5712 = vmatpush.bf16.msra.mxu0 %v5699
  %5713 = vmatpush.bf16.msra.mxu0 %v5698
  %5714 = vmatpush.bf16.msra.mxu0 %v5697
  %5715 = vmatpush.bf16.msra.mxu0 %v5696
  %5716 = vmatpush.bf16.msra.mxu0 %v5695
  %5717 = vmatpush.bf16.msra.mxu0 %v5694
  %5718 = vmatmul.bf16.gmra.mxu0 %v5646
  %v5719 = vpop.f32.mrf.mxu0
  %v5720 = vadd.f32 0.0, %v5719
  %v5721 = vpop.f32.mrf.mxu0
  %v5722 = vadd.f32 0.0, %v5721
  %5723 = vmatmul.bf16.gmra.mxu0 %v5647
  %v5724 = vpop.f32.mrf.mxu0
  %v5725 = vadd.f32 0.0, %v5724
  %v5726 = vpop.f32.mrf.mxu0
  %v5727 = vadd.f32 0.0, %v5726
  %5728 = vmatmul.bf16.gmra.mxu0 %v5648
  %v5729 = vpop.f32.mrf.mxu0
  %v5730 = vadd.f32 0.0, %v5729
  %v5731 = vpop.f32.mrf.mxu0
  %v5732 = vadd.f32 0.0, %v5731
  %5733 = vmatmul.bf16.gmra.mxu0 %v5649
  %v5734 = vpop.f32.mrf.mxu0
  %v5735 = vadd.f32 0.0, %v5734
  %v5736 = vpop.f32.mrf.mxu0
  %v5737 = vadd.f32 0.0, %v5736
  %5738 = vmatmul.bf16.gmra.mxu0 %v5650
  %v5739 = vpop.f32.mrf.mxu0
  %v5740 = vadd.f32 0.0, %v5739
  %v5741 = vpop.f32.mrf.mxu0
  %v5742 = vadd.f32 0.0, %v5741
  %5743 = vmatmul.bf16.gmra.mxu0 %v5651
  %v5744 = vpop.f32.mrf.mxu0
  %v5745 = vadd.f32 0.0, %v5744
  %v5746 = vpop.f32.mrf.mxu0
  %v5747 = vadd.f32 0.0, %v5746
  %5748 = vmatmul.bf16.gmra.mxu0 %v5652
  %v5749 = vpop.f32.mrf.mxu0
  %v5750 = vadd.f32 0.0, %v5749
  %v5751 = vpop.f32.mrf.mxu0
  %v5752 = vadd.f32 0.0, %v5751
  %5753 = vmatmul.bf16.gmra.mxu0 %v5653
  %v5754 = vpop.f32.mrf.mxu0
  %v5755 = vadd.f32 0.0, %v5754
  %v5756 = vpop.f32.mrf.mxu0
  %v5757 = vadd.f32 0.0, %v5756
  %5758 = vdwg.mxu0
  %v5759 = vadd.f32 %v5581, %v5720
  %v5760 = vadd.f32 %v5582, %v5722
  %v5761 = vadd.f32 %v5583, %v5725
  %v5762 = vadd.f32 %v5584, %v5727
  %v5763 = vadd.f32 %v5585, %v5730
  %v5764 = vadd.f32 %v5586, %v5732
  %v5765 = vadd.f32 %v5587, %v5735
  %v5766 = vadd.f32 %v5588, %v5737
  %v5767 = vadd.f32 %v5589, %v5740
  %v5768 = vadd.f32 %v5590, %v5742
  %v5769 = vadd.f32 %v5591, %v5745
  %v5770 = vadd.f32 %v5592, %v5747
  %v5771 = vadd.f32 %v5593, %v5750
  %v5772 = vadd.f32 %v5594, %v5752
  %v5773 = vadd.f32 %v5595, %v5755
  %v5774 = vadd.f32 %v5596, %v5757
  %v5791 = vunpack.c.l.b16 %v2528
  %v5792 = vunpack.c.h.b16 %v2528
  %v5793 = vunpack.c.l.b16 %v2529
  %v5794 = vunpack.c.h.b16 %v2529
  %v5795 = vunpack.c.l.b16 %v2530
  %v5796 = vunpack.c.h.b16 %v2530
  %v5797 = vunpack.c.l.b16 %v2531
  %v5798 = vunpack.c.h.b16 %v2531
  %v5799 = vunpack.c.l.b16 %v2532
  %v5800 = vunpack.c.h.b16 %v2532
  %v5801 = vunpack.c.l.b16 %v2533
  %v5802 = vunpack.c.h.b16 %v2533
  %v5803 = vunpack.c.l.b16 %v2534
  %v5804 = vunpack.c.h.b16 %v2534
  %v5805 = vunpack.c.l.b16 %v2535
  %v5806 = vunpack.c.h.b16 %v2535
  %v5807 = vunpack.c.l.b16 %v2537
  %v5808 = vunpack.c.h.b16 %v2537
  %v5809 = vunpack.c.l.b16 %v2538
  %v5810 = vunpack.c.h.b16 %v2538
  %v5811 = vunpack.c.l.b16 %v2539
  %v5812 = vunpack.c.h.b16 %v2539
  %v5813 = vunpack.c.l.b16 %v2540
  %v5814 = vunpack.c.h.b16 %v2540
  %v5815 = vunpack.c.l.b16 %v2541
  %v5816 = vunpack.c.h.b16 %v2541
  %v5817 = vunpack.c.l.b16 %v2542
  %v5818 = vunpack.c.h.b16 %v2542
  %v5819 = vunpack.c.l.b16 %v2543
  %v5820 = vunpack.c.h.b16 %v2543
  %v5821 = vunpack.c.l.b16 %v2544
  %v5822 = vunpack.c.h.b16 %v2544
  %v5823 = vpack.c.b16 %v5791, %v5791
  %v5824 = vpack.c.b16 %v5792, %v5792
  %v5825 = vpack.c.b16 %v5793, %v5793
  %v5826 = vpack.c.b16 %v5794, %v5794
  %v5827 = vpack.c.b16 %v5795, %v5795
  %v5828 = vpack.c.b16 %v5796, %v5796
  %v5829 = vpack.c.b16 %v5797, %v5797
  %v5830 = vpack.c.b16 %v5798, %v5798
  %v5831 = vpack.c.b16 %v5799, %v5799
  %v5832 = vpack.c.b16 %v5800, %v5800
  %v5833 = vpack.c.b16 %v5801, %v5801
  %v5834 = vpack.c.b16 %v5802, %v5802
  %v5835 = vpack.c.b16 %v5803, %v5803
  %v5836 = vpack.c.b16 %v5804, %v5804
  %v5837 = vpack.c.b16 %v5805, %v5805
  %v5838 = vpack.c.b16 %v5806, %v5806
  %v5839 = vpack.c.b16 %v5807, %v5807
  %v5840 = vpack.c.b16 %v5808, %v5808
  %v5841 = vpack.c.b16 %v5809, %v5809
  %v5842 = vpack.c.b16 %v5810, %v5810
  %v5843 = vpack.c.b16 %v5811, %v5811
  %v5844 = vpack.c.b16 %v5812, %v5812
  %v5845 = vpack.c.b16 %v5813, %v5813
  %v5846 = vpack.c.b16 %v5814, %v5814
  %v5847 = vpack.c.b16 %v5815, %v5815
  %v5848 = vpack.c.b16 %v5816, %v5816
  %v5849 = vpack.c.b16 %v5817, %v5817
  %v5850 = vpack.c.b16 %v5818, %v5818
  %v5851 = vpack.c.b16 %v5819, %v5819
  %v5852 = vpack.c.b16 %v5820, %v5820
  %v5853 = vpack.c.b16 %v5821, %v5821
  %v5854 = vpack.c.b16 %v5822, %v5822
  %v5856 = vshrl.u32 %v5823, 16
  %v5858 = vrot.slane %v5856, 4
  %v5859 = vshll.u32 %v5823, 16
  %v5861 = vrot.slane %v5859, 5
  %v5862 = vor.u32 %v5858, %v5861
  %v5863 = vrot.slane %v5862, 4
  %v5865 = vshll.u32 %v5824, 16
  %v5867 = vrot.slane %v5865, 5
  %v5868 = vsel %vm4478, %v5863, %v5867
  %v5870 = vshrl.u32 %v5825, 16
  %v5872 = vrot.slane %v5870, 4
  %v5873 = vshll.u32 %v5825, 16
  %v5875 = vrot.slane %v5873, 5
  %v5876 = vor.u32 %v5872, %v5875
  %v5877 = vrot.slane %v5876, 4
  %v5879 = vshll.u32 %v5826, 16
  %v5881 = vrot.slane %v5879, 5
  %v5882 = vsel %vm4478, %v5877, %v5881
  %v5884 = vshrl.u32 %v5827, 16
  %v5886 = vrot.slane %v5884, 4
  %v5887 = vshll.u32 %v5827, 16
  %v5889 = vrot.slane %v5887, 5
  %v5890 = vor.u32 %v5886, %v5889
  %v5891 = vrot.slane %v5890, 4
  %v5893 = vshll.u32 %v5828, 16
  %v5895 = vrot.slane %v5893, 5
  %v5896 = vsel %vm4478, %v5891, %v5895
  %v5898 = vshrl.u32 %v5829, 16
  %v5900 = vrot.slane %v5898, 4
  %v5901 = vshll.u32 %v5829, 16
  %v5903 = vrot.slane %v5901, 5
  %v5904 = vor.u32 %v5900, %v5903
  %v5905 = vrot.slane %v5904, 4
  %v5907 = vshll.u32 %v5830, 16
  %v5909 = vrot.slane %v5907, 5
  %v5910 = vsel %vm4478, %v5905, %v5909
  %v5912 = vshrl.u32 %v5831, 16
  %v5914 = vrot.slane %v5912, 4
  %v5915 = vshll.u32 %v5831, 16
  %v5917 = vrot.slane %v5915, 5
  %v5918 = vor.u32 %v5914, %v5917
  %v5919 = vrot.slane %v5918, 4
  %v5921 = vshll.u32 %v5832, 16
  %v5923 = vrot.slane %v5921, 5
  %v5924 = vsel %vm4478, %v5919, %v5923
  %v5926 = vshrl.u32 %v5833, 16
  %v5928 = vrot.slane %v5926, 4
  %v5929 = vshll.u32 %v5833, 16
  %v5931 = vrot.slane %v5929, 5
  %v5932 = vor.u32 %v5928, %v5931
  %v5933 = vrot.slane %v5932, 4
  %v5935 = vshll.u32 %v5834, 16
  %v5937 = vrot.slane %v5935, 5
  %v5938 = vsel %vm4478, %v5933, %v5937
  %v5940 = vshrl.u32 %v5835, 16
  %v5942 = vrot.slane %v5940, 4
  %v5943 = vshll.u32 %v5835, 16
  %v5945 = vrot.slane %v5943, 5
  %v5946 = vor.u32 %v5942, %v5945
  %v5947 = vrot.slane %v5946, 4
  %v5949 = vshll.u32 %v5836, 16
  %v5951 = vrot.slane %v5949, 5
  %v5952 = vsel %vm4478, %v5947, %v5951
  %v5954 = vshrl.u32 %v5837, 16
  %v5956 = vrot.slane %v5954, 4
  %v5957 = vshll.u32 %v5837, 16
  %v5959 = vrot.slane %v5957, 5
  %v5960 = vor.u32 %v5956, %v5959
  %v5961 = vrot.slane %v5960, 4
  %v5963 = vshll.u32 %v5838, 16
  %v5965 = vrot.slane %v5963, 5
  %v5966 = vsel %vm4478, %v5961, %v5965
  %v5968 = vshrl.u32 %v5839, 16
  %v5970 = vrot.slane %v5968, 4
  %v5971 = vshll.u32 %v5839, 16
  %v5973 = vrot.slane %v5971, 5
  %v5974 = vor.u32 %v5970, %v5973
  %v5975 = vrot.slane %v5974, 4
  %v5977 = vshll.u32 %v5840, 16
  %v5979 = vrot.slane %v5977, 5
  %v5980 = vsel %vm4478, %v5975, %v5979
  %v5982 = vshrl.u32 %v5841, 16
  %v5984 = vrot.slane %v5982, 4
  %v5985 = vshll.u32 %v5841, 16
  %v5987 = vrot.slane %v5985, 5
  %v5988 = vor.u32 %v5984, %v5987
  %v5989 = vrot.slane %v5988, 4
  %v5991 = vshll.u32 %v5842, 16
  %v5993 = vrot.slane %v5991, 5
  %v5994 = vsel %vm4478, %v5989, %v5993
  %v5996 = vshrl.u32 %v5843, 16
  %v5998 = vrot.slane %v5996, 4
  %v5999 = vshll.u32 %v5843, 16
  %v6001 = vrot.slane %v5999, 5
  %v6002 = vor.u32 %v5998, %v6001
  %v6003 = vrot.slane %v6002, 4
  %v6005 = vshll.u32 %v5844, 16
  %v6007 = vrot.slane %v6005, 5
  %v6008 = vsel %vm4478, %v6003, %v6007
  %v6010 = vshrl.u32 %v5845, 16
  %v6012 = vrot.slane %v6010, 4
  %v6013 = vshll.u32 %v5845, 16
  %v6015 = vrot.slane %v6013, 5
  %v6016 = vor.u32 %v6012, %v6015
  %v6017 = vrot.slane %v6016, 4
  %v6019 = vshll.u32 %v5846, 16
  %v6021 = vrot.slane %v6019, 5
  %v6022 = vsel %vm4478, %v6017, %v6021
  %v6024 = vshrl.u32 %v5847, 16
  %v6026 = vrot.slane %v6024, 4
  %v6027 = vshll.u32 %v5847, 16
  %v6029 = vrot.slane %v6027, 5
  %v6030 = vor.u32 %v6026, %v6029
  %v6031 = vrot.slane %v6030, 4
  %v6033 = vshll.u32 %v5848, 16
  %v6035 = vrot.slane %v6033, 5
  %v6036 = vsel %vm4478, %v6031, %v6035
  %v6038 = vshrl.u32 %v5849, 16
  %v6040 = vrot.slane %v6038, 4
  %v6041 = vshll.u32 %v5849, 16
  %v6043 = vrot.slane %v6041, 5
  %v6044 = vor.u32 %v6040, %v6043
  %v6045 = vrot.slane %v6044, 4
  %v6047 = vshll.u32 %v5850, 16
  %v6049 = vrot.slane %v6047, 5
  %v6050 = vsel %vm4478, %v6045, %v6049
  %v6052 = vshrl.u32 %v5851, 16
  %v6054 = vrot.slane %v6052, 4
  %v6055 = vshll.u32 %v5851, 16
  %v6057 = vrot.slane %v6055, 5
  %v6058 = vor.u32 %v6054, %v6057
  %v6059 = vrot.slane %v6058, 4
  %v6061 = vshll.u32 %v5852, 16
  %v6063 = vrot.slane %v6061, 5
  %v6064 = vsel %vm4478, %v6059, %v6063
  %v6066 = vshrl.u32 %v5853, 16
  %v6068 = vrot.slane %v6066, 4
  %v6069 = vshll.u32 %v5853, 16
  %v6071 = vrot.slane %v6069, 5
  %v6072 = vor.u32 %v6068, %v6071
  %v6073 = vrot.slane %v6072, 4
  %v6075 = vshll.u32 %v5854, 16
  %v6077 = vrot.slane %v6075, 5
  %v6078 = vsel %vm4478, %v6073, %v6077
  %s6079 = scalar_lea.vmem %s4, 320
  %v6080 = vld [vmem:[%s6079] sm:$0xf]
  %v6081 = vld [vmem:[%s6079 + $0x4] sm:$0xf]
  %v6082 = vld [vmem:[%s6079 + $0x8] sm:$0xf]
  %v6083 = vld [vmem:[%s6079 + $0xc] sm:$0xf]
  %v6084 = vld [vmem:[%s6079 + $0x10] sm:$0xf]
  %v6085 = vld [vmem:[%s6079 + $0x14] sm:$0xf]
  %v6086 = vld [vmem:[%s6079 + $0x18] sm:$0xf]
  %v6087 = vld [vmem:[%s6079 + $0x1c] sm:$0xf]
  %v6088 = vld [vmem:[%s6079 + $0x20] sm:$0xf]
  %v6089 = vld [vmem:[%s6079 + $0x24] sm:$0xf]
  %v6090 = vld [vmem:[%s6079 + $0x28] sm:$0xf]
  %v6091 = vld [vmem:[%s6079 + $0x2c] sm:$0xf]
  %v6092 = vld [vmem:[%s6079 + $0x30] sm:$0xf]
  %v6093 = vld [vmem:[%s6079 + $0x34] sm:$0xf]
  %v6094 = vld [vmem:[%s6079 + $0x38] sm:$0xf]
  %v6095 = vld [vmem:[%s6079 + $0x3c] sm:$0xf]
  %v6096 = vunpack.c.l.b16 %v5868
  %v6097 = vunpack.c.l.b16 %v5882
  %v6098 = vunpack.c.l.b16 %v5896
  %v6099 = vunpack.c.l.b16 %v5910
  %v6100 = vunpack.c.l.b16 %v5924
  %v6101 = vunpack.c.l.b16 %v5938
  %v6102 = vunpack.c.l.b16 %v5952
  %v6103 = vunpack.c.l.b16 %v5966
  %v6104 = vunpack.c.l.b16 %v5980
  %v6105 = vunpack.c.l.b16 %v5994
  %v6106 = vunpack.c.l.b16 %v6008
  %v6107 = vunpack.c.l.b16 %v6022
  %v6108 = vunpack.c.l.b16 %v6036
  %v6109 = vunpack.c.l.b16 %v6050
  %v6110 = vunpack.c.l.b16 %v6064
  %v6111 = vunpack.c.l.b16 %v6078
  %v6112 = vpack.c.b16 %v6097, %v6096
  %v6113 = vpack.c.b16 %v6099, %v6098
  %v6114 = vpack.c.b16 %v6101, %v6100
  %v6115 = vpack.c.b16 %v6103, %v6102
  %v6116 = vpack.c.b16 %v6105, %v6104
  %v6117 = vpack.c.b16 %v6107, %v6106
  %v6118 = vpack.c.b16 %v6109, %v6108
  %v6119 = vpack.c.b16 %v6111, %v6110
  %v6144 = vunpack.c.l.b16 %v6080
  %v6145 = vunpack.c.l.b16 %v6081
  %v6146 = vunpack.c.l.b16 %v6082
  %v6147 = vunpack.c.l.b16 %v6083
  %v6148 = vunpack.c.l.b16 %v6084
  %v6149 = vunpack.c.l.b16 %v6085
  %v6150 = vunpack.c.l.b16 %v6086
  %v6151 = vunpack.c.l.b16 %v6087
  %v6152 = vunpack.c.l.b16 %v6088
  %v6153 = vunpack.c.l.b16 %v6089
  %v6154 = vunpack.c.l.b16 %v6090
  %v6155 = vunpack.c.l.b16 %v6091
  %v6156 = vunpack.c.l.b16 %v6092
  %v6157 = vunpack.c.l.b16 %v6093
  %v6158 = vunpack.c.l.b16 %v6094
  %v6159 = vunpack.c.l.b16 %v6095
  %v6160 = vpack.c.b16 %v6145, %v6144
  %v6161 = vpack.c.b16 %v6147, %v6146
  %v6162 = vpack.c.b16 %v6149, %v6148
  %v6163 = vpack.c.b16 %v6151, %v6150
  %v6164 = vpack.c.b16 %v6153, %v6152
  %v6165 = vpack.c.b16 %v6155, %v6154
  %v6166 = vpack.c.b16 %v6157, %v6156
  %v6167 = vpack.c.b16 %v6159, %v6158
  %6176 = vmatpush.bf16.msra.mxu0 %v6167
  %6177 = vmatpush.bf16.msra.mxu0 %v6166
  %6178 = vmatpush.bf16.msra.mxu0 %v6165
  %6179 = vmatpush.bf16.msra.mxu0 %v6164
  %6180 = vmatpush.bf16.msra.mxu0 %v6163
  %6181 = vmatpush.bf16.msra.mxu0 %v6162
  %6182 = vmatpush.bf16.msra.mxu0 %v6161
  %6183 = vmatpush.bf16.msra.mxu0 %v6160
  %6184 = vmatmul.bf16.gmra.mxu0 %v6112
  %v6185 = vpop.f32.mrf.mxu0
  %v6186 = vadd.f32 0.0, %v6185
  %v6187 = vpop.f32.mrf.mxu0
  %v6188 = vadd.f32 0.0, %v6187
  %6189 = vmatmul.bf16.gmra.mxu0 %v6113
  %v6190 = vpop.f32.mrf.mxu0
  %v6191 = vadd.f32 0.0, %v6190
  %v6192 = vpop.f32.mrf.mxu0
  %v6193 = vadd.f32 0.0, %v6192
  %6194 = vmatmul.bf16.gmra.mxu0 %v6114
  %v6195 = vpop.f32.mrf.mxu0
  %v6196 = vadd.f32 0.0, %v6195
  %v6197 = vpop.f32.mrf.mxu0
  %v6198 = vadd.f32 0.0, %v6197
  %6199 = vmatmul.bf16.gmra.mxu0 %v6115
  %v6200 = vpop.f32.mrf.mxu0
  %v6201 = vadd.f32 0.0, %v6200
  %v6202 = vpop.f32.mrf.mxu0
  %v6203 = vadd.f32 0.0, %v6202
  %6204 = vmatmul.bf16.gmra.mxu0 %v6116
  %v6205 = vpop.f32.mrf.mxu0
  %v6206 = vadd.f32 0.0, %v6205
  %v6207 = vpop.f32.mrf.mxu0
  %v6208 = vadd.f32 0.0, %v6207
  %6209 = vmatmul.bf16.gmra.mxu0 %v6117
  %v6210 = vpop.f32.mrf.mxu0
  %v6211 = vadd.f32 0.0, %v6210
  %v6212 = vpop.f32.mrf.mxu0
  %v6213 = vadd.f32 0.0, %v6212
  %6214 = vmatmul.bf16.gmra.mxu0 %v6118
  %v6215 = vpop.f32.mrf.mxu0
  %v6216 = vadd.f32 0.0, %v6215
  %v6217 = vpop.f32.mrf.mxu0
  %v6218 = vadd.f32 0.0, %v6217
  %6219 = vmatmul.bf16.gmra.mxu0 %v6119
  %v6220 = vpop.f32.mrf.mxu0
  %v6221 = vadd.f32 0.0, %v6220
  %v6222 = vpop.f32.mrf.mxu0
  %v6223 = vadd.f32 0.0, %v6222
  %6224 = vdwg.mxu0
  %v6225 = vadd.f32 %v5759, %v6186
  %v6226 = vadd.f32 %v5760, %v6188
  %v6227 = vadd.f32 %v5761, %v6191
  %v6228 = vadd.f32 %v5762, %v6193
  %v6229 = vadd.f32 %v5763, %v6196
  %v6230 = vadd.f32 %v5764, %v6198
  %v6231 = vadd.f32 %v5765, %v6201
  %v6232 = vadd.f32 %v5766, %v6203
  %v6233 = vadd.f32 %v5767, %v6206
  %v6234 = vadd.f32 %v5768, %v6208
  %v6235 = vadd.f32 %v5769, %v6211
  %v6236 = vadd.f32 %v5770, %v6213
  %v6237 = vadd.f32 %v5771, %v6216
  %v6238 = vadd.f32 %v5772, %v6218
  %v6239 = vadd.f32 %v5773, %v6221
  %v6240 = vadd.f32 %v5774, %v6223
  %v6241 = vunpack.c.h.b16 %v2929
  %v6242 = vunpack.c.h.b16 %v2930
  %v6243 = vunpack.c.h.b16 %v2931
  %v6244 = vunpack.c.h.b16 %v2932
  %v6245 = vunpack.c.h.b16 %v2933
  %v6246 = vunpack.c.h.b16 %v2934
  %v6247 = vunpack.c.h.b16 %v2935
  %v6248 = vunpack.c.h.b16 %v2936
  %v6249 = vunpack.c.h.b16 %v2937
  %v6250 = vunpack.c.h.b16 %v2938
  %v6251 = vunpack.c.h.b16 %v2939
  %v6252 = vunpack.c.h.b16 %v2940
  %v6253 = vunpack.c.h.b16 %v2941
  %v6254 = vunpack.c.h.b16 %v2942
  %v6255 = vunpack.c.h.b16 %v2943
  %v6256 = vunpack.c.h.b16 %v2944
  %v6257 = vpack.c.b16 %v5630, %v5630
  %v6258 = vpack.c.b16 %v6241, %v6241
  %v6259 = vpack.c.b16 %v5631, %v5631
  %v6260 = vpack.c.b16 %v6242, %v6242
  %v6261 = vpack.c.b16 %v5632, %v5632
  %v6262 = vpack.c.b16 %v6243, %v6243
  %v6263 = vpack.c.b16 %v5633, %v5633
  %v6264 = vpack.c.b16 %v6244, %v6244
  %v6265 = vpack.c.b16 %v5634, %v5634
  %v6266 = vpack.c.b16 %v6245, %v6245
  %v6267 = vpack.c.b16 %v5635, %v5635
  %v6268 = vpack.c.b16 %v6246, %v6246
  %v6269 = vpack.c.b16 %v5636, %v5636
  %v6270 = vpack.c.b16 %v6247, %v6247
  %v6271 = vpack.c.b16 %v5637, %v5637
  %v6272 = vpack.c.b16 %v6248, %v6248
  %v6273 = vpack.c.b16 %v5638, %v5638
  %v6274 = vpack.c.b16 %v6249, %v6249
  %v6275 = vpack.c.b16 %v5639, %v5639
  %v6276 = vpack.c.b16 %v6250, %v6250
  %v6277 = vpack.c.b16 %v5640, %v5640
  %v6278 = vpack.c.b16 %v6251, %v6251
  %v6279 = vpack.c.b16 %v5641, %v5641
  %v6280 = vpack.c.b16 %v6252, %v6252
  %v6281 = vpack.c.b16 %v5642, %v5642
  %v6282 = vpack.c.b16 %v6253, %v6253
  %v6283 = vpack.c.b16 %v5643, %v5643
  %v6284 = vpack.c.b16 %v6254, %v6254
  %v6285 = vpack.c.b16 %v5644, %v5644
  %v6286 = vpack.c.b16 %v6255, %v6255
  %v6287 = vpack.c.b16 %v5645, %v5645
  %v6288 = vpack.c.b16 %v6256, %v6256
  %v6290 = vshrl.u32 %v6257, 16
  %v6292 = vrot.slane %v6290, 4
  %v6293 = vshll.u32 %v6257, 16
  %v6295 = vrot.slane %v6293, 5
  %v6296 = vor.u32 %v6292, %v6295
  %v6297 = vrot.slane %v6296, 4
  %v6299 = vshll.u32 %v6258, 16
  %v6301 = vrot.slane %v6299, 5
  %v6302 = vsel %vm4478, %v6297, %v6301
  %v6304 = vshrl.u32 %v6259, 16
  %v6306 = vrot.slane %v6304, 4
  %v6307 = vshll.u32 %v6259, 16
  %v6309 = vrot.slane %v6307, 5
  %v6310 = vor.u32 %v6306, %v6309
  %v6311 = vrot.slane %v6310, 4
  %v6313 = vshll.u32 %v6260, 16
  %v6315 = vrot.slane %v6313, 5
  %v6316 = vsel %vm4478, %v6311, %v6315
  %v6318 = vshrl.u32 %v6261, 16
  %v6320 = vrot.slane %v6318, 4
  %v6321 = vshll.u32 %v6261, 16
  %v6323 = vrot.slane %v6321, 5
  %v6324 = vor.u32 %v6320, %v6323
  %v6325 = vrot.slane %v6324, 4
  %v6327 = vshll.u32 %v6262, 16
  %v6329 = vrot.slane %v6327, 5
  %v6330 = vsel %vm4478, %v6325, %v6329
  %v6332 = vshrl.u32 %v6263, 16
  %v6334 = vrot.slane %v6332, 4
  %v6335 = vshll.u32 %v6263, 16
  %v6337 = vrot.slane %v6335, 5
  %v6338 = vor.u32 %v6334, %v6337
  %v6339 = vrot.slane %v6338, 4
  %v6341 = vshll.u32 %v6264, 16
  %v6343 = vrot.slane %v6341, 5
  %v6344 = vsel %vm4478, %v6339, %v6343
  %v6346 = vshrl.u32 %v6265, 16
  %v6348 = vrot.slane %v6346, 4
  %v6349 = vshll.u32 %v6265, 16
  %v6351 = vrot.slane %v6349, 5
  %v6352 = vor.u32 %v6348, %v6351
  %v6353 = vrot.slane %v6352, 4
  %v6355 = vshll.u32 %v6266, 16
  %v6357 = vrot.slane %v6355, 5
  %v6358 = vsel %vm4478, %v6353, %v6357
  %v6360 = vshrl.u32 %v6267, 16
  %v6362 = vrot.slane %v6360, 4
  %v6363 = vshll.u32 %v6267, 16
  %v6365 = vrot.slane %v6363, 5
  %v6366 = vor.u32 %v6362, %v6365
  %v6367 = vrot.slane %v6366, 4
  %v6369 = vshll.u32 %v6268, 16
  %v6371 = vrot.slane %v6369, 5
  %v6372 = vsel %vm4478, %v6367, %v6371
  %v6374 = vshrl.u32 %v6269, 16
  %v6376 = vrot.slane %v6374, 4
  %v6377 = vshll.u32 %v6269, 16
  %v6379 = vrot.slane %v6377, 5
  %v6380 = vor.u32 %v6376, %v6379
  %v6381 = vrot.slane %v6380, 4
  %v6383 = vshll.u32 %v6270, 16
  %v6385 = vrot.slane %v6383, 5
  %v6386 = vsel %vm4478, %v6381, %v6385
  %v6388 = vshrl.u32 %v6271, 16
  %v6390 = vrot.slane %v6388, 4
  %v6391 = vshll.u32 %v6271, 16
  %v6393 = vrot.slane %v6391, 5
  %v6394 = vor.u32 %v6390, %v6393
  %v6395 = vrot.slane %v6394, 4
  %v6397 = vshll.u32 %v6272, 16
  %v6399 = vrot.slane %v6397, 5
  %v6400 = vsel %vm4478, %v6395, %v6399
  %v6402 = vshrl.u32 %v6273, 16
  %v6404 = vrot.slane %v6402, 4
  %v6405 = vshll.u32 %v6273, 16
  %v6407 = vrot.slane %v6405, 5
  %v6408 = vor.u32 %v6404, %v6407
  %v6409 = vrot.slane %v6408, 4
  %v6411 = vshll.u32 %v6274, 16
  %v6413 = vrot.slane %v6411, 5
  %v6414 = vsel %vm4478, %v6409, %v6413
  %v6416 = vshrl.u32 %v6275, 16
  %v6418 = vrot.slane %v6416, 4
  %v6419 = vshll.u32 %v6275, 16
  %v6421 = vrot.slane %v6419, 5
  %v6422 = vor.u32 %v6418, %v6421
  %v6423 = vrot.slane %v6422, 4
  %v6425 = vshll.u32 %v6276, 16
  %v6427 = vrot.slane %v6425, 5
  %v6428 = vsel %vm4478, %v6423, %v6427
  %v6430 = vshrl.u32 %v6277, 16
  %v6432 = vrot.slane %v6430, 4
  %v6433 = vshll.u32 %v6277, 16
  %v6435 = vrot.slane %v6433, 5
  %v6436 = vor.u32 %v6432, %v6435
  %v6437 = vrot.slane %v6436, 4
  %v6439 = vshll.u32 %v6278, 16
  %v6441 = vrot.slane %v6439, 5
  %v6442 = vsel %vm4478, %v6437, %v6441
  %v6444 = vshrl.u32 %v6279, 16
  %v6446 = vrot.slane %v6444, 4
  %v6447 = vshll.u32 %v6279, 16
  %v6449 = vrot.slane %v6447, 5
  %v6450 = vor.u32 %v6446, %v6449
  %v6451 = vrot.slane %v6450, 4
  %v6453 = vshll.u32 %v6280, 16
  %v6455 = vrot.slane %v6453, 5
  %v6456 = vsel %vm4478, %v6451, %v6455
  %v6458 = vshrl.u32 %v6281, 16
  %v6460 = vrot.slane %v6458, 4
  %v6461 = vshll.u32 %v6281, 16
  %v6463 = vrot.slane %v6461, 5
  %v6464 = vor.u32 %v6460, %v6463
  %v6465 = vrot.slane %v6464, 4
  %v6467 = vshll.u32 %v6282, 16
  %v6469 = vrot.slane %v6467, 5
  %v6470 = vsel %vm4478, %v6465, %v6469
  %v6472 = vshrl.u32 %v6283, 16
  %v6474 = vrot.slane %v6472, 4
  %v6475 = vshll.u32 %v6283, 16
  %v6477 = vrot.slane %v6475, 5
  %v6478 = vor.u32 %v6474, %v6477
  %v6479 = vrot.slane %v6478, 4
  %v6481 = vshll.u32 %v6284, 16
  %v6483 = vrot.slane %v6481, 5
  %v6484 = vsel %vm4478, %v6479, %v6483
  %v6486 = vshrl.u32 %v6285, 16
  %v6488 = vrot.slane %v6486, 4
  %v6489 = vshll.u32 %v6285, 16
  %v6491 = vrot.slane %v6489, 5
  %v6492 = vor.u32 %v6488, %v6491
  %v6493 = vrot.slane %v6492, 4
  %v6495 = vshll.u32 %v6286, 16
  %v6497 = vrot.slane %v6495, 5
  %v6498 = vsel %vm4478, %v6493, %v6497
  %v6500 = vshrl.u32 %v6287, 16
  %v6502 = vrot.slane %v6500, 4
  %v6503 = vshll.u32 %v6287, 16
  %v6505 = vrot.slane %v6503, 5
  %v6506 = vor.u32 %v6502, %v6505
  %v6507 = vrot.slane %v6506, 4
  %v6509 = vshll.u32 %v6288, 16
  %v6511 = vrot.slane %v6509, 5
  %v6512 = vsel %vm4478, %v6507, %v6511
  %s6513 = scalar_lea.vmem %s4, 384
  %v6514 = vld [vmem:[%s6513] sm:$0xf]
  %v6515 = vld [vmem:[%s6513 + $0x4] sm:$0xf]
  %v6516 = vld [vmem:[%s6513 + $0x8] sm:$0xf]
  %v6517 = vld [vmem:[%s6513 + $0xc] sm:$0xf]
  %v6518 = vld [vmem:[%s6513 + $0x10] sm:$0xf]
  %v6519 = vld [vmem:[%s6513 + $0x14] sm:$0xf]
  %v6520 = vld [vmem:[%s6513 + $0x18] sm:$0xf]
  %v6521 = vld [vmem:[%s6513 + $0x1c] sm:$0xf]
  %v6522 = vld [vmem:[%s6513 + $0x20] sm:$0xf]
  %v6523 = vld [vmem:[%s6513 + $0x24] sm:$0xf]
  %v6524 = vld [vmem:[%s6513 + $0x28] sm:$0xf]
  %v6525 = vld [vmem:[%s6513 + $0x2c] sm:$0xf]
  %v6526 = vld [vmem:[%s6513 + $0x30] sm:$0xf]
  %v6527 = vld [vmem:[%s6513 + $0x34] sm:$0xf]
  %v6528 = vld [vmem:[%s6513 + $0x38] sm:$0xf]
  %v6529 = vld [vmem:[%s6513 + $0x3c] sm:$0xf]
  %v6530 = vunpack.c.l.b16 %v6302
  %v6531 = vunpack.c.l.b16 %v6316
  %v6532 = vunpack.c.l.b16 %v6330
  %v6533 = vunpack.c.l.b16 %v6344
  %v6534 = vunpack.c.l.b16 %v6358
  %v6535 = vunpack.c.l.b16 %v6372
  %v6536 = vunpack.c.l.b16 %v6386
  %v6537 = vunpack.c.l.b16 %v6400
  %v6538 = vunpack.c.l.b16 %v6414
  %v6539 = vunpack.c.l.b16 %v6428
  %v6540 = vunpack.c.l.b16 %v6442
  %v6541 = vunpack.c.l.b16 %v6456
  %v6542 = vunpack.c.l.b16 %v6470
  %v6543 = vunpack.c.l.b16 %v6484
  %v6544 = vunpack.c.l.b16 %v6498
  %v6545 = vunpack.c.l.b16 %v6512
  %v6546 = vpack.c.b16 %v6531, %v6530
  %v6547 = vpack.c.b16 %v6533, %v6532
  %v6548 = vpack.c.b16 %v6535, %v6534
  %v6549 = vpack.c.b16 %v6537, %v6536
  %v6550 = vpack.c.b16 %v6539, %v6538
  %v6551 = vpack.c.b16 %v6541, %v6540
  %v6552 = vpack.c.b16 %v6543, %v6542
  %v6553 = vpack.c.b16 %v6545, %v6544
  %v6578 = vunpack.c.l.b16 %v6514
  %v6579 = vunpack.c.l.b16 %v6515
  %v6580 = vunpack.c.l.b16 %v6516
  %v6581 = vunpack.c.l.b16 %v6517
  %v6582 = vunpack.c.l.b16 %v6518
  %v6583 = vunpack.c.l.b16 %v6519
  %v6584 = vunpack.c.l.b16 %v6520
  %v6585 = vunpack.c.l.b16 %v6521
  %v6586 = vunpack.c.l.b16 %v6522
  %v6587 = vunpack.c.l.b16 %v6523
  %v6588 = vunpack.c.l.b16 %v6524
  %v6589 = vunpack.c.l.b16 %v6525
  %v6590 = vunpack.c.l.b16 %v6526
  %v6591 = vunpack.c.l.b16 %v6527
  %v6592 = vunpack.c.l.b16 %v6528
  %v6593 = vunpack.c.l.b16 %v6529
  %v6594 = vpack.c.b16 %v6579, %v6578
  %v6595 = vpack.c.b16 %v6581, %v6580
  %v6596 = vpack.c.b16 %v6583, %v6582
  %v6597 = vpack.c.b16 %v6585, %v6584
  %v6598 = vpack.c.b16 %v6587, %v6586
  %v6599 = vpack.c.b16 %v6589, %v6588
  %v6600 = vpack.c.b16 %v6591, %v6590
  %v6601 = vpack.c.b16 %v6593, %v6592
  %6610 = vmatpush.bf16.msra.mxu0 %v6601
  %6611 = vmatpush.bf16.msra.mxu0 %v6600
  %6612 = vmatpush.bf16.msra.mxu0 %v6599
  %6613 = vmatpush.bf16.msra.mxu0 %v6598
  %6614 = vmatpush.bf16.msra.mxu0 %v6597
  %6615 = vmatpush.bf16.msra.mxu0 %v6596
  %6616 = vmatpush.bf16.msra.mxu0 %v6595
  %6617 = vmatpush.bf16.msra.mxu0 %v6594
  %6618 = vmatmul.bf16.gmra.mxu0 %v6546
  %v6619 = vpop.f32.mrf.mxu0
  %v6620 = vadd.f32 0.0, %v6619
  %v6621 = vpop.f32.mrf.mxu0
  %v6622 = vadd.f32 0.0, %v6621
  %6623 = vmatmul.bf16.gmra.mxu0 %v6547
  %v6624 = vpop.f32.mrf.mxu0
  %v6625 = vadd.f32 0.0, %v6624
  %v6626 = vpop.f32.mrf.mxu0
  %v6627 = vadd.f32 0.0, %v6626
  %6628 = vmatmul.bf16.gmra.mxu0 %v6548
  %v6629 = vpop.f32.mrf.mxu0
  %v6630 = vadd.f32 0.0, %v6629
  %v6631 = vpop.f32.mrf.mxu0
  %v6632 = vadd.f32 0.0, %v6631
  %6633 = vmatmul.bf16.gmra.mxu0 %v6549
  %v6634 = vpop.f32.mrf.mxu0
  %v6635 = vadd.f32 0.0, %v6634
  %v6636 = vpop.f32.mrf.mxu0
  %v6637 = vadd.f32 0.0, %v6636
  %6638 = vmatmul.bf16.gmra.mxu0 %v6550
  %v6639 = vpop.f32.mrf.mxu0
  %v6640 = vadd.f32 0.0, %v6639
  %v6641 = vpop.f32.mrf.mxu0
  %v6642 = vadd.f32 0.0, %v6641
  %6643 = vmatmul.bf16.gmra.mxu0 %v6551
  %v6644 = vpop.f32.mrf.mxu0
  %v6645 = vadd.f32 0.0, %v6644
  %v6646 = vpop.f32.mrf.mxu0
  %v6647 = vadd.f32 0.0, %v6646
  %6648 = vmatmul.bf16.gmra.mxu0 %v6552
  %v6649 = vpop.f32.mrf.mxu0
  %v6650 = vadd.f32 0.0, %v6649
  %v6651 = vpop.f32.mrf.mxu0
  %v6652 = vadd.f32 0.0, %v6651
  %6653 = vmatmul.bf16.gmra.mxu0 %v6553
  %v6654 = vpop.f32.mrf.mxu0
  %v6655 = vadd.f32 0.0, %v6654
  %v6656 = vpop.f32.mrf.mxu0
  %v6657 = vadd.f32 0.0, %v6656
  %6658 = vdwg.mxu0
  %v6659 = vadd.f32 %v6225, %v6620
  %v6660 = vadd.f32 %v6226, %v6622
  %v6661 = vadd.f32 %v6227, %v6625
  %v6662 = vadd.f32 %v6228, %v6627
  %v6663 = vadd.f32 %v6229, %v6630
  %v6664 = vadd.f32 %v6230, %v6632
  %v6665 = vadd.f32 %v6231, %v6635
  %v6666 = vadd.f32 %v6232, %v6637
  %v6667 = vadd.f32 %v6233, %v6640
  %v6668 = vadd.f32 %v6234, %v6642
  %v6669 = vadd.f32 %v6235, %v6645
  %v6670 = vadd.f32 %v6236, %v6647
  %v6671 = vadd.f32 %v6237, %v6650
  %v6672 = vadd.f32 %v6238, %v6652
  %v6673 = vadd.f32 %v6239, %v6655
  %v6674 = vadd.f32 %v6240, %v6657
  %v6675 = vrot.slane %v5823, 5
  %v6676 = vrot.slane %v6675, 4
  %v6677 = vrot.slane %v5824, 5
  %v6678 = vsel %vm5375, %v6676, %v6677
  %v6679 = vrot.slane %v5825, 5
  %v6680 = vrot.slane %v6679, 4
  %v6681 = vrot.slane %v5826, 5
  %v6682 = vsel %vm5375, %v6680, %v6681
  %v6683 = vrot.slane %v5827, 5
  %v6684 = vrot.slane %v6683, 4
  %v6685 = vrot.slane %v5828, 5
  %v6686 = vsel %vm5375, %v6684, %v6685
  %v6687 = vrot.slane %v5829, 5
  %v6688 = vrot.slane %v6687, 4
  %v6689 = vrot.slane %v5830, 5
  %v6690 = vsel %vm5375, %v6688, %v6689
  %v6691 = vrot.slane %v5831, 5
  %v6692 = vrot.slane %v6691, 4
  %v6693 = vrot.slane %v5832, 5
  %v6694 = vsel %vm5375, %v6692, %v6693
  %v6695 = vrot.slane %v5833, 5
  %v6696 = vrot.slane %v6695, 4
  %v6697 = vrot.slane %v5834, 5
  %v6698 = vsel %vm5375, %v6696, %v6697
  %v6699 = vrot.slane %v5835, 5
  %v6700 = vrot.slane %v6699, 4
  %v6701 = vrot.slane %v5836, 5
  %v6702 = vsel %vm5375, %v6700, %v6701
  %v6703 = vrot.slane %v5837, 5
  %v6704 = vrot.slane %v6703, 4
  %v6705 = vrot.slane %v5838, 5
  %v6706 = vsel %vm5375, %v6704, %v6705
  %v6707 = vrot.slane %v5839, 5
  %v6708 = vrot.slane %v6707, 4
  %v6709 = vrot.slane %v5840, 5
  %v6710 = vsel %vm5375, %v6708, %v6709
  %v6711 = vrot.slane %v5841, 5
  %v6712 = vrot.slane %v6711, 4
  %v6713 = vrot.slane %v5842, 5
  %v6714 = vsel %vm5375, %v6712, %v6713
  %v6715 = vrot.slane %v5843, 5
  %v6716 = vrot.slane %v6715, 4
  %v6717 = vrot.slane %v5844, 5
  %v6718 = vsel %vm5375, %v6716, %v6717
  %v6719 = vrot.slane %v5845, 5
  %v6720 = vrot.slane %v6719, 4
  %v6721 = vrot.slane %v5846, 5
  %v6722 = vsel %vm5375, %v6720, %v6721
  %v6723 = vrot.slane %v5847, 5
  %v6724 = vrot.slane %v6723, 4
  %v6725 = vrot.slane %v5848, 5
  %v6726 = vsel %vm5375, %v6724, %v6725
  %v6727 = vrot.slane %v5849, 5
  %v6728 = vrot.slane %v6727, 4
  %v6729 = vrot.slane %v5850, 5
  %v6730 = vsel %vm5375, %v6728, %v6729
  %v6731 = vrot.slane %v5851, 5
  %v6732 = vrot.slane %v6731, 4
  %v6733 = vrot.slane %v5852, 5
  %v6734 = vsel %vm5375, %v6732, %v6733
  %v6735 = vrot.slane %v5853, 5
  %v6736 = vrot.slane %v6735, 4
  %v6737 = vrot.slane %v5854, 5
  %v6738 = vsel %vm5375, %v6736, %v6737
  %s6739 = scalar_lea.vmem %s4, 448
  %v6740 = vld [vmem:[%s6739] sm:$0xf]
  %v6741 = vld [vmem:[%s6739 + $0x4] sm:$0xf]
  %v6742 = vld [vmem:[%s6739 + $0x8] sm:$0xf]
  %v6743 = vld [vmem:[%s6739 + $0xc] sm:$0xf]
  %v6744 = vld [vmem:[%s6739 + $0x10] sm:$0xf]
  %v6745 = vld [vmem:[%s6739 + $0x14] sm:$0xf]
  %v6746 = vld [vmem:[%s6739 + $0x18] sm:$0xf]
  %v6747 = vld [vmem:[%s6739 + $0x1c] sm:$0xf]
  %v6748 = vld [vmem:[%s6739 + $0x20] sm:$0xf]
  %v6749 = vld [vmem:[%s6739 + $0x24] sm:$0xf]
  %v6750 = vld [vmem:[%s6739 + $0x28] sm:$0xf]
  %v6751 = vld [vmem:[%s6739 + $0x2c] sm:$0xf]
  %v6752 = vld [vmem:[%s6739 + $0x30] sm:$0xf]
  %v6753 = vld [vmem:[%s6739 + $0x34] sm:$0xf]
  %v6754 = vld [vmem:[%s6739 + $0x38] sm:$0xf]
  %v6755 = vld [vmem:[%s6739 + $0x3c] sm:$0xf]
  %v6756 = vunpack.c.l.b16 %v6678
  %v6757 = vunpack.c.l.b16 %v6682
  %v6758 = vunpack.c.l.b16 %v6686
  %v6759 = vunpack.c.l.b16 %v6690
  %v6760 = vunpack.c.l.b16 %v6694
  %v6761 = vunpack.c.l.b16 %v6698
  %v6762 = vunpack.c.l.b16 %v6702
  %v6763 = vunpack.c.l.b16 %v6706
  %v6764 = vunpack.c.l.b16 %v6710
  %v6765 = vunpack.c.l.b16 %v6714
  %v6766 = vunpack.c.l.b16 %v6718
  %v6767 = vunpack.c.l.b16 %v6722
  %v6768 = vunpack.c.l.b16 %v6726
  %v6769 = vunpack.c.l.b16 %v6730
  %v6770 = vunpack.c.l.b16 %v6734
  %v6771 = vunpack.c.l.b16 %v6738
  %v6772 = vpack.c.b16 %v6757, %v6756
  %v6773 = vpack.c.b16 %v6759, %v6758
  %v6774 = vpack.c.b16 %v6761, %v6760
  %v6775 = vpack.c.b16 %v6763, %v6762
  %v6776 = vpack.c.b16 %v6765, %v6764
  %v6777 = vpack.c.b16 %v6767, %v6766
  %v6778 = vpack.c.b16 %v6769, %v6768
  %v6779 = vpack.c.b16 %v6771, %v6770
  %v6804 = vunpack.c.l.b16 %v6740
  %v6805 = vunpack.c.l.b16 %v6741
  %v6806 = vunpack.c.l.b16 %v6742
  %v6807 = vunpack.c.l.b16 %v6743
  %v6808 = vunpack.c.l.b16 %v6744
  %v6809 = vunpack.c.l.b16 %v6745
  %v6810 = vunpack.c.l.b16 %v6746
  %v6811 = vunpack.c.l.b16 %v6747
  %v6812 = vunpack.c.l.b16 %v6748
  %v6813 = vunpack.c.l.b16 %v6749
  %v6814 = vunpack.c.l.b16 %v6750
  %v6815 = vunpack.c.l.b16 %v6751
  %v6816 = vunpack.c.l.b16 %v6752
  %v6817 = vunpack.c.l.b16 %v6753
  %v6818 = vunpack.c.l.b16 %v6754
  %v6819 = vunpack.c.l.b16 %v6755
  %v6820 = vpack.c.b16 %v6805, %v6804
  %v6821 = vpack.c.b16 %v6807, %v6806
  %v6822 = vpack.c.b16 %v6809, %v6808
  %v6823 = vpack.c.b16 %v6811, %v6810
  %v6824 = vpack.c.b16 %v6813, %v6812
  %v6825 = vpack.c.b16 %v6815, %v6814
  %v6826 = vpack.c.b16 %v6817, %v6816
  %v6827 = vpack.c.b16 %v6819, %v6818
  %6836 = vmatpush.bf16.msra.mxu0 %v6827
  %6837 = vmatpush.bf16.msra.mxu0 %v6826
  %6838 = vmatpush.bf16.msra.mxu0 %v6825
  %6839 = vmatpush.bf16.msra.mxu0 %v6824
  %6840 = vmatpush.bf16.msra.mxu0 %v6823
  %6841 = vmatpush.bf16.msra.mxu0 %v6822
  %6842 = vmatpush.bf16.msra.mxu0 %v6821
  %6843 = vmatpush.bf16.msra.mxu0 %v6820
  %6844 = vmatmul.bf16.gmra.mxu0 %v6772
  %v6845 = vpop.f32.mrf.mxu0
  %v6846 = vadd.f32 0.0, %v6845
  %v6847 = vpop.f32.mrf.mxu0
  %v6848 = vadd.f32 0.0, %v6847
  %6849 = vmatmul.bf16.gmra.mxu0 %v6773
  %v6850 = vpop.f32.mrf.mxu0
  %v6851 = vadd.f32 0.0, %v6850
  %v6852 = vpop.f32.mrf.mxu0
  %v6853 = vadd.f32 0.0, %v6852
  %6854 = vmatmul.bf16.gmra.mxu0 %v6774
  %v6855 = vpop.f32.mrf.mxu0
  %v6856 = vadd.f32 0.0, %v6855
  %v6857 = vpop.f32.mrf.mxu0
  %v6858 = vadd.f32 0.0, %v6857
  %6859 = vmatmul.bf16.gmra.mxu0 %v6775
  %v6860 = vpop.f32.mrf.mxu0
  %v6861 = vadd.f32 0.0, %v6860
  %v6862 = vpop.f32.mrf.mxu0
  %v6863 = vadd.f32 0.0, %v6862
  %6864 = vmatmul.bf16.gmra.mxu0 %v6776
  %v6865 = vpop.f32.mrf.mxu0
  %v6866 = vadd.f32 0.0, %v6865
  %v6867 = vpop.f32.mrf.mxu0
  %v6868 = vadd.f32 0.0, %v6867
  %6869 = vmatmul.bf16.gmra.mxu0 %v6777
  %v6870 = vpop.f32.mrf.mxu0
  %v6871 = vadd.f32 0.0, %v6870
  %v6872 = vpop.f32.mrf.mxu0
  %v6873 = vadd.f32 0.0, %v6872
  %6874 = vmatmul.bf16.gmra.mxu0 %v6778
  %v6875 = vpop.f32.mrf.mxu0
  %v6876 = vadd.f32 0.0, %v6875
  %v6877 = vpop.f32.mrf.mxu0
  %v6878 = vadd.f32 0.0, %v6877
  %6879 = vmatmul.bf16.gmra.mxu0 %v6779
  %v6880 = vpop.f32.mrf.mxu0
  %v6881 = vadd.f32 0.0, %v6880
  %v6882 = vpop.f32.mrf.mxu0
  %v6883 = vadd.f32 0.0, %v6882
  %6884 = vdwg.mxu0
  %v6885 = vadd.f32 %v6659, %v6846
  %v6886 = vadd.f32 %v6660, %v6848
  %v6887 = vadd.f32 %v6661, %v6851
  %v6888 = vadd.f32 %v6662, %v6853
  %v6889 = vadd.f32 %v6663, %v6856
  %v6890 = vadd.f32 %v6664, %v6858
  %v6891 = vadd.f32 %v6665, %v6861
  %v6892 = vadd.f32 %v6666, %v6863
  %v6893 = vadd.f32 %v6667, %v6866
  %v6894 = vadd.f32 %v6668, %v6868
  %v6895 = vadd.f32 %v6669, %v6871
  %v6896 = vadd.f32 %v6670, %v6873
  %v6897 = vadd.f32 %v6671, %v6876
  %v6898 = vadd.f32 %v6672, %v6878
  %v6899 = vadd.f32 %v6673, %v6881
  %v6900 = vadd.f32 %v6674, %v6883
  %s6901 = scalar_lea.vmem %s4, 512
  %v6902 = vld [vmem:[%s6901] sm:$0xf]
  %v6903 = vld [vmem:[%s6901 + $0x4] sm:$0xf]
  %v6904 = vld [vmem:[%s6901 + $0x8] sm:$0xf]
  %v6905 = vld [vmem:[%s6901 + $0xc] sm:$0xf]
  %v6906 = vld [vmem:[%s6901 + $0x10] sm:$0xf]
  %v6907 = vld [vmem:[%s6901 + $0x14] sm:$0xf]
  %v6908 = vld [vmem:[%s6901 + $0x18] sm:$0xf]
  %v6909 = vld [vmem:[%s6901 + $0x1c] sm:$0xf]
  %v6910 = vld [vmem:[%s6901 + $0x20] sm:$0xf]
  %v6911 = vld [vmem:[%s6901 + $0x24] sm:$0xf]
  %v6912 = vld [vmem:[%s6901 + $0x28] sm:$0xf]
  %v6913 = vld [vmem:[%s6901 + $0x2c] sm:$0xf]
  %v6914 = vld [vmem:[%s6901 + $0x30] sm:$0xf]
  %v6915 = vld [vmem:[%s6901 + $0x34] sm:$0xf]
  %v6916 = vld [vmem:[%s6901 + $0x38] sm:$0xf]
  %v6917 = vld [vmem:[%s6901 + $0x3c] sm:$0xf]
  %v6920 = vunpack.c.l.b16 %v4376
  %v6921 = vunpack.c.l.b16 %v4384
  %v6922 = vpack.c.b16 %v4849, %v4848
  %v6923 = vpack.c.b16 %v4851, %v4850
  %v6924 = vpack.c.b16 %v4853, %v4852
  %v6925 = vpack.c.b16 %v6920, %v4854
  %v6926 = vpack.c.b16 %v4856, %v4855
  %v6927 = vpack.c.b16 %v4858, %v4857
  %v6928 = vpack.c.b16 %v4860, %v4859
  %v6929 = vpack.c.b16 %v6921, %v4861
  %v6954 = vunpack.c.l.b16 %v6902
  %v6955 = vunpack.c.l.b16 %v6903
  %v6956 = vunpack.c.l.b16 %v6904
  %v6957 = vunpack.c.l.b16 %v6905
  %v6958 = vunpack.c.l.b16 %v6906
  %v6959 = vunpack.c.l.b16 %v6907
  %v6960 = vunpack.c.l.b16 %v6908
  %v6961 = vunpack.c.l.b16 %v6909
  %v6962 = vunpack.c.l.b16 %v6910
  %v6963 = vunpack.c.l.b16 %v6911
  %v6964 = vunpack.c.l.b16 %v6912
  %v6965 = vunpack.c.l.b16 %v6913
  %v6966 = vunpack.c.l.b16 %v6914
  %v6967 = vunpack.c.l.b16 %v6915
  %v6968 = vunpack.c.l.b16 %v6916
  %v6969 = vunpack.c.l.b16 %v6917
  %v6970 = vpack.c.b16 %v6955, %v6954
  %v6971 = vpack.c.b16 %v6957, %v6956
  %v6972 = vpack.c.b16 %v6959, %v6958
  %v6973 = vpack.c.b16 %v6961, %v6960
  %v6974 = vpack.c.b16 %v6963, %v6962
  %v6975 = vpack.c.b16 %v6965, %v6964
  %v6976 = vpack.c.b16 %v6967, %v6966
  %v6977 = vpack.c.b16 %v6969, %v6968
  %6986 = vmatpush.bf16.msra.mxu0 %v6977
  %6987 = vmatpush.bf16.msra.mxu0 %v6976
  %6988 = vmatpush.bf16.msra.mxu0 %v6975
  %6989 = vmatpush.bf16.msra.mxu0 %v6974
  %6990 = vmatpush.bf16.msra.mxu0 %v6973
  %6991 = vmatpush.bf16.msra.mxu0 %v6972
  %6992 = vmatpush.bf16.msra.mxu0 %v6971
  %6993 = vmatpush.bf16.msra.mxu0 %v6970
  %6994 = vmatmul.bf16.gmra.mxu0 %v6922
  %v6995 = vpop.f32.mrf.mxu0
  %v6996 = vadd.f32 0.0, %v6995
  %v6997 = vpop.f32.mrf.mxu0
  %v6998 = vadd.f32 0.0, %v6997
  %6999 = vmatmul.bf16.gmra.mxu0 %v6923
  %v7000 = vpop.f32.mrf.mxu0
  %v7001 = vadd.f32 0.0, %v7000
  %v7002 = vpop.f32.mrf.mxu0
  %v7003 = vadd.f32 0.0, %v7002
  %7004 = vmatmul.bf16.gmra.mxu0 %v6924
  %v7005 = vpop.f32.mrf.mxu0
  %v7006 = vadd.f32 0.0, %v7005
  %v7007 = vpop.f32.mrf.mxu0
  %v7008 = vadd.f32 0.0, %v7007
  %7009 = vmatmul.bf16.gmra.mxu0 %v6925
  %v7010 = vpop.f32.mrf.mxu0
  %v7011 = vadd.f32 0.0, %v7010
  %v7012 = vpop.f32.mrf.mxu0
  %v7013 = vadd.f32 0.0, %v7012
  %7014 = vmatmul.bf16.gmra.mxu0 %v6926
  %v7015 = vpop.f32.mrf.mxu0
  %v7016 = vadd.f32 0.0, %v7015
  %v7017 = vpop.f32.mrf.mxu0
  %v7018 = vadd.f32 0.0, %v7017
  %7019 = vmatmul.bf16.gmra.mxu0 %v6927
  %v7020 = vpop.f32.mrf.mxu0
  %v7021 = vadd.f32 0.0, %v7020
  %v7022 = vpop.f32.mrf.mxu0
  %v7023 = vadd.f32 0.0, %v7022
  %7024 = vmatmul.bf16.gmra.mxu0 %v6928
  %v7025 = vpop.f32.mrf.mxu0
  %v7026 = vadd.f32 0.0, %v7025
  %v7027 = vpop.f32.mrf.mxu0
  %v7028 = vadd.f32 0.0, %v7027
  %7029 = vmatmul.bf16.gmra.mxu0 %v6929
  %v7030 = vpop.f32.mrf.mxu0
  %v7031 = vadd.f32 0.0, %v7030
  %v7032 = vpop.f32.mrf.mxu0
  %v7033 = vadd.f32 0.0, %v7032
  %7034 = vdwg.mxu0
  %v7035 = vadd.f32 %v6885, %v6996
  %v7036 = vadd.f32 %v6886, %v6998
  %v7037 = vadd.f32 %v6887, %v7001
  %v7038 = vadd.f32 %v6888, %v7003
  %v7039 = vadd.f32 %v6889, %v7006
  %v7040 = vadd.f32 %v6890, %v7008
  %v7041 = vadd.f32 %v6891, %v7011
  %v7042 = vadd.f32 %v6892, %v7013
  %v7043 = vadd.f32 %v6893, %v7016
  %v7044 = vadd.f32 %v6894, %v7018
  %v7045 = vadd.f32 %v6895, %v7021
  %v7046 = vadd.f32 %v6896, %v7023
  %v7047 = vadd.f32 %v6897, %v7026
  %v7048 = vadd.f32 %v6898, %v7028
  %v7049 = vadd.f32 %v6899, %v7031
  %v7050 = vadd.f32 %v6900, %v7033
  %v7053 = vunpack.c.l.b16 %v3976
  %v7054 = vunpack.c.h.b16 %v3976
  %v7055 = vunpack.c.l.b16 %v3984
  %v7056 = vunpack.c.h.b16 %v3984
  %v7057 = vpack.c.b16 %v7053, %v7053
  %v7058 = vpack.c.b16 %v7054, %v7054
  %v7059 = vpack.c.b16 %v7055, %v7055
  %v7060 = vpack.c.b16 %v7056, %v7056
  %v7062 = vshrl.u32 %v7057, 16
  %v7064 = vrot.slane %v7062, 4
  %v7065 = vshll.u32 %v7057, 16
  %v7067 = vrot.slane %v7065, 5
  %v7068 = vor.u32 %v7064, %v7067
  %v7069 = vrot.slane %v7068, 4
  %v7071 = vshll.u32 %v7058, 16
  %v7073 = vrot.slane %v7071, 5
  %v7074 = vsel %vm4478, %v7069, %v7073
  %v7076 = vshrl.u32 %v7059, 16
  %v7078 = vrot.slane %v7076, 4
  %v7079 = vshll.u32 %v7059, 16
  %v7081 = vrot.slane %v7079, 5
  %v7082 = vor.u32 %v7078, %v7081
  %v7083 = vrot.slane %v7082, 4
  %v7085 = vshll.u32 %v7060, 16
  %v7087 = vrot.slane %v7085, 5
  %v7088 = vsel %vm4478, %v7083, %v7087
  %s7089 = scalar_lea.vmem %s4, 576
  %v7090 = vld [vmem:[%s7089] sm:$0xf]
  %v7091 = vld [vmem:[%s7089 + $0x4] sm:$0xf]
  %v7092 = vld [vmem:[%s7089 + $0x8] sm:$0xf]
  %v7093 = vld [vmem:[%s7089 + $0xc] sm:$0xf]
  %v7094 = vld [vmem:[%s7089 + $0x10] sm:$0xf]
  %v7095 = vld [vmem:[%s7089 + $0x14] sm:$0xf]
  %v7096 = vld [vmem:[%s7089 + $0x18] sm:$0xf]
  %v7097 = vld [vmem:[%s7089 + $0x1c] sm:$0xf]
  %v7098 = vld [vmem:[%s7089 + $0x20] sm:$0xf]
  %v7099 = vld [vmem:[%s7089 + $0x24] sm:$0xf]
  %v7100 = vld [vmem:[%s7089 + $0x28] sm:$0xf]
  %v7101 = vld [vmem:[%s7089 + $0x2c] sm:$0xf]
  %v7102 = vld [vmem:[%s7089 + $0x30] sm:$0xf]
  %v7103 = vld [vmem:[%s7089 + $0x34] sm:$0xf]
  %v7104 = vld [vmem:[%s7089 + $0x38] sm:$0xf]
  %v7105 = vld [vmem:[%s7089 + $0x3c] sm:$0xf]
  %v7106 = vunpack.c.l.b16 %v7074
  %v7107 = vunpack.c.l.b16 %v7088
  %v7108 = vpack.c.b16 %v4708, %v4707
  %v7109 = vpack.c.b16 %v4710, %v4709
  %v7110 = vpack.c.b16 %v4712, %v4711
  %v7111 = vpack.c.b16 %v7106, %v4713
  %v7112 = vpack.c.b16 %v4715, %v4714
  %v7113 = vpack.c.b16 %v4717, %v4716
  %v7114 = vpack.c.b16 %v4719, %v4718
  %v7115 = vpack.c.b16 %v7107, %v4720
  %v7140 = vunpack.c.l.b16 %v7090
  %v7141 = vunpack.c.l.b16 %v7091
  %v7142 = vunpack.c.l.b16 %v7092
  %v7143 = vunpack.c.l.b16 %v7093
  %v7144 = vunpack.c.l.b16 %v7094
  %v7145 = vunpack.c.l.b16 %v7095
  %v7146 = vunpack.c.l.b16 %v7096
  %v7147 = vunpack.c.l.b16 %v7097
  %v7148 = vunpack.c.l.b16 %v7098
  %v7149 = vunpack.c.l.b16 %v7099
  %v7150 = vunpack.c.l.b16 %v7100
  %v7151 = vunpack.c.l.b16 %v7101
  %v7152 = vunpack.c.l.b16 %v7102
  %v7153 = vunpack.c.l.b16 %v7103
  %v7154 = vunpack.c.l.b16 %v7104
  %v7155 = vunpack.c.l.b16 %v7105
  %v7156 = vpack.c.b16 %v7141, %v7140
  %v7157 = vpack.c.b16 %v7143, %v7142
  %v7158 = vpack.c.b16 %v7145, %v7144
  %v7159 = vpack.c.b16 %v7147, %v7146
  %v7160 = vpack.c.b16 %v7149, %v7148
  %v7161 = vpack.c.b16 %v7151, %v7150
  %v7162 = vpack.c.b16 %v7153, %v7152
  %v7163 = vpack.c.b16 %v7155, %v7154
  %7172 = vmatpush.bf16.msra.mxu0 %v7163
  %7173 = vmatpush.bf16.msra.mxu0 %v7162
  %7174 = vmatpush.bf16.msra.mxu0 %v7161
  %7175 = vmatpush.bf16.msra.mxu0 %v7160
  %7176 = vmatpush.bf16.msra.mxu0 %v7159
  %7177 = vmatpush.bf16.msra.mxu0 %v7158
  %7178 = vmatpush.bf16.msra.mxu0 %v7157
  %7179 = vmatpush.bf16.msra.mxu0 %v7156
  %7180 = vmatmul.bf16.gmra.mxu0 %v7108
  %v7181 = vpop.f32.mrf.mxu0
  %v7182 = vadd.f32 0.0, %v7181
  %v7183 = vpop.f32.mrf.mxu0
  %v7184 = vadd.f32 0.0, %v7183
  %7185 = vmatmul.bf16.gmra.mxu0 %v7109
  %v7186 = vpop.f32.mrf.mxu0
  %v7187 = vadd.f32 0.0, %v7186
  %v7188 = vpop.f32.mrf.mxu0
  %v7189 = vadd.f32 0.0, %v7188
  %7190 = vmatmul.bf16.gmra.mxu0 %v7110
  %v7191 = vpop.f32.mrf.mxu0
  %v7192 = vadd.f32 0.0, %v7191
  %v7193 = vpop.f32.mrf.mxu0
  %v7194 = vadd.f32 0.0, %v7193
  %7195 = vmatmul.bf16.gmra.mxu0 %v7111
  %v7196 = vpop.f32.mrf.mxu0
  %v7197 = vadd.f32 0.0, %v7196
  %v7198 = vpop.f32.mrf.mxu0
  %v7199 = vadd.f32 0.0, %v7198
  %7200 = vmatmul.bf16.gmra.mxu0 %v7112
  %v7201 = vpop.f32.mrf.mxu0
  %v7202 = vadd.f32 0.0, %v7201
  %v7203 = vpop.f32.mrf.mxu0
  %v7204 = vadd.f32 0.0, %v7203
  %7205 = vmatmul.bf16.gmra.mxu0 %v7113
  %v7206 = vpop.f32.mrf.mxu0
  %v7207 = vadd.f32 0.0, %v7206
  %v7208 = vpop.f32.mrf.mxu0
  %v7209 = vadd.f32 0.0, %v7208
  %7210 = vmatmul.bf16.gmra.mxu0 %v7114
  %v7211 = vpop.f32.mrf.mxu0
  %v7212 = vadd.f32 0.0, %v7211
  %v7213 = vpop.f32.mrf.mxu0
  %v7214 = vadd.f32 0.0, %v7213
  %7215 = vmatmul.bf16.gmra.mxu0 %v7115
  %v7216 = vpop.f32.mrf.mxu0
  %v7217 = vadd.f32 0.0, %v7216
  %v7218 = vpop.f32.mrf.mxu0
  %v7219 = vadd.f32 0.0, %v7218
  %7220 = vdwg.mxu0
  %v7221 = vadd.f32 %v7035, %v7182
  %v7222 = vadd.f32 %v7036, %v7184
  %v7223 = vadd.f32 %v7037, %v7187
  %v7224 = vadd.f32 %v7038, %v7189
  %v7225 = vadd.f32 %v7039, %v7192
  %v7226 = vadd.f32 %v7040, %v7194
  %v7227 = vadd.f32 %v7041, %v7197
  %v7228 = vadd.f32 %v7042, %v7199
  %v7229 = vadd.f32 %v7043, %v7202
  %v7230 = vadd.f32 %v7044, %v7204
  %v7231 = vadd.f32 %v7045, %v7207
  %v7232 = vadd.f32 %v7046, %v7209
  %v7233 = vadd.f32 %v7047, %v7212
  %v7234 = vadd.f32 %v7048, %v7214
  %v7235 = vadd.f32 %v7049, %v7217
  %v7236 = vadd.f32 %v7050, %v7219
  %v7237 = vunpack.c.h.b16 %v4376
  %v7238 = vunpack.c.h.b16 %v4384
  %v7239 = vpack.c.b16 %v6920, %v6920
  %v7240 = vpack.c.b16 %v7237, %v7237
  %v7241 = vpack.c.b16 %v6921, %v6921
  %v7242 = vpack.c.b16 %v7238, %v7238
  %v7244 = vshrl.u32 %v7239, 16
  %v7246 = vrot.slane %v7244, 4
  %v7247 = vshll.u32 %v7239, 16
  %v7249 = vrot.slane %v7247, 5
  %v7250 = vor.u32 %v7246, %v7249
  %v7251 = vrot.slane %v7250, 4
  %v7253 = vshll.u32 %v7240, 16
  %v7255 = vrot.slane %v7253, 5
  %v7256 = vsel %vm4478, %v7251, %v7255
  %v7258 = vshrl.u32 %v7241, 16
  %v7260 = vrot.slane %v7258, 4
  %v7261 = vshll.u32 %v7241, 16
  %v7263 = vrot.slane %v7261, 5
  %v7264 = vor.u32 %v7260, %v7263
  %v7265 = vrot.slane %v7264, 4
  %v7267 = vshll.u32 %v7242, 16
  %v7269 = vrot.slane %v7267, 5
  %v7270 = vsel %vm4478, %v7265, %v7269
  %s7271 = scalar_lea.vmem %s4, 640
  %v7272 = vld [vmem:[%s7271] sm:$0xf]
  %v7273 = vld [vmem:[%s7271 + $0x4] sm:$0xf]
  %v7274 = vld [vmem:[%s7271 + $0x8] sm:$0xf]
  %v7275 = vld [vmem:[%s7271 + $0xc] sm:$0xf]
  %v7276 = vld [vmem:[%s7271 + $0x10] sm:$0xf]
  %v7277 = vld [vmem:[%s7271 + $0x14] sm:$0xf]
  %v7278 = vld [vmem:[%s7271 + $0x18] sm:$0xf]
  %v7279 = vld [vmem:[%s7271 + $0x1c] sm:$0xf]
  %v7280 = vld [vmem:[%s7271 + $0x20] sm:$0xf]
  %v7281 = vld [vmem:[%s7271 + $0x24] sm:$0xf]
  %v7282 = vld [vmem:[%s7271 + $0x28] sm:$0xf]
  %v7283 = vld [vmem:[%s7271 + $0x2c] sm:$0xf]
  %v7284 = vld [vmem:[%s7271 + $0x30] sm:$0xf]
  %v7285 = vld [vmem:[%s7271 + $0x34] sm:$0xf]
  %v7286 = vld [vmem:[%s7271 + $0x38] sm:$0xf]
  %v7287 = vld [vmem:[%s7271 + $0x3c] sm:$0xf]
  %v7288 = vunpack.c.l.b16 %v7256
  %v7289 = vunpack.c.l.b16 %v7270
  %v7290 = vpack.c.b16 %v5231, %v5230
  %v7291 = vpack.c.b16 %v5233, %v5232
  %v7292 = vpack.c.b16 %v5235, %v5234
  %v7293 = vpack.c.b16 %v7288, %v5236
  %v7294 = vpack.c.b16 %v5238, %v5237
  %v7295 = vpack.c.b16 %v5240, %v5239
  %v7296 = vpack.c.b16 %v5242, %v5241
  %v7297 = vpack.c.b16 %v7289, %v5243
  %v7322 = vunpack.c.l.b16 %v7272
  %v7323 = vunpack.c.l.b16 %v7273
  %v7324 = vunpack.c.l.b16 %v7274
  %v7325 = vunpack.c.l.b16 %v7275
  %v7326 = vunpack.c.l.b16 %v7276
  %v7327 = vunpack.c.l.b16 %v7277
  %v7328 = vunpack.c.l.b16 %v7278
  %v7329 = vunpack.c.l.b16 %v7279
  %v7330 = vunpack.c.l.b16 %v7280
  %v7331 = vunpack.c.l.b16 %v7281
  %v7332 = vunpack.c.l.b16 %v7282
  %v7333 = vunpack.c.l.b16 %v7283
  %v7334 = vunpack.c.l.b16 %v7284
  %v7335 = vunpack.c.l.b16 %v7285
  %v7336 = vunpack.c.l.b16 %v7286
  %v7337 = vunpack.c.l.b16 %v7287
  %v7338 = vpack.c.b16 %v7323, %v7322
  %v7339 = vpack.c.b16 %v7325, %v7324
  %v7340 = vpack.c.b16 %v7327, %v7326
  %v7341 = vpack.c.b16 %v7329, %v7328
  %v7342 = vpack.c.b16 %v7331, %v7330
  %v7343 = vpack.c.b16 %v7333, %v7332
  %v7344 = vpack.c.b16 %v7335, %v7334
  %v7345 = vpack.c.b16 %v7337, %v7336
  %7354 = vmatpush.bf16.msra.mxu0 %v7345
  %7355 = vmatpush.bf16.msra.mxu0 %v7344
  %7356 = vmatpush.bf16.msra.mxu0 %v7343
  %7357 = vmatpush.bf16.msra.mxu0 %v7342
  %7358 = vmatpush.bf16.msra.mxu0 %v7341
  %7359 = vmatpush.bf16.msra.mxu0 %v7340
  %7360 = vmatpush.bf16.msra.mxu0 %v7339
  %7361 = vmatpush.bf16.msra.mxu0 %v7338
  %7362 = vmatmul.bf16.gmra.mxu0 %v7290
  %v7363 = vpop.f32.mrf.mxu0
  %v7364 = vadd.f32 0.0, %v7363
  %v7365 = vpop.f32.mrf.mxu0
  %v7366 = vadd.f32 0.0, %v7365
  %7367 = vmatmul.bf16.gmra.mxu0 %v7291
  %v7368 = vpop.f32.mrf.mxu0
  %v7369 = vadd.f32 0.0, %v7368
  %v7370 = vpop.f32.mrf.mxu0
  %v7371 = vadd.f32 0.0, %v7370
  %7372 = vmatmul.bf16.gmra.mxu0 %v7292
  %v7373 = vpop.f32.mrf.mxu0
  %v7374 = vadd.f32 0.0, %v7373
  %v7375 = vpop.f32.mrf.mxu0
  %v7376 = vadd.f32 0.0, %v7375
  %7377 = vmatmul.bf16.gmra.mxu0 %v7293
  %v7378 = vpop.f32.mrf.mxu0
  %v7379 = vadd.f32 0.0, %v7378
  %v7380 = vpop.f32.mrf.mxu0
  %v7381 = vadd.f32 0.0, %v7380
  %7382 = vmatmul.bf16.gmra.mxu0 %v7294
  %v7383 = vpop.f32.mrf.mxu0
  %v7384 = vadd.f32 0.0, %v7383
  %v7385 = vpop.f32.mrf.mxu0
  %v7386 = vadd.f32 0.0, %v7385
  %7387 = vmatmul.bf16.gmra.mxu0 %v7295
  %v7388 = vpop.f32.mrf.mxu0
  %v7389 = vadd.f32 0.0, %v7388
  %v7390 = vpop.f32.mrf.mxu0
  %v7391 = vadd.f32 0.0, %v7390
  %7392 = vmatmul.bf16.gmra.mxu0 %v7296
  %v7393 = vpop.f32.mrf.mxu0
  %v7394 = vadd.f32 0.0, %v7393
  %v7395 = vpop.f32.mrf.mxu0
  %v7396 = vadd.f32 0.0, %v7395
  %7397 = vmatmul.bf16.gmra.mxu0 %v7297
  %v7398 = vpop.f32.mrf.mxu0
  %v7399 = vadd.f32 0.0, %v7398
  %v7400 = vpop.f32.mrf.mxu0
  %v7401 = vadd.f32 0.0, %v7400
  %7402 = vdwg.mxu0
  %v7403 = vadd.f32 %v7221, %v7364
  %v7404 = vadd.f32 %v7222, %v7366
  %v7405 = vadd.f32 %v7223, %v7369
  %v7406 = vadd.f32 %v7224, %v7371
  %v7407 = vadd.f32 %v7225, %v7374
  %v7408 = vadd.f32 %v7226, %v7376
  %v7409 = vadd.f32 %v7227, %v7379
  %v7410 = vadd.f32 %v7228, %v7381
  %v7411 = vadd.f32 %v7229, %v7384
  %v7412 = vadd.f32 %v7230, %v7386
  %v7413 = vadd.f32 %v7231, %v7389
  %v7414 = vadd.f32 %v7232, %v7391
  %v7415 = vadd.f32 %v7233, %v7394
  %v7416 = vadd.f32 %v7234, %v7396
  %v7417 = vadd.f32 %v7235, %v7399
  %v7418 = vadd.f32 %v7236, %v7401
  %v7419 = vrot.slane %v7057, 5
  %v7420 = vrot.slane %v7419, 4
  %v7421 = vrot.slane %v7058, 5
  %v7422 = vsel %vm5375, %v7420, %v7421
  %v7423 = vrot.slane %v7059, 5
  %v7424 = vrot.slane %v7423, 4
  %v7425 = vrot.slane %v7060, 5
  %v7426 = vsel %vm5375, %v7424, %v7425
  %s7427 = scalar_lea.vmem %s4, 704
  %v7428 = vld [vmem:[%s7427] sm:$0xf]
  %v7429 = vld [vmem:[%s7427 + $0x4] sm:$0xf]
  %v7430 = vld [vmem:[%s7427 + $0x8] sm:$0xf]
  %v7431 = vld [vmem:[%s7427 + $0xc] sm:$0xf]
  %v7432 = vld [vmem:[%s7427 + $0x10] sm:$0xf]
  %v7433 = vld [vmem:[%s7427 + $0x14] sm:$0xf]
  %v7434 = vld [vmem:[%s7427 + $0x18] sm:$0xf]
  %v7435 = vld [vmem:[%s7427 + $0x1c] sm:$0xf]
  %v7436 = vld [vmem:[%s7427 + $0x20] sm:$0xf]
  %v7437 = vld [vmem:[%s7427 + $0x24] sm:$0xf]
  %v7438 = vld [vmem:[%s7427 + $0x28] sm:$0xf]
  %v7439 = vld [vmem:[%s7427 + $0x2c] sm:$0xf]
  %v7440 = vld [vmem:[%s7427 + $0x30] sm:$0xf]
  %v7441 = vld [vmem:[%s7427 + $0x34] sm:$0xf]
  %v7442 = vld [vmem:[%s7427 + $0x38] sm:$0xf]
  %v7443 = vld [vmem:[%s7427 + $0x3c] sm:$0xf]
  %v7444 = vunpack.c.l.b16 %v7422
  %v7445 = vunpack.c.l.b16 %v7426
  %v7446 = vpack.c.b16 %v5455, %v5454
  %v7447 = vpack.c.b16 %v5457, %v5456
  %v7448 = vpack.c.b16 %v5459, %v5458
  %v7449 = vpack.c.b16 %v7444, %v5460
  %v7450 = vpack.c.b16 %v5462, %v5461
  %v7451 = vpack.c.b16 %v5464, %v5463
  %v7452 = vpack.c.b16 %v5466, %v5465
  %v7453 = vpack.c.b16 %v7445, %v5467
  %v7478 = vunpack.c.l.b16 %v7428
  %v7479 = vunpack.c.l.b16 %v7429
  %v7480 = vunpack.c.l.b16 %v7430
  %v7481 = vunpack.c.l.b16 %v7431
  %v7482 = vunpack.c.l.b16 %v7432
  %v7483 = vunpack.c.l.b16 %v7433
  %v7484 = vunpack.c.l.b16 %v7434
  %v7485 = vunpack.c.l.b16 %v7435
  %v7486 = vunpack.c.l.b16 %v7436
  %v7487 = vunpack.c.l.b16 %v7437
  %v7488 = vunpack.c.l.b16 %v7438
  %v7489 = vunpack.c.l.b16 %v7439
  %v7490 = vunpack.c.l.b16 %v7440
  %v7491 = vunpack.c.l.b16 %v7441
  %v7492 = vunpack.c.l.b16 %v7442
  %v7493 = vunpack.c.l.b16 %v7443
  %v7494 = vpack.c.b16 %v7479, %v7478
  %v7495 = vpack.c.b16 %v7481, %v7480
  %v7496 = vpack.c.b16 %v7483, %v7482
  %v7497 = vpack.c.b16 %v7485, %v7484
  %v7498 = vpack.c.b16 %v7487, %v7486
  %v7499 = vpack.c.b16 %v7489, %v7488
  %v7500 = vpack.c.b16 %v7491, %v7490
  %v7501 = vpack.c.b16 %v7493, %v7492
  %7510 = vmatpush.bf16.msra.mxu0 %v7501
  %7511 = vmatpush.bf16.msra.mxu0 %v7500
  %7512 = vmatpush.bf16.msra.mxu0 %v7499
  %7513 = vmatpush.bf16.msra.mxu0 %v7498
  %7514 = vmatpush.bf16.msra.mxu0 %v7497
  %7515 = vmatpush.bf16.msra.mxu0 %v7496
  %7516 = vmatpush.bf16.msra.mxu0 %v7495
  %7517 = vmatpush.bf16.msra.mxu0 %v7494
  %7518 = vmatmul.bf16.gmra.mxu0 %v7446
  %v7519 = vpop.f32.mrf.mxu0
  %v7520 = vadd.f32 0.0, %v7519
  %v7521 = vpop.f32.mrf.mxu0
  %v7522 = vadd.f32 0.0, %v7521
  %7523 = vmatmul.bf16.gmra.mxu0 %v7447
  %v7524 = vpop.f32.mrf.mxu0
  %v7525 = vadd.f32 0.0, %v7524
  %v7526 = vpop.f32.mrf.mxu0
  %v7527 = vadd.f32 0.0, %v7526
  %7528 = vmatmul.bf16.gmra.mxu0 %v7448
  %v7529 = vpop.f32.mrf.mxu0
  %v7530 = vadd.f32 0.0, %v7529
  %v7531 = vpop.f32.mrf.mxu0
  %v7532 = vadd.f32 0.0, %v7531
  %7533 = vmatmul.bf16.gmra.mxu0 %v7449
  %v7534 = vpop.f32.mrf.mxu0
  %v7535 = vadd.f32 0.0, %v7534
  %v7536 = vpop.f32.mrf.mxu0
  %v7537 = vadd.f32 0.0, %v7536
  %7538 = vmatmul.bf16.gmra.mxu0 %v7450
  %v7539 = vpop.f32.mrf.mxu0
  %v7540 = vadd.f32 0.0, %v7539
  %v7541 = vpop.f32.mrf.mxu0
  %v7542 = vadd.f32 0.0, %v7541
  %7543 = vmatmul.bf16.gmra.mxu0 %v7451
  %v7544 = vpop.f32.mrf.mxu0
  %v7545 = vadd.f32 0.0, %v7544
  %v7546 = vpop.f32.mrf.mxu0
  %v7547 = vadd.f32 0.0, %v7546
  %7548 = vmatmul.bf16.gmra.mxu0 %v7452
  %v7549 = vpop.f32.mrf.mxu0
  %v7550 = vadd.f32 0.0, %v7549
  %v7551 = vpop.f32.mrf.mxu0
  %v7552 = vadd.f32 0.0, %v7551
  %7553 = vmatmul.bf16.gmra.mxu0 %v7453
  %v7554 = vpop.f32.mrf.mxu0
  %v7555 = vadd.f32 0.0, %v7554
  %v7556 = vpop.f32.mrf.mxu0
  %v7557 = vadd.f32 0.0, %v7556
  %7558 = vdwg.mxu0
  %v7559 = vadd.f32 %v7403, %v7520
  %v7560 = vadd.f32 %v7404, %v7522
  %v7561 = vadd.f32 %v7405, %v7525
  %v7562 = vadd.f32 %v7406, %v7527
  %v7563 = vadd.f32 %v7407, %v7530
  %v7564 = vadd.f32 %v7408, %v7532
  %v7565 = vadd.f32 %v7409, %v7535
  %v7566 = vadd.f32 %v7410, %v7537
  %v7567 = vadd.f32 %v7411, %v7540
  %v7568 = vadd.f32 %v7412, %v7542
  %v7569 = vadd.f32 %v7413, %v7545
  %v7570 = vadd.f32 %v7414, %v7547
  %v7571 = vadd.f32 %v7415, %v7550
  %v7572 = vadd.f32 %v7416, %v7552
  %v7573 = vadd.f32 %v7417, %v7555
  %v7574 = vadd.f32 %v7418, %v7557
  %s7575 = scalar_lea.vmem %s4, 768
  %v7576 = vld [vmem:[%s7575] sm:$0xf]
  %v7577 = vld [vmem:[%s7575 + $0x4] sm:$0xf]
  %v7578 = vld [vmem:[%s7575 + $0x8] sm:$0xf]
  %v7579 = vld [vmem:[%s7575 + $0xc] sm:$0xf]
  %v7580 = vld [vmem:[%s7575 + $0x10] sm:$0xf]
  %v7581 = vld [vmem:[%s7575 + $0x14] sm:$0xf]
  %v7582 = vld [vmem:[%s7575 + $0x18] sm:$0xf]
  %v7583 = vld [vmem:[%s7575 + $0x1c] sm:$0xf]
  %v7584 = vld [vmem:[%s7575 + $0x20] sm:$0xf]
  %v7585 = vld [vmem:[%s7575 + $0x24] sm:$0xf]
  %v7586 = vld [vmem:[%s7575 + $0x28] sm:$0xf]
  %v7587 = vld [vmem:[%s7575 + $0x2c] sm:$0xf]
  %v7588 = vld [vmem:[%s7575 + $0x30] sm:$0xf]
  %v7589 = vld [vmem:[%s7575 + $0x34] sm:$0xf]
  %v7590 = vld [vmem:[%s7575 + $0x38] sm:$0xf]
  %v7591 = vld [vmem:[%s7575 + $0x3c] sm:$0xf]
  %v7592 = vpack.c.b16 %v5632, %v5631
  %v7593 = vpack.c.b16 %v5634, %v5633
  %v7594 = vpack.c.b16 %v5636, %v5635
  %v7595 = vpack.c.b16 %v4416, %v5637
  %v7596 = vpack.c.b16 %v5640, %v5639
  %v7597 = vpack.c.b16 %v5642, %v5641
  %v7598 = vpack.c.b16 %v5644, %v5643
  %v7599 = vpack.c.b16 %v4416, %v5645
  %v7624 = vunpack.c.l.b16 %v7576
  %v7625 = vunpack.c.l.b16 %v7577
  %v7626 = vunpack.c.l.b16 %v7578
  %v7627 = vunpack.c.l.b16 %v7579
  %v7628 = vunpack.c.l.b16 %v7580
  %v7629 = vunpack.c.l.b16 %v7581
  %v7630 = vunpack.c.l.b16 %v7582
  %v7631 = vunpack.c.l.b16 %v7583
  %v7632 = vunpack.c.l.b16 %v7584
  %v7633 = vunpack.c.l.b16 %v7585
  %v7634 = vunpack.c.l.b16 %v7586
  %v7635 = vunpack.c.l.b16 %v7587
  %v7636 = vunpack.c.l.b16 %v7588
  %v7637 = vunpack.c.l.b16 %v7589
  %v7638 = vunpack.c.l.b16 %v7590
  %v7639 = vunpack.c.l.b16 %v7591
  %v7640 = vpack.c.b16 %v7625, %v7624
  %v7641 = vpack.c.b16 %v7627, %v7626
  %v7642 = vpack.c.b16 %v7629, %v7628
  %v7643 = vpack.c.b16 %v7631, %v7630
  %v7644 = vpack.c.b16 %v7633, %v7632
  %v7645 = vpack.c.b16 %v7635, %v7634
  %v7646 = vpack.c.b16 %v7637, %v7636
  %v7647 = vpack.c.b16 %v7639, %v7638
  %7656 = vmatpush.bf16.msra.mxu0 %v7647
  %7657 = vmatpush.bf16.msra.mxu0 %v7646
  %7658 = vmatpush.bf16.msra.mxu0 %v7645
  %7659 = vmatpush.bf16.msra.mxu0 %v7644
  %7660 = vmatpush.bf16.msra.mxu0 %v7643
  %7661 = vmatpush.bf16.msra.mxu0 %v7642
  %7662 = vmatpush.bf16.msra.mxu0 %v7641
  %7663 = vmatpush.bf16.msra.mxu0 %v7640
  %7664 = vmatmul.bf16.gmra.mxu0 %v7592
  %v7665 = vpop.f32.mrf.mxu0
  %v7666 = vadd.f32 0.0, %v7665
  %v7667 = vpop.f32.mrf.mxu0
  %v7668 = vadd.f32 0.0, %v7667
  %7669 = vmatmul.bf16.gmra.mxu0 %v7593
  %v7670 = vpop.f32.mrf.mxu0
  %v7671 = vadd.f32 0.0, %v7670
  %v7672 = vpop.f32.mrf.mxu0
  %v7673 = vadd.f32 0.0, %v7672
  %7674 = vmatmul.bf16.gmra.mxu0 %v7594
  %v7675 = vpop.f32.mrf.mxu0
  %v7676 = vadd.f32 0.0, %v7675
  %v7677 = vpop.f32.mrf.mxu0
  %v7678 = vadd.f32 0.0, %v7677
  %7679 = vmatmul.bf16.gmra.mxu0 %v7595
  %v7680 = vpop.f32.mrf.mxu0
  %v7681 = vadd.f32 0.0, %v7680
  %v7682 = vpop.f32.mrf.mxu0
  %v7683 = vadd.f32 0.0, %v7682
  %7684 = vmatmul.bf16.gmra.mxu0 %v7596
  %v7685 = vpop.f32.mrf.mxu0
  %v7686 = vadd.f32 0.0, %v7685
  %v7687 = vpop.f32.mrf.mxu0
  %v7688 = vadd.f32 0.0, %v7687
  %7689 = vmatmul.bf16.gmra.mxu0 %v7597
  %v7690 = vpop.f32.mrf.mxu0
  %v7691 = vadd.f32 0.0, %v7690
  %v7692 = vpop.f32.mrf.mxu0
  %v7693 = vadd.f32 0.0, %v7692
  %7694 = vmatmul.bf16.gmra.mxu0 %v7598
  %v7695 = vpop.f32.mrf.mxu0
  %v7696 = vadd.f32 0.0, %v7695
  %v7697 = vpop.f32.mrf.mxu0
  %v7698 = vadd.f32 0.0, %v7697
  %7699 = vmatmul.bf16.gmra.mxu0 %v7599
  %v7700 = vpop.f32.mrf.mxu0
  %v7701 = vadd.f32 0.0, %v7700
  %v7702 = vpop.f32.mrf.mxu0
  %v7703 = vadd.f32 0.0, %v7702
  %7704 = vdwg.mxu0
  %v7705 = vadd.f32 %v7559, %v7666
  %v7706 = vadd.f32 %v7560, %v7668
  %v7707 = vadd.f32 %v7561, %v7671
  %v7708 = vadd.f32 %v7562, %v7673
  %v7709 = vadd.f32 %v7563, %v7676
  %v7710 = vadd.f32 %v7564, %v7678
  %v7711 = vadd.f32 %v7565, %v7681
  %v7712 = vadd.f32 %v7566, %v7683
  %v7713 = vadd.f32 %v7567, %v7686
  %v7714 = vadd.f32 %v7568, %v7688
  %v7715 = vadd.f32 %v7569, %v7691
  %v7716 = vadd.f32 %v7570, %v7693
  %v7717 = vadd.f32 %v7571, %v7696
  %v7718 = vadd.f32 %v7572, %v7698
  %v7719 = vadd.f32 %v7573, %v7701
  %v7720 = vadd.f32 %v7574, %v7703
  %s7721 = scalar_lea.vmem %s4, 832
  %v7722 = vld [vmem:[%s7721] sm:$0xf]
  %v7723 = vld [vmem:[%s7721 + $0x4] sm:$0xf]
  %v7724 = vld [vmem:[%s7721 + $0x8] sm:$0xf]
  %v7725 = vld [vmem:[%s7721 + $0xc] sm:$0xf]
  %v7726 = vld [vmem:[%s7721 + $0x10] sm:$0xf]
  %v7727 = vld [vmem:[%s7721 + $0x14] sm:$0xf]
  %v7728 = vld [vmem:[%s7721 + $0x18] sm:$0xf]
  %v7729 = vld [vmem:[%s7721 + $0x1c] sm:$0xf]
  %v7730 = vld [vmem:[%s7721 + $0x20] sm:$0xf]
  %v7731 = vld [vmem:[%s7721 + $0x24] sm:$0xf]
  %v7732 = vld [vmem:[%s7721 + $0x28] sm:$0xf]
  %v7733 = vld [vmem:[%s7721 + $0x2c] sm:$0xf]
  %v7734 = vld [vmem:[%s7721 + $0x30] sm:$0xf]
  %v7735 = vld [vmem:[%s7721 + $0x34] sm:$0xf]
  %v7736 = vld [vmem:[%s7721 + $0x38] sm:$0xf]
  %v7737 = vld [vmem:[%s7721 + $0x3c] sm:$0xf]
  %v7738 = vpack.c.b16 %v6098, %v6097
  %v7739 = vpack.c.b16 %v6100, %v6099
  %v7740 = vpack.c.b16 %v6102, %v6101
  %v7741 = vpack.c.b16 %v4706, %v6103
  %v7742 = vpack.c.b16 %v6106, %v6105
  %v7743 = vpack.c.b16 %v6108, %v6107
  %v7744 = vpack.c.b16 %v6110, %v6109
  %v7745 = vpack.c.b16 %v4706, %v6111
  %v7770 = vunpack.c.l.b16 %v7722
  %v7771 = vunpack.c.l.b16 %v7723
  %v7772 = vunpack.c.l.b16 %v7724
  %v7773 = vunpack.c.l.b16 %v7725
  %v7774 = vunpack.c.l.b16 %v7726
  %v7775 = vunpack.c.l.b16 %v7727
  %v7776 = vunpack.c.l.b16 %v7728
  %v7777 = vunpack.c.l.b16 %v7729
  %v7778 = vunpack.c.l.b16 %v7730
  %v7779 = vunpack.c.l.b16 %v7731
  %v7780 = vunpack.c.l.b16 %v7732
  %v7781 = vunpack.c.l.b16 %v7733
  %v7782 = vunpack.c.l.b16 %v7734
  %v7783 = vunpack.c.l.b16 %v7735
  %v7784 = vunpack.c.l.b16 %v7736
  %v7785 = vunpack.c.l.b16 %v7737
  %v7786 = vpack.c.b16 %v7771, %v7770
  %v7787 = vpack.c.b16 %v7773, %v7772
  %v7788 = vpack.c.b16 %v7775, %v7774
  %v7789 = vpack.c.b16 %v7777, %v7776
  %v7790 = vpack.c.b16 %v7779, %v7778
  %v7791 = vpack.c.b16 %v7781, %v7780
  %v7792 = vpack.c.b16 %v7783, %v7782
  %v7793 = vpack.c.b16 %v7785, %v7784
  %7802 = vmatpush.bf16.msra.mxu0 %v7793
  %7803 = vmatpush.bf16.msra.mxu0 %v7792
  %7804 = vmatpush.bf16.msra.mxu0 %v7791
  %7805 = vmatpush.bf16.msra.mxu0 %v7790
  %7806 = vmatpush.bf16.msra.mxu0 %v7789
  %7807 = vmatpush.bf16.msra.mxu0 %v7788
  %7808 = vmatpush.bf16.msra.mxu0 %v7787
  %7809 = vmatpush.bf16.msra.mxu0 %v7786
  %7810 = vmatmul.bf16.gmra.mxu0 %v7738
  %v7811 = vpop.f32.mrf.mxu0
  %v7812 = vadd.f32 0.0, %v7811
  %v7813 = vpop.f32.mrf.mxu0
  %v7814 = vadd.f32 0.0, %v7813
  %7815 = vmatmul.bf16.gmra.mxu0 %v7739
  %v7816 = vpop.f32.mrf.mxu0
  %v7817 = vadd.f32 0.0, %v7816
  %v7818 = vpop.f32.mrf.mxu0
  %v7819 = vadd.f32 0.0, %v7818
  %7820 = vmatmul.bf16.gmra.mxu0 %v7740
  %v7821 = vpop.f32.mrf.mxu0
  %v7822 = vadd.f32 0.0, %v7821
  %v7823 = vpop.f32.mrf.mxu0
  %v7824 = vadd.f32 0.0, %v7823
  %7825 = vmatmul.bf16.gmra.mxu0 %v7741
  %v7826 = vpop.f32.mrf.mxu0
  %v7827 = vadd.f32 0.0, %v7826
  %v7828 = vpop.f32.mrf.mxu0
  %v7829 = vadd.f32 0.0, %v7828
  %7830 = vmatmul.bf16.gmra.mxu0 %v7742
  %v7831 = vpop.f32.mrf.mxu0
  %v7832 = vadd.f32 0.0, %v7831
  %v7833 = vpop.f32.mrf.mxu0
  %v7834 = vadd.f32 0.0, %v7833
  %7835 = vmatmul.bf16.gmra.mxu0 %v7743
  %v7836 = vpop.f32.mrf.mxu0
  %v7837 = vadd.f32 0.0, %v7836
  %v7838 = vpop.f32.mrf.mxu0
  %v7839 = vadd.f32 0.0, %v7838
  %7840 = vmatmul.bf16.gmra.mxu0 %v7744
  %v7841 = vpop.f32.mrf.mxu0
  %v7842 = vadd.f32 0.0, %v7841
  %v7843 = vpop.f32.mrf.mxu0
  %v7844 = vadd.f32 0.0, %v7843
  %7845 = vmatmul.bf16.gmra.mxu0 %v7745
  %v7846 = vpop.f32.mrf.mxu0
  %v7847 = vadd.f32 0.0, %v7846
  %v7848 = vpop.f32.mrf.mxu0
  %v7849 = vadd.f32 0.0, %v7848
  %7850 = vdwg.mxu0
  %v7851 = vadd.f32 %v7705, %v7812
  %v7852 = vadd.f32 %v7706, %v7814
  %v7853 = vadd.f32 %v7707, %v7817
  %v7854 = vadd.f32 %v7708, %v7819
  %v7855 = vadd.f32 %v7709, %v7822
  %v7856 = vadd.f32 %v7710, %v7824
  %v7857 = vadd.f32 %v7711, %v7827
  %v7858 = vadd.f32 %v7712, %v7829
  %v7859 = vadd.f32 %v7713, %v7832
  %v7860 = vadd.f32 %v7714, %v7834
  %v7861 = vadd.f32 %v7715, %v7837
  %v7862 = vadd.f32 %v7716, %v7839
  %v7863 = vadd.f32 %v7717, %v7842
  %v7864 = vadd.f32 %v7718, %v7844
  %v7865 = vadd.f32 %v7719, %v7847
  %v7866 = vadd.f32 %v7720, %v7849
  %s7867 = scalar_lea.vmem %s4, 896
  %v7868 = vld [vmem:[%s7867] sm:$0xf]
  %v7869 = vld [vmem:[%s7867 + $0x4] sm:$0xf]
  %v7870 = vld [vmem:[%s7867 + $0x8] sm:$0xf]
  %v7871 = vld [vmem:[%s7867 + $0xc] sm:$0xf]
  %v7872 = vld [vmem:[%s7867 + $0x10] sm:$0xf]
  %v7873 = vld [vmem:[%s7867 + $0x14] sm:$0xf]
  %v7874 = vld [vmem:[%s7867 + $0x18] sm:$0xf]
  %v7875 = vld [vmem:[%s7867 + $0x1c] sm:$0xf]
  %v7876 = vld [vmem:[%s7867 + $0x20] sm:$0xf]
  %v7877 = vld [vmem:[%s7867 + $0x24] sm:$0xf]
  %v7878 = vld [vmem:[%s7867 + $0x28] sm:$0xf]
  %v7879 = vld [vmem:[%s7867 + $0x2c] sm:$0xf]
  %v7880 = vld [vmem:[%s7867 + $0x30] sm:$0xf]
  %v7881 = vld [vmem:[%s7867 + $0x34] sm:$0xf]
  %v7882 = vld [vmem:[%s7867 + $0x38] sm:$0xf]
  %v7883 = vld [vmem:[%s7867 + $0x3c] sm:$0xf]
  %v7884 = vpack.c.b16 %v6532, %v6531
  %v7885 = vpack.c.b16 %v6534, %v6533
  %v7886 = vpack.c.b16 %v6536, %v6535
  %v7887 = vpack.c.b16 %v4706, %v6537
  %v7888 = vpack.c.b16 %v6540, %v6539
  %v7889 = vpack.c.b16 %v6542, %v6541
  %v7890 = vpack.c.b16 %v6544, %v6543
  %v7891 = vpack.c.b16 %v4706, %v6545
  %v7916 = vunpack.c.l.b16 %v7868
  %v7917 = vunpack.c.l.b16 %v7869
  %v7918 = vunpack.c.l.b16 %v7870
  %v7919 = vunpack.c.l.b16 %v7871
  %v7920 = vunpack.c.l.b16 %v7872
  %v7921 = vunpack.c.l.b16 %v7873
  %v7922 = vunpack.c.l.b16 %v7874
  %v7923 = vunpack.c.l.b16 %v7875
  %v7924 = vunpack.c.l.b16 %v7876
  %v7925 = vunpack.c.l.b16 %v7877
  %v7926 = vunpack.c.l.b16 %v7878
  %v7927 = vunpack.c.l.b16 %v7879
  %v7928 = vunpack.c.l.b16 %v7880
  %v7929 = vunpack.c.l.b16 %v7881
  %v7930 = vunpack.c.l.b16 %v7882
  %v7931 = vunpack.c.l.b16 %v7883
  %v7932 = vpack.c.b16 %v7917, %v7916
  %v7933 = vpack.c.b16 %v7919, %v7918
  %v7934 = vpack.c.b16 %v7921, %v7920
  %v7935 = vpack.c.b16 %v7923, %v7922
  %v7936 = vpack.c.b16 %v7925, %v7924
  %v7937 = vpack.c.b16 %v7927, %v7926
  %v7938 = vpack.c.b16 %v7929, %v7928
  %v7939 = vpack.c.b16 %v7931, %v7930
  %7948 = vmatpush.bf16.msra.mxu0 %v7939
  %7949 = vmatpush.bf16.msra.mxu0 %v7938
  %7950 = vmatpush.bf16.msra.mxu0 %v7937
  %7951 = vmatpush.bf16.msra.mxu0 %v7936
  %7952 = vmatpush.bf16.msra.mxu0 %v7935
  %7953 = vmatpush.bf16.msra.mxu0 %v7934
  %7954 = vmatpush.bf16.msra.mxu0 %v7933
  %7955 = vmatpush.bf16.msra.mxu0 %v7932
  %7956 = vmatmul.bf16.gmra.mxu0 %v7884
  %v7957 = vpop.f32.mrf.mxu0
  %v7958 = vadd.f32 0.0, %v7957
  %v7959 = vpop.f32.mrf.mxu0
  %v7960 = vadd.f32 0.0, %v7959
  %7961 = vmatmul.bf16.gmra.mxu0 %v7885
  %v7962 = vpop.f32.mrf.mxu0
  %v7963 = vadd.f32 0.0, %v7962
  %v7964 = vpop.f32.mrf.mxu0
  %v7965 = vadd.f32 0.0, %v7964
  %7966 = vmatmul.bf16.gmra.mxu0 %v7886
  %v7967 = vpop.f32.mrf.mxu0
  %v7968 = vadd.f32 0.0, %v7967
  %v7969 = vpop.f32.mrf.mxu0
  %v7970 = vadd.f32 0.0, %v7969
  %7971 = vmatmul.bf16.gmra.mxu0 %v7887
  %v7972 = vpop.f32.mrf.mxu0
  %v7973 = vadd.f32 0.0, %v7972
  %v7974 = vpop.f32.mrf.mxu0
  %v7975 = vadd.f32 0.0, %v7974
  %7976 = vmatmul.bf16.gmra.mxu0 %v7888
  %v7977 = vpop.f32.mrf.mxu0
  %v7978 = vadd.f32 0.0, %v7977
  %v7979 = vpop.f32.mrf.mxu0
  %v7980 = vadd.f32 0.0, %v7979
  %7981 = vmatmul.bf16.gmra.mxu0 %v7889
  %v7982 = vpop.f32.mrf.mxu0
  %v7983 = vadd.f32 0.0, %v7982
  %v7984 = vpop.f32.mrf.mxu0
  %v7985 = vadd.f32 0.0, %v7984
  %7986 = vmatmul.bf16.gmra.mxu0 %v7890
  %v7987 = vpop.f32.mrf.mxu0
  %v7988 = vadd.f32 0.0, %v7987
  %v7989 = vpop.f32.mrf.mxu0
  %v7990 = vadd.f32 0.0, %v7989
  %7991 = vmatmul.bf16.gmra.mxu0 %v7891
  %v7992 = vpop.f32.mrf.mxu0
  %v7993 = vadd.f32 0.0, %v7992
  %v7994 = vpop.f32.mrf.mxu0
  %v7995 = vadd.f32 0.0, %v7994
  %7996 = vdwg.mxu0
  %v7997 = vadd.f32 %v7851, %v7958
  %v7998 = vadd.f32 %v7852, %v7960
  %v7999 = vadd.f32 %v7853, %v7963
  %v8000 = vadd.f32 %v7854, %v7965
  %v8001 = vadd.f32 %v7855, %v7968
  %v8002 = vadd.f32 %v7856, %v7970
  %v8003 = vadd.f32 %v7857, %v7973
  %v8004 = vadd.f32 %v7858, %v7975
  %v8005 = vadd.f32 %v7859, %v7978
  %v8006 = vadd.f32 %v7860, %v7980
  %v8007 = vadd.f32 %v7861, %v7983
  %v8008 = vadd.f32 %v7862, %v7985
  %v8009 = vadd.f32 %v7863, %v7988
  %v8010 = vadd.f32 %v7864, %v7990
  %v8011 = vadd.f32 %v7865, %v7993
  %v8012 = vadd.f32 %v7866, %v7995
  %s8013 = scalar_lea.vmem %s4, 960
  %v8014 = vld [vmem:[%s8013] sm:$0xf]
  %v8015 = vld [vmem:[%s8013 + $0x4] sm:$0xf]
  %v8016 = vld [vmem:[%s8013 + $0x8] sm:$0xf]
  %v8017 = vld [vmem:[%s8013 + $0xc] sm:$0xf]
  %v8018 = vld [vmem:[%s8013 + $0x10] sm:$0xf]
  %v8019 = vld [vmem:[%s8013 + $0x14] sm:$0xf]
  %v8020 = vld [vmem:[%s8013 + $0x18] sm:$0xf]
  %v8021 = vld [vmem:[%s8013 + $0x1c] sm:$0xf]
  %v8022 = vld [vmem:[%s8013 + $0x20] sm:$0xf]
  %v8023 = vld [vmem:[%s8013 + $0x24] sm:$0xf]
  %v8024 = vld [vmem:[%s8013 + $0x28] sm:$0xf]
  %v8025 = vld [vmem:[%s8013 + $0x2c] sm:$0xf]
  %v8026 = vld [vmem:[%s8013 + $0x30] sm:$0xf]
  %v8027 = vld [vmem:[%s8013 + $0x34] sm:$0xf]
  %v8028 = vld [vmem:[%s8013 + $0x38] sm:$0xf]
  %v8029 = vld [vmem:[%s8013 + $0x3c] sm:$0xf]
  %v8030 = vpack.c.b16 %v6758, %v6757
  %v8031 = vpack.c.b16 %v6760, %v6759
  %v8032 = vpack.c.b16 %v6762, %v6761
  %v8033 = vpack.c.b16 %v5453, %v6763
  %v8034 = vpack.c.b16 %v6766, %v6765
  %v8035 = vpack.c.b16 %v6768, %v6767
  %v8036 = vpack.c.b16 %v6770, %v6769
  %v8037 = vpack.c.b16 %v5453, %v6771
  %v8062 = vunpack.c.l.b16 %v8014
  %v8063 = vunpack.c.l.b16 %v8015
  %v8064 = vunpack.c.l.b16 %v8016
  %v8065 = vunpack.c.l.b16 %v8017
  %v8066 = vunpack.c.l.b16 %v8018
  %v8067 = vunpack.c.l.b16 %v8019
  %v8068 = vunpack.c.l.b16 %v8020
  %v8069 = vunpack.c.l.b16 %v8021
  %v8070 = vunpack.c.l.b16 %v8022
  %v8071 = vunpack.c.l.b16 %v8023
  %v8072 = vunpack.c.l.b16 %v8024
  %v8073 = vunpack.c.l.b16 %v8025
  %v8074 = vunpack.c.l.b16 %v8026
  %v8075 = vunpack.c.l.b16 %v8027
  %v8076 = vunpack.c.l.b16 %v8028
  %v8077 = vunpack.c.l.b16 %v8029
  %v8078 = vpack.c.b16 %v8063, %v8062
  %v8079 = vpack.c.b16 %v8065, %v8064
  %v8080 = vpack.c.b16 %v8067, %v8066
  %v8081 = vpack.c.b16 %v8069, %v8068
  %v8082 = vpack.c.b16 %v8071, %v8070
  %v8083 = vpack.c.b16 %v8073, %v8072
  %v8084 = vpack.c.b16 %v8075, %v8074
  %v8085 = vpack.c.b16 %v8077, %v8076
  %8094 = vmatpush.bf16.msra.mxu0 %v8085
  %8095 = vmatpush.bf16.msra.mxu0 %v8084
  %8096 = vmatpush.bf16.msra.mxu0 %v8083
  %8097 = vmatpush.bf16.msra.mxu0 %v8082
  %8098 = vmatpush.bf16.msra.mxu0 %v8081
  %8099 = vmatpush.bf16.msra.mxu0 %v8080
  %8100 = vmatpush.bf16.msra.mxu0 %v8079
  %8101 = vmatpush.bf16.msra.mxu0 %v8078
  %8102 = vmatmul.bf16.gmra.mxu0 %v8030
  %v8103 = vpop.f32.mrf.mxu0
  %v8104 = vadd.f32 0.0, %v8103
  %v8105 = vpop.f32.mrf.mxu0
  %v8106 = vadd.f32 0.0, %v8105
  %8107 = vmatmul.bf16.gmra.mxu0 %v8031
  %v8108 = vpop.f32.mrf.mxu0
  %v8109 = vadd.f32 0.0, %v8108
  %v8110 = vpop.f32.mrf.mxu0
  %v8111 = vadd.f32 0.0, %v8110
  %8112 = vmatmul.bf16.gmra.mxu0 %v8032
  %v8113 = vpop.f32.mrf.mxu0
  %v8114 = vadd.f32 0.0, %v8113
  %v8115 = vpop.f32.mrf.mxu0
  %v8116 = vadd.f32 0.0, %v8115
  %8117 = vmatmul.bf16.gmra.mxu0 %v8033
  %v8118 = vpop.f32.mrf.mxu0
  %v8119 = vadd.f32 0.0, %v8118
  %v8120 = vpop.f32.mrf.mxu0
  %v8121 = vadd.f32 0.0, %v8120
  %8122 = vmatmul.bf16.gmra.mxu0 %v8034
  %v8123 = vpop.f32.mrf.mxu0
  %v8124 = vadd.f32 0.0, %v8123
  %v8125 = vpop.f32.mrf.mxu0
  %v8126 = vadd.f32 0.0, %v8125
  %8127 = vmatmul.bf16.gmra.mxu0 %v8035
  %v8128 = vpop.f32.mrf.mxu0
  %v8129 = vadd.f32 0.0, %v8128
  %v8130 = vpop.f32.mrf.mxu0
  %v8131 = vadd.f32 0.0, %v8130
  %8132 = vmatmul.bf16.gmra.mxu0 %v8036
  %v8133 = vpop.f32.mrf.mxu0
  %v8134 = vadd.f32 0.0, %v8133
  %v8135 = vpop.f32.mrf.mxu0
  %v8136 = vadd.f32 0.0, %v8135
  %8137 = vmatmul.bf16.gmra.mxu0 %v8037
  %v8138 = vpop.f32.mrf.mxu0
  %v8139 = vadd.f32 0.0, %v8138
  %v8140 = vpop.f32.mrf.mxu0
  %v8141 = vadd.f32 0.0, %v8140
  %8142 = vdwg.mxu0
  %v8143 = vadd.f32 %v7997, %v8104
  %v8144 = vadd.f32 %v7998, %v8106
  %v8145 = vadd.f32 %v7999, %v8109
  %v8146 = vadd.f32 %v8000, %v8111
  %v8147 = vadd.f32 %v8001, %v8114
  %v8148 = vadd.f32 %v8002, %v8116
  %v8149 = vadd.f32 %v8003, %v8119
  %v8150 = vadd.f32 %v8004, %v8121
  %v8151 = vadd.f32 %v8005, %v8124
  %v8152 = vadd.f32 %v8006, %v8126
  %v8153 = vadd.f32 %v8007, %v8129
  %v8154 = vadd.f32 %v8008, %v8131
  %v8155 = vadd.f32 %v8009, %v8134
  %v8156 = vadd.f32 %v8010, %v8136
  %v8157 = vadd.f32 %v8011, %v8139
  %v8158 = vadd.f32 %v8012, %v8141
  %v8159 = vld [vmem:[%s5] sm:$0x1]
  %v8160 = vld [vmem:[%s6] sm:$0x1]
  %v8161 = vmul.f32 %v8143, %v8143
  %v8162 = vmul.f32 %v8144, %v8144
  %v8163 = vmul.f32 %v8145, %v8145
  %v8164 = vmul.f32 %v8146, %v8146
  %v8165 = vmul.f32 %v8147, %v8147
  %v8166 = vmul.f32 %v8148, %v8148
  %v8167 = vmul.f32 %v8149, %v8149
  %v8168 = vmul.f32 %v8150, %v8150
  %v8169 = vmul.f32 %v8151, %v8151
  %v8170 = vmul.f32 %v8152, %v8152
  %v8171 = vmul.f32 %v8153, %v8153
  %v8172 = vmul.f32 %v8154, %v8154
  %v8173 = vmul.f32 %v8155, %v8155
  %v8174 = vmul.f32 %v8156, %v8156
  %v8175 = vmul.f32 %v8157, %v8157
  %v8176 = vmul.f32 %v8158, %v8158
  %8177 = vmatpush.msra.mxu0 %v8158
  %8178 = vmatpush.msra.mxu0 %v8157
  %8179 = vmatpush.msra.mxu0 %v8156
  %8180 = vmatpush.msra.mxu0 %v8155
  %8181 = vmatpush.msra.mxu0 %v8154
  %8182 = vmatpush.msra.mxu0 %v8153
  %8183 = vmatpush.msra.mxu0 %v8152
  %8184 = vmatpush.msra.mxu0 %v8151
  %8185 = vmatpush.msra.mxu0 %v8150
  %8186 = vmatpush.msra.mxu0 %v8149
  %8187 = vmatpush.msra.mxu0 %v8148
  %8188 = vmatpush.msra.mxu0 %v8147
  %8189 = vmatpush.msra.mxu0 %v8146
  %8190 = vmatpush.msra.mxu0 %v8145
  %8191 = vmatpush.msra.mxu0 %v8144
  %8192 = vmatpush.msra.mxu0 %v8143
  %8193 = vmatmul.f32.gmra.mxu0 1.0
  %v8194 = vpop.f32.mrf.mxu0
  %v8195 = vadd.f32 0.0, %v8194
  %8196 = vdwg.mxu0
  %8197 = vmatpush.msra.mxu0 %v8176
  %8198 = vmatpush.msra.mxu0 %v8175
  %8199 = vmatpush.msra.mxu0 %v8174
  %8200 = vmatpush.msra.mxu0 %v8173
  %8201 = vmatpush.msra.mxu0 %v8172
  %8202 = vmatpush.msra.mxu0 %v8171
  %8203 = vmatpush.msra.mxu0 %v8170
  %8204 = vmatpush.msra.mxu0 %v8169
  %8205 = vmatpush.msra.mxu0 %v8168
  %8206 = vmatpush.msra.mxu0 %v8167
  %8207 = vmatpush.msra.mxu0 %v8166
  %8208 = vmatpush.msra.mxu0 %v8165
  %8209 = vmatpush.msra.mxu0 %v8164
  %8210 = vmatpush.msra.mxu0 %v8163
  %8211 = vmatpush.msra.mxu0 %v8162
  %8212 = vmatpush.msra.mxu0 %v8161
  %8213 = vmatmul.f32.gmra.mxu0 1.0
  %v8214 = vpop.f32.mrf.mxu0
  %v8215 = vadd.f32 0.0, %v8214
  %8216 = vdwg.mxu0
  %v8217 = vmul.f32 %v8195, 0.0078125
  %v8218 = vmul.f32 %v8215, 0.0078125
  %v8219 = vmul.f32 %v8217, %v8217
  %v8220 = vsub.f32 %v8218, %v8219
  %v8221 = vadd.f32 %v8220, 1e-05
  %v8222 = vrsqrt.pop %v8221
  %v8223 = vmul.f32 %v8222, %v8221
  %v8224 = vmul.f32 %v8223, %v8222
  %v8225 = vmul.f32 0.5, %v8224
  %v8226 = vsub.f32 1.5, %v8225
  %v8227 = vmul.f32 %v8222, %v8226
  %vm8228 = vweird.f32 %v8221
  %vm8229 = vweird.f32 %v8222
  %vm8230 = vmor %vm8228, %vm8229
  %v8231 = vsel %vm8230, %v8222, %v8227
  %v8232 = vmul.f32 %v8159, %v8231
  %v8233 = vmul.f32 %v8217, %v8232
  %v8234 = vsub.f32 %v8160, %v8233
  %v8236 = vperm.slane %v8232, 0
  %v8238 = vmul.f32 %v8143, %v8236
  %v8239 = vmul.f32 %v8144, %v8236
  %v8240 = vmul.f32 %v8145, %v8236
  %v8241 = vmul.f32 %v8146, %v8236
  %v8242 = vmul.f32 %v8147, %v8236
  %v8243 = vmul.f32 %v8148, %v8236
  %v8244 = vmul.f32 %v8149, %v8236
  %v8245 = vmul.f32 %v8150, %v8236
  %v8246 = vmul.f32 %v8151, %v8236
  %v8247 = vmul.f32 %v8152, %v8236
  %v8248 = vmul.f32 %v8153, %v8236
  %v8249 = vmul.f32 %v8154, %v8236
  %v8250 = vmul.f32 %v8155, %v8236
  %v8251 = vmul.f32 %v8156, %v8236
  %v8252 = vmul.f32 %v8157, %v8236
  %v8253 = vmul.f32 %v8158, %v8236
  %v8255 = vperm.slane %v8234, 0
  %v8257 = vadd.f32 %v8238, %v8255
  %v8258 = vadd.f32 %v8239, %v8255
  %v8259 = vadd.f32 %v8240, %v8255
  %v8260 = vadd.f32 %v8241, %v8255
  %v8261 = vadd.f32 %v8242, %v8255
  %v8262 = vadd.f32 %v8243, %v8255
  %v8263 = vadd.f32 %v8244, %v8255
  %v8264 = vadd.f32 %v8245, %v8255
  %v8265 = vadd.f32 %v8246, %v8255
  %v8266 = vadd.f32 %v8247, %v8255
  %v8267 = vadd.f32 %v8248, %v8255
  %v8268 = vadd.f32 %v8249, %v8255
  %v8269 = vadd.f32 %v8250, %v8255
  %v8270 = vadd.f32 %v8251, %v8255
  %v8271 = vadd.f32 %v8252, %v8255
  %v8272 = vadd.f32 %v8253, %v8255
  %v8273 = vmul.f32 %v8257, 0.2
  %v8274 = vmul.f32 %v8258, 0.2
  %v8275 = vmul.f32 %v8259, 0.2
  %v8276 = vmul.f32 %v8260, 0.2
  %v8277 = vmul.f32 %v8261, 0.2
  %v8278 = vmul.f32 %v8262, 0.2
  %v8279 = vmul.f32 %v8263, 0.2
  %v8280 = vmul.f32 %v8264, 0.2
  %v8281 = vmul.f32 %v8265, 0.2
  %v8282 = vmul.f32 %v8266, 0.2
  %v8283 = vmul.f32 %v8267, 0.2
  %v8284 = vmul.f32 %v8268, 0.2
  %v8285 = vmul.f32 %v8269, 0.2
  %v8286 = vmul.f32 %v8270, 0.2
  %v8287 = vmul.f32 %v8271, 0.2
  %v8288 = vmul.f32 %v8272, 0.2
  %v8289 = vmax.f32 %v8257, %v8273
  %v8290 = vmax.f32 %v8258, %v8274
  %v8291 = vmax.f32 %v8259, %v8275
  %v8292 = vmax.f32 %v8260, %v8276
  %v8293 = vmax.f32 %v8261, %v8277
  %v8294 = vmax.f32 %v8262, %v8278
  %v8295 = vmax.f32 %v8263, %v8279
  %v8296 = vmax.f32 %v8264, %v8280
  %v8297 = vmax.f32 %v8265, %v8281
  %v8298 = vmax.f32 %v8266, %v8282
  %v8299 = vmax.f32 %v8267, %v8283
  %v8300 = vmax.f32 %v8268, %v8284
  %v8301 = vmax.f32 %v8269, %v8285
  %v8302 = vmax.f32 %v8270, %v8286
  %v8303 = vmax.f32 %v8271, %v8287
  %v8304 = vmax.f32 %v8272, %v8288
  %v8321 = vrot.slane %v8289, 2
  %v8322 = vrot.slane %v8289, 4
  %v8323 = vrot.slane %v8289, 6
  %v8324 = vrot.slane %v8290, 2
  %v8325 = vrot.slane %v8290, 4
  %v8326 = vrot.slane %v8290, 6
  %v8327 = vrot.slane %v8291, 2
  %v8328 = vrot.slane %v8291, 4
  %v8329 = vrot.slane %v8291, 6
  %v8330 = vrot.slane %v8292, 2
  %v8331 = vrot.slane %v8292, 4
  %v8332 = vrot.slane %v8292, 6
  %v8333 = vrot.slane %v8293, 2
  %v8334 = vrot.slane %v8293, 4
  %v8335 = vrot.slane %v8293, 6
  %v8336 = vrot.slane %v8294, 2
  %v8337 = vrot.slane %v8294, 4
  %v8338 = vrot.slane %v8294, 6
  %v8339 = vrot.slane %v8295, 2
  %v8340 = vrot.slane %v8295, 4
  %v8341 = vrot.slane %v8295, 6
  %v8342 = vrot.slane %v8296, 2
  %v8343 = vrot.slane %v8296, 4
  %v8344 = vrot.slane %v8296, 6
  %v8345 = vrot.slane %v8297, 2
  %v8346 = vrot.slane %v8297, 4
  %v8347 = vrot.slane %v8297, 6
  %v8348 = vrot.slane %v8298, 2
  %v8349 = vrot.slane %v8298, 4
  %v8350 = vrot.slane %v8298, 6
  %v8351 = vrot.slane %v8299, 2
  %v8352 = vrot.slane %v8299, 4
  %v8353 = vrot.slane %v8299, 6
  %v8354 = vrot.slane %v8300, 2
  %v8355 = vrot.slane %v8300, 4
  %v8356 = vrot.slane %v8300, 6
  %v8357 = vrot.slane %v8301, 2
  %v8358 = vrot.slane %v8301, 4
  %v8359 = vrot.slane %v8301, 6
  %v8360 = vrot.slane %v8302, 2
  %v8361 = vrot.slane %v8302, 4
  %v8362 = vrot.slane %v8302, 6
  %v8363 = vrot.slane %v8303, 2
  %v8364 = vrot.slane %v8303, 4
  %v8365 = vrot.slane %v8303, 6
  %v8366 = vrot.slane %v8304, 2
  %v8367 = vrot.slane %v8304, 4
  %v8368 = vrot.slane %v8304, 6
  %v8417 = vpack.c.bf16 %v8289, %v8289
  %v8418 = vpack.c.bf16 %v8321, %v8321
  %v8419 = vpack.c.bf16 %v8322, %v8322
  %v8420 = vpack.c.bf16 %v8323, %v8323
  %v8421 = vpack.c.bf16 %v8291, %v8291
  %v8422 = vpack.c.bf16 %v8327, %v8327
  %v8423 = vpack.c.bf16 %v8328, %v8328
  %v8424 = vpack.c.bf16 %v8329, %v8329
  %v8425 = vpack.c.bf16 %v8293, %v8293
  %v8426 = vpack.c.bf16 %v8333, %v8333
  %v8427 = vpack.c.bf16 %v8334, %v8334
  %v8428 = vpack.c.bf16 %v8335, %v8335
  %v8429 = vpack.c.bf16 %v8295, %v8295
  %v8430 = vpack.c.bf16 %v8339, %v8339
  %v8431 = vpack.c.bf16 %v8340, %v8340
  %v8432 = vpack.c.bf16 %v8341, %v8341
  %v8433 = vpack.c.bf16 %v8297, %v8297
  %v8434 = vpack.c.bf16 %v8345, %v8345
  %v8435 = vpack.c.bf16 %v8346, %v8346
  %v8436 = vpack.c.bf16 %v8347, %v8347
  %v8437 = vpack.c.bf16 %v8299, %v8299
  %v8438 = vpack.c.bf16 %v8351, %v8351
  %v8439 = vpack.c.bf16 %v8352, %v8352
  %v8440 = vpack.c.bf16 %v8353, %v8353
  %v8441 = vpack.c.bf16 %v8301, %v8301
  %v8442 = vpack.c.bf16 %v8357, %v8357
  %v8443 = vpack.c.bf16 %v8358, %v8358
  %v8444 = vpack.c.bf16 %v8359, %v8359
  %v8445 = vpack.c.bf16 %v8303, %v8303
  %v8446 = vpack.c.bf16 %v8363, %v8363
  %v8447 = vpack.c.bf16 %v8364, %v8364
  %v8448 = vpack.c.bf16 %v8365, %v8365
  %v8481 = vunpack.c.l.b16 %v8417
  %v8482 = vunpack.c.l.b16 %v8418
  %v8483 = vunpack.c.l.b16 %v8419
  %v8484 = vunpack.c.l.b16 %v8420
  %v8485 = vunpack.c.l.b16 %v8421
  %v8486 = vunpack.c.l.b16 %v8422
  %v8487 = vunpack.c.l.b16 %v8423
  %v8488 = vunpack.c.l.b16 %v8424
  %v8489 = vunpack.c.l.b16 %v8425
  %v8490 = vunpack.c.l.b16 %v8426
  %v8491 = vunpack.c.l.b16 %v8427
  %v8492 = vunpack.c.l.b16 %v8428
  %v8493 = vunpack.c.l.b16 %v8429
  %v8494 = vunpack.c.l.b16 %v8430
  %v8495 = vunpack.c.l.b16 %v8431
  %v8496 = vunpack.c.l.b16 %v8432
  %v8497 = vunpack.c.l.b16 %v8433
  %v8498 = vunpack.c.l.b16 %v8434
  %v8499 = vunpack.c.l.b16 %v8435
  %v8500 = vunpack.c.l.b16 %v8436
  %v8501 = vunpack.c.l.b16 %v8437
  %v8502 = vunpack.c.l.b16 %v8438
  %v8503 = vunpack.c.l.b16 %v8439
  %v8504 = vunpack.c.l.b16 %v8440
  %v8505 = vunpack.c.l.b16 %v8441
  %v8506 = vunpack.c.l.b16 %v8442
  %v8507 = vunpack.c.l.b16 %v8443
  %v8508 = vunpack.c.l.b16 %v8444
  %v8509 = vunpack.c.l.b16 %v8445
  %v8510 = vunpack.c.l.b16 %v8446
  %v8511 = vunpack.c.l.b16 %v8447
  %v8512 = vunpack.c.l.b16 %v8448
  %v8513 = vpack.c.b16 %v8481, %v8481
  %v8514 = vpack.c.b16 %v8482, %v8482
  %v8515 = vpack.c.b16 %v8483, %v8483
  %v8516 = vpack.c.b16 %v8484, %v8484
  %v8517 = vpack.c.b16 %v8485, %v8485
  %v8518 = vpack.c.b16 %v8486, %v8486
  %v8519 = vpack.c.b16 %v8487, %v8487
  %v8520 = vpack.c.b16 %v8488, %v8488
  %v8521 = vpack.c.b16 %v8489, %v8489
  %v8522 = vpack.c.b16 %v8490, %v8490
  %v8523 = vpack.c.b16 %v8491, %v8491
  %v8524 = vpack.c.b16 %v8492, %v8492
  %v8525 = vpack.c.b16 %v8493, %v8493
  %v8526 = vpack.c.b16 %v8494, %v8494
  %v8527 = vpack.c.b16 %v8495, %v8495
  %v8528 = vpack.c.b16 %v8496, %v8496
  %v8529 = vpack.c.b16 %v8497, %v8497
  %v8530 = vpack.c.b16 %v8498, %v8498
  %v8531 = vpack.c.b16 %v8499, %v8499
  %v8532 = vpack.c.b16 %v8500, %v8500
  %v8533 = vpack.c.b16 %v8501, %v8501
  %v8534 = vpack.c.b16 %v8502, %v8502
  %v8535 = vpack.c.b16 %v8503, %v8503
  %v8536 = vpack.c.b16 %v8504, %v8504
  %v8537 = vpack.c.b16 %v8505, %v8505
  %v8538 = vpack.c.b16 %v8506, %v8506
  %v8539 = vpack.c.b16 %v8507, %v8507
  %v8540 = vpack.c.b16 %v8508, %v8508
  %v8541 = vpack.c.b16 %v8509, %v8509
  %v8542 = vpack.c.b16 %v8510, %v8510
  %v8543 = vpack.c.b16 %v8511, %v8511
  %v8544 = vpack.c.b16 %v8512, %v8512
  %v8545 = vunpack.c.l.b16 %v8513
  %v8546 = vunpack.c.l.b16 %v8514
  %v8547 = vunpack.c.l.b16 %v8515
  %v8548 = vunpack.c.l.b16 %v8516
  %v8549 = vunpack.c.l.b16 %v8517
  %v8550 = vunpack.c.l.b16 %v8518
  %v8551 = vunpack.c.l.b16 %v8519
  %v8552 = vunpack.c.l.b16 %v8520
  %v8553 = vunpack.c.l.b16 %v8521
  %v8554 = vunpack.c.l.b16 %v8522
  %v8555 = vunpack.c.l.b16 %v8523
  %v8556 = vunpack.c.l.b16 %v8524
  %v8557 = vunpack.c.l.b16 %v8525
  %v8558 = vunpack.c.l.b16 %v8526
  %v8559 = vunpack.c.l.b16 %v8527
  %v8560 = vunpack.c.l.b16 %v8528
  %v8561 = vunpack.c.l.b16 %v8529
  %v8562 = vunpack.c.l.b16 %v8530
  %v8563 = vunpack.c.l.b16 %v8531
  %v8564 = vunpack.c.l.b16 %v8532
  %v8565 = vunpack.c.l.b16 %v8533
  %v8566 = vunpack.c.l.b16 %v8534
  %v8567 = vunpack.c.l.b16 %v8535
  %v8568 = vunpack.c.l.b16 %v8536
  %v8569 = vunpack.c.l.b16 %v8537
  %v8570 = vunpack.c.l.b16 %v8538
  %v8571 = vunpack.c.l.b16 %v8539
  %v8572 = vunpack.c.l.b16 %v8540
  %v8573 = vunpack.c.l.b16 %v8541
  %v8574 = vunpack.c.l.b16 %v8542
  %v8575 = vunpack.c.l.b16 %v8543
  %v8576 = vunpack.c.l.b16 %v8544
  %v8577 = vrot.slane %v8546, 7
  %v8578 = vsel %vm2123, %v8577, %v8545
  %v8579 = vrot.slane %v8547, 6
  %v8580 = vsel %vm2126, %v8579, %v8578
  %v8581 = vrot.slane %v8548, 5
  %v8582 = vsel %vm2129, %v8581, %v8580
  %v8583 = vrot.slane %v8550, 7
  %v8584 = vsel %vm2123, %v8583, %v8549
  %v8585 = vrot.slane %v8551, 6
  %v8586 = vsel %vm2126, %v8585, %v8584
  %v8587 = vrot.slane %v8552, 5
  %v8588 = vsel %vm2129, %v8587, %v8586
  %v8589 = vrot.slane %v8554, 7
  %v8590 = vsel %vm2123, %v8589, %v8553
  %v8591 = vrot.slane %v8555, 6
  %v8592 = vsel %vm2126, %v8591, %v8590
  %v8593 = vrot.slane %v8556, 5
  %v8594 = vsel %vm2129, %v8593, %v8592
  %v8595 = vrot.slane %v8558, 7
  %v8596 = vsel %vm2123, %v8595, %v8557
  %v8597 = vrot.slane %v8559, 6
  %v8598 = vsel %vm2126, %v8597, %v8596
  %v8599 = vrot.slane %v8560, 5
  %v8600 = vsel %vm2129, %v8599, %v8598
  %v8601 = vrot.slane %v8562, 7
  %v8602 = vsel %vm2123, %v8601, %v8561
  %v8603 = vrot.slane %v8563, 6
  %v8604 = vsel %vm2126, %v8603, %v8602
  %v8605 = vrot.slane %v8564, 5
  %v8606 = vsel %vm2129, %v8605, %v8604
  %v8607 = vrot.slane %v8566, 7
  %v8608 = vsel %vm2123, %v8607, %v8565
  %v8609 = vrot.slane %v8567, 6
  %v8610 = vsel %vm2126, %v8609, %v8608
  %v8611 = vrot.slane %v8568, 5
  %v8612 = vsel %vm2129, %v8611, %v8610
  %v8613 = vrot.slane %v8570, 7
  %v8614 = vsel %vm2123, %v8613, %v8569
  %v8615 = vrot.slane %v8571, 6
  %v8616 = vsel %vm2126, %v8615, %v8614
  %v8617 = vrot.slane %v8572, 5
  %v8618 = vsel %vm2129, %v8617, %v8616
  %v8619 = vrot.slane %v8574, 7
  %v8620 = vsel %vm2123, %v8619, %v8573
  %v8621 = vrot.slane %v8575, 6
  %v8622 = vsel %vm2126, %v8621, %v8620
  %v8623 = vrot.slane %v8576, 5
  %v8624 = vsel %vm2129, %v8623, %v8622
  %v8625 = vpack.c.b16 %v8582, %v8582
  %v8626 = vpack.c.b16 %v8588, %v8588
  %v8627 = vpack.c.b16 %v8594, %v8594
  %v8628 = vpack.c.b16 %v8600, %v8600
  %v8629 = vpack.c.b16 %v8606, %v8606
  %v8630 = vpack.c.b16 %v8612, %v8612
  %v8631 = vpack.c.b16 %v8618, %v8618
  %v8632 = vpack.c.b16 %v8624, %v8624
  %v8634 = vshrl.u32 %v8625, 16
  %v8636 = vrot.slane %v8634, 7
  %v8637 = vshll.u32 %v8625, 16
  %v8639 = vor.u32 %v8636, %v8637
  %v8641 = vshrl.u32 %v8626, 16
  %v8643 = vrot.slane %v8641, 7
  %v8644 = vshll.u32 %v8626, 16
  %v8646 = vor.u32 %v8643, %v8644
  %v8648 = vshrl.u32 %v8627, 16
  %v8650 = vrot.slane %v8648, 7
  %v8651 = vshll.u32 %v8627, 16
  %v8653 = vor.u32 %v8650, %v8651
  %v8655 = vshrl.u32 %v8628, 16
  %v8657 = vrot.slane %v8655, 7
  %v8658 = vshll.u32 %v8628, 16
  %v8660 = vor.u32 %v8657, %v8658
  %v8662 = vshrl.u32 %v8629, 16
  %v8664 = vrot.slane %v8662, 7
  %v8665 = vshll.u32 %v8629, 16
  %v8667 = vor.u32 %v8664, %v8665
  %v8669 = vshrl.u32 %v8630, 16
  %v8671 = vrot.slane %v8669, 7
  %v8672 = vshll.u32 %v8630, 16
  %v8674 = vor.u32 %v8671, %v8672
  %v8676 = vshrl.u32 %v8631, 16
  %v8678 = vrot.slane %v8676, 7
  %v8679 = vshll.u32 %v8631, 16
  %v8681 = vor.u32 %v8678, %v8679
  %v8683 = vshrl.u32 %v8632, 16
  %v8685 = vrot.slane %v8683, 7
  %v8686 = vshll.u32 %v8632, 16
  %v8688 = vor.u32 %v8685, %v8686
  %v8697 = vsel %vm2507, 0, %v8639
  %v8698 = vsel %vm2507, 0, %v8646
  %v8699 = vsel %vm2507, 0, %v8653
  %v8700 = vsel %vm2507, 0, %v8660
  %v8701 = vsel %vm2507, 0, %v8667
  %v8702 = vsel %vm2507, 0, %v8674
  %v8703 = vsel %vm2507, 0, %v8681
  %v8704 = vsel %vm2507, 0, %v8688
  %vm8705 = vsmask.f32 2304
  %vm8706 = vmand %vm5373, %vm8705
  %v8707 = vsel %vm8706, %v8697, 0
  %v8708 = vsel %vm8706, %v8698, 0
  %v8709 = vsel %vm8706, %v8699, 0
  %v8710 = vsel %vm8706, %v8700, 0
  %v8711 = vsel %vm8706, %v2516, 0
  %v8712 = vsel %vm8706, %v8701, 0
  %v8713 = vsel %vm8706, %v8702, 0
  %v8714 = vsel %vm8706, %v8703, 0
  %v8715 = vsel %vm8706, %v8704, 0
  %v8716 = vrot.slane %v8545, 1
  %v8717 = vsel %vm2123, %v8546, %v8716
  %v8718 = vrot.slane %v8547, 7
  %v8719 = vsel %vm2126, %v8718, %v8717
  %v8720 = vrot.slane %v8548, 6
  %v8721 = vsel %vm2129, %v8720, %v8719
  %v8722 = vrot.slane %v8549, 1
  %v8723 = vsel %vm2123, %v8550, %v8722
  %v8724 = vrot.slane %v8551, 7
  %v8725 = vsel %vm2126, %v8724, %v8723
  %v8726 = vrot.slane %v8552, 6
  %v8727 = vsel %vm2129, %v8726, %v8725
  %v8728 = vrot.slane %v8553, 1
  %v8729 = vsel %vm2123, %v8554, %v8728
  %v8730 = vrot.slane %v8555, 7
  %v8731 = vsel %vm2126, %v8730, %v8729
  %v8732 = vrot.slane %v8556, 6
  %v8733 = vsel %vm2129, %v8732, %v8731
  %v8734 = vrot.slane %v8557, 1
  %v8735 = vsel %vm2123, %v8558, %v8734
  %v8736 = vrot.slane %v8559, 7
  %v8737 = vsel %vm2126, %v8736, %v8735
  %v8738 = vrot.slane %v8560, 6
  %v8739 = vsel %vm2129, %v8738, %v8737
  %v8740 = vrot.slane %v8561, 1
  %v8741 = vsel %vm2123, %v8562, %v8740
  %v8742 = vrot.slane %v8563, 7
  %v8743 = vsel %vm2126, %v8742, %v8741
  %v8744 = vrot.slane %v8564, 6
  %v8745 = vsel %vm2129, %v8744, %v8743
  %v8746 = vrot.slane %v8565, 1
  %v8747 = vsel %vm2123, %v8566, %v8746
  %v8748 = vrot.slane %v8567, 7
  %v8749 = vsel %vm2126, %v8748, %v8747
  %v8750 = vrot.slane %v8568, 6
  %v8751 = vsel %vm2129, %v8750, %v8749
  %v8752 = vrot.slane %v8569, 1
  %v8753 = vsel %vm2123, %v8570, %v8752
  %v8754 = vrot.slane %v8571, 7
  %v8755 = vsel %vm2126, %v8754, %v8753
  %v8756 = vrot.slane %v8572, 6
  %v8757 = vsel %vm2129, %v8756, %v8755
  %v8758 = vrot.slane %v8573, 1
  %v8759 = vsel %vm2123, %v8574, %v8758
  %v8760 = vrot.slane %v8575, 7
  %v8761 = vsel %vm2126, %v8760, %v8759
  %v8762 = vrot.slane %v8576, 6
  %v8763 = vsel %vm2129, %v8762, %v8761
  %v8764 = vpack.c.b16 %v8721, %v8721
  %v8765 = vpack.c.b16 %v8727, %v8727
  %v8766 = vpack.c.b16 %v8733, %v8733
  %v8767 = vpack.c.b16 %v8739, %v8739
  %v8768 = vpack.c.b16 %v8745, %v8745
  %v8769 = vpack.c.b16 %v8751, %v8751
  %v8770 = vpack.c.b16 %v8757, %v8757
  %v8771 = vpack.c.b16 %v8763, %v8763
  %v8773 = vshrl.u32 %v8764, 16
  %v8775 = vrot.slane %v8773, 7
  %v8776 = vshll.u32 %v8764, 16
  %v8778 = vor.u32 %v8775, %v8776
  %v8780 = vshrl.u32 %v8765, 16
  %v8782 = vrot.slane %v8780, 7
  %v8783 = vshll.u32 %v8765, 16
  %v8785 = vor.u32 %v8782, %v8783
  %v8787 = vshrl.u32 %v8766, 16
  %v8789 = vrot.slane %v8787, 7
  %v8790 = vshll.u32 %v8766, 16
  %v8792 = vor.u32 %v8789, %v8790
  %v8794 = vshrl.u32 %v8767, 16
  %v8796 = vrot.slane %v8794, 7
  %v8797 = vshll.u32 %v8767, 16
  %v8799 = vor.u32 %v8796, %v8797
  %v8801 = vshrl.u32 %v8768, 16
  %v8803 = vrot.slane %v8801, 7
  %v8804 = vshll.u32 %v8768, 16
  %v8806 = vor.u32 %v8803, %v8804
  %v8808 = vshrl.u32 %v8769, 16
  %v8810 = vrot.slane %v8808, 7
  %v8811 = vshll.u32 %v8769, 16
  %v8813 = vor.u32 %v8810, %v8811
  %v8815 = vshrl.u32 %v8770, 16
  %v8817 = vrot.slane %v8815, 7
  %v8818 = vshll.u32 %v8770, 16
  %v8820 = vor.u32 %v8817, %v8818
  %v8822 = vshrl.u32 %v8771, 16
  %v8824 = vrot.slane %v8822, 7
  %v8825 = vshll.u32 %v8771, 16
  %v8827 = vor.u32 %v8824, %v8825
  %v8836 = vsel %vm2507, 0, %v8778
  %v8837 = vsel %vm2507, 0, %v8785
  %v8838 = vsel %vm2507, 0, %v8792
  %v8839 = vsel %vm2507, 0, %v8799
  %v8840 = vsel %vm2507, 0, %v8806
  %v8841 = vsel %vm2507, 0, %v8813
  %v8842 = vsel %vm2507, 0, %v8820
  %v8843 = vsel %vm2507, 0, %v8827
  %v8844 = vsel %vm8706, %v8836, 0
  %v8845 = vsel %vm8706, %v8837, 0
  %v8846 = vsel %vm8706, %v8838, 0
  %v8847 = vsel %vm8706, %v8839, 0
  %v8848 = vsel %vm8706, %v8840, 0
  %v8849 = vsel %vm8706, %v8841, 0
  %v8850 = vsel %vm8706, %v8842, 0
  %v8851 = vsel %vm8706, %v8843, 0
  %v8852 = vpack.c.bf16 %v8290, %v8290
  %v8853 = vpack.c.bf16 %v8324, %v8324
  %v8854 = vpack.c.bf16 %v8325, %v8325
  %v8855 = vpack.c.bf16 %v8326, %v8326
  %v8856 = vpack.c.bf16 %v8292, %v8292
  %v8857 = vpack.c.bf16 %v8330, %v8330
  %v8858 = vpack.c.bf16 %v8331, %v8331
  %v8859 = vpack.c.bf16 %v8332, %v8332
  %v8860 = vpack.c.bf16 %v8294, %v8294
  %v8861 = vpack.c.bf16 %v8336, %v8336
  %v8862 = vpack.c.bf16 %v8337, %v8337
  %v8863 = vpack.c.bf16 %v8338, %v8338
  %v8864 = vpack.c.bf16 %v8296, %v8296
  %v8865 = vpack.c.bf16 %v8342, %v8342
  %v8866 = vpack.c.bf16 %v8343, %v8343
  %v8867 = vpack.c.bf16 %v8344, %v8344
  %v8868 = vpack.c.bf16 %v8298, %v8298
  %v8869 = vpack.c.bf16 %v8348, %v8348
  %v8870 = vpack.c.bf16 %v8349, %v8349
  %v8871 = vpack.c.bf16 %v8350, %v8350
  %v8872 = vpack.c.bf16 %v8300, %v8300
  %v8873 = vpack.c.bf16 %v8354, %v8354
  %v8874 = vpack.c.bf16 %v8355, %v8355
  %v8875 = vpack.c.bf16 %v8356, %v8356
  %v8876 = vpack.c.bf16 %v8302, %v8302
  %v8877 = vpack.c.bf16 %v8360, %v8360
  %v8878 = vpack.c.bf16 %v8361, %v8361
  %v8879 = vpack.c.bf16 %v8362, %v8362
  %v8880 = vpack.c.bf16 %v8304, %v8304
  %v8881 = vpack.c.bf16 %v8366, %v8366
  %v8882 = vpack.c.bf16 %v8367, %v8367
  %v8883 = vpack.c.bf16 %v8368, %v8368
  %v8916 = vunpack.c.l.b16 %v8852
  %v8917 = vunpack.c.l.b16 %v8853
  %v8918 = vunpack.c.l.b16 %v8854
  %v8919 = vunpack.c.l.b16 %v8855
  %v8920 = vunpack.c.l.b16 %v8856
  %v8921 = vunpack.c.l.b16 %v8857
  %v8922 = vunpack.c.l.b16 %v8858
  %v8923 = vunpack.c.l.b16 %v8859
  %v8924 = vunpack.c.l.b16 %v8860
  %v8925 = vunpack.c.l.b16 %v8861
  %v8926 = vunpack.c.l.b16 %v8862
  %v8927 = vunpack.c.l.b16 %v8863
  %v8928 = vunpack.c.l.b16 %v8864
  %v8929 = vunpack.c.l.b16 %v8865
  %v8930 = vunpack.c.l.b16 %v8866
  %v8931 = vunpack.c.l.b16 %v8867
  %v8932 = vunpack.c.l.b16 %v8868
  %v8933 = vunpack.c.l.b16 %v8869
  %v8934 = vunpack.c.l.b16 %v8870
  %v8935 = vunpack.c.l.b16 %v8871
  %v8936 = vunpack.c.l.b16 %v8872
  %v8937 = vunpack.c.l.b16 %v8873
  %v8938 = vunpack.c.l.b16 %v8874
  %v8939 = vunpack.c.l.b16 %v8875
  %v8940 = vunpack.c.l.b16 %v8876
  %v8941 = vunpack.c.l.b16 %v8877
  %v8942 = vunpack.c.l.b16 %v8878
  %v8943 = vunpack.c.l.b16 %v8879
  %v8944 = vunpack.c.l.b16 %v8880
  %v8945 = vunpack.c.l.b16 %v8881
  %v8946 = vunpack.c.l.b16 %v8882
  %v8947 = vunpack.c.l.b16 %v8883
  %v8948 = vpack.c.b16 %v8916, %v8916
  %v8949 = vpack.c.b16 %v8917, %v8917
  %v8950 = vpack.c.b16 %v8918, %v8918
  %v8951 = vpack.c.b16 %v8919, %v8919
  %v8952 = vpack.c.b16 %v8920, %v8920
  %v8953 = vpack.c.b16 %v8921, %v8921
  %v8954 = vpack.c.b16 %v8922, %v8922
  %v8955 = vpack.c.b16 %v8923, %v8923
  %v8956 = vpack.c.b16 %v8924, %v8924
  %v8957 = vpack.c.b16 %v8925, %v8925
  %v8958 = vpack.c.b16 %v8926, %v8926
  %v8959 = vpack.c.b16 %v8927, %v8927
  %v8960 = vpack.c.b16 %v8928, %v8928
  %v8961 = vpack.c.b16 %v8929, %v8929
  %v8962 = vpack.c.b16 %v8930, %v8930
  %v8963 = vpack.c.b16 %v8931, %v8931
  %v8964 = vpack.c.b16 %v8932, %v8932
  %v8965 = vpack.c.b16 %v8933, %v8933
  %v8966 = vpack.c.b16 %v8934, %v8934
  %v8967 = vpack.c.b16 %v8935, %v8935
  %v8968 = vpack.c.b16 %v8936, %v8936
  %v8969 = vpack.c.b16 %v8937, %v8937
  %v8970 = vpack.c.b16 %v8938, %v8938
  %v8971 = vpack.c.b16 %v8939, %v8939
  %v8972 = vpack.c.b16 %v8940, %v8940
  %v8973 = vpack.c.b16 %v8941, %v8941
  %v8974 = vpack.c.b16 %v8942, %v8942
  %v8975 = vpack.c.b16 %v8943, %v8943
  %v8976 = vpack.c.b16 %v8944, %v8944
  %v8977 = vpack.c.b16 %v8945, %v8945
  %v8978 = vpack.c.b16 %v8946, %v8946
  %v8979 = vpack.c.b16 %v8947, %v8947
  %v8980 = vunpack.c.l.b16 %v8948
  %v8981 = vunpack.c.l.b16 %v8949
  %v8982 = vunpack.c.l.b16 %v8950
  %v8983 = vunpack.c.l.b16 %v8951
  %v8984 = vunpack.c.l.b16 %v8952
  %v8985 = vunpack.c.l.b16 %v8953
  %v8986 = vunpack.c.l.b16 %v8954
  %v8987 = vunpack.c.l.b16 %v8955
  %v8988 = vunpack.c.l.b16 %v8956
  %v8989 = vunpack.c.l.b16 %v8957
  %v8990 = vunpack.c.l.b16 %v8958
  %v8991 = vunpack.c.l.b16 %v8959
  %v8992 = vunpack.c.l.b16 %v8960
  %v8993 = vunpack.c.l.b16 %v8961
  %v8994 = vunpack.c.l.b16 %v8962
  %v8995 = vunpack.c.l.b16 %v8963
  %v8996 = vunpack.c.l.b16 %v8964
  %v8997 = vunpack.c.l.b16 %v8965
  %v8998 = vunpack.c.l.b16 %v8966
  %v8999 = vunpack.c.l.b16 %v8967
  %v9000 = vunpack.c.l.b16 %v8968
  %v9001 = vunpack.c.l.b16 %v8969
  %v9002 = vunpack.c.l.b16 %v8970
  %v9003 = vunpack.c.l.b16 %v8971
  %v9004 = vunpack.c.l.b16 %v8972
  %v9005 = vunpack.c.l.b16 %v8973
  %v9006 = vunpack.c.l.b16 %v8974
  %v9007 = vunpack.c.l.b16 %v8975
  %v9008 = vunpack.c.l.b16 %v8976
  %v9009 = vunpack.c.l.b16 %v8977
  %v9010 = vunpack.c.l.b16 %v8978
  %v9011 = vunpack.c.l.b16 %v8979
  %v9012 = vrot.slane %v8981, 7
  %v9013 = vsel %vm2123, %v9012, %v8980
  %v9014 = vrot.slane %v8982, 6
  %v9015 = vsel %vm2126, %v9014, %v9013
  %v9016 = vrot.slane %v8983, 5
  %v9017 = vsel %vm2129, %v9016, %v9015
  %v9018 = vrot.slane %v8985, 7
  %v9019 = vsel %vm2123, %v9018, %v8984
  %v9020 = vrot.slane %v8986, 6
  %v9021 = vsel %vm2126, %v9020, %v9019
  %v9022 = vrot.slane %v8987, 5
  %v9023 = vsel %vm2129, %v9022, %v9021
  %v9024 = vrot.slane %v8989, 7
  %v9025 = vsel %vm2123, %v9024, %v8988
  %v9026 = vrot.slane %v8990, 6
  %v9027 = vsel %vm2126, %v9026, %v9025
  %v9028 = vrot.slane %v8991, 5
  %v9029 = vsel %vm2129, %v9028, %v9027
  %v9030 = vrot.slane %v8993, 7
  %v9031 = vsel %vm2123, %v9030, %v8992
  %v9032 = vrot.slane %v8994, 6
  %v9033 = vsel %vm2126, %v9032, %v9031
  %v9034 = vrot.slane %v8995, 5
  %v9035 = vsel %vm2129, %v9034, %v9033
  %v9036 = vrot.slane %v8997, 7
  %v9037 = vsel %vm2123, %v9036, %v8996
  %v9038 = vrot.slane %v8998, 6
  %v9039 = vsel %vm2126, %v9038, %v9037
  %v9040 = vrot.slane %v8999, 5
  %v9041 = vsel %vm2129, %v9040, %v9039
  %v9042 = vrot.slane %v9001, 7
  %v9043 = vsel %vm2123, %v9042, %v9000
  %v9044 = vrot.slane %v9002, 6
  %v9045 = vsel %vm2126, %v9044, %v9043
  %v9046 = vrot.slane %v9003, 5
  %v9047 = vsel %vm2129, %v9046, %v9045
  %v9048 = vrot.slane %v9005, 7
  %v9049 = vsel %vm2123, %v9048, %v9004
  %v9050 = vrot.slane %v9006, 6
  %v9051 = vsel %vm2126, %v9050, %v9049
  %v9052 = vrot.slane %v9007, 5
  %v9053 = vsel %vm2129, %v9052, %v9051
  %v9054 = vrot.slane %v9009, 7
  %v9055 = vsel %vm2123, %v9054, %v9008
  %v9056 = vrot.slane %v9010, 6
  %v9057 = vsel %vm2126, %v9056, %v9055
  %v9058 = vrot.slane %v9011, 5
  %v9059 = vsel %vm2129, %v9058, %v9057
  %v9060 = vpack.c.b16 %v9017, %v9017
  %v9061 = vpack.c.b16 %v9023, %v9023
  %v9062 = vpack.c.b16 %v9029, %v9029
  %v9063 = vpack.c.b16 %v9035, %v9035
  %v9064 = vpack.c.b16 %v9041, %v9041
  %v9065 = vpack.c.b16 %v9047, %v9047
  %v9066 = vpack.c.b16 %v9053, %v9053
  %v9067 = vpack.c.b16 %v9059, %v9059
  %v9069 = vshrl.u32 %v9060, 16
  %v9071 = vrot.slane %v9069, 7
  %v9072 = vshll.u32 %v9060, 16
  %v9074 = vor.u32 %v9071, %v9072
  %v9076 = vshrl.u32 %v9061, 16
  %v9078 = vrot.slane %v9076, 7
  %v9079 = vshll.u32 %v9061, 16
  %v9081 = vor.u32 %v9078, %v9079
  %v9083 = vshrl.u32 %v9062, 16
  %v9085 = vrot.slane %v9083, 7
  %v9086 = vshll.u32 %v9062, 16
  %v9088 = vor.u32 %v9085, %v9086
  %v9090 = vshrl.u32 %v9063, 16
  %v9092 = vrot.slane %v9090, 7
  %v9093 = vshll.u32 %v9063, 16
  %v9095 = vor.u32 %v9092, %v9093
  %v9097 = vshrl.u32 %v9064, 16
  %v9099 = vrot.slane %v9097, 7
  %v9100 = vshll.u32 %v9064, 16
  %v9102 = vor.u32 %v9099, %v9100
  %v9104 = vshrl.u32 %v9065, 16
  %v9106 = vrot.slane %v9104, 7
  %v9107 = vshll.u32 %v9065, 16
  %v9109 = vor.u32 %v9106, %v9107
  %v9111 = vshrl.u32 %v9066, 16
  %v9113 = vrot.slane %v9111, 7
  %v9114 = vshll.u32 %v9066, 16
  %v9116 = vor.u32 %v9113, %v9114
  %v9118 = vshrl.u32 %v9067, 16
  %v9120 = vrot.slane %v9118, 7
  %v9121 = vshll.u32 %v9067, 16
  %v9123 = vor.u32 %v9120, %v9121
  %v9132 = vsel %vm2507, 0, %v9074
  %v9133 = vsel %vm2507, 0, %v9081
  %v9134 = vsel %vm2507, 0, %v9088
  %v9135 = vsel %vm2507, 0, %v9095
  %v9136 = vsel %vm2507, 0, %v9102
  %v9137 = vsel %vm2507, 0, %v9109
  %v9138 = vsel %vm2507, 0, %v9116
  %v9139 = vsel %vm2507, 0, %v9123
  %v9140 = vsel %vm8706, %v9132, 0
  %v9141 = vsel %vm8706, %v9133, 0
  %v9142 = vsel %vm8706, %v9134, 0
  %v9143 = vsel %vm8706, %v9135, 0
  %v9144 = vsel %vm8706, %v9136, 0
  %v9145 = vsel %vm8706, %v9137, 0
  %v9146 = vsel %vm8706, %v9138, 0
  %v9147 = vsel %vm8706, %v9139, 0
  %v9148 = vrot.slane %v8980, 1
  %v9149 = vsel %vm2123, %v8981, %v9148
  %v9150 = vrot.slane %v8982, 7
  %v9151 = vsel %vm2126, %v9150, %v9149
  %v9152 = vrot.slane %v8983, 6
  %v9153 = vsel %vm2129, %v9152, %v9151
  %v9154 = vrot.slane %v8984, 1
  %v9155 = vsel %vm2123, %v8985, %v9154
  %v9156 = vrot.slane %v8986, 7
  %v9157 = vsel %vm2126, %v9156, %v9155
  %v9158 = vrot.slane %v8987, 6
  %v9159 = vsel %vm2129, %v9158, %v9157
  %v9160 = vrot.slane %v8988, 1
  %v9161 = vsel %vm2123, %v8989, %v9160
  %v9162 = vrot.slane %v8990, 7
  %v9163 = vsel %vm2126, %v9162, %v9161
  %v9164 = vrot.slane %v8991, 6
  %v9165 = vsel %vm2129, %v9164, %v9163
  %v9166 = vrot.slane %v8992, 1
  %v9167 = vsel %vm2123, %v8993, %v9166
  %v9168 = vrot.slane %v8994, 7
  %v9169 = vsel %vm2126, %v9168, %v9167
  %v9170 = vrot.slane %v8995, 6
  %v9171 = vsel %vm2129, %v9170, %v9169
  %v9172 = vrot.slane %v8996, 1
  %v9173 = vsel %vm2123, %v8997, %v9172
  %v9174 = vrot.slane %v8998, 7
  %v9175 = vsel %vm2126, %v9174, %v9173
  %v9176 = vrot.slane %v8999, 6
  %v9177 = vsel %vm2129, %v9176, %v9175
  %v9178 = vrot.slane %v9000, 1
  %v9179 = vsel %vm2123, %v9001, %v9178
  %v9180 = vrot.slane %v9002, 7
  %v9181 = vsel %vm2126, %v9180, %v9179
  %v9182 = vrot.slane %v9003, 6
  %v9183 = vsel %vm2129, %v9182, %v9181
  %v9184 = vrot.slane %v9004, 1
  %v9185 = vsel %vm2123, %v9005, %v9184
  %v9186 = vrot.slane %v9006, 7
  %v9187 = vsel %vm2126, %v9186, %v9185
  %v9188 = vrot.slane %v9007, 6
  %v9189 = vsel %vm2129, %v9188, %v9187
  %v9190 = vrot.slane %v9008, 1
  %v9191 = vsel %vm2123, %v9009, %v9190
  %v9192 = vrot.slane %v9010, 7
  %v9193 = vsel %vm2126, %v9192, %v9191
  %v9194 = vrot.slane %v9011, 6
  %v9195 = vsel %vm2129, %v9194, %v9193
  %v9196 = vpack.c.b16 %v9153, %v9153
  %v9197 = vpack.c.b16 %v9159, %v9159
  %v9198 = vpack.c.b16 %v9165, %v9165
  %v9199 = vpack.c.b16 %v9171, %v9171
  %v9200 = vpack.c.b16 %v9177, %v9177
  %v9201 = vpack.c.b16 %v9183, %v9183
  %v9202 = vpack.c.b16 %v9189, %v9189
  %v9203 = vpack.c.b16 %v9195, %v9195
  %v9205 = vshrl.u32 %v9196, 16
  %v9207 = vrot.slane %v9205, 7
  %v9208 = vshll.u32 %v9196, 16
  %v9210 = vor.u32 %v9207, %v9208
  %v9212 = vshrl.u32 %v9197, 16
  %v9214 = vrot.slane %v9212, 7
  %v9215 = vshll.u32 %v9197, 16
  %v9217 = vor.u32 %v9214, %v9215
  %v9219 = vshrl.u32 %v9198, 16
  %v9221 = vrot.slane %v9219, 7
  %v9222 = vshll.u32 %v9198, 16
  %v9224 = vor.u32 %v9221, %v9222
  %v9226 = vshrl.u32 %v9199, 16
  %v9228 = vrot.slane %v9226, 7
  %v9229 = vshll.u32 %v9199, 16
  %v9231 = vor.u32 %v9228, %v9229
  %v9233 = vshrl.u32 %v9200, 16
  %v9235 = vrot.slane %v9233, 7
  %v9236 = vshll.u32 %v9200, 16
  %v9238 = vor.u32 %v9235, %v9236
  %v9240 = vshrl.u32 %v9201, 16
  %v9242 = vrot.slane %v9240, 7
  %v9243 = vshll.u32 %v9201, 16
  %v9245 = vor.u32 %v9242, %v9243
  %v9247 = vshrl.u32 %v9202, 16
  %v9249 = vrot.slane %v9247, 7
  %v9250 = vshll.u32 %v9202, 16
  %v9252 = vor.u32 %v9249, %v9250
  %v9254 = vshrl.u32 %v9203, 16
  %v9256 = vrot.slane %v9254, 7
  %v9257 = vshll.u32 %v9203, 16
  %v9259 = vor.u32 %v9256, %v9257
  %v9268 = vsel %vm2507, 0, %v9210
  %v9269 = vsel %vm2507, 0, %v9217
  %v9270 = vsel %vm2507, 0, %v9224
  %v9271 = vsel %vm2507, 0, %v9231
  %v9272 = vsel %vm2507, 0, %v9238
  %v9273 = vsel %vm2507, 0, %v9245
  %v9274 = vsel %vm2507, 0, %v9252
  %v9275 = vsel %vm2507, 0, %v9259
  %v9276 = vsel %vm8706, %v9268, 0
  %v9277 = vsel %vm8706, %v9269, 0
  %v9278 = vsel %vm8706, %v9270, 0
  %v9279 = vsel %vm8706, %v9271, 0
  %v9280 = vsel %vm8706, %v9272, 0
  %v9281 = vsel %vm8706, %v9273, 0
  %v9282 = vsel %vm8706, %v9274, 0
  %v9283 = vsel %vm8706, %v9275, 0
  %v9284 = vld [vmem:[%s7] sm:$0xff]
  %v9285 = vld [vmem:[%s7 + $0x8] sm:$0xff]
  %v9286 = vld [vmem:[%s7 + $0x10] sm:$0xff]
  %v9287 = vld [vmem:[%s7 + $0x18] sm:$0xff]
  %v9288 = vld [vmem:[%s7 + $0x20] sm:$0xff]
  %v9289 = vld [vmem:[%s7 + $0x28] sm:$0xff]
  %v9290 = vld [vmem:[%s7 + $0x30] sm:$0xff]
  %v9291 = vld [vmem:[%s7 + $0x38] sm:$0xff]
  %v9292 = vld [vmem:[%s7 + $0x40] sm:$0xff]
  %v9293 = vld [vmem:[%s7 + $0x48] sm:$0xff]
  %v9294 = vld [vmem:[%s7 + $0x50] sm:$0xff]
  %v9295 = vld [vmem:[%s7 + $0x58] sm:$0xff]
  %v9296 = vld [vmem:[%s7 + $0x60] sm:$0xff]
  %v9297 = vld [vmem:[%s7 + $0x68] sm:$0xff]
  %v9298 = vld [vmem:[%s7 + $0x70] sm:$0xff]
  %v9299 = vld [vmem:[%s7 + $0x78] sm:$0xff]
  %v9307 = vrot.slane %v8711, 2
  %v9308 = vrot.slane %v9140, 2
  %v9309 = vrot.slane %v9141, 2
  %v9310 = vrot.slane %v9142, 2
  %v9311 = vrot.slane %v9144, 2
  %v9312 = vrot.slane %v9145, 2
  %v9313 = vrot.slane %v9146, 2
  %vm9314 = vsmask.f32 1280
  %vm9315 = vsmask.f32 3336
  %vm9316 = vmor %vm9314, %vm9315
  %vm9317 = vsmask.f32 5392
  %vm9318 = vmor %vm9316, %vm9317
  %vm9319 = vsmask.f32 7448
  %vm9320 = vmor %vm9318, %vm9319
  %v9322 = vshrl.u32 %v8711, 16
  %v9324 = vrot.slane %v9322, 6
  %v9325 = vshll.u32 %v8711, 16
  %v9327 = vrot.slane %v9325, 7
  %v9328 = vor.u32 %v9324, %v9327
  %v9329 = vrot.slane %v9328, 2
  %v9331 = vshll.u32 %v9307, 16
  %v9333 = vrot.slane %v9331, 7
  %v9334 = vsel %vm9320, %v9329, %v9333
  %v9336 = vshrl.u32 %v9140, 16
  %v9338 = vrot.slane %v9336, 6
  %v9339 = vshll.u32 %v9140, 16
  %v9341 = vrot.slane %v9339, 7
  %v9342 = vor.u32 %v9338, %v9341
  %v9343 = vrot.slane %v9342, 2
  %v9345 = vshll.u32 %v9308, 16
  %v9347 = vrot.slane %v9345, 7
  %v9348 = vsel %vm9320, %v9343, %v9347
  %v9350 = vshrl.u32 %v9141, 16
  %v9352 = vrot.slane %v9350, 6
  %v9353 = vshll.u32 %v9141, 16
  %v9355 = vrot.slane %v9353, 7
  %v9356 = vor.u32 %v9352, %v9355
  %v9357 = vrot.slane %v9356, 2
  %v9359 = vshll.u32 %v9309, 16
  %v9361 = vrot.slane %v9359, 7
  %v9362 = vsel %vm9320, %v9357, %v9361
  %v9364 = vshrl.u32 %v9142, 16
  %v9366 = vrot.slane %v9364, 6
  %v9367 = vshll.u32 %v9142, 16
  %v9369 = vrot.slane %v9367, 7
  %v9370 = vor.u32 %v9366, %v9369
  %v9371 = vrot.slane %v9370, 2
  %v9373 = vshll.u32 %v9310, 16
  %v9375 = vrot.slane %v9373, 7
  %v9376 = vsel %vm9320, %v9371, %v9375
  %v9378 = vshrl.u32 %v9144, 16
  %v9380 = vrot.slane %v9378, 6
  %v9381 = vshll.u32 %v9144, 16
  %v9383 = vrot.slane %v9381, 7
  %v9384 = vor.u32 %v9380, %v9383
  %v9385 = vrot.slane %v9384, 2
  %v9387 = vshll.u32 %v9311, 16
  %v9389 = vrot.slane %v9387, 7
  %v9390 = vsel %vm9320, %v9385, %v9389
  %v9392 = vshrl.u32 %v9145, 16
  %v9394 = vrot.slane %v9392, 6
  %v9395 = vshll.u32 %v9145, 16
  %v9397 = vrot.slane %v9395, 7
  %v9398 = vor.u32 %v9394, %v9397
  %v9399 = vrot.slane %v9398, 2
  %v9401 = vshll.u32 %v9312, 16
  %v9403 = vrot.slane %v9401, 7
  %v9404 = vsel %vm9320, %v9399, %v9403
  %v9406 = vshrl.u32 %v9146, 16
  %v9408 = vrot.slane %v9406, 6
  %v9409 = vshll.u32 %v9146, 16
  %v9411 = vrot.slane %v9409, 7
  %v9412 = vor.u32 %v9408, %v9411
  %v9413 = vrot.slane %v9412, 2
  %v9415 = vshll.u32 %v9313, 16
  %v9417 = vrot.slane %v9415, 7
  %v9418 = vsel %vm9320, %v9413, %v9417
  %s9419 = scalar_lea.vmem %s7, 128
  %v9420 = vld [vmem:[%s9419] sm:$0xff]
  %v9421 = vld [vmem:[%s9419 + $0x8] sm:$0xff]
  %v9422 = vld [vmem:[%s9419 + $0x10] sm:$0xff]
  %v9423 = vld [vmem:[%s9419 + $0x18] sm:$0xff]
  %v9424 = vld [vmem:[%s9419 + $0x20] sm:$0xff]
  %v9425 = vld [vmem:[%s9419 + $0x28] sm:$0xff]
  %v9426 = vld [vmem:[%s9419 + $0x30] sm:$0xff]
  %v9427 = vld [vmem:[%s9419 + $0x38] sm:$0xff]
  %v9428 = vld [vmem:[%s9419 + $0x40] sm:$0xff]
  %v9429 = vld [vmem:[%s9419 + $0x48] sm:$0xff]
  %v9430 = vld [vmem:[%s9419 + $0x50] sm:$0xff]
  %v9431 = vld [vmem:[%s9419 + $0x58] sm:$0xff]
  %v9432 = vld [vmem:[%s9419 + $0x60] sm:$0xff]
  %v9433 = vld [vmem:[%s9419 + $0x68] sm:$0xff]
  %v9434 = vld [vmem:[%s9419 + $0x70] sm:$0xff]
  %v9435 = vld [vmem:[%s9419 + $0x78] sm:$0xff]
  %9437 = vst [vmem:[#allocation1] ss:$4 sm:$0xff] %v9334
  %s9439 = scalar_lea.vmem [#allocation1], 1
  %9440 = vst [vmem:[%s9439] ss:$4 sm:$0xff] %v9348
  %s9442 = scalar_lea.vmem [#allocation1], 2
  %9443 = vst [vmem:[%s9442] ss:$4 sm:$0xff] %v9362
  %s9445 = scalar_lea.vmem [#allocation1], 3
  %9446 = vst [vmem:[%s9445] ss:$4 sm:$0xff] %v9376
  %s9447 = scalar_lea.vmem [#allocation1], 32
  %9448 = vst [vmem:[%s9447] ss:$4 sm:$0xff] %v9334
  %s9450 = scalar_lea.vmem [#allocation1], 33
  %9451 = vst [vmem:[%s9450] ss:$4 sm:$0xff] %v9390
  %s9453 = scalar_lea.vmem [#allocation1], 34
  %9454 = vst [vmem:[%s9453] ss:$4 sm:$0xff] %v9404
  %s9456 = scalar_lea.vmem [#allocation1], 35
  %9457 = vst [vmem:[%s9456] ss:$4 sm:$0xff] %v9418
  %v9458 = vld.sshfl [vmem:[#allocation1] sm:$0xff pattern:$0x73625140]
  %v9459 = vld.sshfl [vmem:[#allocation1 + $0x20] sm:$0xff pattern:$0x73625140]
  %v9478 = vunpack.c.l.b16 %v9420
  %v9479 = vunpack.c.h.b16 %v9420
  %v9480 = vunpack.c.l.b16 %v9421
  %v9481 = vunpack.c.h.b16 %v9421
  %v9482 = vunpack.c.l.b16 %v9422
  %v9483 = vunpack.c.h.b16 %v9422
  %v9484 = vunpack.c.l.b16 %v9423
  %v9485 = vunpack.c.h.b16 %v9423
  %v9486 = vunpack.c.l.b16 %v9424
  %v9487 = vunpack.c.h.b16 %v9424
  %v9488 = vunpack.c.l.b16 %v9425
  %v9489 = vunpack.c.h.b16 %v9425
  %v9490 = vunpack.c.l.b16 %v9426
  %v9491 = vunpack.c.h.b16 %v9426
  %v9492 = vunpack.c.l.b16 %v9427
  %v9493 = vunpack.c.h.b16 %v9427
  %v9494 = vunpack.c.l.b16 %v9428
  %v9495 = vunpack.c.h.b16 %v9428
  %v9496 = vunpack.c.l.b16 %v9429
  %v9497 = vunpack.c.h.b16 %v9429
  %v9498 = vunpack.c.l.b16 %v9430
  %v9499 = vunpack.c.h.b16 %v9430
  %v9500 = vunpack.c.l.b16 %v9431
  %v9501 = vunpack.c.h.b16 %v9431
  %v9502 = vunpack.c.l.b16 %v9432
  %v9503 = vunpack.c.h.b16 %v9432
  %v9504 = vunpack.c.l.b16 %v9433
  %v9505 = vunpack.c.h.b16 %v9433
  %v9506 = vunpack.c.l.b16 %v9434
  %v9507 = vunpack.c.h.b16 %v9434
  %v9508 = vunpack.c.l.b16 %v9435
  %v9509 = vunpack.c.h.b16 %v9435
  %v9510 = vpack.c.b16 %v9480, %v9478
  %v9511 = vpack.c.b16 %v9481, %v9479
  %v9512 = vpack.c.b16 %v9484, %v9482
  %v9513 = vpack.c.b16 %v9485, %v9483
  %v9514 = vpack.c.b16 %v9488, %v9486
  %v9515 = vpack.c.b16 %v9489, %v9487
  %v9516 = vpack.c.b16 %v9492, %v9490
  %v9517 = vpack.c.b16 %v9493, %v9491
  %v9518 = vpack.c.b16 %v9496, %v9494
  %v9519 = vpack.c.b16 %v9497, %v9495
  %v9520 = vpack.c.b16 %v9500, %v9498
  %v9521 = vpack.c.b16 %v9501, %v9499
  %v9522 = vpack.c.b16 %v9504, %v9502
  %v9523 = vpack.c.b16 %v9505, %v9503
  %v9524 = vpack.c.b16 %v9508, %v9506
  %v9525 = vpack.c.b16 %v9509, %v9507
  %9542 = vmatpush.bf16.msra.mxu0 %v9524
  %9543 = vmatpush.bf16.msra.mxu0 %v9522
  %9544 = vmatpush.bf16.msra.mxu0 %v9520
  %9545 = vmatpush.bf16.msra.mxu0 %v9518
  %9546 = vmatpush.bf16.msra.mxu0 %v9516
  %9547 = vmatpush.bf16.msra.mxu0 %v9514
  %9548 = vmatpush.bf16.msra.mxu0 %v9512
  %9549 = vmatpush.bf16.msra.mxu0 %v9510
  %9550 = vmatmul.bf16.gmra.mxu0 %v9458
  %v9551 = vpop.f32.mrf.mxu0
  %v9552 = vadd.f32 0.0, %v9551
  %v9553 = vpop.f32.mrf.mxu0
  %v9554 = vadd.f32 0.0, %v9553
  %9555 = vmatmul.bf16.gmra.mxu0 %v9459
  %v9556 = vpop.f32.mrf.mxu0
  %v9557 = vadd.f32 0.0, %v9556
  %v9558 = vpop.f32.mrf.mxu0
  %v9559 = vadd.f32 0.0, %v9558
  %9560 = vdwg.mxu0
  %9561 = vmatpush.bf16.msra.mxu0 %v9525
  %9562 = vmatpush.bf16.msra.mxu0 %v9523
  %9563 = vmatpush.bf16.msra.mxu0 %v9521
  %9564 = vmatpush.bf16.msra.mxu0 %v9519
  %9565 = vmatpush.bf16.msra.mxu0 %v9517
  %9566 = vmatpush.bf16.msra.mxu0 %v9515
  %9567 = vmatpush.bf16.msra.mxu0 %v9513
  %9568 = vmatpush.bf16.msra.mxu0 %v9511
  %9569 = vmatmul.bf16.gmra.mxu0 %v9458
  %v9570 = vpop.f32.mrf.mxu0
  %v9571 = vadd.f32 0.0, %v9570
  %v9572 = vpop.f32.mrf.mxu0
  %v9573 = vadd.f32 0.0, %v9572
  %9574 = vmatmul.bf16.gmra.mxu0 %v9459
  %v9575 = vpop.f32.mrf.mxu0
  %v9576 = vadd.f32 0.0, %v9575
  %v9577 = vpop.f32.mrf.mxu0
  %v9578 = vadd.f32 0.0, %v9577
  %9579 = vdwg.mxu0
  %9580 = vst [vmem:[#allocation1] ss:$4 sm:$0xff] %v8711
  %s9582 = scalar_lea.vmem [#allocation1], 1
  %9583 = vst [vmem:[%s9582] ss:$4 sm:$0xff] %v9276
  %s9585 = scalar_lea.vmem [#allocation1], 2
  %9586 = vst [vmem:[%s9585] ss:$4 sm:$0xff] %v9277
  %s9588 = scalar_lea.vmem [#allocation1], 3
  %9589 = vst [vmem:[%s9588] ss:$4 sm:$0xff] %v9278
  %s9590 = scalar_lea.vmem [#allocation1], 32
  %9591 = vst [vmem:[%s9590] ss:$4 sm:$0xff] %v8711
  %s9593 = scalar_lea.vmem [#allocation1], 33
  %9594 = vst [vmem:[%s9593] ss:$4 sm:$0xff] %v9280
  %s9596 = scalar_lea.vmem [#allocation1], 34
  %9597 = vst [vmem:[%s9596] ss:$4 sm:$0xff] %v9281
  %s9599 = scalar_lea.vmem [#allocation1], 35
  %9600 = vst [vmem:[%s9599] ss:$4 sm:$0xff] %v9282
  %v9601 = vld.sshfl [vmem:[#allocation1] sm:$0xff pattern:$0x73625140]
  %v9602 = vld.sshfl [vmem:[#allocation1 + $0x20] sm:$0xff pattern:$0x73625140]
  %v9621 = vunpack.c.l.b16 %v9284
  %v9622 = vunpack.c.h.b16 %v9284
  %v9623 = vunpack.c.l.b16 %v9285
  %v9624 = vunpack.c.h.b16 %v9285
  %v9625 = vunpack.c.l.b16 %v9286
  %v9626 = vunpack.c.h.b16 %v9286
  %v9627 = vunpack.c.l.b16 %v9287
  %v9628 = vunpack.c.h.b16 %v9287
  %v9629 = vunpack.c.l.b16 %v9288
  %v9630 = vunpack.c.h.b16 %v9288
  %v9631 = vunpack.c.l.b16 %v9289
  %v9632 = vunpack.c.h.b16 %v9289
  %v9633 = vunpack.c.l.b16 %v9290
  %v9634 = vunpack.c.h.b16 %v9290
  %v9635 = vunpack.c.l.b16 %v9291
  %v9636 = vunpack.c.h.b16 %v9291
  %v9637 = vunpack.c.l.b16 %v9292
  %v9638 = vunpack.c.h.b16 %v9292
  %v9639 = vunpack.c.l.b16 %v9293
  %v9640 = vunpack.c.h.b16 %v9293
  %v9641 = vunpack.c.l.b16 %v9294
  %v9642 = vunpack.c.h.b16 %v9294
  %v9643 = vunpack.c.l.b16 %v9295
  %v9644 = vunpack.c.h.b16 %v9295
  %v9645 = vunpack.c.l.b16 %v9296
  %v9646 = vunpack.c.h.b16 %v9296
  %v9647 = vunpack.c.l.b16 %v9297
  %v9648 = vunpack.c.h.b16 %v9297
  %v9649 = vunpack.c.l.b16 %v9298
  %v9650 = vunpack.c.h.b16 %v9298
  %v9651 = vunpack.c.l.b16 %v9299
  %v9652 = vunpack.c.h.b16 %v9299
  %v9653 = vpack.c.b16 %v9623, %v9621
  %v9654 = vpack.c.b16 %v9624, %v9622
  %v9655 = vpack.c.b16 %v9627, %v9625
  %v9656 = vpack.c.b16 %v9628, %v9626
  %v9657 = vpack.c.b16 %v9631, %v9629
  %v9658 = vpack.c.b16 %v9632, %v9630
  %v9659 = vpack.c.b16 %v9635, %v9633
  %v9660 = vpack.c.b16 %v9636, %v9634
  %v9661 = vpack.c.b16 %v9639, %v9637
  %v9662 = vpack.c.b16 %v9640, %v9638
  %v9663 = vpack.c.b16 %v9643, %v9641
  %v9664 = vpack.c.b16 %v9644, %v9642
  %v9665 = vpack.c.b16 %v9647, %v9645
  %v9666 = vpack.c.b16 %v9648, %v9646
  %v9667 = vpack.c.b16 %v9651, %v9649
  %v9668 = vpack.c.b16 %v9652, %v9650
  %9685 = vmatpush.bf16.msra.mxu0 %v9667
  %9686 = vmatpush.bf16.msra.mxu0 %v9665
  %9687 = vmatpush.bf16.msra.mxu0 %v9663
  %9688 = vmatpush.bf16.msra.mxu0 %v9661
  %9689 = vmatpush.bf16.msra.mxu0 %v9659
  %9690 = vmatpush.bf16.msra.mxu0 %v9657
  %9691 = vmatpush.bf16.msra.mxu0 %v9655
  %9692 = vmatpush.bf16.msra.mxu0 %v9653
  %9693 = vmatmul.bf16.gmra.mxu0 %v9601
  %v9694 = vpop.f32.mrf.mxu0
  %v9695 = vadd.f32 %v9552, %v9694
  %v9696 = vpop.f32.mrf.mxu0
  %v9697 = vadd.f32 %v9554, %v9696
  %9698 = vmatmul.bf16.gmra.mxu0 %v9602
  %v9699 = vpop.f32.mrf.mxu0
  %v9700 = vadd.f32 %v9557, %v9699
  %v9701 = vpop.f32.mrf.mxu0
  %v9702 = vadd.f32 %v9559, %v9701
  %9703 = vdwg.mxu0
  %9704 = vmatpush.bf16.msra.mxu0 %v9668
  %9705 = vmatpush.bf16.msra.mxu0 %v9666
  %9706 = vmatpush.bf16.msra.mxu0 %v9664
  %9707 = vmatpush.bf16.msra.mxu0 %v9662
  %9708 = vmatpush.bf16.msra.mxu0 %v9660
  %9709 = vmatpush.bf16.msra.mxu0 %v9658
  %9710 = vmatpush.bf16.msra.mxu0 %v9656
  %9711 = vmatpush.bf16.msra.mxu0 %v9654
  %9712 = vmatmul.bf16.gmra.mxu0 %v9601
  %v9713 = vpop.f32.mrf.mxu0
  %v9714 = vadd.f32 %v9571, %v9713
  %v9715 = vpop.f32.mrf.mxu0
  %v9716 = vadd.f32 %v9573, %v9715
  %9717 = vmatmul.bf16.gmra.mxu0 %v9602
  %v9718 = vpop.f32.mrf.mxu0
  %v9719 = vadd.f32 %v9576, %v9718
  %v9720 = vpop.f32.mrf.mxu0
  %v9721 = vadd.f32 %v9578, %v9720
  %9722 = vdwg.mxu0
  %v9729 = vrot.slane %v9276, 2
  %v9730 = vrot.slane %v9277, 2
  %v9731 = vrot.slane %v9278, 2
  %v9732 = vrot.slane %v9280, 2
  %v9733 = vrot.slane %v9281, 2
  %v9734 = vrot.slane %v9282, 2
  %v9735 = vshrl.u32 %v9276, 16
  %v9737 = vrot.slane %v9735, 6
  %v9738 = vshll.u32 %v9276, 16
  %v9740 = vrot.slane %v9738, 7
  %v9741 = vor.u32 %v9737, %v9740
  %v9742 = vrot.slane %v9741, 2
  %v9744 = vshll.u32 %v9729, 16
  %v9746 = vrot.slane %v9744, 7
  %v9747 = vsel %vm9320, %v9742, %v9746
  %v9748 = vshrl.u32 %v9277, 16
  %v9750 = vrot.slane %v9748, 6
  %v9751 = vshll.u32 %v9277, 16
  %v9753 = vrot.slane %v9751, 7
  %v9754 = vor.u32 %v9750, %v9753
  %v9755 = vrot.slane %v9754, 2
  %v9757 = vshll.u32 %v9730, 16
  %v9759 = vrot.slane %v9757, 7
  %v9760 = vsel %vm9320, %v9755, %v9759
  %v9761 = vshrl.u32 %v9278, 16
  %v9763 = vrot.slane %v9761, 6
  %v9764 = vshll.u32 %v9278, 16
  %v9766 = vrot.slane %v9764, 7
  %v9767 = vor.u32 %v9763, %v9766
  %v9768 = vrot.slane %v9767, 2
  %v9770 = vshll.u32 %v9731, 16
  %v9772 = vrot.slane %v9770, 7
  %v9773 = vsel %vm9320, %v9768, %v9772
  %v9774 = vshrl.u32 %v9280, 16
  %v9776 = vrot.slane %v9774, 6
  %v9777 = vshll.u32 %v9280, 16
  %v9779 = vrot.slane %v9777, 7
  %v9780 = vor.u32 %v9776, %v9779
  %v9781 = vrot.slane %v9780, 2
  %v9783 = vshll.u32 %v9732, 16
  %v9785 = vrot.slane %v9783, 7
  %v9786 = vsel %vm9320, %v9781, %v9785
  %v9787 = vshrl.u32 %v9281, 16
  %v9789 = vrot.slane %v9787, 6
  %v9790 = vshll.u32 %v9281, 16
  %v9792 = vrot.slane %v9790, 7
  %v9793 = vor.u32 %v9789, %v9792
  %v9794 = vrot.slane %v9793, 2
  %v9796 = vshll.u32 %v9733, 16
  %v9798 = vrot.slane %v9796, 7
  %v9799 = vsel %vm9320, %v9794, %v9798
  %v9800 = vshrl.u32 %v9282, 16
  %v9802 = vrot.slane %v9800, 6
  %v9803 = vshll.u32 %v9282, 16
  %v9805 = vrot.slane %v9803, 7
  %v9806 = vor.u32 %v9802, %v9805
  %v9807 = vrot.slane %v9806, 2
  %v9809 = vshll.u32 %v9734, 16
  %v9811 = vrot.slane %v9809, 7
  %v9812 = vsel %vm9320, %v9807, %v9811
  %s9813 = scalar_lea.vmem %s7, 256
  %v9814 = vld [vmem:[%s9813] sm:$0xff]
  %v9815 = vld [vmem:[%s9813 + $0x8] sm:$0xff]
  %v9816 = vld [vmem:[%s9813 + $0x10] sm:$0xff]
  %v9817 = vld [vmem:[%s9813 + $0x18] sm:$0xff]
  %v9818 = vld [vmem:[%s9813 + $0x20] sm:$0xff]
  %v9819 = vld [vmem:[%s9813 + $0x28] sm:$0xff]
  %v9820 = vld [vmem:[%s9813 + $0x30] sm:$0xff]
  %v9821 = vld [vmem:[%s9813 + $0x38] sm:$0xff]
  %v9822 = vld [vmem:[%s9813 + $0x40] sm:$0xff]
  %v9823 = vld [vmem:[%s9813 + $0x48] sm:$0xff]
  %v9824 = vld [vmem:[%s9813 + $0x50] sm:$0xff]
  %v9825 = vld [vmem:[%s9813 + $0x58] sm:$0xff]
  %v9826 = vld [vmem:[%s9813 + $0x60] sm:$0xff]
  %v9827 = vld [vmem:[%s9813 + $0x68] sm:$0xff]
  %v9828 = vld [vmem:[%s9813 + $0x70] sm:$0xff]
  %v9829 = vld [vmem:[%s9813 + $0x78] sm:$0xff]
  %9830 = vst [vmem:[#allocation1] ss:$4 sm:$0xff] %v9334
  %s9832 = scalar_lea.vmem [#allocation1], 1
  %9833 = vst [vmem:[%s9832] ss:$4 sm:$0xff] %v9747
  %s9835 = scalar_lea.vmem [#allocation1], 2
  %9836 = vst [vmem:[%s9835] ss:$4 sm:$0xff] %v9760
  %s9838 = scalar_lea.vmem [#allocation1], 3
  %9839 = vst [vmem:[%s9838] ss:$4 sm:$0xff] %v9773
  %s9840 = scalar_lea.vmem [#allocation1], 32
  %9841 = vst [vmem:[%s9840] ss:$4 sm:$0xff] %v9334
  %s9843 = scalar_lea.vmem [#allocation1], 33
  %9844 = vst [vmem:[%s9843] ss:$4 sm:$0xff] %v9786
  %s9846 = scalar_lea.vmem [#allocation1], 34
  %9847 = vst [vmem:[%s9846] ss:$4 sm:$0xff] %v9799
  %s9849 = scalar_lea.vmem [#allocation1], 35
  %9850 = vst [vmem:[%s9849] ss:$4 sm:$0xff] %v9812
  %v9851 = vld.sshfl [vmem:[#allocation1] sm:$0xff pattern:$0x73625140]
  %v9852 = vld.sshfl [vmem:[#allocation1 + $0x20] sm:$0xff pattern:$0x73625140]
  %v9871 = vunpack.c.l.b16 %v9814
  %v9872 = vunpack.c.h.b16 %v9814
  %v9873 = vunpack.c.l.b16 %v9815
  %v9874 = vunpack.c.h.b16 %v9815
  %v9875 = vunpack.c.l.b16 %v9816
  %v9876 = vunpack.c.h.b16 %v9816
  %v9877 = vunpack.c.l.b16 %v9817
  %v9878 = vunpack.c.h.b16 %v9817
  %v9879 = vunpack.c.l.b16 %v9818
  %v9880 = vunpack.c.h.b16 %v9818
  %v9881 = vunpack.c.l.b16 %v9819
  %v9882 = vunpack.c.h.b16 %v9819
  %v9883 = vunpack.c.l.b16 %v9820
  %v9884 = vunpack.c.h.b16 %v9820
  %v9885 = vunpack.c.l.b16 %v9821
  %v9886 = vunpack.c.h.b16 %v9821
  %v9887 = vunpack.c.l.b16 %v9822
  %v9888 = vunpack.c.h.b16 %v9822
  %v9889 = vunpack.c.l.b16 %v9823
  %v9890 = vunpack.c.h.b16 %v9823
  %v9891 = vunpack.c.l.b16 %v9824
  %v9892 = vunpack.c.h.b16 %v9824
  %v9893 = vunpack.c.l.b16 %v9825
  %v9894 = vunpack.c.h.b16 %v9825
  %v9895 = vunpack.c.l.b16 %v9826
  %v9896 = vunpack.c.h.b16 %v9826
  %v9897 = vunpack.c.l.b16 %v9827
  %v9898 = vunpack.c.h.b16 %v9827
  %v9899 = vunpack.c.l.b16 %v9828
  %v9900 = vunpack.c.h.b16 %v9828
  %v9901 = vunpack.c.l.b16 %v9829
  %v9902 = vunpack.c.h.b16 %v9829
  %v9903 = vpack.c.b16 %v9873, %v9871
  %v9904 = vpack.c.b16 %v9874, %v9872
  %v9905 = vpack.c.b16 %v9877, %v9875
  %v9906 = vpack.c.b16 %v9878, %v9876
  %v9907 = vpack.c.b16 %v9881, %v9879
  %v9908 = vpack.c.b16 %v9882, %v9880
  %v9909 = vpack.c.b16 %v9885, %v9883
  %v9910 = vpack.c.b16 %v9886, %v9884
  %v9911 = vpack.c.b16 %v9889, %v9887
  %v9912 = vpack.c.b16 %v9890, %v9888
  %v9913 = vpack.c.b16 %v9893, %v9891
  %v9914 = vpack.c.b16 %v9894, %v9892
  %v9915 = vpack.c.b16 %v9897, %v9895
  %v9916 = vpack.c.b16 %v9898, %v9896
  %v9917 = vpack.c.b16 %v9901, %v9899
  %v9918 = vpack.c.b16 %v9902, %v9900
  %9935 = vmatpush.bf16.msra.mxu0 %v9917
  %9936 = vmatpush.bf16.msra.mxu0 %v9915
  %9937 = vmatpush.bf16.msra.mxu0 %v9913
  %9938 = vmatpush.bf16.msra.mxu0 %v9911
  %9939 = vmatpush.bf16.msra.mxu0 %v9909
  %9940 = vmatpush.bf16.msra.mxu0 %v9907
  %9941 = vmatpush.bf16.msra.mxu0 %v9905
  %9942 = vmatpush.bf16.msra.mxu0 %v9903
  %9943 = vmatmul.bf16.gmra.mxu0 %v9851
  %v9944 = vpop.f32.mrf.mxu0
  %v9945 = vadd.f32 0.0, %v9944
  %v9946 = vpop.f32.mrf.mxu0
  %v9947 = vadd.f32 0.0, %v9946
  %9948 = vmatmul.bf16.gmra.mxu0 %v9852
  %v9949 = vpop.f32.mrf.mxu0
  %v9950 = vadd.f32 0.0, %v9949
  %v9951 = vpop.f32.mrf.mxu0
  %v9952 = vadd.f32 0.0, %v9951
  %9953 = vdwg.mxu0
  %9954 = vmatpush.bf16.msra.mxu0 %v9918
  %9955 = vmatpush.bf16.msra.mxu0 %v9916
  %9956 = vmatpush.bf16.msra.mxu0 %v9914
  %9957 = vmatpush.bf16.msra.mxu0 %v9912
  %9958 = vmatpush.bf16.msra.mxu0 %v9910
  %9959 = vmatpush.bf16.msra.mxu0 %v9908
  %9960 = vmatpush.bf16.msra.mxu0 %v9906
  %9961 = vmatpush.bf16.msra.mxu0 %v9904
  %9962 = vmatmul.bf16.gmra.mxu0 %v9851
  %v9963 = vpop.f32.mrf.mxu0
  %v9964 = vadd.f32 0.0, %v9963
  %v9965 = vpop.f32.mrf.mxu0
  %v9966 = vadd.f32 0.0, %v9965
  %9967 = vmatmul.bf16.gmra.mxu0 %v9852
  %v9968 = vpop.f32.mrf.mxu0
  %v9969 = vadd.f32 0.0, %v9968
  %v9970 = vpop.f32.mrf.mxu0
  %v9971 = vadd.f32 0.0, %v9970
  %9972 = vdwg.mxu0
  %v9973 = vadd.f32 %v9695, %v9945
  %v9974 = vadd.f32 %v9714, %v9964
  %v9975 = vadd.f32 %v9697, %v9947
  %v9976 = vadd.f32 %v9716, %v9966
  %v9977 = vadd.f32 %v9700, %v9950
  %v9978 = vadd.f32 %v9719, %v9969
  %v9979 = vadd.f32 %v9702, %v9952
  %v9980 = vadd.f32 %v9721, %v9971
  %vm9981 = vcmask 1042434
  %vm9982 = vmor %vm2505, %vm9981
  %vm9983 = vcmask 1044484
  %vm9984 = vmor %vm9982, %vm9983
  %vm9985 = vcmask 1046534
  %vm9986 = vmor %vm9984, %vm9985
  %v9987 = vrot.slane %v8711, 7
  %v9988 = vrot.slane %v9987, 2
  %v9989 = vrot.slane %v9307, 7
  %v9990 = vsel %vm9986, %v9988, %v9989
  %v9991 = vrot.slane %v9140, 7
  %v9992 = vrot.slane %v9991, 2
  %v9993 = vrot.slane %v9308, 7
  %v9994 = vsel %vm9986, %v9992, %v9993
  %v9995 = vrot.slane %v9141, 7
  %v9996 = vrot.slane %v9995, 2
  %v9997 = vrot.slane %v9309, 7
  %v9998 = vsel %vm9986, %v9996, %v9997
  %v9999 = vrot.slane %v9142, 7
  %v10000 = vrot.slane %v9999, 2
  %v10001 = vrot.slane %v9310, 7
  %v10002 = vsel %vm9986, %v10000, %v10001
  %v10003 = vrot.slane %v9144, 7
  %v10004 = vrot.slane %v10003, 2
  %v10005 = vrot.slane %v9311, 7
  %v10006 = vsel %vm9986, %v10004, %v10005
  %v10007 = vrot.slane %v9145, 7
  %v10008 = vrot.slane %v10007, 2
  %v10009 = vrot.slane %v9312, 7
  %v10010 = vsel %vm9986, %v10008, %v10009
  %v10011 = vrot.slane %v9146, 7
  %v10012 = vrot.slane %v10011, 2
  %v10013 = vrot.slane %v9313, 7
  %v10014 = vsel %vm9986, %v10012, %v10013
  %s10015 = scalar_lea.vmem %s7, 384
  %v10016 = vld [vmem:[%s10015] sm:$0xff]
  %v10017 = vld [vmem:[%s10015 + $0x8] sm:$0xff]
  %v10018 = vld [vmem:[%s10015 + $0x10] sm:$0xff]
  %v10019 = vld [vmem:[%s10015 + $0x18] sm:$0xff]
  %v10020 = vld [vmem:[%s10015 + $0x20] sm:$0xff]
  %v10021 = vld [vmem:[%s10015 + $0x28] sm:$0xff]
  %v10022 = vld [vmem:[%s10015 + $0x30] sm:$0xff]
  %v10023 = vld [vmem:[%s10015 + $0x38] sm:$0xff]
  %v10024 = vld [vmem:[%s10015 + $0x40] sm:$0xff]
  %v10025 = vld [vmem:[%s10015 + $0x48] sm:$0xff]
  %v10026 = vld [vmem:[%s10015 + $0x50] sm:$0xff]
  %v10027 = vld [vmem:[%s10015 + $0x58] sm:$0xff]
  %v10028 = vld [vmem:[%s10015 + $0x60] sm:$0xff]
  %v10029 = vld [vmem:[%s10015 + $0x68] sm:$0xff]
  %v10030 = vld [vmem:[%s10015 + $0x70] sm:$0xff]
  %v10031 = vld [vmem:[%s10015 + $0x78] sm:$0xff]
  %10033 = vst [vmem:[#allocation1] ss:$4 sm:$0xff] %v9990
  %s10035 = scalar_lea.vmem [#allocation1], 1
  %10036 = vst [vmem:[%s10035] ss:$4 sm:$0xff] %v9994
  %s10038 = scalar_lea.vmem [#allocation1], 2
  %10039 = vst [vmem:[%s10038] ss:$4 sm:$0xff] %v9998
  %s10041 = scalar_lea.vmem [#allocation1], 3
  %10042 = vst [vmem:[%s10041] ss:$4 sm:$0xff] %v10002
  %s10043 = scalar_lea.vmem [#allocation1], 32
  %10044 = vst [vmem:[%s10043] ss:$4 sm:$0xff] %v9990
  %s10046 = scalar_lea.vmem [#allocation1], 33
  %10047 = vst [vmem:[%s10046] ss:$4 sm:$0xff] %v10006
  %s10049 = scalar_lea.vmem [#allocation1], 34
  %10050 = vst [vmem:[%s10049] ss:$4 sm:$0xff] %v10010
  %s10052 = scalar_lea.vmem [#allocation1], 35
  %10053 = vst [vmem:[%s10052] ss:$4 sm:$0xff] %v10014
  %v10054 = vld.sshfl [vmem:[#allocation1] sm:$0xff pattern:$0x73625140]
  %v10055 = vld.sshfl [vmem:[#allocation1 + $0x20] sm:$0xff pattern:$0x73625140]
  %v10074 = vunpack.c.l.b16 %v10016
  %v10075 = vunpack.c.h.b16 %v10016
  %v10076 = vunpack.c.l.b16 %v10017
  %v10077 = vunpack.c.h.b16 %v10017
  %v10078 = vunpack.c.l.b16 %v10018
  %v10079 = vunpack.c.h.b16 %v10018
  %v10080 = vunpack.c.l.b16 %v10019
  %v10081 = vunpack.c.h.b16 %v10019
  %v10082 = vunpack.c.l.b16 %v10020
  %v10083 = vunpack.c.h.b16 %v10020
  %v10084 = vunpack.c.l.b16 %v10021
  %v10085 = vunpack.c.h.b16 %v10021
  %v10086 = vunpack.c.l.b16 %v10022
  %v10087 = vunpack.c.h.b16 %v10022
  %v10088 = vunpack.c.l.b16 %v10023
  %v10089 = vunpack.c.h.b16 %v10023
  %v10090 = vunpack.c.l.b16 %v10024
  %v10091 = vunpack.c.h.b16 %v10024
  %v10092 = vunpack.c.l.b16 %v10025
  %v10093 = vunpack.c.h.b16 %v10025
  %v10094 = vunpack.c.l.b16 %v10026
  %v10095 = vunpack.c.h.b16 %v10026
  %v10096 = vunpack.c.l.b16 %v10027
  %v10097 = vunpack.c.h.b16 %v10027
  %v10098 = vunpack.c.l.b16 %v10028
  %v10099 = vunpack.c.h.b16 %v10028
  %v10100 = vunpack.c.l.b16 %v10029
  %v10101 = vunpack.c.h.b16 %v10029
  %v10102 = vunpack.c.l.b16 %v10030
  %v10103 = vunpack.c.h.b16 %v10030
  %v10104 = vunpack.c.l.b16 %v10031
  %v10105 = vunpack.c.h.b16 %v10031
  %v10106 = vpack.c.b16 %v10076, %v10074
  %v10107 = vpack.c.b16 %v10077, %v10075
  %v10108 = vpack.c.b16 %v10080, %v10078
  %v10109 = vpack.c.b16 %v10081, %v10079
  %v10110 = vpack.c.b16 %v10084, %v10082
  %v10111 = vpack.c.b16 %v10085, %v10083
  %v10112 = vpack.c.b16 %v10088, %v10086
  %v10113 = vpack.c.b16 %v10089, %v10087
  %v10114 = vpack.c.b16 %v10092, %v10090
  %v10115 = vpack.c.b16 %v10093, %v10091
  %v10116 = vpack.c.b16 %v10096, %v10094
  %v10117 = vpack.c.b16 %v10097, %v10095
  %v10118 = vpack.c.b16 %v10100, %v10098
  %v10119 = vpack.c.b16 %v10101, %v10099
  %v10120 = vpack.c.b16 %v10104, %v10102
  %v10121 = vpack.c.b16 %v10105, %v10103
  %10138 = vmatpush.bf16.msra.mxu0 %v10120
  %10139 = vmatpush.bf16.msra.mxu0 %v10118
  %10140 = vmatpush.bf16.msra.mxu0 %v10116
  %10141 = vmatpush.bf16.msra.mxu0 %v10114
  %10142 = vmatpush.bf16.msra.mxu0 %v10112
  %10143 = vmatpush.bf16.msra.mxu0 %v10110
  %10144 = vmatpush.bf16.msra.mxu0 %v10108
  %10145 = vmatpush.bf16.msra.mxu0 %v10106
  %10146 = vmatmul.bf16.gmra.mxu0 %v10054
  %v10147 = vpop.f32.mrf.mxu0
  %v10148 = vadd.f32 0.0, %v10147
  %v10149 = vpop.f32.mrf.mxu0
  %v10150 = vadd.f32 0.0, %v10149
  %10151 = vmatmul.bf16.gmra.mxu0 %v10055
  %v10152 = vpop.f32.mrf.mxu0
  %v10153 = vadd.f32 0.0, %v10152
  %v10154 = vpop.f32.mrf.mxu0
  %v10155 = vadd.f32 0.0, %v10154
  %10156 = vdwg.mxu0
  %10157 = vmatpush.bf16.msra.mxu0 %v10121
  %10158 = vmatpush.bf16.msra.mxu0 %v10119
  %10159 = vmatpush.bf16.msra.mxu0 %v10117
  %10160 = vmatpush.bf16.msra.mxu0 %v10115
  %10161 = vmatpush.bf16.msra.mxu0 %v10113
  %10162 = vmatpush.bf16.msra.mxu0 %v10111
  %10163 = vmatpush.bf16.msra.mxu0 %v10109
  %10164 = vmatpush.bf16.msra.mxu0 %v10107
  %10165 = vmatmul.bf16.gmra.mxu0 %v10054
  %v10166 = vpop.f32.mrf.mxu0
  %v10167 = vadd.f32 0.0, %v10166
  %v10168 = vpop.f32.mrf.mxu0
  %v10169 = vadd.f32 0.0, %v10168
  %10170 = vmatmul.bf16.gmra.mxu0 %v10055
  %v10171 = vpop.f32.mrf.mxu0
  %v10172 = vadd.f32 0.0, %v10171
  %v10173 = vpop.f32.mrf.mxu0
  %v10174 = vadd.f32 0.0, %v10173
  %10175 = vdwg.mxu0
  %v10176 = vadd.f32 %v9973, %v10148
  %v10177 = vadd.f32 %v9974, %v10167
  %v10178 = vadd.f32 %v9975, %v10150
  %v10179 = vadd.f32 %v9976, %v10169
  %v10180 = vadd.f32 %v9977, %v10153
  %v10181 = vadd.f32 %v9978, %v10172
  %v10182 = vadd.f32 %v9979, %v10155
  %v10183 = vadd.f32 %v9980, %v10174
  %s10184 = scalar_lea.vmem %s7, 512
  %v10185 = vld [vmem:[%s10184] sm:$0xff]
  %v10186 = vld [vmem:[%s10184 + $0x8] sm:$0xff]
  %v10187 = vld [vmem:[%s10184 + $0x10] sm:$0xff]
  %v10188 = vld [vmem:[%s10184 + $0x18] sm:$0xff]
  %v10189 = vld [vmem:[%s10184 + $0x20] sm:$0xff]
  %v10190 = vld [vmem:[%s10184 + $0x28] sm:$0xff]
  %v10191 = vld [vmem:[%s10184 + $0x30] sm:$0xff]
  %v10192 = vld [vmem:[%s10184 + $0x38] sm:$0xff]
  %v10193 = vld [vmem:[%s10184 + $0x40] sm:$0xff]
  %v10194 = vld [vmem:[%s10184 + $0x48] sm:$0xff]
  %v10195 = vld [vmem:[%s10184 + $0x50] sm:$0xff]
  %v10196 = vld [vmem:[%s10184 + $0x58] sm:$0xff]
  %v10197 = vld [vmem:[%s10184 + $0x60] sm:$0xff]
  %v10198 = vld [vmem:[%s10184 + $0x68] sm:$0xff]
  %v10199 = vld [vmem:[%s10184 + $0x70] sm:$0xff]
  %v10200 = vld [vmem:[%s10184 + $0x78] sm:$0xff]
  %10202 = vst [vmem:[#allocation1] ss:$4 sm:$0xff] %v8844
  %s10204 = scalar_lea.vmem [#allocation1], 1
  %10205 = vst [vmem:[%s10204] ss:$4 sm:$0xff] %v8845
  %s10207 = scalar_lea.vmem [#allocation1], 2
  %10208 = vst [vmem:[%s10207] ss:$4 sm:$0xff] %v8846
  %s10210 = scalar_lea.vmem [#allocation1], 3
  %10211 = vst [vmem:[%s10210] ss:$4 sm:$0xff] %v8847
  %s10213 = scalar_lea.vmem [#allocation1], 32
  %10214 = vst [vmem:[%s10213] ss:$4 sm:$0xff] %v8848
  %s10216 = scalar_lea.vmem [#allocation1], 33
  %10217 = vst [vmem:[%s10216] ss:$4 sm:$0xff] %v8849
  %s10219 = scalar_lea.vmem [#allocation1], 34
  %10220 = vst [vmem:[%s10219] ss:$4 sm:$0xff] %v8850
  %s10222 = scalar_lea.vmem [#allocation1], 35
  %10223 = vst [vmem:[%s10222] ss:$4 sm:$0xff] %v8851
  %v10224 = vld.sshfl [vmem:[#allocation1] sm:$0xff pattern:$0x73625140]
  %v10225 = vld.sshfl [vmem:[#allocation1 + $0x20] sm:$0xff pattern:$0x73625140]
  %v10244 = vunpack.c.l.b16 %v10185
  %v10245 = vunpack.c.h.b16 %v10185
  %v10246 = vunpack.c.l.b16 %v10186
  %v10247 = vunpack.c.h.b16 %v10186
  %v10248 = vunpack.c.l.b16 %v10187
  %v10249 = vunpack.c.h.b16 %v10187
  %v10250 = vunpack.c.l.b16 %v10188
  %v10251 = vunpack.c.h.b16 %v10188
  %v10252 = vunpack.c.l.b16 %v10189
  %v10253 = vunpack.c.h.b16 %v10189
  %v10254 = vunpack.c.l.b16 %v10190
  %v10255 = vunpack.c.h.b16 %v10190
  %v10256 = vunpack.c.l.b16 %v10191
  %v10257 = vunpack.c.h.b16 %v10191
  %v10258 = vunpack.c.l.b16 %v10192
  %v10259 = vunpack.c.h.b16 %v10192
  %v10260 = vunpack.c.l.b16 %v10193
  %v10261 = vunpack.c.h.b16 %v10193
  %v10262 = vunpack.c.l.b16 %v10194
  %v10263 = vunpack.c.h.b16 %v10194
  %v10264 = vunpack.c.l.b16 %v10195
  %v10265 = vunpack.c.h.b16 %v10195
  %v10266 = vunpack.c.l.b16 %v10196
  %v10267 = vunpack.c.h.b16 %v10196
  %v10268 = vunpack.c.l.b16 %v10197
  %v10269 = vunpack.c.h.b16 %v10197
  %v10270 = vunpack.c.l.b16 %v10198
  %v10271 = vunpack.c.h.b16 %v10198
  %v10272 = vunpack.c.l.b16 %v10199
  %v10273 = vunpack.c.h.b16 %v10199
  %v10274 = vunpack.c.l.b16 %v10200
  %v10275 = vunpack.c.h.b16 %v10200
  %v10276 = vpack.c.b16 %v10246, %v10244
  %v10277 = vpack.c.b16 %v10247, %v10245
  %v10278 = vpack.c.b16 %v10250, %v10248
  %v10279 = vpack.c.b16 %v10251, %v10249
  %v10280 = vpack.c.b16 %v10254, %v10252
  %v10281 = vpack.c.b16 %v10255, %v10253
  %v10282 = vpack.c.b16 %v10258, %v10256
  %v10283 = vpack.c.b16 %v10259, %v10257
  %v10284 = vpack.c.b16 %v10262, %v10260
  %v10285 = vpack.c.b16 %v10263, %v10261
  %v10286 = vpack.c.b16 %v10266, %v10264
  %v10287 = vpack.c.b16 %v10267, %v10265
  %v10288 = vpack.c.b16 %v10270, %v10268
  %v10289 = vpack.c.b16 %v10271, %v10269
  %v10290 = vpack.c.b16 %v10274, %v10272
  %v10291 = vpack.c.b16 %v10275, %v10273
  %10308 = vmatpush.bf16.msra.mxu0 %v10290
  %10309 = vmatpush.bf16.msra.mxu0 %v10288
  %10310 = vmatpush.bf16.msra.mxu0 %v10286
  %10311 = vmatpush.bf16.msra.mxu0 %v10284
  %10312 = vmatpush.bf16.msra.mxu0 %v10282
  %10313 = vmatpush.bf16.msra.mxu0 %v10280
  %10314 = vmatpush.bf16.msra.mxu0 %v10278
  %10315 = vmatpush.bf16.msra.mxu0 %v10276
  %10316 = vmatmul.bf16.gmra.mxu0 %v10224
  %v10317 = vpop.f32.mrf.mxu0
  %v10318 = vadd.f32 0.0, %v10317
  %v10319 = vpop.f32.mrf.mxu0
  %v10320 = vadd.f32 0.0, %v10319
  %10321 = vmatmul.bf16.gmra.mxu0 %v10225
  %v10322 = vpop.f32.mrf.mxu0
  %v10323 = vadd.f32 0.0, %v10322
  %v10324 = vpop.f32.mrf.mxu0
  %v10325 = vadd.f32 0.0, %v10324
  %10326 = vdwg.mxu0
  %10327 = vmatpush.bf16.msra.mxu0 %v10291
  %10328 = vmatpush.bf16.msra.mxu0 %v10289
  %10329 = vmatpush.bf16.msra.mxu0 %v10287
  %10330 = vmatpush.bf16.msra.mxu0 %v10285
  %10331 = vmatpush.bf16.msra.mxu0 %v10283
  %10332 = vmatpush.bf16.msra.mxu0 %v10281
  %10333 = vmatpush.bf16.msra.mxu0 %v10279
  %10334 = vmatpush.bf16.msra.mxu0 %v10277
  %10335 = vmatmul.bf16.gmra.mxu0 %v10224
  %v10336 = vpop.f32.mrf.mxu0
  %v10337 = vadd.f32 0.0, %v10336
  %v10338 = vpop.f32.mrf.mxu0
  %v10339 = vadd.f32 0.0, %v10338
  %10340 = vmatmul.bf16.gmra.mxu0 %v10225
  %v10341 = vpop.f32.mrf.mxu0
  %v10342 = vadd.f32 0.0, %v10341
  %v10343 = vpop.f32.mrf.mxu0
  %v10344 = vadd.f32 0.0, %v10343
  %10345 = vdwg.mxu0
  %v10346 = vadd.f32 %v10176, %v10318
  %v10347 = vadd.f32 %v10177, %v10337
  %v10348 = vadd.f32 %v10178, %v10320
  %v10349 = vadd.f32 %v10179, %v10339
  %v10350 = vadd.f32 %v10180, %v10323
  %v10351 = vadd.f32 %v10181, %v10342
  %v10352 = vadd.f32 %v10182, %v10325
  %v10353 = vadd.f32 %v10183, %v10344
  %v10362 = vrot.slane %v8707, 2
  %v10363 = vrot.slane %v8708, 2
  %v10364 = vrot.slane %v8709, 2
  %v10365 = vrot.slane %v8710, 2
  %v10366 = vrot.slane %v8712, 2
  %v10367 = vrot.slane %v8713, 2
  %v10368 = vrot.slane %v8714, 2
  %v10369 = vrot.slane %v8715, 2
  %v10371 = vshrl.u32 %v8707, 16
  %v10373 = vrot.slane %v10371, 6
  %v10374 = vshll.u32 %v8707, 16
  %v10376 = vrot.slane %v10374, 7
  %v10377 = vor.u32 %v10373, %v10376
  %v10378 = vrot.slane %v10377, 2
  %v10380 = vshll.u32 %v10362, 16
  %v10382 = vrot.slane %v10380, 7
  %v10383 = vsel %vm9320, %v10378, %v10382
  %v10385 = vshrl.u32 %v8708, 16
  %v10387 = vrot.slane %v10385, 6
  %v10388 = vshll.u32 %v8708, 16
  %v10390 = vrot.slane %v10388, 7
  %v10391 = vor.u32 %v10387, %v10390
  %v10392 = vrot.slane %v10391, 2
  %v10394 = vshll.u32 %v10363, 16
  %v10396 = vrot.slane %v10394, 7
  %v10397 = vsel %vm9320, %v10392, %v10396
  %v10399 = vshrl.u32 %v8709, 16
  %v10401 = vrot.slane %v10399, 6
  %v10402 = vshll.u32 %v8709, 16
  %v10404 = vrot.slane %v10402, 7
  %v10405 = vor.u32 %v10401, %v10404
  %v10406 = vrot.slane %v10405, 2
  %v10408 = vshll.u32 %v10364, 16
  %v10410 = vrot.slane %v10408, 7
  %v10411 = vsel %vm9320, %v10406, %v10410
  %v10413 = vshrl.u32 %v8710, 16
  %v10415 = vrot.slane %v10413, 6
  %v10416 = vshll.u32 %v8710, 16
  %v10418 = vrot.slane %v10416, 7
  %v10419 = vor.u32 %v10415, %v10418
  %v10420 = vrot.slane %v10419, 2
  %v10422 = vshll.u32 %v10365, 16
  %v10424 = vrot.slane %v10422, 7
  %v10425 = vsel %vm9320, %v10420, %v10424
  %v10427 = vshrl.u32 %v8712, 16
  %v10429 = vrot.slane %v10427, 6
  %v10430 = vshll.u32 %v8712, 16
  %v10432 = vrot.slane %v10430, 7
  %v10433 = vor.u32 %v10429, %v10432
  %v10434 = vrot.slane %v10433, 2
  %v10436 = vshll.u32 %v10366, 16
  %v10438 = vrot.slane %v10436, 7
  %v10439 = vsel %vm9320, %v10434, %v10438
  %v10441 = vshrl.u32 %v8713, 16
  %v10443 = vrot.slane %v10441, 6
  %v10444 = vshll.u32 %v8713, 16
  %v10446 = vrot.slane %v10444, 7
  %v10447 = vor.u32 %v10443, %v10446
  %v10448 = vrot.slane %v10447, 2
  %v10450 = vshll.u32 %v10367, 16
  %v10452 = vrot.slane %v10450, 7
  %v10453 = vsel %vm9320, %v10448, %v10452
  %v10455 = vshrl.u32 %v8714, 16
  %v10457 = vrot.slane %v10455, 6
  %v10458 = vshll.u32 %v8714, 16
  %v10460 = vrot.slane %v10458, 7
  %v10461 = vor.u32 %v10457, %v10460
  %v10462 = vrot.slane %v10461, 2
  %v10464 = vshll.u32 %v10368, 16
  %v10466 = vrot.slane %v10464, 7
  %v10467 = vsel %vm9320, %v10462, %v10466
  %v10469 = vshrl.u32 %v8715, 16
  %v10471 = vrot.slane %v10469, 6
  %v10472 = vshll.u32 %v8715, 16
  %v10474 = vrot.slane %v10472, 7
  %v10475 = vor.u32 %v10471, %v10474
  %v10476 = vrot.slane %v10475, 2
  %v10478 = vshll.u32 %v10369, 16
  %v10480 = vrot.slane %v10478, 7
  %v10481 = vsel %vm9320, %v10476, %v10480
  %s10482 = scalar_lea.vmem %s7, 640
  %v10483 = vld [vmem:[%s10482] sm:$0xff]
  %v10484 = vld [vmem:[%s10482 + $0x8] sm:$0xff]
  %v10485 = vld [vmem:[%s10482 + $0x10] sm:$0xff]
  %v10486 = vld [vmem:[%s10482 + $0x18] sm:$0xff]
  %v10487 = vld [vmem:[%s10482 + $0x20] sm:$0xff]
  %v10488 = vld [vmem:[%s10482 + $0x28] sm:$0xff]
  %v10489 = vld [vmem:[%s10482 + $0x30] sm:$0xff]
  %v10490 = vld [vmem:[%s10482 + $0x38] sm:$0xff]
  %v10491 = vld [vmem:[%s10482 + $0x40] sm:$0xff]
  %v10492 = vld [vmem:[%s10482 + $0x48] sm:$0xff]
  %v10493 = vld [vmem:[%s10482 + $0x50] sm:$0xff]
  %v10494 = vld [vmem:[%s10482 + $0x58] sm:$0xff]
  %v10495 = vld [vmem:[%s10482 + $0x60] sm:$0xff]
  %v10496 = vld [vmem:[%s10482 + $0x68] sm:$0xff]
  %v10497 = vld [vmem:[%s10482 + $0x70] sm:$0xff]
  %v10498 = vld [vmem:[%s10482 + $0x78] sm:$0xff]
  %10500 = vst [vmem:[#allocation1] ss:$4 sm:$0xff] %v10383
  %s10502 = scalar_lea.vmem [#allocation1], 1
  %10503 = vst [vmem:[%s10502] ss:$4 sm:$0xff] %v10397
  %s10505 = scalar_lea.vmem [#allocation1], 2
  %10506 = vst [vmem:[%s10505] ss:$4 sm:$0xff] %v10411
  %s10508 = scalar_lea.vmem [#allocation1], 3
  %10509 = vst [vmem:[%s10508] ss:$4 sm:$0xff] %v10425
  %s10511 = scalar_lea.vmem [#allocation1], 32
  %10512 = vst [vmem:[%s10511] ss:$4 sm:$0xff] %v10439
  %s10514 = scalar_lea.vmem [#allocation1], 33
  %10515 = vst [vmem:[%s10514] ss:$4 sm:$0xff] %v10453
  %s10517 = scalar_lea.vmem [#allocation1], 34
  %10518 = vst [vmem:[%s10517] ss:$4 sm:$0xff] %v10467
  %s10520 = scalar_lea.vmem [#allocation1], 35
  %10521 = vst [vmem:[%s10520] ss:$4 sm:$0xff] %v10481
  %v10522 = vld.sshfl [vmem:[#allocation1] sm:$0xff pattern:$0x73625140]
  %v10523 = vld.sshfl [vmem:[#allocation1 + $0x20] sm:$0xff pattern:$0x73625140]
  %v10542 = vunpack.c.l.b16 %v10483
  %v10543 = vunpack.c.h.b16 %v10483
  %v10544 = vunpack.c.l.b16 %v10484
  %v10545 = vunpack.c.h.b16 %v10484
  %v10546 = vunpack.c.l.b16 %v10485
  %v10547 = vunpack.c.h.b16 %v10485
  %v10548 = vunpack.c.l.b16 %v10486
  %v10549 = vunpack.c.h.b16 %v10486
  %v10550 = vunpack.c.l.b16 %v10487
  %v10551 = vunpack.c.h.b16 %v10487
  %v10552 = vunpack.c.l.b16 %v10488
  %v10553 = vunpack.c.h.b16 %v10488
  %v10554 = vunpack.c.l.b16 %v10489
  %v10555 = vunpack.c.h.b16 %v10489
  %v10556 = vunpack.c.l.b16 %v10490
  %v10557 = vunpack.c.h.b16 %v10490
  %v10558 = vunpack.c.l.b16 %v10491
  %v10559 = vunpack.c.h.b16 %v10491
  %v10560 = vunpack.c.l.b16 %v10492
  %v10561 = vunpack.c.h.b16 %v10492
  %v10562 = vunpack.c.l.b16 %v10493
  %v10563 = vunpack.c.h.b16 %v10493
  %v10564 = vunpack.c.l.b16 %v10494
  %v10565 = vunpack.c.h.b16 %v10494
  %v10566 = vunpack.c.l.b16 %v10495
  %v10567 = vunpack.c.h.b16 %v10495
  %v10568 = vunpack.c.l.b16 %v10496
  %v10569 = vunpack.c.h.b16 %v10496
  %v10570 = vunpack.c.l.b16 %v10497
  %v10571 = vunpack.c.h.b16 %v10497
  %v10572 = vunpack.c.l.b16 %v10498
  %v10573 = vunpack.c.h.b16 %v10498
  %v10574 = vpack.c.b16 %v10544, %v10542
  %v10575 = vpack.c.b16 %v10545, %v10543
  %v10576 = vpack.c.b16 %v10548, %v10546
  %v10577 = vpack.c.b16 %v10549, %v10547
  %v10578 = vpack.c.b16 %v10552, %v10550
  %v10579 = vpack.c.b16 %v10553, %v10551
  %v10580 = vpack.c.b16 %v10556, %v10554
  %v10581 = vpack.c.b16 %v10557, %v10555
  %v10582 = vpack.c.b16 %v10560, %v10558
  %v10583 = vpack.c.b16 %v10561, %v10559
  %v10584 = vpack.c.b16 %v10564, %v10562
  %v10585 = vpack.c.b16 %v10565, %v10563
  %v10586 = vpack.c.b16 %v10568, %v10566
  %v10587 = vpack.c.b16 %v10569, %v10567
  %v10588 = vpack.c.b16 %v10572, %v10570
  %v10589 = vpack.c.b16 %v10573, %v10571
  %10606 = vmatpush.bf16.msra.mxu0 %v10588
  %10607 = vmatpush.bf16.msra.mxu0 %v10586
  %10608 = vmatpush.bf16.msra.mxu0 %v10584
  %10609 = vmatpush.bf16.msra.mxu0 %v10582
  %10610 = vmatpush.bf16.msra.mxu0 %v10580
  %10611 = vmatpush.bf16.msra.mxu0 %v10578
  %10612 = vmatpush.bf16.msra.mxu0 %v10576
  %10613 = vmatpush.bf16.msra.mxu0 %v10574
  %10614 = vmatmul.bf16.gmra.mxu0 %v10522
  %v10615 = vpop.f32.mrf.mxu0
  %v10616 = vadd.f32 0.0, %v10615
  %v10617 = vpop.f32.mrf.mxu0
  %v10618 = vadd.f32 0.0, %v10617
  %10619 = vmatmul.bf16.gmra.mxu0 %v10523
  %v10620 = vpop.f32.mrf.mxu0
  %v10621 = vadd.f32 0.0, %v10620
  %v10622 = vpop.f32.mrf.mxu0
  %v10623 = vadd.f32 0.0, %v10622
  %10624 = vdwg.mxu0
  %10625 = vmatpush.bf16.msra.mxu0 %v10589
  %10626 = vmatpush.bf16.msra.mxu0 %v10587
  %10627 = vmatpush.bf16.msra.mxu0 %v10585
  %10628 = vmatpush.bf16.msra.mxu0 %v10583
  %10629 = vmatpush.bf16.msra.mxu0 %v10581
  %10630 = vmatpush.bf16.msra.mxu0 %v10579
  %10631 = vmatpush.bf16.msra.mxu0 %v10577
  %10632 = vmatpush.bf16.msra.mxu0 %v10575
  %10633 = vmatmul.bf16.gmra.mxu0 %v10522
  %v10634 = vpop.f32.mrf.mxu0
  %v10635 = vadd.f32 0.0, %v10634
  %v10636 = vpop.f32.mrf.mxu0
  %v10637 = vadd.f32 0.0, %v10636
  %10638 = vmatmul.bf16.gmra.mxu0 %v10523
  %v10639 = vpop.f32.mrf.mxu0
  %v10640 = vadd.f32 0.0, %v10639
  %v10641 = vpop.f32.mrf.mxu0
  %v10642 = vadd.f32 0.0, %v10641
  %10643 = vdwg.mxu0
  %v10644 = vadd.f32 %v10346, %v10616
  %v10645 = vadd.f32 %v10347, %v10635
  %v10646 = vadd.f32 %v10348, %v10618
  %v10647 = vadd.f32 %v10349, %v10637
  %v10648 = vadd.f32 %v10350, %v10621
  %v10649 = vadd.f32 %v10351, %v10640
  %v10650 = vadd.f32 %v10352, %v10623
  %v10651 = vadd.f32 %v10353, %v10642
  %v10660 = vrot.slane %v8844, 2
  %v10661 = vrot.slane %v8845, 2
  %v10662 = vrot.slane %v8846, 2
  %v10663 = vrot.slane %v8847, 2
  %v10664 = vrot.slane %v8848, 2
  %v10665 = vrot.slane %v8849, 2
  %v10666 = vrot.slane %v8850, 2
  %v10667 = vrot.slane %v8851, 2
  %v10668 = vshrl.u32 %v8844, 16
  %v10670 = vrot.slane %v10668, 6
  %v10671 = vshll.u32 %v8844, 16
  %v10673 = vrot.slane %v10671, 7
  %v10674 = vor.u32 %v10670, %v10673
  %v10675 = vrot.slane %v10674, 2
  %v10677 = vshll.u32 %v10660, 16
  %v10679 = vrot.slane %v10677, 7
  %v10680 = vsel %vm9320, %v10675, %v10679
  %v10681 = vshrl.u32 %v8845, 16
  %v10683 = vrot.slane %v10681, 6
  %v10684 = vshll.u32 %v8845, 16
  %v10686 = vrot.slane %v10684, 7
  %v10687 = vor.u32 %v10683, %v10686
  %v10688 = vrot.slane %v10687, 2
  %v10690 = vshll.u32 %v10661, 16
  %v10692 = vrot.slane %v10690, 7
  %v10693 = vsel %vm9320, %v10688, %v10692
  %v10694 = vshrl.u32 %v8846, 16
  %v10696 = vrot.slane %v10694, 6
  %v10697 = vshll.u32 %v8846, 16
  %v10699 = vrot.slane %v10697, 7
  %v10700 = vor.u32 %v10696, %v10699
  %v10701 = vrot.slane %v10700, 2
  %v10703 = vshll.u32 %v10662, 16
  %v10705 = vrot.slane %v10703, 7
  %v10706 = vsel %vm9320, %v10701, %v10705
  %v10707 = vshrl.u32 %v8847, 16
  %v10709 = vrot.slane %v10707, 6
  %v10710 = vshll.u32 %v8847, 16
  %v10712 = vrot.slane %v10710, 7
  %v10713 = vor.u32 %v10709, %v10712
  %v10714 = vrot.slane %v10713, 2
  %v10716 = vshll.u32 %v10663, 16
  %v10718 = vrot.slane %v10716, 7
  %v10719 = vsel %vm9320, %v10714, %v10718
  %v10720 = vshrl.u32 %v8848, 16
  %v10722 = vrot.slane %v10720, 6
  %v10723 = vshll.u32 %v8848, 16
  %v10725 = vrot.slane %v10723, 7
  %v10726 = vor.u32 %v10722, %v10725
  %v10727 = vrot.slane %v10726, 2
  %v10729 = vshll.u32 %v10664, 16
  %v10731 = vrot.slane %v10729, 7
  %v10732 = vsel %vm9320, %v10727, %v10731
  %v10733 = vshrl.u32 %v8849, 16
  %v10735 = vrot.slane %v10733, 6
  %v10736 = vshll.u32 %v8849, 16
  %v10738 = vrot.slane %v10736, 7
  %v10739 = vor.u32 %v10735, %v10738
  %v10740 = vrot.slane %v10739, 2
  %v10742 = vshll.u32 %v10665, 16
  %v10744 = vrot.slane %v10742, 7
  %v10745 = vsel %vm9320, %v10740, %v10744
  %v10746 = vshrl.u32 %v8850, 16
  %v10748 = vrot.slane %v10746, 6
  %v10749 = vshll.u32 %v8850, 16
  %v10751 = vrot.slane %v10749, 7
  %v10752 = vor.u32 %v10748, %v10751
  %v10753 = vrot.slane %v10752, 2
  %v10755 = vshll.u32 %v10666, 16
  %v10757 = vrot.slane %v10755, 7
  %v10758 = vsel %vm9320, %v10753, %v10757
  %v10759 = vshrl.u32 %v8851, 16
  %v10761 = vrot.slane %v10759, 6
  %v10762 = vshll.u32 %v8851, 16
  %v10764 = vrot.slane %v10762, 7
  %v10765 = vor.u32 %v10761, %v10764
  %v10766 = vrot.slane %v10765, 2
  %v10768 = vshll.u32 %v10667, 16
  %v10770 = vrot.slane %v10768, 7
  %v10771 = vsel %vm9320, %v10766, %v10770
  %s10772 = scalar_lea.vmem %s7, 768
  %v10773 = vld [vmem:[%s10772] sm:$0xff]
  %v10774 = vld [vmem:[%s10772 + $0x8] sm:$0xff]
  %v10775 = vld [vmem:[%s10772 + $0x10] sm:$0xff]
  %v10776 = vld [vmem:[%s10772 + $0x18] sm:$0xff]
  %v10777 = vld [vmem:[%s10772 + $0x20] sm:$0xff]
  %v10778 = vld [vmem:[%s10772 + $0x28] sm:$0xff]
  %v10779 = vld [vmem:[%s10772 + $0x30] sm:$0xff]
  %v10780 = vld [vmem:[%s10772 + $0x38] sm:$0xff]
  %v10781 = vld [vmem:[%s10772 + $0x40] sm:$0xff]
  %v10782 = vld [vmem:[%s10772 + $0x48] sm:$0xff]
  %v10783 = vld [vmem:[%s10772 + $0x50] sm:$0xff]
  %v10784 = vld [vmem:[%s10772 + $0x58] sm:$0xff]
  %v10785 = vld [vmem:[%s10772 + $0x60] sm:$0xff]
  %v10786 = vld [vmem:[%s10772 + $0x68] sm:$0xff]
  %v10787 = vld [vmem:[%s10772 + $0x70] sm:$0xff]
  %v10788 = vld [vmem:[%s10772 + $0x78] sm:$0xff]
  %10790 = vst [vmem:[#allocation1] ss:$4 sm:$0xff] %v10680
  %s10792 = scalar_lea.vmem [#allocation1], 1
  %10793 = vst [vmem:[%s10792] ss:$4 sm:$0xff] %v10693
  %s10795 = scalar_lea.vmem [#allocation1], 2
  %10796 = vst [vmem:[%s10795] ss:$4 sm:$0xff] %v10706
  %s10798 = scalar_lea.vmem [#allocation1], 3
  %10799 = vst [vmem:[%s10798] ss:$4 sm:$0xff] %v10719
  %s10801 = scalar_lea.vmem [#allocation1], 32
  %10802 = vst [vmem:[%s10801] ss:$4 sm:$0xff] %v10732
  %s10804 = scalar_lea.vmem [#allocation1], 33
  %10805 = vst [vmem:[%s10804] ss:$4 sm:$0xff] %v10745
  %s10807 = scalar_lea.vmem [#allocation1], 34
  %10808 = vst [vmem:[%s10807] ss:$4 sm:$0xff] %v10758
  %s10810 = scalar_lea.vmem [#allocation1], 35
  %10811 = vst [vmem:[%s10810] ss:$4 sm:$0xff] %v10771
  %v10812 = vld.sshfl [vmem:[#allocation1] sm:$0xff pattern:$0x73625140]
  %v10813 = vld.sshfl [vmem:[#allocation1 + $0x20] sm:$0xff pattern:$0x73625140]
  %v10832 = vunpack.c.l.b16 %v10773
  %v10833 = vunpack.c.h.b16 %v10773
  %v10834 = vunpack.c.l.b16 %v10774
  %v10835 = vunpack.c.h.b16 %v10774
  %v10836 = vunpack.c.l.b16 %v10775
  %v10837 = vunpack.c.h.b16 %v10775
  %v10838 = vunpack.c.l.b16 %v10776
  %v10839 = vunpack.c.h.b16 %v10776
  %v10840 = vunpack.c.l.b16 %v10777
  %v10841 = vunpack.c.h.b16 %v10777
  %v10842 = vunpack.c.l.b16 %v10778
  %v10843 = vunpack.c.h.b16 %v10778
  %v10844 = vunpack.c.l.b16 %v10779
  %v10845 = vunpack.c.h.b16 %v10779
  %v10846 = vunpack.c.l.b16 %v10780
  %v10847 = vunpack.c.h.b16 %v10780
  %v10848 = vunpack.c.l.b16 %v10781
  %v10849 = vunpack.c.h.b16 %v10781
  %v10850 = vunpack.c.l.b16 %v10782
  %v10851 = vunpack.c.h.b16 %v10782
  %v10852 = vunpack.c.l.b16 %v10783
  %v10853 = vunpack.c.h.b16 %v10783
  %v10854 = vunpack.c.l.b16 %v10784
  %v10855 = vunpack.c.h.b16 %v10784
  %v10856 = vunpack.c.l.b16 %v10785
  %v10857 = vunpack.c.h.b16 %v10785
  %v10858 = vunpack.c.l.b16 %v10786
  %v10859 = vunpack.c.h.b16 %v10786
  %v10860 = vunpack.c.l.b16 %v10787
  %v10861 = vunpack.c.h.b16 %v10787
  %v10862 = vunpack.c.l.b16 %v10788
  %v10863 = vunpack.c.h.b16 %v10788
  %v10864 = vpack.c.b16 %v10834, %v10832
  %v10865 = vpack.c.b16 %v10835, %v10833
  %v10866 = vpack.c.b16 %v10838, %v10836
  %v10867 = vpack.c.b16 %v10839, %v10837
  %v10868 = vpack.c.b16 %v10842, %v10840
  %v10869 = vpack.c.b16 %v10843, %v10841
  %v10870 = vpack.c.b16 %v10846, %v10844
  %v10871 = vpack.c.b16 %v10847, %v10845
  %v10872 = vpack.c.b16 %v10850, %v10848
  %v10873 = vpack.c.b16 %v10851, %v10849
  %v10874 = vpack.c.b16 %v10854, %v10852
  %v10875 = vpack.c.b16 %v10855, %v10853
  %v10876 = vpack.c.b16 %v10858, %v10856
  %v10877 = vpack.c.b16 %v10859, %v10857
  %v10878 = vpack.c.b16 %v10862, %v10860
  %v10879 = vpack.c.b16 %v10863, %v10861
  %10896 = vmatpush.bf16.msra.mxu0 %v10878
  %10897 = vmatpush.bf16.msra.mxu0 %v10876
  %10898 = vmatpush.bf16.msra.mxu0 %v10874
  %10899 = vmatpush.bf16.msra.mxu0 %v10872
  %10900 = vmatpush.bf16.msra.mxu0 %v10870
  %10901 = vmatpush.bf16.msra.mxu0 %v10868
  %10902 = vmatpush.bf16.msra.mxu0 %v10866
  %10903 = vmatpush.bf16.msra.mxu0 %v10864
  %10904 = vmatmul.bf16.gmra.mxu0 %v10812
  %v10905 = vpop.f32.mrf.mxu0
  %v10906 = vadd.f32 0.0, %v10905
  %v10907 = vpop.f32.mrf.mxu0
  %v10908 = vadd.f32 0.0, %v10907
  %10909 = vmatmul.bf16.gmra.mxu0 %v10813
  %v10910 = vpop.f32.mrf.mxu0
  %v10911 = vadd.f32 0.0, %v10910
  %v10912 = vpop.f32.mrf.mxu0
  %v10913 = vadd.f32 0.0, %v10912
  %10914 = vdwg.mxu0
  %10915 = vmatpush.bf16.msra.mxu0 %v10879
  %10916 = vmatpush.bf16.msra.mxu0 %v10877
  %10917 = vmatpush.bf16.msra.mxu0 %v10875
  %10918 = vmatpush.bf16.msra.mxu0 %v10873
  %10919 = vmatpush.bf16.msra.mxu0 %v10871
  %10920 = vmatpush.bf16.msra.mxu0 %v10869
  %10921 = vmatpush.bf16.msra.mxu0 %v10867
  %10922 = vmatpush.bf16.msra.mxu0 %v10865
  %10923 = vmatmul.bf16.gmra.mxu0 %v10812
  %v10924 = vpop.f32.mrf.mxu0
  %v10925 = vadd.f32 0.0, %v10924
  %v10926 = vpop.f32.mrf.mxu0
  %v10927 = vadd.f32 0.0, %v10926
  %10928 = vmatmul.bf16.gmra.mxu0 %v10813
  %v10929 = vpop.f32.mrf.mxu0
  %v10930 = vadd.f32 0.0, %v10929
  %v10931 = vpop.f32.mrf.mxu0
  %v10932 = vadd.f32 0.0, %v10931
  %10933 = vdwg.mxu0
  %v10934 = vadd.f32 %v10644, %v10906
  %v10935 = vadd.f32 %v10645, %v10925
  %v10936 = vadd.f32 %v10646, %v10908
  %v10937 = vadd.f32 %v10647, %v10927
  %v10938 = vadd.f32 %v10648, %v10911
  %v10939 = vadd.f32 %v10649, %v10930
  %v10940 = vadd.f32 %v10650, %v10913
  %v10941 = vadd.f32 %v10651, %v10932
  %v10942 = vrot.slane %v8707, 7
  %v10943 = vrot.slane %v10942, 2
  %v10944 = vrot.slane %v10362, 7
  %v10945 = vsel %vm9986, %v10943, %v10944
  %v10946 = vrot.slane %v8708, 7
  %v10947 = vrot.slane %v10946, 2
  %v10948 = vrot.slane %v10363, 7
  %v10949 = vsel %vm9986, %v10947, %v10948
  %v10950 = vrot.slane %v8709, 7
  %v10951 = vrot.slane %v10950, 2
  %v10952 = vrot.slane %v10364, 7
  %v10953 = vsel %vm9986, %v10951, %v10952
  %v10954 = vrot.slane %v8710, 7
  %v10955 = vrot.slane %v10954, 2
  %v10956 = vrot.slane %v10365, 7
  %v10957 = vsel %vm9986, %v10955, %v10956
  %v10958 = vrot.slane %v8712, 7
  %v10959 = vrot.slane %v10958, 2
  %v10960 = vrot.slane %v10366, 7
  %v10961 = vsel %vm9986, %v10959, %v10960
  %v10962 = vrot.slane %v8713, 7
  %v10963 = vrot.slane %v10962, 2
  %v10964 = vrot.slane %v10367, 7
  %v10965 = vsel %vm9986, %v10963, %v10964
  %v10966 = vrot.slane %v8714, 7
  %v10967 = vrot.slane %v10966, 2
  %v10968 = vrot.slane %v10368, 7
  %v10969 = vsel %vm9986, %v10967, %v10968
  %v10970 = vrot.slane %v8715, 7
  %v10971 = vrot.slane %v10970, 2
  %v10972 = vrot.slane %v10369, 7
  %v10973 = vsel %vm9986, %v10971, %v10972
  %s10974 = scalar_lea.vmem %s7, 896
  %v10975 = vld [vmem:[%s10974] sm:$0xff]
  %v10976 = vld [vmem:[%s10974 + $0x8] sm:$0xff]
  %v10977 = vld [vmem:[%s10974 + $0x10] sm:$0xff]
  %v10978 = vld [vmem:[%s10974 + $0x18] sm:$0xff]
  %v10979 = vld [vmem:[%s10974 + $0x20] sm:$0xff]
  %v10980 = vld [vmem:[%s10974 + $0x28] sm:$0xff]
  %v10981 = vld [vmem:[%s10974 + $0x30] sm:$0xff]
  %v10982 = vld [vmem:[%s10974 + $0x38] sm:$0xff]
  %v10983 = vld [vmem:[%s10974 + $0x40] sm:$0xff]
  %v10984 = vld [vmem:[%s10974 + $0x48] sm:$0xff]
  %v10985 = vld [vmem:[%s10974 + $0x50] sm:$0xff]
  %v10986 = vld [vmem:[%s10974 + $0x58] sm:$0xff]
  %v10987 = vld [vmem:[%s10974 + $0x60] sm:$0xff]
  %v10988 = vld [vmem:[%s10974 + $0x68] sm:$0xff]
  %v10989 = vld [vmem:[%s10974 + $0x70] sm:$0xff]
  %v10990 = vld [vmem:[%s10974 + $0x78] sm:$0xff]
  %10992 = vst [vmem:[#allocation1] ss:$4 sm:$0xff] %v10945
  %s10994 = scalar_lea.vmem [#allocation1], 1
  %10995 = vst [vmem:[%s10994] ss:$4 sm:$0xff] %v10949
  %s10997 = scalar_lea.vmem [#allocation1], 2
  %10998 = vst [vmem:[%s10997] ss:$4 sm:$0xff] %v10953
  %s11000 = scalar_lea.vmem [#allocation1], 3
  %11001 = vst [vmem:[%s11000] ss:$4 sm:$0xff] %v10957
  %s11003 = scalar_lea.vmem [#allocation1], 32
  %11004 = vst [vmem:[%s11003] ss:$4 sm:$0xff] %v10961
  %s11006 = scalar_lea.vmem [#allocation1], 33
  %11007 = vst [vmem:[%s11006] ss:$4 sm:$0xff] %v10965
  %s11009 = scalar_lea.vmem [#allocation1], 34
  %11010 = vst [vmem:[%s11009] ss:$4 sm:$0xff] %v10969
  %s11012 = scalar_lea.vmem [#allocation1], 35
  %11013 = vst [vmem:[%s11012] ss:$4 sm:$0xff] %v10973
  %v11014 = vld.sshfl [vmem:[#allocation1] sm:$0xff pattern:$0x73625140]
  %v11015 = vld.sshfl [vmem:[#allocation1 + $0x20] sm:$0xff pattern:$0x73625140]
  %v11034 = vunpack.c.l.b16 %v10975
  %v11035 = vunpack.c.h.b16 %v10975
  %v11036 = vunpack.c.l.b16 %v10976
  %v11037 = vunpack.c.h.b16 %v10976
  %v11038 = vunpack.c.l.b16 %v10977
  %v11039 = vunpack.c.h.b16 %v10977
  %v11040 = vunpack.c.l.b16 %v10978
  %v11041 = vunpack.c.h.b16 %v10978
  %v11042 = vunpack.c.l.b16 %v10979
  %v11043 = vunpack.c.h.b16 %v10979
  %v11044 = vunpack.c.l.b16 %v10980
  %v11045 = vunpack.c.h.b16 %v10980
  %v11046 = vunpack.c.l.b16 %v10981
  %v11047 = vunpack.c.h.b16 %v10981
  %v11048 = vunpack.c.l.b16 %v10982
  %v11049 = vunpack.c.h.b16 %v10982
  %v11050 = vunpack.c.l.b16 %v10983
  %v11051 = vunpack.c.h.b16 %v10983
  %v11052 = vunpack.c.l.b16 %v10984
  %v11053 = vunpack.c.h.b16 %v10984
  %v11054 = vunpack.c.l.b16 %v10985
  %v11055 = vunpack.c.h.b16 %v10985
  %v11056 = vunpack.c.l.b16 %v10986
  %v11057 = vunpack.c.h.b16 %v10986
  %v11058 = vunpack.c.l.b16 %v10987
  %v11059 = vunpack.c.h.b16 %v10987
  %v11060 = vunpack.c.l.b16 %v10988
  %v11061 = vunpack.c.h.b16 %v10988
  %v11062 = vunpack.c.l.b16 %v10989
  %v11063 = vunpack.c.h.b16 %v10989
  %v11064 = vunpack.c.l.b16 %v10990
  %v11065 = vunpack.c.h.b16 %v10990
  %v11066 = vpack.c.b16 %v11036, %v11034
  %v11067 = vpack.c.b16 %v11037, %v11035
  %v11068 = vpack.c.b16 %v11040, %v11038
  %v11069 = vpack.c.b16 %v11041, %v11039
  %v11070 = vpack.c.b16 %v11044, %v11042
  %v11071 = vpack.c.b16 %v11045, %v11043
  %v11072 = vpack.c.b16 %v11048, %v11046
  %v11073 = vpack.c.b16 %v11049, %v11047
  %v11074 = vpack.c.b16 %v11052, %v11050
  %v11075 = vpack.c.b16 %v11053, %v11051
  %v11076 = vpack.c.b16 %v11056, %v11054
  %v11077 = vpack.c.b16 %v11057, %v11055
  %v11078 = vpack.c.b16 %v11060, %v11058
  %v11079 = vpack.c.b16 %v11061, %v11059
  %v11080 = vpack.c.b16 %v11064, %v11062
  %v11081 = vpack.c.b16 %v11065, %v11063
  %11098 = vmatpush.bf16.msra.mxu0 %v11080
  %11099 = vmatpush.bf16.msra.mxu0 %v11078
  %11100 = vmatpush.bf16.msra.mxu0 %v11076
  %11101 = vmatpush.bf16.msra.mxu0 %v11074
  %11102 = vmatpush.bf16.msra.mxu0 %v11072
  %11103 = vmatpush.bf16.msra.mxu0 %v11070
  %11104 = vmatpush.bf16.msra.mxu0 %v11068
  %11105 = vmatpush.bf16.msra.mxu0 %v11066
  %11106 = vmatmul.bf16.gmra.mxu0 %v11014
  %v11107 = vpop.f32.mrf.mxu0
  %v11108 = vadd.f32 0.0, %v11107
  %v11109 = vpop.f32.mrf.mxu0
  %v11110 = vadd.f32 0.0, %v11109
  %11111 = vmatmul.bf16.gmra.mxu0 %v11015
  %v11112 = vpop.f32.mrf.mxu0
  %v11113 = vadd.f32 0.0, %v11112
  %v11114 = vpop.f32.mrf.mxu0
  %v11115 = vadd.f32 0.0, %v11114
  %11116 = vdwg.mxu0
  %11117 = vmatpush.bf16.msra.mxu0 %v11081
  %11118 = vmatpush.bf16.msra.mxu0 %v11079
  %11119 = vmatpush.bf16.msra.mxu0 %v11077
  %11120 = vmatpush.bf16.msra.mxu0 %v11075
  %11121 = vmatpush.bf16.msra.mxu0 %v11073
  %11122 = vmatpush.bf16.msra.mxu0 %v11071
  %11123 = vmatpush.bf16.msra.mxu0 %v11069
  %11124 = vmatpush.bf16.msra.mxu0 %v11067
  %11125 = vmatmul.bf16.gmra.mxu0 %v11014
  %v11126 = vpop.f32.mrf.mxu0
  %v11127 = vadd.f32 0.0, %v11126
  %v11128 = vpop.f32.mrf.mxu0
  %v11129 = vadd.f32 0.0, %v11128
  %11130 = vmatmul.bf16.gmra.mxu0 %v11015
  %v11131 = vpop.f32.mrf.mxu0
  %v11132 = vadd.f32 0.0, %v11131
  %v11133 = vpop.f32.mrf.mxu0
  %v11134 = vadd.f32 0.0, %v11133
  %11135 = vdwg.mxu0
  %v11136 = vadd.f32 %v10934, %v11108
  %v11137 = vadd.f32 %v10935, %v11127
  %v11138 = vadd.f32 %v10936, %v11110
  %v11139 = vadd.f32 %v10937, %v11129
  %v11140 = vadd.f32 %v10938, %v11113
  %v11141 = vadd.f32 %v10939, %v11132
  %v11142 = vadd.f32 %v10940, %v11115
  %v11143 = vadd.f32 %v10941, %v11134
  %s11144 = scalar_lea.vmem %s7, 1024
  %v11145 = vld [vmem:[%s11144] sm:$0xff]
  %v11146 = vld [vmem:[%s11144 + $0x8] sm:$0xff]
  %v11147 = vld [vmem:[%s11144 + $0x10] sm:$0xff]
  %v11148 = vld [vmem:[%s11144 + $0x18] sm:$0xff]
  %v11149 = vld [vmem:[%s11144 + $0x20] sm:$0xff]
  %v11150 = vld [vmem:[%s11144 + $0x28] sm:$0xff]
  %v11151 = vld [vmem:[%s11144 + $0x30] sm:$0xff]
  %v11152 = vld [vmem:[%s11144 + $0x38] sm:$0xff]
  %v11153 = vld [vmem:[%s11144 + $0x40] sm:$0xff]
  %v11154 = vld [vmem:[%s11144 + $0x48] sm:$0xff]
  %v11155 = vld [vmem:[%s11144 + $0x50] sm:$0xff]
  %v11156 = vld [vmem:[%s11144 + $0x58] sm:$0xff]
  %v11157 = vld [vmem:[%s11144 + $0x60] sm:$0xff]
  %v11158 = vld [vmem:[%s11144 + $0x68] sm:$0xff]
  %v11159 = vld [vmem:[%s11144 + $0x70] sm:$0xff]
  %v11160 = vld [vmem:[%s11144 + $0x78] sm:$0xff]
  %11161 = vst [vmem:[#allocation1] ss:$4 sm:$0xff] %v9276
  %s11162 = scalar_lea.vmem [#allocation1], 1
  %11163 = vst [vmem:[%s11162] ss:$4 sm:$0xff] %v9277
  %s11164 = scalar_lea.vmem [#allocation1], 2
  %11165 = vst [vmem:[%s11164] ss:$4 sm:$0xff] %v9278
  %s11167 = scalar_lea.vmem [#allocation1], 3
  %11168 = vst [vmem:[%s11167] ss:$4 sm:$0xff] %v9279
  %s11169 = scalar_lea.vmem [#allocation1], 32
  %11170 = vst [vmem:[%s11169] ss:$4 sm:$0xff] %v9280
  %s11171 = scalar_lea.vmem [#allocation1], 33
  %11172 = vst [vmem:[%s11171] ss:$4 sm:$0xff] %v9281
  %s11173 = scalar_lea.vmem [#allocation1], 34
  %11174 = vst [vmem:[%s11173] ss:$4 sm:$0xff] %v9282
  %s11176 = scalar_lea.vmem [#allocation1], 35
  %11177 = vst [vmem:[%s11176] ss:$4 sm:$0xff] %v9283
  %v11178 = vld.sshfl [vmem:[#allocation1] sm:$0xff pattern:$0x73625140]
  %v11179 = vld.sshfl [vmem:[#allocation1 + $0x20] sm:$0xff pattern:$0x73625140]
  %v11198 = vunpack.c.l.b16 %v11145
  %v11199 = vunpack.c.h.b16 %v11145
  %v11200 = vunpack.c.l.b16 %v11146
  %v11201 = vunpack.c.h.b16 %v11146
  %v11202 = vunpack.c.l.b16 %v11147
  %v11203 = vunpack.c.h.b16 %v11147
  %v11204 = vunpack.c.l.b16 %v11148
  %v11205 = vunpack.c.h.b16 %v11148
  %v11206 = vunpack.c.l.b16 %v11149
  %v11207 = vunpack.c.h.b16 %v11149
  %v11208 = vunpack.c.l.b16 %v11150
  %v11209 = vunpack.c.h.b16 %v11150
  %v11210 = vunpack.c.l.b16 %v11151
  %v11211 = vunpack.c.h.b16 %v11151
  %v11212 = vunpack.c.l.b16 %v11152
  %v11213 = vunpack.c.h.b16 %v11152
  %v11214 = vunpack.c.l.b16 %v11153
  %v11215 = vunpack.c.h.b16 %v11153
  %v11216 = vunpack.c.l.b16 %v11154
  %v11217 = vunpack.c.h.b16 %v11154
  %v11218 = vunpack.c.l.b16 %v11155
  %v11219 = vunpack.c.h.b16 %v11155
  %v11220 = vunpack.c.l.b16 %v11156
  %v11221 = vunpack.c.h.b16 %v11156
  %v11222 = vunpack.c.l.b16 %v11157
  %v11223 = vunpack.c.h.b16 %v11157
  %v11224 = vunpack.c.l.b16 %v11158
  %v11225 = vunpack.c.h.b16 %v11158
  %v11226 = vunpack.c.l.b16 %v11159
  %v11227 = vunpack.c.h.b16 %v11159
  %v11228 = vunpack.c.l.b16 %v11160
  %v11229 = vunpack.c.h.b16 %v11160
  %v11230 = vpack.c.b16 %v11200, %v11198
  %v11231 = vpack.c.b16 %v11201, %v11199
  %v11232 = vpack.c.b16 %v11204, %v11202
  %v11233 = vpack.c.b16 %v11205, %v11203
  %v11234 = vpack.c.b16 %v11208, %v11206
  %v11235 = vpack.c.b16 %v11209, %v11207
  %v11236 = vpack.c.b16 %v11212, %v11210
  %v11237 = vpack.c.b16 %v11213, %v11211
  %v11238 = vpack.c.b16 %v11216, %v11214
  %v11239 = vpack.c.b16 %v11217, %v11215
  %v11240 = vpack.c.b16 %v11220, %v11218
  %v11241 = vpack.c.b16 %v11221, %v11219
  %v11242 = vpack.c.b16 %v11224, %v11222
  %v11243 = vpack.c.b16 %v11225, %v11223
  %v11244 = vpack.c.b16 %v11228, %v11226
  %v11245 = vpack.c.b16 %v11229, %v11227
  %11262 = vmatpush.bf16.msra.mxu0 %v11244
  %11263 = vmatpush.bf16.msra.mxu0 %v11242
  %11264 = vmatpush.bf16.msra.mxu0 %v11240
  %11265 = vmatpush.bf16.msra.mxu0 %v11238
  %11266 = vmatpush.bf16.msra.mxu0 %v11236
  %11267 = vmatpush.bf16.msra.mxu0 %v11234
  %11268 = vmatpush.bf16.msra.mxu0 %v11232
  %11269 = vmatpush.bf16.msra.mxu0 %v11230
  %11270 = vmatmul.bf16.gmra.mxu0 %v11178
  %v11271 = vpop.f32.mrf.mxu0
  %v11272 = vadd.f32 0.0, %v11271
  %v11273 = vpop.f32.mrf.mxu0
  %v11274 = vadd.f32 0.0, %v11273
  %11275 = vmatmul.bf16.gmra.mxu0 %v11179
  %v11276 = vpop.f32.mrf.mxu0
  %v11277 = vadd.f32 0.0, %v11276
  %v11278 = vpop.f32.mrf.mxu0
  %v11279 = vadd.f32 0.0, %v11278
  %11280 = vdwg.mxu0
  %11281 = vmatpush.bf16.msra.mxu0 %v11245
  %11282 = vmatpush.bf16.msra.mxu0 %v11243
  %11283 = vmatpush.bf16.msra.mxu0 %v11241
  %11284 = vmatpush.bf16.msra.mxu0 %v11239
  %11285 = vmatpush.bf16.msra.mxu0 %v11237
  %11286 = vmatpush.bf16.msra.mxu0 %v11235
  %11287 = vmatpush.bf16.msra.mxu0 %v11233
  %11288 = vmatpush.bf16.msra.mxu0 %v11231
  %11289 = vmatmul.bf16.gmra.mxu0 %v11178
  %v11290 = vpop.f32.mrf.mxu0
  %v11291 = vadd.f32 0.0, %v11290
  %v11292 = vpop.f32.mrf.mxu0
  %v11293 = vadd.f32 0.0, %v11292
  %11294 = vmatmul.bf16.gmra.mxu0 %v11179
  %v11295 = vpop.f32.mrf.mxu0
  %v11296 = vadd.f32 0.0, %v11295
  %v11297 = vpop.f32.mrf.mxu0
  %v11298 = vadd.f32 0.0, %v11297
  %11299 = vdwg.mxu0
  %v11300 = vadd.f32 %v11136, %v11272
  %v11301 = vadd.f32 %v11137, %v11291
  %v11302 = vadd.f32 %v11138, %v11274
  %v11303 = vadd.f32 %v11139, %v11293
  %v11304 = vadd.f32 %v11140, %v11277
  %v11305 = vadd.f32 %v11141, %v11296
  %v11306 = vadd.f32 %v11142, %v11279
  %v11307 = vadd.f32 %v11143, %v11298
  %v11310 = vrot.slane %v9143, 2
  %v11311 = vrot.slane %v9147, 2
  %v11313 = vshrl.u32 %v9143, 16
  %v11315 = vrot.slane %v11313, 6
  %v11316 = vshll.u32 %v9143, 16
  %v11318 = vrot.slane %v11316, 7
  %v11319 = vor.u32 %v11315, %v11318
  %v11320 = vrot.slane %v11319, 2
  %v11322 = vshll.u32 %v11310, 16
  %v11324 = vrot.slane %v11322, 7
  %v11325 = vsel %vm9320, %v11320, %v11324
  %v11327 = vshrl.u32 %v9147, 16
  %v11329 = vrot.slane %v11327, 6
  %v11330 = vshll.u32 %v9147, 16
  %v11332 = vrot.slane %v11330, 7
  %v11333 = vor.u32 %v11329, %v11332
  %v11334 = vrot.slane %v11333, 2
  %v11336 = vshll.u32 %v11311, 16
  %v11338 = vrot.slane %v11336, 7
  %v11339 = vsel %vm9320, %v11334, %v11338
  %s11340 = scalar_lea.vmem %s7, 1152
  %v11341 = vld [vmem:[%s11340] sm:$0xff]
  %v11342 = vld [vmem:[%s11340 + $0x8] sm:$0xff]
  %v11343 = vld [vmem:[%s11340 + $0x10] sm:$0xff]
  %v11344 = vld [vmem:[%s11340 + $0x18] sm:$0xff]
  %v11345 = vld [vmem:[%s11340 + $0x20] sm:$0xff]
  %v11346 = vld [vmem:[%s11340 + $0x28] sm:$0xff]
  %v11347 = vld [vmem:[%s11340 + $0x30] sm:$0xff]
  %v11348 = vld [vmem:[%s11340 + $0x38] sm:$0xff]
  %v11349 = vld [vmem:[%s11340 + $0x40] sm:$0xff]
  %v11350 = vld [vmem:[%s11340 + $0x48] sm:$0xff]
  %v11351 = vld [vmem:[%s11340 + $0x50] sm:$0xff]
  %v11352 = vld [vmem:[%s11340 + $0x58] sm:$0xff]
  %v11353 = vld [vmem:[%s11340 + $0x60] sm:$0xff]
  %v11354 = vld [vmem:[%s11340 + $0x68] sm:$0xff]
  %v11355 = vld [vmem:[%s11340 + $0x70] sm:$0xff]
  %v11356 = vld [vmem:[%s11340 + $0x78] sm:$0xff]
  %11357 = vst [vmem:[#allocation1] ss:$4 sm:$0xff] %v9348
  %s11358 = scalar_lea.vmem [#allocation1], 1
  %11359 = vst [vmem:[%s11358] ss:$4 sm:$0xff] %v9362
  %s11360 = scalar_lea.vmem [#allocation1], 2
  %11361 = vst [vmem:[%s11360] ss:$4 sm:$0xff] %v9376
  %s11363 = scalar_lea.vmem [#allocation1], 3
  %11364 = vst [vmem:[%s11363] ss:$4 sm:$0xff] %v11325
  %s11365 = scalar_lea.vmem [#allocation1], 32
  %11366 = vst [vmem:[%s11365] ss:$4 sm:$0xff] %v9390
  %s11367 = scalar_lea.vmem [#allocation1], 33
  %11368 = vst [vmem:[%s11367] ss:$4 sm:$0xff] %v9404
  %s11369 = scalar_lea.vmem [#allocation1], 34
  %11370 = vst [vmem:[%s11369] ss:$4 sm:$0xff] %v9418
  %s11372 = scalar_lea.vmem [#allocation1], 35
  %11373 = vst [vmem:[%s11372] ss:$4 sm:$0xff] %v11339
  %v11374 = vld.sshfl [vmem:[#allocation1] sm:$0xff pattern:$0x73625140]
  %v11375 = vld.sshfl [vmem:[#allocation1 + $0x20] sm:$0xff pattern:$0x73625140]
  %v11394 = vunpack.c.l.b16 %v11341
  %v11395 = vunpack.c.h.b16 %v11341
  %v11396 = vunpack.c.l.b16 %v11342
  %v11397 = vunpack.c.h.b16 %v11342
  %v11398 = vunpack.c.l.b16 %v11343
  %v11399 = vunpack.c.h.b16 %v11343
  %v11400 = vunpack.c.l.b16 %v11344
  %v11401 = vunpack.c.h.b16 %v11344
  %v11402 = vunpack.c.l.b16 %v11345
  %v11403 = vunpack.c.h.b16 %v11345
  %v11404 = vunpack.c.l.b16 %v11346
  %v11405 = vunpack.c.h.b16 %v11346
  %v11406 = vunpack.c.l.b16 %v11347
  %v11407 = vunpack.c.h.b16 %v11347
  %v11408 = vunpack.c.l.b16 %v11348
  %v11409 = vunpack.c.h.b16 %v11348
  %v11410 = vunpack.c.l.b16 %v11349
  %v11411 = vunpack.c.h.b16 %v11349
  %v11412 = vunpack.c.l.b16 %v11350
  %v11413 = vunpack.c.h.b16 %v11350
  %v11414 = vunpack.c.l.b16 %v11351
  %v11415 = vunpack.c.h.b16 %v11351
  %v11416 = vunpack.c.l.b16 %v11352
  %v11417 = vunpack.c.h.b16 %v11352
  %v11418 = vunpack.c.l.b16 %v11353
  %v11419 = vunpack.c.h.b16 %v11353
  %v11420 = vunpack.c.l.b16 %v11354
  %v11421 = vunpack.c.h.b16 %v11354
  %v11422 = vunpack.c.l.b16 %v11355
  %v11423 = vunpack.c.h.b16 %v11355
  %v11424 = vunpack.c.l.b16 %v11356
  %v11425 = vunpack.c.h.b16 %v11356
  %v11426 = vpack.c.b16 %v11396, %v11394
  %v11427 = vpack.c.b16 %v11397, %v11395
  %v11428 = vpack.c.b16 %v11400, %v11398
  %v11429 = vpack.c.b16 %v11401, %v11399
  %v11430 = vpack.c.b16 %v11404, %v11402
  %v11431 = vpack.c.b16 %v11405, %v11403
  %v11432 = vpack.c.b16 %v11408, %v11406
  %v11433 = vpack.c.b16 %v11409, %v11407
  %v11434 = vpack.c.b16 %v11412, %v11410
  %v11435 = vpack.c.b16 %v11413, %v11411
  %v11436 = vpack.c.b16 %v11416, %v11414
  %v11437 = vpack.c.b16 %v11417, %v11415
  %v11438 = vpack.c.b16 %v11420, %v11418
  %v11439 = vpack.c.b16 %v11421, %v11419
  %v11440 = vpack.c.b16 %v11424, %v11422
  %v11441 = vpack.c.b16 %v11425, %v11423
  %11458 = vmatpush.bf16.msra.mxu0 %v11440
  %11459 = vmatpush.bf16.msra.mxu0 %v11438
  %11460 = vmatpush.bf16.msra.mxu0 %v11436
  %11461 = vmatpush.bf16.msra.mxu0 %v11434
  %11462 = vmatpush.bf16.msra.mxu0 %v11432
  %11463 = vmatpush.bf16.msra.mxu0 %v11430
  %11464 = vmatpush.bf16.msra.mxu0 %v11428
  %11465 = vmatpush.bf16.msra.mxu0 %v11426
  %11466 = vmatmul.bf16.gmra.mxu0 %v11374
  %v11467 = vpop.f32.mrf.mxu0
  %v11468 = vadd.f32 0.0, %v11467
  %v11469 = vpop.f32.mrf.mxu0
  %v11470 = vadd.f32 0.0, %v11469
  %11471 = vmatmul.bf16.gmra.mxu0 %v11375
  %v11472 = vpop.f32.mrf.mxu0
  %v11473 = vadd.f32 0.0, %v11472
  %v11474 = vpop.f32.mrf.mxu0
  %v11475 = vadd.f32 0.0, %v11474
  %11476 = vdwg.mxu0
  %11477 = vmatpush.bf16.msra.mxu0 %v11441
  %11478 = vmatpush.bf16.msra.mxu0 %v11439
  %11479 = vmatpush.bf16.msra.mxu0 %v11437
  %11480 = vmatpush.bf16.msra.mxu0 %v11435
  %11481 = vmatpush.bf16.msra.mxu0 %v11433
  %11482 = vmatpush.bf16.msra.mxu0 %v11431
  %11483 = vmatpush.bf16.msra.mxu0 %v11429
  %11484 = vmatpush.bf16.msra.mxu0 %v11427
  %11485 = vmatmul.bf16.gmra.mxu0 %v11374
  %v11486 = vpop.f32.mrf.mxu0
  %v11487 = vadd.f32 0.0, %v11486
  %v11488 = vpop.f32.mrf.mxu0
  %v11489 = vadd.f32 0.0, %v11488
  %11490 = vmatmul.bf16.gmra.mxu0 %v11375
  %v11491 = vpop.f32.mrf.mxu0
  %v11492 = vadd.f32 0.0, %v11491
  %v11493 = vpop.f32.mrf.mxu0
  %v11494 = vadd.f32 0.0, %v11493
  %11495 = vdwg.mxu0
  %v11496 = vadd.f32 %v11300, %v11468
  %v11497 = vadd.f32 %v11301, %v11487
  %v11498 = vadd.f32 %v11302, %v11470
  %v11499 = vadd.f32 %v11303, %v11489
  %v11500 = vadd.f32 %v11304, %v11473
  %v11501 = vadd.f32 %v11305, %v11492
  %v11502 = vadd.f32 %v11306, %v11475
  %v11503 = vadd.f32 %v11307, %v11494
  %v11506 = vrot.slane %v9279, 2
  %v11507 = vrot.slane %v9283, 2
  %v11508 = vshrl.u32 %v9279, 16
  %v11510 = vrot.slane %v11508, 6
  %v11511 = vshll.u32 %v9279, 16
  %v11513 = vrot.slane %v11511, 7
  %v11514 = vor.u32 %v11510, %v11513
  %v11515 = vrot.slane %v11514, 2
  %v11517 = vshll.u32 %v11506, 16
  %v11519 = vrot.slane %v11517, 7
  %v11520 = vsel %vm9320, %v11515, %v11519
  %v11521 = vshrl.u32 %v9283, 16
  %v11523 = vrot.slane %v11521, 6
  %v11524 = vshll.u32 %v9283, 16
  %v11526 = vrot.slane %v11524, 7
  %v11527 = vor.u32 %v11523, %v11526
  %v11528 = vrot.slane %v11527, 2
  %v11530 = vshll.u32 %v11507, 16
  %v11532 = vrot.slane %v11530, 7
  %v11533 = vsel %vm9320, %v11528, %v11532
  %s11534 = scalar_lea.vmem %s7, 1280
  %v11535 = vld [vmem:[%s11534] sm:$0xff]
  %v11536 = vld [vmem:[%s11534 + $0x8] sm:$0xff]
  %v11537 = vld [vmem:[%s11534 + $0x10] sm:$0xff]
  %v11538 = vld [vmem:[%s11534 + $0x18] sm:$0xff]
  %v11539 = vld [vmem:[%s11534 + $0x20] sm:$0xff]
  %v11540 = vld [vmem:[%s11534 + $0x28] sm:$0xff]
  %v11541 = vld [vmem:[%s11534 + $0x30] sm:$0xff]
  %v11542 = vld [vmem:[%s11534 + $0x38] sm:$0xff]
  %v11543 = vld [vmem:[%s11534 + $0x40] sm:$0xff]
  %v11544 = vld [vmem:[%s11534 + $0x48] sm:$0xff]
  %v11545 = vld [vmem:[%s11534 + $0x50] sm:$0xff]
  %v11546 = vld [vmem:[%s11534 + $0x58] sm:$0xff]
  %v11547 = vld [vmem:[%s11534 + $0x60] sm:$0xff]
  %v11548 = vld [vmem:[%s11534 + $0x68] sm:$0xff]
  %v11549 = vld [vmem:[%s11534 + $0x70] sm:$0xff]
  %v11550 = vld [vmem:[%s11534 + $0x78] sm:$0xff]
  %11551 = vst [vmem:[#allocation1] ss:$4 sm:$0xff] %v9747
  %s11552 = scalar_lea.vmem [#allocation1], 1
  %11553 = vst [vmem:[%s11552] ss:$4 sm:$0xff] %v9760
  %s11554 = scalar_lea.vmem [#allocation1], 2
  %11555 = vst [vmem:[%s11554] ss:$4 sm:$0xff] %v9773
  %s11557 = scalar_lea.vmem [#allocation1], 3
  %11558 = vst [vmem:[%s11557] ss:$4 sm:$0xff] %v11520
  %s11559 = scalar_lea.vmem [#allocation1], 32
  %11560 = vst [vmem:[%s11559] ss:$4 sm:$0xff] %v9786
  %s11561 = scalar_lea.vmem [#allocation1], 33
  %11562 = vst [vmem:[%s11561] ss:$4 sm:$0xff] %v9799
  %s11563 = scalar_lea.vmem [#allocation1], 34
  %11564 = vst [vmem:[%s11563] ss:$4 sm:$0xff] %v9812
  %s11566 = scalar_lea.vmem [#allocation1], 35
  %11567 = vst [vmem:[%s11566] ss:$4 sm:$0xff] %v11533
  %v11568 = vld.sshfl [vmem:[#allocation1] sm:$0xff pattern:$0x73625140]
  %v11569 = vld.sshfl [vmem:[#allocation1 + $0x20] sm:$0xff pattern:$0x73625140]
  %v11588 = vunpack.c.l.b16 %v11535
  %v11589 = vunpack.c.h.b16 %v11535
  %v11590 = vunpack.c.l.b16 %v11536
  %v11591 = vunpack.c.h.b16 %v11536
  %v11592 = vunpack.c.l.b16 %v11537
  %v11593 = vunpack.c.h.b16 %v11537
  %v11594 = vunpack.c.l.b16 %v11538
  %v11595 = vunpack.c.h.b16 %v11538
  %v11596 = vunpack.c.l.b16 %v11539
  %v11597 = vunpack.c.h.b16 %v11539
  %v11598 = vunpack.c.l.b16 %v11540
  %v11599 = vunpack.c.h.b16 %v11540
  %v11600 = vunpack.c.l.b16 %v11541
  %v11601 = vunpack.c.h.b16 %v11541
  %v11602 = vunpack.c.l.b16 %v11542
  %v11603 = vunpack.c.h.b16 %v11542
  %v11604 = vunpack.c.l.b16 %v11543
  %v11605 = vunpack.c.h.b16 %v11543
  %v11606 = vunpack.c.l.b16 %v11544
  %v11607 = vunpack.c.h.b16 %v11544
  %v11608 = vunpack.c.l.b16 %v11545
  %v11609 = vunpack.c.h.b16 %v11545
  %v11610 = vunpack.c.l.b16 %v11546
  %v11611 = vunpack.c.h.b16 %v11546
  %v11612 = vunpack.c.l.b16 %v11547
  %v11613 = vunpack.c.h.b16 %v11547
  %v11614 = vunpack.c.l.b16 %v11548
  %v11615 = vunpack.c.h.b16 %v11548
  %v11616 = vunpack.c.l.b16 %v11549
  %v11617 = vunpack.c.h.b16 %v11549
  %v11618 = vunpack.c.l.b16 %v11550
  %v11619 = vunpack.c.h.b16 %v11550
  %v11620 = vpack.c.b16 %v11590, %v11588
  %v11621 = vpack.c.b16 %v11591, %v11589
  %v11622 = vpack.c.b16 %v11594, %v11592
  %v11623 = vpack.c.b16 %v11595, %v11593
  %v11624 = vpack.c.b16 %v11598, %v11596
  %v11625 = vpack.c.b16 %v11599, %v11597
  %v11626 = vpack.c.b16 %v11602, %v11600
  %v11627 = vpack.c.b16 %v11603, %v11601
  %v11628 = vpack.c.b16 %v11606, %v11604
  %v11629 = vpack.c.b16 %v11607, %v11605
  %v11630 = vpack.c.b16 %v11610, %v11608
  %v11631 = vpack.c.b16 %v11611, %v11609
  %v11632 = vpack.c.b16 %v11614, %v11612
  %v11633 = vpack.c.b16 %v11615, %v11613
  %v11634 = vpack.c.b16 %v11618, %v11616
  %v11635 = vpack.c.b16 %v11619, %v11617
  %11652 = vmatpush.bf16.msra.mxu0 %v11634
  %11653 = vmatpush.bf16.msra.mxu0 %v11632
  %11654 = vmatpush.bf16.msra.mxu0 %v11630
  %11655 = vmatpush.bf16.msra.mxu0 %v11628
  %11656 = vmatpush.bf16.msra.mxu0 %v11626
  %11657 = vmatpush.bf16.msra.mxu0 %v11624
  %11658 = vmatpush.bf16.msra.mxu0 %v11622
  %11659 = vmatpush.bf16.msra.mxu0 %v11620
  %11660 = vmatmul.bf16.gmra.mxu0 %v11568
  %v11661 = vpop.f32.mrf.mxu0
  %v11662 = vadd.f32 0.0, %v11661
  %v11663 = vpop.f32.mrf.mxu0
  %v11664 = vadd.f32 0.0, %v11663
  %11665 = vmatmul.bf16.gmra.mxu0 %v11569
  %v11666 = vpop.f32.mrf.mxu0
  %v11667 = vadd.f32 0.0, %v11666
  %v11668 = vpop.f32.mrf.mxu0
  %v11669 = vadd.f32 0.0, %v11668
  %11670 = vdwg.mxu0
  %11671 = vmatpush.bf16.msra.mxu0 %v11635
  %11672 = vmatpush.bf16.msra.mxu0 %v11633
  %11673 = vmatpush.bf16.msra.mxu0 %v11631
  %11674 = vmatpush.bf16.msra.mxu0 %v11629
  %11675 = vmatpush.bf16.msra.mxu0 %v11627
  %11676 = vmatpush.bf16.msra.mxu0 %v11625
  %11677 = vmatpush.bf16.msra.mxu0 %v11623
  %11678 = vmatpush.bf16.msra.mxu0 %v11621
  %11679 = vmatmul.bf16.gmra.mxu0 %v11568
  %v11680 = vpop.f32.mrf.mxu0
  %v11681 = vadd.f32 0.0, %v11680
  %v11682 = vpop.f32.mrf.mxu0
  %v11683 = vadd.f32 0.0, %v11682
  %11684 = vmatmul.bf16.gmra.mxu0 %v11569
  %v11685 = vpop.f32.mrf.mxu0
  %v11686 = vadd.f32 0.0, %v11685
  %v11687 = vpop.f32.mrf.mxu0
  %v11688 = vadd.f32 0.0, %v11687
  %11689 = vdwg.mxu0
  %v11690 = vadd.f32 %v11496, %v11662
  %v11691 = vadd.f32 %v11497, %v11681
  %v11692 = vadd.f32 %v11498, %v11664
  %v11693 = vadd.f32 %v11499, %v11683
  %v11694 = vadd.f32 %v11500, %v11667
  %v11695 = vadd.f32 %v11501, %v11686
  %v11696 = vadd.f32 %v11502, %v11669
  %v11697 = vadd.f32 %v11503, %v11688
  %v11698 = vrot.slane %v9143, 7
  %v11699 = vrot.slane %v11698, 2
  %v11700 = vrot.slane %v11310, 7
  %v11701 = vsel %vm9986, %v11699, %v11700
  %v11702 = vrot.slane %v9147, 7
  %v11703 = vrot.slane %v11702, 2
  %v11704 = vrot.slane %v11311, 7
  %v11705 = vsel %vm9986, %v11703, %v11704
  %s11706 = scalar_lea.vmem %s7, 1408
  %v11707 = vld [vmem:[%s11706] sm:$0xff]
  %v11708 = vld [vmem:[%s11706 + $0x8] sm:$0xff]
  %v11709 = vld [vmem:[%s11706 + $0x10] sm:$0xff]
  %v11710 = vld [vmem:[%s11706 + $0x18] sm:$0xff]
  %v11711 = vld [vmem:[%s11706 + $0x20] sm:$0xff]
  %v11712 = vld [vmem:[%s11706 + $0x28] sm:$0xff]
  %v11713 = vld [vmem:[%s11706 + $0x30] sm:$0xff]
  %v11714 = vld [vmem:[%s11706 + $0x38] sm:$0xff]
  %v11715 = vld [vmem:[%s11706 + $0x40] sm:$0xff]
  %v11716 = vld [vmem:[%s11706 + $0x48] sm:$0xff]
  %v11717 = vld [vmem:[%s11706 + $0x50] sm:$0xff]
  %v11718 = vld [vmem:[%s11706 + $0x58] sm:$0xff]
  %v11719 = vld [vmem:[%s11706 + $0x60] sm:$0xff]
  %v11720 = vld [vmem:[%s11706 + $0x68] sm:$0xff]
  %v11721 = vld [vmem:[%s11706 + $0x70] sm:$0xff]
  %v11722 = vld [vmem:[%s11706 + $0x78] sm:$0xff]
  %11723 = vst [vmem:[#allocation1] ss:$4 sm:$0xff] %v9994
  %s11724 = scalar_lea.vmem [#allocation1], 1
  %11725 = vst [vmem:[%s11724] ss:$4 sm:$0xff] %v9998
  %s11726 = scalar_lea.vmem [#allocation1], 2
  %11727 = vst [vmem:[%s11726] ss:$4 sm:$0xff] %v10002
  %s11729 = scalar_lea.vmem [#allocation1], 3
  %11730 = vst [vmem:[%s11729] ss:$4 sm:$0xff] %v11701
  %s11731 = scalar_lea.vmem [#allocation1], 32
  %11732 = vst [vmem:[%s11731] ss:$4 sm:$0xff] %v10006
  %s11733 = scalar_lea.vmem [#allocation1], 33
  %11734 = vst [vmem:[%s11733] ss:$4 sm:$0xff] %v10010
  %s11735 = scalar_lea.vmem [#allocation1], 34
  %11736 = vst [vmem:[%s11735] ss:$4 sm:$0xff] %v10014
  %s11738 = scalar_lea.vmem [#allocation1], 35
  %11739 = vst [vmem:[%s11738] ss:$4 sm:$0xff] %v11705
  %v11740 = vld.sshfl [vmem:[#allocation1] sm:$0xff pattern:$0x73625140]
  %v11741 = vld.sshfl [vmem:[#allocation1 + $0x20] sm:$0xff pattern:$0x73625140]
  %v11760 = vunpack.c.l.b16 %v11707
  %v11761 = vunpack.c.h.b16 %v11707
  %v11762 = vunpack.c.l.b16 %v11708
  %v11763 = vunpack.c.h.b16 %v11708
  %v11764 = vunpack.c.l.b16 %v11709
  %v11765 = vunpack.c.h.b16 %v11709
  %v11766 = vunpack.c.l.b16 %v11710
  %v11767 = vunpack.c.h.b16 %v11710
  %v11768 = vunpack.c.l.b16 %v11711
  %v11769 = vunpack.c.h.b16 %v11711
  %v11770 = vunpack.c.l.b16 %v11712
  %v11771 = vunpack.c.h.b16 %v11712
  %v11772 = vunpack.c.l.b16 %v11713
  %v11773 = vunpack.c.h.b16 %v11713
  %v11774 = vunpack.c.l.b16 %v11714
  %v11775 = vunpack.c.h.b16 %v11714
  %v11776 = vunpack.c.l.b16 %v11715
  %v11777 = vunpack.c.h.b16 %v11715
  %v11778 = vunpack.c.l.b16 %v11716
  %v11779 = vunpack.c.h.b16 %v11716
  %v11780 = vunpack.c.l.b16 %v11717
  %v11781 = vunpack.c.h.b16 %v11717
  %v11782 = vunpack.c.l.b16 %v11718
  %v11783 = vunpack.c.h.b16 %v11718
  %v11784 = vunpack.c.l.b16 %v11719
  %v11785 = vunpack.c.h.b16 %v11719
  %v11786 = vunpack.c.l.b16 %v11720
  %v11787 = vunpack.c.h.b16 %v11720
  %v11788 = vunpack.c.l.b16 %v11721
  %v11789 = vunpack.c.h.b16 %v11721
  %v11790 = vunpack.c.l.b16 %v11722
  %v11791 = vunpack.c.h.b16 %v11722
  %v11792 = vpack.c.b16 %v11762, %v11760
  %v11793 = vpack.c.b16 %v11763, %v11761
  %v11794 = vpack.c.b16 %v11766, %v11764
  %v11795 = vpack.c.b16 %v11767, %v11765
  %v11796 = vpack.c.b16 %v11770, %v11768
  %v11797 = vpack.c.b16 %v11771, %v11769
  %v11798 = vpack.c.b16 %v11774, %v11772
  %v11799 = vpack.c.b16 %v11775, %v11773
  %v11800 = vpack.c.b16 %v11778, %v11776
  %v11801 = vpack.c.b16 %v11779, %v11777
  %v11802 = vpack.c.b16 %v11782, %v11780
  %v11803 = vpack.c.b16 %v11783, %v11781
  %v11804 = vpack.c.b16 %v11786, %v11784
  %v11805 = vpack.c.b16 %v11787, %v11785
  %v11806 = vpack.c.b16 %v11790, %v11788
  %v11807 = vpack.c.b16 %v11791, %v11789
  %11824 = vmatpush.bf16.msra.mxu0 %v11806
  %11825 = vmatpush.bf16.msra.mxu0 %v11804
  %11826 = vmatpush.bf16.msra.mxu0 %v11802
  %11827 = vmatpush.bf16.msra.mxu0 %v11800
  %11828 = vmatpush.bf16.msra.mxu0 %v11798
  %11829 = vmatpush.bf16.msra.mxu0 %v11796
  %11830 = vmatpush.bf16.msra.mxu0 %v11794
  %11831 = vmatpush.bf16.msra.mxu0 %v11792
  %11832 = vmatmul.bf16.gmra.mxu0 %v11740
  %v11833 = vpop.f32.mrf.mxu0
  %v11834 = vadd.f32 0.0, %v11833
  %v11835 = vpop.f32.mrf.mxu0
  %v11836 = vadd.f32 0.0, %v11835
  %11837 = vmatmul.bf16.gmra.mxu0 %v11741
  %v11838 = vpop.f32.mrf.mxu0
  %v11839 = vadd.f32 0.0, %v11838
  %v11840 = vpop.f32.mrf.mxu0
  %v11841 = vadd.f32 0.0, %v11840
  %11842 = vdwg.mxu0
  %11843 = vmatpush.bf16.msra.mxu0 %v11807
  %11844 = vmatpush.bf16.msra.mxu0 %v11805
  %11845 = vmatpush.bf16.msra.mxu0 %v11803
  %11846 = vmatpush.bf16.msra.mxu0 %v11801
  %11847 = vmatpush.bf16.msra.mxu0 %v11799
  %11848 = vmatpush.bf16.msra.mxu0 %v11797
  %11849 = vmatpush.bf16.msra.mxu0 %v11795
  %11850 = vmatpush.bf16.msra.mxu0 %v11793
  %11851 = vmatmul.bf16.gmra.mxu0 %v11740
  %v11852 = vpop.f32.mrf.mxu0
  %v11853 = vadd.f32 0.0, %v11852
  %v11854 = vpop.f32.mrf.mxu0
  %v11855 = vadd.f32 0.0, %v11854
  %11856 = vmatmul.bf16.gmra.mxu0 %v11741
  %v11857 = vpop.f32.mrf.mxu0
  %v11858 = vadd.f32 0.0, %v11857
  %v11859 = vpop.f32.mrf.mxu0
  %v11860 = vadd.f32 0.0, %v11859
  %11861 = vdwg.mxu0
  %v11862 = vadd.f32 %v11690, %v11834
  %v11863 = vadd.f32 %v11691, %v11853
  %v11864 = vadd.f32 %v11692, %v11836
  %v11865 = vadd.f32 %v11693, %v11855
  %v11866 = vadd.f32 %v11694, %v11839
  %v11867 = vadd.f32 %v11695, %v11858
  %v11868 = vadd.f32 %v11696, %v11841
  %v11869 = vadd.f32 %v11697, %v11860
  %s11870 = scalar_lea.vmem %s7, 1536
  %v11871 = vld [vmem:[%s11870] sm:$0xff]
  %v11872 = vld [vmem:[%s11870 + $0x8] sm:$0xff]
  %v11873 = vld [vmem:[%s11870 + $0x10] sm:$0xff]
  %v11874 = vld [vmem:[%s11870 + $0x18] sm:$0xff]
  %v11875 = vld [vmem:[%s11870 + $0x20] sm:$0xff]
  %v11876 = vld [vmem:[%s11870 + $0x28] sm:$0xff]
  %v11877 = vld [vmem:[%s11870 + $0x30] sm:$0xff]
  %v11878 = vld [vmem:[%s11870 + $0x38] sm:$0xff]
  %v11879 = vld [vmem:[%s11870 + $0x40] sm:$0xff]
  %v11880 = vld [vmem:[%s11870 + $0x48] sm:$0xff]
  %v11881 = vld [vmem:[%s11870 + $0x50] sm:$0xff]
  %v11882 = vld [vmem:[%s11870 + $0x58] sm:$0xff]
  %v11883 = vld [vmem:[%s11870 + $0x60] sm:$0xff]
  %v11884 = vld [vmem:[%s11870 + $0x68] sm:$0xff]
  %v11885 = vld [vmem:[%s11870 + $0x70] sm:$0xff]
  %v11886 = vld [vmem:[%s11870 + $0x78] sm:$0xff]
  %11887 = vst [vmem:[#allocation1] ss:$4 sm:$0xff] %v8845
  %s11888 = scalar_lea.vmem [#allocation1], 1
  %11889 = vst [vmem:[%s11888] ss:$4 sm:$0xff] %v8846
  %s11890 = scalar_lea.vmem [#allocation1], 2
  %11891 = vst [vmem:[%s11890] ss:$4 sm:$0xff] %v8847
  %s11892 = scalar_lea.vmem [#allocation1], 3
  %11893 = vst [vmem:[%s11892] ss:$4 sm:$0xff] %v8711
  %s11894 = scalar_lea.vmem [#allocation1], 32
  %11895 = vst [vmem:[%s11894] ss:$4 sm:$0xff] %v8849
  %s11896 = scalar_lea.vmem [#allocation1], 33
  %11897 = vst [vmem:[%s11896] ss:$4 sm:$0xff] %v8850
  %s11898 = scalar_lea.vmem [#allocation1], 34
  %11899 = vst [vmem:[%s11898] ss:$4 sm:$0xff] %v8851
  %s11900 = scalar_lea.vmem [#allocation1], 35
  %11901 = vst [vmem:[%s11900] ss:$4 sm:$0xff] %v8711
  %v11902 = vld.sshfl [vmem:[#allocation1] sm:$0xff pattern:$0x73625140]
  %v11903 = vld.sshfl [vmem:[#allocation1 + $0x20] sm:$0xff pattern:$0x73625140]
  %v11922 = vunpack.c.l.b16 %v11871
  %v11923 = vunpack.c.h.b16 %v11871
  %v11924 = vunpack.c.l.b16 %v11872
  %v11925 = vunpack.c.h.b16 %v11872
  %v11926 = vunpack.c.l.b16 %v11873
  %v11927 = vunpack.c.h.b16 %v11873
  %v11928 = vunpack.c.l.b16 %v11874
  %v11929 = vunpack.c.h.b16 %v11874
  %v11930 = vunpack.c.l.b16 %v11875
  %v11931 = vunpack.c.h.b16 %v11875
  %v11932 = vunpack.c.l.b16 %v11876
  %v11933 = vunpack.c.h.b16 %v11876
  %v11934 = vunpack.c.l.b16 %v11877
  %v11935 = vunpack.c.h.b16 %v11877
  %v11936 = vunpack.c.l.b16 %v11878
  %v11937 = vunpack.c.h.b16 %v11878
  %v11938 = vunpack.c.l.b16 %v11879
  %v11939 = vunpack.c.h.b16 %v11879
  %v11940 = vunpack.c.l.b16 %v11880
  %v11941 = vunpack.c.h.b16 %v11880
  %v11942 = vunpack.c.l.b16 %v11881
  %v11943 = vunpack.c.h.b16 %v11881
  %v11944 = vunpack.c.l.b16 %v11882
  %v11945 = vunpack.c.h.b16 %v11882
  %v11946 = vunpack.c.l.b16 %v11883
  %v11947 = vunpack.c.h.b16 %v11883
  %v11948 = vunpack.c.l.b16 %v11884
  %v11949 = vunpack.c.h.b16 %v11884
  %v11950 = vunpack.c.l.b16 %v11885
  %v11951 = vunpack.c.h.b16 %v11885
  %v11952 = vunpack.c.l.b16 %v11886
  %v11953 = vunpack.c.h.b16 %v11886
  %v11954 = vpack.c.b16 %v11924, %v11922
  %v11955 = vpack.c.b16 %v11925, %v11923
  %v11956 = vpack.c.b16 %v11928, %v11926
  %v11957 = vpack.c.b16 %v11929, %v11927
  %v11958 = vpack.c.b16 %v11932, %v11930
  %v11959 = vpack.c.b16 %v11933, %v11931
  %v11960 = vpack.c.b16 %v11936, %v11934
  %v11961 = vpack.c.b16 %v11937, %v11935
  %v11962 = vpack.c.b16 %v11940, %v11938
  %v11963 = vpack.c.b16 %v11941, %v11939
  %v11964 = vpack.c.b16 %v11944, %v11942
  %v11965 = vpack.c.b16 %v11945, %v11943
  %v11966 = vpack.c.b16 %v11948, %v11946
  %v11967 = vpack.c.b16 %v11949, %v11947
  %v11968 = vpack.c.b16 %v11952, %v11950
  %v11969 = vpack.c.b16 %v11953, %v11951
  %11986 = vmatpush.bf16.msra.mxu0 %v11968
  %11987 = vmatpush.bf16.msra.mxu0 %v11966
  %11988 = vmatpush.bf16.msra.mxu0 %v11964
  %11989 = vmatpush.bf16.msra.mxu0 %v11962
  %11990 = vmatpush.bf16.msra.mxu0 %v11960
  %11991 = vmatpush.bf16.msra.mxu0 %v11958
  %11992 = vmatpush.bf16.msra.mxu0 %v11956
  %11993 = vmatpush.bf16.msra.mxu0 %v11954
  %11994 = vmatmul.bf16.gmra.mxu0 %v11902
  %v11995 = vpop.f32.mrf.mxu0
  %v11996 = vadd.f32 0.0, %v11995
  %v11997 = vpop.f32.mrf.mxu0
  %v11998 = vadd.f32 0.0, %v11997
  %11999 = vmatmul.bf16.gmra.mxu0 %v11903
  %v12000 = vpop.f32.mrf.mxu0
  %v12001 = vadd.f32 0.0, %v12000
  %v12002 = vpop.f32.mrf.mxu0
  %v12003 = vadd.f32 0.0, %v12002
  %12004 = vdwg.mxu0
  %12005 = vmatpush.bf16.msra.mxu0 %v11969
  %12006 = vmatpush.bf16.msra.mxu0 %v11967
  %12007 = vmatpush.bf16.msra.mxu0 %v11965
  %12008 = vmatpush.bf16.msra.mxu0 %v11963
  %12009 = vmatpush.bf16.msra.mxu0 %v11961
  %12010 = vmatpush.bf16.msra.mxu0 %v11959
  %12011 = vmatpush.bf16.msra.mxu0 %v11957
  %12012 = vmatpush.bf16.msra.mxu0 %v11955
  %12013 = vmatmul.bf16.gmra.mxu0 %v11902
  %v12014 = vpop.f32.mrf.mxu0
  %v12015 = vadd.f32 0.0, %v12014
  %v12016 = vpop.f32.mrf.mxu0
  %v12017 = vadd.f32 0.0, %v12016
  %12018 = vmatmul.bf16.gmra.mxu0 %v11903
  %v12019 = vpop.f32.mrf.mxu0
  %v12020 = vadd.f32 0.0, %v12019
  %v12021 = vpop.f32.mrf.mxu0
  %v12022 = vadd.f32 0.0, %v12021
  %12023 = vdwg.mxu0
  %v12024 = vadd.f32 %v11862, %v11996
  %v12025 = vadd.f32 %v11863, %v12015
  %v12026 = vadd.f32 %v11864, %v11998
  %v12027 = vadd.f32 %v11865, %v12017
  %v12028 = vadd.f32 %v11866, %v12001
  %v12029 = vadd.f32 %v11867, %v12020
  %v12030 = vadd.f32 %v11868, %v12003
  %v12031 = vadd.f32 %v11869, %v12022
  %s12032 = scalar_lea.vmem %s7, 1664
  %v12033 = vld [vmem:[%s12032] sm:$0xff]
  %v12034 = vld [vmem:[%s12032 + $0x8] sm:$0xff]
  %v12035 = vld [vmem:[%s12032 + $0x10] sm:$0xff]
  %v12036 = vld [vmem:[%s12032 + $0x18] sm:$0xff]
  %v12037 = vld [vmem:[%s12032 + $0x20] sm:$0xff]
  %v12038 = vld [vmem:[%s12032 + $0x28] sm:$0xff]
  %v12039 = vld [vmem:[%s12032 + $0x30] sm:$0xff]
  %v12040 = vld [vmem:[%s12032 + $0x38] sm:$0xff]
  %v12041 = vld [vmem:[%s12032 + $0x40] sm:$0xff]
  %v12042 = vld [vmem:[%s12032 + $0x48] sm:$0xff]
  %v12043 = vld [vmem:[%s12032 + $0x50] sm:$0xff]
  %v12044 = vld [vmem:[%s12032 + $0x58] sm:$0xff]
  %v12045 = vld [vmem:[%s12032 + $0x60] sm:$0xff]
  %v12046 = vld [vmem:[%s12032 + $0x68] sm:$0xff]
  %v12047 = vld [vmem:[%s12032 + $0x70] sm:$0xff]
  %v12048 = vld [vmem:[%s12032 + $0x78] sm:$0xff]
  %12049 = vst [vmem:[#allocation1] ss:$4 sm:$0xff] %v10397
  %s12050 = scalar_lea.vmem [#allocation1], 1
  %12051 = vst [vmem:[%s12050] ss:$4 sm:$0xff] %v10411
  %s12052 = scalar_lea.vmem [#allocation1], 2
  %12053 = vst [vmem:[%s12052] ss:$4 sm:$0xff] %v10425
  %s12054 = scalar_lea.vmem [#allocation1], 3
  %12055 = vst [vmem:[%s12054] ss:$4 sm:$0xff] %v9334
  %s12056 = scalar_lea.vmem [#allocation1], 32
  %12057 = vst [vmem:[%s12056] ss:$4 sm:$0xff] %v10453
  %s12058 = scalar_lea.vmem [#allocation1], 33
  %12059 = vst [vmem:[%s12058] ss:$4 sm:$0xff] %v10467
  %s12060 = scalar_lea.vmem [#allocation1], 34
  %12061 = vst [vmem:[%s12060] ss:$4 sm:$0xff] %v10481
  %s12062 = scalar_lea.vmem [#allocation1], 35
  %12063 = vst [vmem:[%s12062] ss:$4 sm:$0xff] %v9334
  %v12064 = vld.sshfl [vmem:[#allocation1] sm:$0xff pattern:$0x73625140]
  %v12065 = vld.sshfl [vmem:[#allocation1 + $0x20] sm:$0xff pattern:$0x73625140]
  %v12084 = vunpack.c.l.b16 %v12033
  %v12085 = vunpack.c.h.b16 %v12033
  %v12086 = vunpack.c.l.b16 %v12034
  %v12087 = vunpack.c.h.b16 %v12034
  %v12088 = vunpack.c.l.b16 %v12035
  %v12089 = vunpack.c.h.b16 %v12035
  %v12090 = vunpack.c.l.b16 %v12036
  %v12091 = vunpack.c.h.b16 %v12036
  %v12092 = vunpack.c.l.b16 %v12037
  %v12093 = vunpack.c.h.b16 %v12037
  %v12094 = vunpack.c.l.b16 %v12038
  %v12095 = vunpack.c.h.b16 %v12038
  %v12096 = vunpack.c.l.b16 %v12039
  %v12097 = vunpack.c.h.b16 %v12039
  %v12098 = vunpack.c.l.b16 %v12040
  %v12099 = vunpack.c.h.b16 %v12040
  %v12100 = vunpack.c.l.b16 %v12041
  %v12101 = vunpack.c.h.b16 %v12041
  %v12102 = vunpack.c.l.b16 %v12042
  %v12103 = vunpack.c.h.b16 %v12042
  %v12104 = vunpack.c.l.b16 %v12043
  %v12105 = vunpack.c.h.b16 %v12043
  %v12106 = vunpack.c.l.b16 %v12044
  %v12107 = vunpack.c.h.b16 %v12044
  %v12108 = vunpack.c.l.b16 %v12045
  %v12109 = vunpack.c.h.b16 %v12045
  %v12110 = vunpack.c.l.b16 %v12046
  %v12111 = vunpack.c.h.b16 %v12046
  %v12112 = vunpack.c.l.b16 %v12047
  %v12113 = vunpack.c.h.b16 %v12047
  %v12114 = vunpack.c.l.b16 %v12048
  %v12115 = vunpack.c.h.b16 %v12048
  %v12116 = vpack.c.b16 %v12086, %v12084
  %v12117 = vpack.c.b16 %v12087, %v12085
  %v12118 = vpack.c.b16 %v12090, %v12088
  %v12119 = vpack.c.b16 %v12091, %v12089
  %v12120 = vpack.c.b16 %v12094, %v12092
  %v12121 = vpack.c.b16 %v12095, %v12093
  %v12122 = vpack.c.b16 %v12098, %v12096
  %v12123 = vpack.c.b16 %v12099, %v12097
  %v12124 = vpack.c.b16 %v12102, %v12100
  %v12125 = vpack.c.b16 %v12103, %v12101
  %v12126 = vpack.c.b16 %v12106, %v12104
  %v12127 = vpack.c.b16 %v12107, %v12105
  %v12128 = vpack.c.b16 %v12110, %v12108
  %v12129 = vpack.c.b16 %v12111, %v12109
  %v12130 = vpack.c.b16 %v12114, %v12112
  %v12131 = vpack.c.b16 %v12115, %v12113
  %12148 = vmatpush.bf16.msra.mxu0 %v12130
  %12149 = vmatpush.bf16.msra.mxu0 %v12128
  %12150 = vmatpush.bf16.msra.mxu0 %v12126
  %12151 = vmatpush.bf16.msra.mxu0 %v12124
  %12152 = vmatpush.bf16.msra.mxu0 %v12122
  %12153 = vmatpush.bf16.msra.mxu0 %v12120
  %12154 = vmatpush.bf16.msra.mxu0 %v12118
  %12155 = vmatpush.bf16.msra.mxu0 %v12116
  %12156 = vmatmul.bf16.gmra.mxu0 %v12064
  %v12157 = vpop.f32.mrf.mxu0
  %v12158 = vadd.f32 0.0, %v12157
  %v12159 = vpop.f32.mrf.mxu0
  %v12160 = vadd.f32 0.0, %v12159
  %12161 = vmatmul.bf16.gmra.mxu0 %v12065
  %v12162 = vpop.f32.mrf.mxu0
  %v12163 = vadd.f32 0.0, %v12162
  %v12164 = vpop.f32.mrf.mxu0
  %v12165 = vadd.f32 0.0, %v12164
  %12166 = vdwg.mxu0
  %12167 = vmatpush.bf16.msra.mxu0 %v12131
  %12168 = vmatpush.bf16.msra.mxu0 %v12129
  %12169 = vmatpush.bf16.msra.mxu0 %v12127
  %12170 = vmatpush.bf16.msra.mxu0 %v12125
  %12171 = vmatpush.bf16.msra.mxu0 %v12123
  %12172 = vmatpush.bf16.msra.mxu0 %v12121
  %12173 = vmatpush.bf16.msra.mxu0 %v12119
  %12174 = vmatpush.bf16.msra.mxu0 %v12117
  %12175 = vmatmul.bf16.gmra.mxu0 %v12064
  %v12176 = vpop.f32.mrf.mxu0
  %v12177 = vadd.f32 0.0, %v12176
  %v12178 = vpop.f32.mrf.mxu0
  %v12179 = vadd.f32 0.0, %v12178
  %12180 = vmatmul.bf16.gmra.mxu0 %v12065
  %v12181 = vpop.f32.mrf.mxu0
  %v12182 = vadd.f32 0.0, %v12181
  %v12183 = vpop.f32.mrf.mxu0
  %v12184 = vadd.f32 0.0, %v12183
  %12185 = vdwg.mxu0
  %v12186 = vadd.f32 %v12024, %v12158
  %v12187 = vadd.f32 %v12025, %v12177
  %v12188 = vadd.f32 %v12026, %v12160
  %v12189 = vadd.f32 %v12027, %v12179
  %v12190 = vadd.f32 %v12028, %v12163
  %v12191 = vadd.f32 %v12029, %v12182
  %v12192 = vadd.f32 %v12030, %v12165
  %v12193 = vadd.f32 %v12031, %v12184
  %s12194 = scalar_lea.vmem %s7, 1792
  %v12195 = vld [vmem:[%s12194] sm:$0xff]
  %v12196 = vld [vmem:[%s12194 + $0x8] sm:$0xff]
  %v12197 = vld [vmem:[%s12194 + $0x10] sm:$0xff]
  %v12198 = vld [vmem:[%s12194 + $0x18] sm:$0xff]
  %v12199 = vld [vmem:[%s12194 + $0x20] sm:$0xff]
  %v12200 = vld [vmem:[%s12194 + $0x28] sm:$0xff]
  %v12201 = vld [vmem:[%s12194 + $0x30] sm:$0xff]
  %v12202 = vld [vmem:[%s12194 + $0x38] sm:$0xff]
  %v12203 = vld [vmem:[%s12194 + $0x40] sm:$0xff]
  %v12204 = vld [vmem:[%s12194 + $0x48] sm:$0xff]
  %v12205 = vld [vmem:[%s12194 + $0x50] sm:$0xff]
  %v12206 = vld [vmem:[%s12194 + $0x58] sm:$0xff]
  %v12207 = vld [vmem:[%s12194 + $0x60] sm:$0xff]
  %v12208 = vld [vmem:[%s12194 + $0x68] sm:$0xff]
  %v12209 = vld [vmem:[%s12194 + $0x70] sm:$0xff]
  %v12210 = vld [vmem:[%s12194 + $0x78] sm:$0xff]
  %12211 = vst [vmem:[#allocation1] ss:$4 sm:$0xff] %v10693
  %s12212 = scalar_lea.vmem [#allocation1], 1
  %12213 = vst [vmem:[%s12212] ss:$4 sm:$0xff] %v10706
  %s12214 = scalar_lea.vmem [#allocation1], 2
  %12215 = vst [vmem:[%s12214] ss:$4 sm:$0xff] %v10719
  %s12216 = scalar_lea.vmem [#allocation1], 3
  %12217 = vst [vmem:[%s12216] ss:$4 sm:$0xff] %v9334
  %s12218 = scalar_lea.vmem [#allocation1], 32
  %12219 = vst [vmem:[%s12218] ss:$4 sm:$0xff] %v10745
  %s12220 = scalar_lea.vmem [#allocation1], 33
  %12221 = vst [vmem:[%s12220] ss:$4 sm:$0xff] %v10758
  %s12222 = scalar_lea.vmem [#allocation1], 34
  %12223 = vst [vmem:[%s12222] ss:$4 sm:$0xff] %v10771
  %s12224 = scalar_lea.vmem [#allocation1], 35
  %12225 = vst [vmem:[%s12224] ss:$4 sm:$0xff] %v9334
  %v12226 = vld.sshfl [vmem:[#allocation1] sm:$0xff pattern:$0x73625140]
  %v12227 = vld.sshfl [vmem:[#allocation1 + $0x20] sm:$0xff pattern:$0x73625140]
  %v12246 = vunpack.c.l.b16 %v12195
  %v12247 = vunpack.c.h.b16 %v12195
  %v12248 = vunpack.c.l.b16 %v12196
  %v12249 = vunpack.c.h.b16 %v12196
  %v12250 = vunpack.c.l.b16 %v12197
  %v12251 = vunpack.c.h.b16 %v12197
  %v12252 = vunpack.c.l.b16 %v12198
  %v12253 = vunpack.c.h.b16 %v12198
  %v12254 = vunpack.c.l.b16 %v12199
  %v12255 = vunpack.c.h.b16 %v12199
  %v12256 = vunpack.c.l.b16 %v12200
  %v12257 = vunpack.c.h.b16 %v12200
  %v12258 = vunpack.c.l.b16 %v12201
  %v12259 = vunpack.c.h.b16 %v12201
  %v12260 = vunpack.c.l.b16 %v12202
  %v12261 = vunpack.c.h.b16 %v12202
  %v12262 = vunpack.c.l.b16 %v12203
  %v12263 = vunpack.c.h.b16 %v12203
  %v12264 = vunpack.c.l.b16 %v12204
  %v12265 = vunpack.c.h.b16 %v12204
  %v12266 = vunpack.c.l.b16 %v12205
  %v12267 = vunpack.c.h.b16 %v12205
  %v12268 = vunpack.c.l.b16 %v12206
  %v12269 = vunpack.c.h.b16 %v12206
  %v12270 = vunpack.c.l.b16 %v12207
  %v12271 = vunpack.c.h.b16 %v12207
  %v12272 = vunpack.c.l.b16 %v12208
  %v12273 = vunpack.c.h.b16 %v12208
  %v12274 = vunpack.c.l.b16 %v12209
  %v12275 = vunpack.c.h.b16 %v12209
  %v12276 = vunpack.c.l.b16 %v12210
  %v12277 = vunpack.c.h.b16 %v12210
  %v12278 = vpack.c.b16 %v12248, %v12246
  %v12279 = vpack.c.b16 %v12249, %v12247
  %v12280 = vpack.c.b16 %v12252, %v12250
  %v12281 = vpack.c.b16 %v12253, %v12251
  %v12282 = vpack.c.b16 %v12256, %v12254
  %v12283 = vpack.c.b16 %v12257, %v12255
  %v12284 = vpack.c.b16 %v12260, %v12258
  %v12285 = vpack.c.b16 %v12261, %v12259
  %v12286 = vpack.c.b16 %v12264, %v12262
  %v12287 = vpack.c.b16 %v12265, %v12263
  %v12288 = vpack.c.b16 %v12268, %v12266
  %v12289 = vpack.c.b16 %v12269, %v12267
  %v12290 = vpack.c.b16 %v12272, %v12270
  %v12291 = vpack.c.b16 %v12273, %v12271
  %v12292 = vpack.c.b16 %v12276, %v12274
  %v12293 = vpack.c.b16 %v12277, %v12275
  %12310 = vmatpush.bf16.msra.mxu0 %v12292
  %12311 = vmatpush.bf16.msra.mxu0 %v12290
  %12312 = vmatpush.bf16.msra.mxu0 %v12288
  %12313 = vmatpush.bf16.msra.mxu0 %v12286
  %12314 = vmatpush.bf16.msra.mxu0 %v12284
  %12315 = vmatpush.bf16.msra.mxu0 %v12282
  %12316 = vmatpush.bf16.msra.mxu0 %v12280
  %12317 = vmatpush.bf16.msra.mxu0 %v12278
  %12318 = vmatmul.bf16.gmra.mxu0 %v12226
  %v12319 = vpop.f32.mrf.mxu0
  %v12320 = vadd.f32 0.0, %v12319
  %v12321 = vpop.f32.mrf.mxu0
  %v12322 = vadd.f32 0.0, %v12321
  %12323 = vmatmul.bf16.gmra.mxu0 %v12227
  %v12324 = vpop.f32.mrf.mxu0
  %v12325 = vadd.f32 0.0, %v12324
  %v12326 = vpop.f32.mrf.mxu0
  %v12327 = vadd.f32 0.0, %v12326
  %12328 = vdwg.mxu0
  %12329 = vmatpush.bf16.msra.mxu0 %v12293
  %12330 = vmatpush.bf16.msra.mxu0 %v12291
  %12331 = vmatpush.bf16.msra.mxu0 %v12289
  %12332 = vmatpush.bf16.msra.mxu0 %v12287
  %12333 = vmatpush.bf16.msra.mxu0 %v12285
  %12334 = vmatpush.bf16.msra.mxu0 %v12283
  %12335 = vmatpush.bf16.msra.mxu0 %v12281
  %12336 = vmatpush.bf16.msra.mxu0 %v12279
  %12337 = vmatmul.bf16.gmra.mxu0 %v12226
  %v12338 = vpop.f32.mrf.mxu0
  %v12339 = vadd.f32 0.0, %v12338
  %v12340 = vpop.f32.mrf.mxu0
  %v12341 = vadd.f32 0.0, %v12340
  %12342 = vmatmul.bf16.gmra.mxu0 %v12227
  %v12343 = vpop.f32.mrf.mxu0
  %v12344 = vadd.f32 0.0, %v12343
  %v12345 = vpop.f32.mrf.mxu0
  %v12346 = vadd.f32 0.0, %v12345
  %12347 = vdwg.mxu0
  %v12348 = vadd.f32 %v12186, %v12320
  %v12349 = vadd.f32 %v12187, %v12339
  %v12350 = vadd.f32 %v12188, %v12322
  %v12351 = vadd.f32 %v12189, %v12341
  %v12352 = vadd.f32 %v12190, %v12325
  %v12353 = vadd.f32 %v12191, %v12344
  %v12354 = vadd.f32 %v12192, %v12327
  %v12355 = vadd.f32 %v12193, %v12346
  %s12356 = scalar_lea.vmem %s7, 1920
  %v12357 = vld [vmem:[%s12356] sm:$0xff]
  %v12358 = vld [vmem:[%s12356 + $0x8] sm:$0xff]
  %v12359 = vld [vmem:[%s12356 + $0x10] sm:$0xff]
  %v12360 = vld [vmem:[%s12356 + $0x18] sm:$0xff]
  %v12361 = vld [vmem:[%s12356 + $0x20] sm:$0xff]
  %v12362 = vld [vmem:[%s12356 + $0x28] sm:$0xff]
  %v12363 = vld [vmem:[%s12356 + $0x30] sm:$0xff]
  %v12364 = vld [vmem:[%s12356 + $0x38] sm:$0xff]
  %v12365 = vld [vmem:[%s12356 + $0x40] sm:$0xff]
  %v12366 = vld [vmem:[%s12356 + $0x48] sm:$0xff]
  %v12367 = vld [vmem:[%s12356 + $0x50] sm:$0xff]
  %v12368 = vld [vmem:[%s12356 + $0x58] sm:$0xff]
  %v12369 = vld [vmem:[%s12356 + $0x60] sm:$0xff]
  %v12370 = vld [vmem:[%s12356 + $0x68] sm:$0xff]
  %v12371 = vld [vmem:[%s12356 + $0x70] sm:$0xff]
  %v12372 = vld [vmem:[%s12356 + $0x78] sm:$0xff]
  %12373 = vst [vmem:[#allocation1] ss:$4 sm:$0xff] %v10949
  %s12374 = scalar_lea.vmem [#allocation1], 1
  %12375 = vst [vmem:[%s12374] ss:$4 sm:$0xff] %v10953
  %s12376 = scalar_lea.vmem [#allocation1], 2
  %12377 = vst [vmem:[%s12376] ss:$4 sm:$0xff] %v10957
  %s12378 = scalar_lea.vmem [#allocation1], 3
  %12379 = vst [vmem:[%s12378] ss:$4 sm:$0xff] %v9990
  %s12380 = scalar_lea.vmem [#allocation1], 32
  %12381 = vst [vmem:[%s12380] ss:$4 sm:$0xff] %v10965
  %s12382 = scalar_lea.vmem [#allocation1], 33
  %12383 = vst [vmem:[%s12382] ss:$4 sm:$0xff] %v10969
  %s12384 = scalar_lea.vmem [#allocation1], 34
  %12385 = vst [vmem:[%s12384] ss:$4 sm:$0xff] %v10973
  %s12386 = scalar_lea.vmem [#allocation1], 35
  %12387 = vst [vmem:[%s12386] ss:$4 sm:$0xff] %v9990
  %v12388 = vld.sshfl [vmem:[#allocation1] sm:$0xff pattern:$0x73625140]
  %v12389 = vld.sshfl [vmem:[#allocation1 + $0x20] sm:$0xff pattern:$0x73625140]
  %v12408 = vunpack.c.l.b16 %v12357
  %v12409 = vunpack.c.h.b16 %v12357
  %v12410 = vunpack.c.l.b16 %v12358
  %v12411 = vunpack.c.h.b16 %v12358
  %v12412 = vunpack.c.l.b16 %v12359
  %v12413 = vunpack.c.h.b16 %v12359
  %v12414 = vunpack.c.l.b16 %v12360
  %v12415 = vunpack.c.h.b16 %v12360
  %v12416 = vunpack.c.l.b16 %v12361
  %v12417 = vunpack.c.h.b16 %v12361
  %v12418 = vunpack.c.l.b16 %v12362
  %v12419 = vunpack.c.h.b16 %v12362
  %v12420 = vunpack.c.l.b16 %v12363
  %v12421 = vunpack.c.h.b16 %v12363
  %v12422 = vunpack.c.l.b16 %v12364
  %v12423 = vunpack.c.h.b16 %v12364
  %v12424 = vunpack.c.l.b16 %v12365
  %v12425 = vunpack.c.h.b16 %v12365
  %v12426 = vunpack.c.l.b16 %v12366
  %v12427 = vunpack.c.h.b16 %v12366
  %v12428 = vunpack.c.l.b16 %v12367
  %v12429 = vunpack.c.h.b16 %v12367
  %v12430 = vunpack.c.l.b16 %v12368
  %v12431 = vunpack.c.h.b16 %v12368
  %v12432 = vunpack.c.l.b16 %v12369
  %v12433 = vunpack.c.h.b16 %v12369
  %v12434 = vunpack.c.l.b16 %v12370
  %v12435 = vunpack.c.h.b16 %v12370
  %v12436 = vunpack.c.l.b16 %v12371
  %v12437 = vunpack.c.h.b16 %v12371
  %v12438 = vunpack.c.l.b16 %v12372
  %v12439 = vunpack.c.h.b16 %v12372
  %v12440 = vpack.c.b16 %v12410, %v12408
  %v12441 = vpack.c.b16 %v12411, %v12409
  %v12442 = vpack.c.b16 %v12414, %v12412
  %v12443 = vpack.c.b16 %v12415, %v12413
  %v12444 = vpack.c.b16 %v12418, %v12416
  %v12445 = vpack.c.b16 %v12419, %v12417
  %v12446 = vpack.c.b16 %v12422, %v12420
  %v12447 = vpack.c.b16 %v12423, %v12421
  %v12448 = vpack.c.b16 %v12426, %v12424
  %v12449 = vpack.c.b16 %v12427, %v12425
  %v12450 = vpack.c.b16 %v12430, %v12428
  %v12451 = vpack.c.b16 %v12431, %v12429
  %v12452 = vpack.c.b16 %v12434, %v12432
  %v12453 = vpack.c.b16 %v12435, %v12433
  %v12454 = vpack.c.b16 %v12438, %v12436
  %v12455 = vpack.c.b16 %v12439, %v12437
  %12472 = vmatpush.bf16.msra.mxu0 %v12454
  %12473 = vmatpush.bf16.msra.mxu0 %v12452
  %12474 = vmatpush.bf16.msra.mxu0 %v12450
  %12475 = vmatpush.bf16.msra.mxu0 %v12448
  %12476 = vmatpush.bf16.msra.mxu0 %v12446
  %12477 = vmatpush.bf16.msra.mxu0 %v12444
  %12478 = vmatpush.bf16.msra.mxu0 %v12442
  %12479 = vmatpush.bf16.msra.mxu0 %v12440
  %12480 = vmatmul.bf16.gmra.mxu0 %v12388
  %v12481 = vpop.f32.mrf.mxu0
  %v12482 = vadd.f32 0.0, %v12481
  %v12483 = vpop.f32.mrf.mxu0
  %v12484 = vadd.f32 0.0, %v12483
  %12485 = vmatmul.bf16.gmra.mxu0 %v12389
  %v12486 = vpop.f32.mrf.mxu0
  %v12487 = vadd.f32 0.0, %v12486
  %v12488 = vpop.f32.mrf.mxu0
  %v12489 = vadd.f32 0.0, %v12488
  %12490 = vdwg.mxu0
  %12491 = vmatpush.bf16.msra.mxu0 %v12455
  %12492 = vmatpush.bf16.msra.mxu0 %v12453
  %12493 = vmatpush.bf16.msra.mxu0 %v12451
  %12494 = vmatpush.bf16.msra.mxu0 %v12449
  %12495 = vmatpush.bf16.msra.mxu0 %v12447
  %12496 = vmatpush.bf16.msra.mxu0 %v12445
  %12497 = vmatpush.bf16.msra.mxu0 %v12443
  %12498 = vmatpush.bf16.msra.mxu0 %v12441
  %12499 = vmatmul.bf16.gmra.mxu0 %v12388
  %v12500 = vpop.f32.mrf.mxu0
  %v12501 = vadd.f32 0.0, %v12500
  %v12502 = vpop.f32.mrf.mxu0
  %v12503 = vadd.f32 0.0, %v12502
  %12504 = vmatmul.bf16.gmra.mxu0 %v12389
  %v12505 = vpop.f32.mrf.mxu0
  %v12506 = vadd.f32 0.0, %v12505
  %v12507 = vpop.f32.mrf.mxu0
  %v12508 = vadd.f32 0.0, %v12507
  %12509 = vdwg.mxu0
  %v12510 = vadd.f32 %v12348, %v12482
  %v12511 = vadd.f32 %v12349, %v12501
  %v12512 = vadd.f32 %v12350, %v12484
  %v12513 = vadd.f32 %v12351, %v12503
  %v12514 = vadd.f32 %v12352, %v12487
  %v12515 = vadd.f32 %v12353, %v12506
  %v12516 = vadd.f32 %v12354, %v12489
  %v12517 = vadd.f32 %v12355, %v12508
  %v12518 = vld [vmem:[%s8] sm:$0x3]
  %v12519 = vld [vmem:[%s9] sm:$0x3]
  %v12520 = vmul.f32 %v12510, %v12510
  %v12521 = vmul.f32 %v12511, %v12511
  %v12522 = vmul.f32 %v12512, %v12512
  %v12523 = vmul.f32 %v12513, %v12513
  %v12524 = vmul.f32 %v12514, %v12514
  %v12525 = vmul.f32 %v12515, %v12515
  %v12526 = vmul.f32 %v12516, %v12516
  %v12527 = vmul.f32 %v12517, %v12517
  %vm12528 = vcmask 261120
  %v12530 = vsel %vm12528, 1.0, 0
  %12532 = vmatpush.msra.mxu0 0.0
  %12533 = vmatpush.msra.mxu0 0.0
  %12534 = vmatpush.msra.mxu0 0.0
  %12535 = vmatpush.msra.mxu0 0.0
  %12536 = vmatpush.msra.mxu0 0.0
  %12537 = vmatpush.msra.mxu0 0.0
  %12538 = vmatpush.msra.mxu0 0.0
  %12539 = vmatpush.msra.mxu0 0.0
  %12540 = vmatpush.msra.mxu0 0.0
  %12541 = vmatpush.msra.mxu0 0.0
  %12542 = vmatpush.msra.mxu0 0.0
  %12543 = vmatpush.msra.mxu0 0.0
  %12544 = vmatpush.msra.mxu0 %v12516
  %12545 = vmatpush.msra.mxu0 %v12514
  %12546 = vmatpush.msra.mxu0 %v12512
  %12547 = vmatpush.msra.mxu0 %v12510
  %12548 = vmatmul.f32.gmra.mxu0 %v12530
  %v12549 = vpop.f32.mrf.mxu0
  %v12550 = vadd.f32 0.0, %v12549
  %12551 = vdwg.mxu0
  %12552 = vmatpush.msra.mxu0 0.0
  %12553 = vmatpush.msra.mxu0 0.0
  %12554 = vmatpush.msra.mxu0 0.0
  %12555 = vmatpush.msra.mxu0 0.0
  %12556 = vmatpush.msra.mxu0 0.0
  %12557 = vmatpush.msra.mxu0 0.0
  %12558 = vmatpush.msra.mxu0 0.0
  %12559 = vmatpush.msra.mxu0 0.0
  %12560 = vmatpush.msra.mxu0 0.0
  %12561 = vmatpush.msra.mxu0 0.0
  %12562 = vmatpush.msra.mxu0 0.0
  %12563 = vmatpush.msra.mxu0 0.0
  %12564 = vmatpush.msra.mxu0 %v12517
  %12565 = vmatpush.msra.mxu0 %v12515
  %12566 = vmatpush.msra.mxu0 %v12513
  %12567 = vmatpush.msra.mxu0 %v12511
  %12568 = vmatmul.f32.gmra.mxu0 %v12530
  %v12569 = vpop.f32.mrf.mxu0
  %v12570 = vadd.f32 0.0, %v12569
  %12571 = vdwg.mxu0
  %12572 = vmatpush.msra.mxu0 0.0
  %12573 = vmatpush.msra.mxu0 0.0
  %12574 = vmatpush.msra.mxu0 0.0
  %12575 = vmatpush.msra.mxu0 0.0
  %12576 = vmatpush.msra.mxu0 0.0
  %12577 = vmatpush.msra.mxu0 0.0
  %12578 = vmatpush.msra.mxu0 0.0
  %12579 = vmatpush.msra.mxu0 0.0
  %12580 = vmatpush.msra.mxu0 0.0
  %12581 = vmatpush.msra.mxu0 0.0
  %12582 = vmatpush.msra.mxu0 0.0
  %12583 = vmatpush.msra.mxu0 0.0
  %12584 = vmatpush.msra.mxu0 %v12526
  %12585 = vmatpush.msra.mxu0 %v12524
  %12586 = vmatpush.msra.mxu0 %v12522
  %12587 = vmatpush.msra.mxu0 %v12520
  %12588 = vmatmul.f32.gmra.mxu0 %v12530
  %v12589 = vpop.f32.mrf.mxu0
  %v12590 = vadd.f32 0.0, %v12589
  %12591 = vdwg.mxu0
  %12592 = vmatpush.msra.mxu0 0.0
  %12593 = vmatpush.msra.mxu0 0.0
  %12594 = vmatpush.msra.mxu0 0.0
  %12595 = vmatpush.msra.mxu0 0.0
  %12596 = vmatpush.msra.mxu0 0.0
  %12597 = vmatpush.msra.mxu0 0.0
  %12598 = vmatpush.msra.mxu0 0.0
  %12599 = vmatpush.msra.mxu0 0.0
  %12600 = vmatpush.msra.mxu0 0.0
  %12601 = vmatpush.msra.mxu0 0.0
  %12602 = vmatpush.msra.mxu0 0.0
  %12603 = vmatpush.msra.mxu0 0.0
  %12604 = vmatpush.msra.mxu0 %v12527
  %12605 = vmatpush.msra.mxu0 %v12525
  %12606 = vmatpush.msra.mxu0 %v12523
  %12607 = vmatpush.msra.mxu0 %v12521
  %12608 = vmatmul.f32.gmra.mxu0 %v12530
  %v12609 = vpop.f32.mrf.mxu0
  %v12610 = vadd.f32 0.0, %v12609
  %12611 = vdwg.mxu0
  %v12612 = vmul.f32 %v12550, 0.03125
  %v12613 = vmul.f32 %v12570, 0.03125
  %v12614 = vmul.f32 %v12590, 0.03125
  %v12615 = vmul.f32 %v12610, 0.03125
  %v12616 = vmul.f32 %v12612, %v12612
  %v12617 = vmul.f32 %v12613, %v12613
  %v12618 = vsub.f32 %v12614, %v12616
  %v12619 = vsub.f32 %v12615, %v12617
  %v12620 = vadd.f32 %v12618, 1e-05
  %v12621 = vadd.f32 %v12619, 1e-05
  %v12622 = vrsqrt.pop %v12620
  %v12623 = vmul.f32 %v12622, %v12620
  %v12624 = vmul.f32 %v12623, %v12622
  %v12625 = vmul.f32 0.5, %v12624
  %v12626 = vsub.f32 1.5, %v12625
  %v12627 = vmul.f32 %v12622, %v12626
  %vm12628 = vweird.f32 %v12620
  %vm12629 = vweird.f32 %v12622
  %vm12630 = vmor %vm12628, %vm12629
  %v12631 = vsel %vm12630, %v12622, %v12627
  %v12632 = vrsqrt.pop %v12621
  %v12633 = vmul.f32 %v12632, %v12621
  %v12634 = vmul.f32 %v12633, %v12632
  %v12635 = vmul.f32 0.5, %v12634
  %v12636 = vsub.f32 1.5, %v12635
  %v12637 = vmul.f32 %v12632, %v12636
  %vm12638 = vweird.f32 %v12621
  %vm12639 = vweird.f32 %v12632
  %vm12640 = vmor %vm12638, %vm12639
  %v12641 = vsel %vm12640, %v12632, %v12637
  %v12644 = vrot.slane %v12641, 7
  %vm12645 = vcmask 1040384
  %v12646 = vsel %vm12645, %v12631, %v12644
  %v12648 = vmul.f32 %v12518, %v12646
  %v12650 = vperm.slane %v12648, 0
  %v12651 = vperm.slane %v12648, 1
  %v12654 = vmul.f32 %v12612, %v12650
  %v12655 = vmul.f32 %v12613, %v12651
  %v12658 = vrot.slane %v12655, 7
  %v12659 = vsel %vm12645, %v12654, %v12658
  %v12661 = vsub.f32 %v12519, %v12659
  %v12662 = vmul.f32 %v12510, %v12650
  %v12663 = vmul.f32 %v12511, %v12651
  %v12664 = vmul.f32 %v12512, %v12650
  %v12665 = vmul.f32 %v12513, %v12651
  %v12666 = vmul.f32 %v12514, %v12650
  %v12667 = vmul.f32 %v12515, %v12651
  %v12668 = vmul.f32 %v12516, %v12650
  %v12669 = vmul.f32 %v12517, %v12651
  %v12671 = vperm.slane %v12661, 0
  %v12672 = vperm.slane %v12661, 1
  %v12675 = vadd.f32 %v12662, %v12671
  %v12676 = vadd.f32 %v12663, %v12672
  %v12677 = vadd.f32 %v12664, %v12671
  %v12678 = vadd.f32 %v12665, %v12672
  %v12679 = vadd.f32 %v12666, %v12671
  %v12680 = vadd.f32 %v12667, %v12672
  %v12681 = vadd.f32 %v12668, %v12671
  %v12682 = vadd.f32 %v12669, %v12672
  %v12683 = vmul.f32 %v12675, 0.2
  %v12684 = vmul.f32 %v12676, 0.2
  %v12685 = vmul.f32 %v12677, 0.2
  %v12686 = vmul.f32 %v12678, 0.2
  %v12687 = vmul.f32 %v12679, 0.2
  %v12688 = vmul.f32 %v12680, 0.2
  %v12689 = vmul.f32 %v12681, 0.2
  %v12690 = vmul.f32 %v12682, 0.2
  %v12691 = vmax.f32 %v12675, %v12683
  %v12692 = vmax.f32 %v12676, %v12684
  %v12693 = vmax.f32 %v12677, %v12685
  %v12694 = vmax.f32 %v12678, %v12686
  %v12695 = vmax.f32 %v12679, %v12687
  %v12696 = vmax.f32 %v12680, %v12688
  %v12697 = vmax.f32 %v12681, %v12689
  %v12698 = vmax.f32 %v12682, %v12690
  %v12699 = vld [vmem:[%s10] sm:$0xff]
  %v12700 = vld [vmem:[%s10 + $0x8] sm:$0xff]
  %v12701 = vld [vmem:[%s10 + $0x10] sm:$0xff]
  %v12702 = vld [vmem:[%s10 + $0x18] sm:$0xff]
  %v12703 = vmul.f32 %v12691, %v12699
  %v12704 = vmul.f32 %v12692, %v12700
  %v12705 = vmul.f32 %v12693, %v12701
  %v12706 = vmul.f32 %v12694, %v12702
  %v12707 = vmul.f32 %v12695, %v12699
  %v12708 = vmul.f32 %v12696, %v12700
  %v12709 = vmul.f32 %v12697, %v12701
  %v12710 = vmul.f32 %v12698, %v12702
  %v12711 = vadd.f32 %v12703, %v12705
  %v12712 = vrot.slane %v12711, 4
  %v12713 = vadd.f32 %v12711, %v12712
  %v12714 = vrot.slane %v12713, 2
  %v12715 = vadd.f32 %v12713, %v12714
  %v12716 = vrot.slane %v12715, 1
  %v12717 = vadd.f32 %v12715, %v12716
  %v12718 = vadd.f32 %v12704, %v12706
  %v12719 = vrot.slane %v12718, 4
  %v12720 = vadd.f32 %v12718, %v12719
  %v12721 = vrot.slane %v12720, 2
  %v12722 = vadd.f32 %v12720, %v12721
  %v12723 = vrot.slane %v12722, 1
  %v12724 = vadd.f32 %v12722, %v12723
  %v12725 = vadd.f32 %v12707, %v12709
  %v12726 = vrot.slane %v12725, 4
  %v12727 = vadd.f32 %v12725, %v12726
  %v12728 = vrot.slane %v12727, 2
  %v12729 = vadd.f32 %v12727, %v12728
  %v12730 = vrot.slane %v12729, 1
  %v12731 = vadd.f32 %v12729, %v12730
  %v12732 = vadd.f32 %v12708, %v12710
  %v12733 = vrot.slane %v12732, 4
  %v12734 = vadd.f32 %v12732, %v12733
  %v12735 = vrot.slane %v12734, 2
  %v12736 = vadd.f32 %v12734, %v12735
  %v12737 = vrot.slane %v12736, 1
  %v12738 = vadd.f32 %v12736, %v12737
  %v12743 = vsel %vm2123, %v12731, %v12717
  %v12744 = vsel %vm2123, %v12738, %v12724
  %vm12747 = vcmask 1041408
  %v12748 = vsel %vm12747, %v12743, 0.0
  %v12749 = vsel %vm12747, %v12744, 0.0
  %v12750 = vadd.f32 %v12748, %v12749
  %12751 = vadd.xlane.f32.xlu0 %v12750
  %v12752 = vpop.xlane.xlu0 %12751
  %v12753 = vxor.u32 %v12752, 2147483648
  %v12754 = vmul.f32 %v12753, 1.442695
  %v12755 = vpow.pop %v12754
  %v12756 = vadd.f32 %v12755, 1.0
  %v12757 = vrcp.pop %v12756
  %v12758 = vmul.f32 %v12756, %v12757
  %v12759 = vsub.f32 1.0, %v12758
  %v12760 = vmul.f32 %v12757, %v12759
  %v12761 = vadd.f32 %v12757, %v12760
  %vm12762 = vweird.f32 %v12756
  %vm12763 = vweird.f32 %v12757
  %vm12764 = vmor %vm12762, %vm12763
  %v12765 = vsel %vm12764, %v12757, %v12761
  %v12766 = vand.u32 2147483647, %v12756
  %vm12767 = vcmp.eq.f32.partialorder %v12766, 8.507059e+37
  %v12768 = vand.u32 %v12756, 2147483648
  %v12769 = vor.u32 1.1754944e-38, %v12768
  %v12770 = vsel %vm12767, %v12769, %v12765
  %v12771 = vmul.f32 1.0, %v12770
  %vm12772 = vcmask 1024
  %12773 = vst.msk [vmem:[%s11] sm:$0x3] %vm12772, %v12771
  // Predicated region
  $region46: #{dcgan_discriminator.1} parent=0 // pred_check
    _
  $region47: #{dcgan_discriminator.1} parent=0 // pred_check_branch
    %12775 = sbr.rel (0) target = $region49
  $region48: #{dcgan_discriminator.1} parent=0 // pred_region
    _
  $region49: #{dcgan_discriminator.1} parent=0 // pred_fallthru
    _
  // Predicated region
  $region50: #{dcgan_discriminator.1} parent=0 // pred_check
    _
  $region51: #{dcgan_discriminator.1} parent=0 // pred_check_branch
    %12777 = sbr.rel (0) target = $region53
  $region52: #{dcgan_discriminator.1} parent=0 // pred_region
    _
  $region53: #{dcgan_discriminator.1} parent=0 // pred_fallthru
    _

</llo_original>
